<compile_context>
chip_gen: v7x
topology: tpu7x:2x2x1
jax: 0.10.0
libtpu: 0.0.40
codegen_flags: <defaults>
</compile_context>

<pallas_src>
import jax
import jax.numpy as jnp
from jax.experimental import pallas as pl
from jax.experimental.pallas import tpu as pltpu

# Make the pure-JAX reference use full-f32 matmuls so it matches the kernel's
# f32 MXU accumulation.
jax.config.update("jax_default_matmul_precision", "highest")

# ----------------------------- synthetic config ------------------------------
HIDDEN_DIM = 32      # MODEL.ROI_RELATION_HEAD.CONTEXT_HIDDEN_DIM
POOLING_DIM = 64     # MODEL.ROI_RELATION_HEAD.CONTEXT_POOLING_DIM == MLP_HEAD_DIM
NUM_OBJ_CLS = 10     # MODEL.ROI_BOX_HEAD.NUM_CLASSES
NUM_REL_CLS = 16     # MODEL.ROI_RELATION_HEAD.NUM_CLASSES
SPT_DIM = 32         # get_box_pair_info output width

R_PAD = 128                          # relation-class dim padded to full lane width
NUM_PAIR = NUM_OBJ_CLS * NUM_OBJ_CLS
NUM_PAIR_PAD = 128                   # padded pair-class count (K of the one-hot matmul)
MAX_TR = 2048                        # max row tile
MIN_TR = 128                         # min row tile

assert NUM_REL_CLS <= R_PAD and POOLING_DIM <= R_PAD
assert NUM_PAIR <= NUM_PAIR_PAD
assert 2 * HIDDEN_DIM + POOLING_DIM == 128   # packed [ctx_rep | union] is exactly 128 lanes


# ------------------------------ Pallas kernel --------------------------------
def _rel_logits_kernel(xu_ref, bbox_ref, idx_ref,
                       wpc_ref, ws1_ref, ws2_ref, wctx_ref, wgv_ref,
                       frq_ref, bias_ref, out_ref):
    f32 = jnp.float32
    ctx_w = 2 * HIDDEN_DIM

    # bias slab (8, 128): one bias vector per row, lane-0 aligned
    b_ctx = bias_ref[0:1, :]                      # ctx_compress bias (padded to R_PAD)
    b_pc = bias_ref[1:2, 0:POOLING_DIM]           # post_cat bias
    b_s1 = bias_ref[2:3, 0:HIDDEN_DIM]            # spt_emb[0] bias
    b_s2 = bias_ref[3:4, 0:POOLING_DIM]           # spt_emb[2] bias

    xu = xu_ref[...]                              # (TR, 128) = [ctx_rep | union_features]
    ctx_in = xu[:, :ctx_w]                        # (TR, 64)
    union = xu[:, ctx_w:]                         # (TR, 64)

    # post_ctx_rep = ReLU(post_cat(ctx_rep)) * spt_emb(pair_bbox)
    post_ctx = jnp.maximum(
        jnp.dot(ctx_in, wpc_ref[...], preferred_element_type=f32) + b_pc, 0.0)
    spt_h = jnp.maximum(
        jnp.dot(bbox_ref[...], ws1_ref[...], preferred_element_type=f32) + b_s1, 0.0)
    spt = jnp.maximum(
        jnp.dot(spt_h, ws2_ref[...], preferred_element_type=f32) + b_s2, 0.0)
    post_ctx = post_ctx * spt

    # ctx_compress head (K=64, N=128)
    ctx_d = jnp.dot(post_ctx, wctx_ref[...], preferred_element_type=f32) + b_ctx

    # ctx_gate_fc + vis_compress heads fused into ONE K=128 matmul on [post_ctx | union]
    gv_in = jnp.concatenate([post_ctx, union], axis=-1)          # (TR, 128)
    gv_d = jnp.dot(gv_in, wgv_ref[...], preferred_element_type=f32)

    # frequency bias (index_with_labels): in-kernel one-hot gather from the
    # VMEM-resident table (vis_compress/ctx_gate biases already folded into rows).
    idx = idx_ref[...]                                            # (TR, 1) int32
    classes = jax.lax.broadcasted_iota(jnp.int32, (idx.shape[0], NUM_PAIR_PAD), 1)
    onehot = jnp.where(idx == classes, 1.0, 0.0)                  # (TR, NUM_PAIR_PAD) f32
    frq_d = jnp.dot(onehot, frq_ref[...], preferred_element_type=f32)

    # gate fusion: ctx * sigmoid(vis + frq + gate)
    out_ref[...] = ctx_d * jax.nn.sigmoid(gv_d + frq_d)


# ------------------------------ pallas wrapper --------------------------------
def _pick_row_tile(n_rel):
    # Keep >=2 grid steps when possible (v7x has 2 TensorCores); cap for VMEM;
    # row tile must be a multiple of 8 sublanes.
    half = (n_rel + 1) // 2
    tr = ((max(half, 1) + 7) // 8) * 8
    return max(MIN_TR, min(tr, MAX_TR))


def rel_logits_pallas(ctx_rep, pair_bbox, union_features, frq_idx, packed):
    n_rel = ctx_rep.shape[0]
    tr = _pick_row_tile(n_rel)
    n_pad = pl.cdiv(n_rel, tr) * tr

    def pad_rows(x):
        return jnp.pad(x, ((0, n_pad - n_rel), (0, 0)))

    # one lane-dense 128-wide row stream: [ctx_rep(64) | union(64)]
    xu_p = pad_rows(jnp.concatenate([ctx_rep, union_features], axis=1).astype(jnp.float32))
    bbox_p = pad_rows(pair_bbox.astype(jnp.float32))
    idx_p = pad_rows(frq_idx.astype(jnp.int32)[:, None])

    weights = [packed["post_cat_w"], packed["spt1_w"], packed["spt2_w"],
               packed["w_ctx"], packed["w_gv"], packed["frq_table_vb"],
               packed["bias_slab"]]

    def row_spec(width):
        return pl.BlockSpec((tr, width), lambda i: (i, 0))

    in_specs = [row_spec(128), row_spec(SPT_DIM), row_spec(1)]
    in_specs += [pl.BlockSpec(w.shape, lambda i: (0, 0)) for w in weights]

    flops_row = 2 * (2 * HIDDEN_DIM * POOLING_DIM + SPT_DIM * HIDDEN_DIM
                     + HIDDEN_DIM * POOLING_DIM + POOLING_DIM * R_PAD
                     + 128 * R_PAD + NUM_PAIR_PAD * R_PAD)
    bytes_row = 4 * (128 + SPT_DIM + 1 + R_PAD)
    w_bytes = sum(int(w.size) * 4 for w in weights)
    cost = pl.CostEstimate(flops=flops_row * n_pad,
                           transcendentals=n_pad * R_PAD,
                           bytes_accessed=bytes_row * n_pad + w_bytes)

    out = pl.pallas_call(
        _rel_logits_kernel,
        out_shape=jax.ShapeDtypeStruct((n_pad, R_PAD), jnp.float32),
        grid=(n_pad // tr,),
        in_specs=in_specs,
        out_specs=pl.BlockSpec((tr, R_PAD), lambda i: (i, 0)),
        compiler_params=pltpu.CompilerParams(
            dimension_semantics=("parallel",),
            vmem_limit_bytes=32 * 1024 * 1024),
        cost_estimate=cost,
    )(xu_p, bbox_p, idx_p, *weights)

    # padded rows / padded relation classes are garbage -> slice them off here
    return out[:n_rel, :NUM_REL_CLS]


# ------------------------------ glue (plain JAX) --------------------------------
def get_box_info(boxes, need_norm=True, img_size=None):
    # boxes: [N, 4] (x1,y1,x2,y2) -> [N, 8] (x1,y1,x2,y2,cx,cy,w,h)
    wh = boxes[:, 2:4] - boxes[:, 0:2] + 1.0
    center = boxes[:, 0:2] + 0.5 * wh
    info = jnp.concatenate([boxes, center, wh], axis=1)
    if need_norm:
        info = info / jnp.maximum(jnp.maximum(img_size[0], img_size[1]), 100.0)
    return info


def get_box_pair_info(b1, b2):
    # b1, b2: [N, 8] normalized box infos -> [N, 32]
    ub = jnp.stack(
        [jnp.minimum(b1[:, 0], b2[:, 0]), jnp.minimum(b1[:, 1], b2[:, 1]),
         jnp.maximum(b1[:, 2], b2[:, 2]), jnp.maximum(b1[:, 3], b2[:, 3])], axis=1)
    union_info = get_box_info(ub, need_norm=False)
    ib = jnp.stack(
        [jnp.maximum(b1[:, 0], b2[:, 0]), jnp.maximum(b1[:, 1], b2[:, 1]),
         jnp.minimum(b1[:, 2], b2[:, 2]), jnp.minimum(b1[:, 3], b2[:, 3])], axis=1)
    inter_info = get_box_info(ib, need_norm=False)
    invalid = jnp.logical_or(ib[:, 2] < ib[:, 0], ib[:, 3] < ib[:, 1])
    inter_info = jnp.where(invalid[:, None], 0.0, inter_info)
    return jnp.concatenate([b1, b2, union_info, inter_info], axis=1)


def _split_rows(x, sizes):
    out, off = [], 0
    for s in sizes:
        out.append(x[off:off + s])
        off += s
    return out


def causal_predictor_forward(params, packed, obj_dists, edge_ctx, boxes, img_size,
                             pair_idx_global, union_features, num_objs, num_rels):
    """Eval forward of CausalAnalysisPredictor (effect_analysis=False)."""
    # TODO(synk): real obj_preds come from LSTMContext's sequential label decoder.
    obj_preds = jnp.argmax(obj_dists, axis=-1)

    # post_emb: tiny (n_obj, H) @ (H, 2H) GEMM; left to XLA (fuses with gathers below).
    edge_rep = edge_ctx @ params["post_emb_w"] + params["post_emb_b"]
    head_rep = edge_rep[:, :HIDDEN_DIM]
    tail_rep = edge_rep[:, HIDDEN_DIM:]

    h_idx = pair_idx_global[:, 0]
    t_idx = pair_idx_global[:, 1]

    # ctx_rep = cat(head_rep[pi0], tail_rep[pi1])
    ctx_rep = jnp.concatenate(
        [jnp.take(head_rep, h_idx, axis=0), jnp.take(tail_rep, t_idx, axis=0)], axis=1)

    # pair_pred -> frequency-bias row index (the row gather itself happens in-kernel)
    pair_pred = jnp.stack(
        [jnp.take(obj_preds, h_idx), jnp.take(obj_preds, t_idx)], axis=1)
    frq_idx = pair_pred[:, 0] * NUM_OBJ_CLS + pair_pred[:, 1]

    # pair bbox spatial features
    obj_box_info = get_box_info(boxes, need_norm=True, img_size=img_size)
    pair_bbox = get_box_pair_info(
        jnp.take(obj_box_info, h_idx, axis=0), jnp.take(obj_box_info, t_idx, axis=0))

    # fused hot path: post_cat + spt_emb + gate/vis/ctx heads + freq bias (one Pallas kernel)
    rel_dists = rel_logits_pallas(ctx_rep, pair_bbox, union_features, frq_idx, packed)

    obj_dist_list = _split_rows(obj_dists, num_objs)
    rel_dist_list = _split_rows(rel_dists, num_rels)
    add_losses = {}
    return obj_dist_list, rel_dist_list, add_losses


# pure-JAX reference of the kernel path (for correctness check)
def _reference_rel_logits(ctx_rep, pair_bbox, union_features, frq_dists, p):
    post_ctx = jax.nn.relu(ctx_rep @ p["post_cat_w"] + p["post_cat_b"])
    spt = jax.nn.relu(
        jax.nn.relu(pair_bbox @ p["spt1_w"] + p["spt1_b"]) @ p["spt2_w"] + p["spt2_b"])
    post_ctx = post_ctx * spt
    ctx_d = post_ctx @ p["ctx_compress_w"] + p["ctx_compress_b"]
    vis_d = union_features @ p["vis_compress_w"] + p["vis_compress_b"]
    gate_d = post_ctx @ p["ctx_gate_w"] + p["ctx_gate_b"]
    return ctx_d * jax.nn.sigmoid(vis_d + frq_dists + gate_d)


# ------------------------------ param init & packing --------------------------------
def init_params(key):
    ks = jax.random.split(key, 16)

    def xavier(k, fin, fout):
        lim = (6.0 / (fin + fout)) ** 0.5
        return jax.random.uniform(k, (fin, fout), jnp.float32, -lim, lim)

    p = {}
    p["post_emb_w"] = 10.0 * (1.0 / HIDDEN_DIM) ** 0.5 * jax.random.normal(
        ks[0], (HIDDEN_DIM, 2 * HIDDEN_DIM), jnp.float32)
    p["post_emb_b"] = jnp.zeros((1, 2 * HIDDEN_DIM), jnp.float32)
    p["post_cat_w"] = xavier(ks[1], 2 * HIDDEN_DIM, POOLING_DIM)
    p["post_cat_b"] = 0.01 * jax.random.normal(ks[2], (1, POOLING_DIM), jnp.float32)
    p["spt1_w"] = xavier(ks[3], SPT_DIM, HIDDEN_DIM)
    p["spt1_b"] = 0.01 * jax.random.normal(ks[4], (1, HIDDEN_DIM), jnp.float32)
    p["spt2_w"] = xavier(ks[5], HIDDEN_DIM, POOLING_DIM)
    p["spt2_b"] = 0.01 * jax.random.normal(ks[6], (1, POOLING_DIM), jnp.float32)
    p["ctx_compress_w"] = xavier(ks[7], POOLING_DIM, NUM_REL_CLS)
    p["ctx_compress_b"] = 0.01 * jax.random.normal(ks[8], (1, NUM_REL_CLS), jnp.float32)
    p["vis_compress_w"] = xavier(ks[9], POOLING_DIM, NUM_REL_CLS)
    p["vis_compress_b"] = 0.01 * jax.random.normal(ks[10], (1, NUM_REL_CLS), jnp.float32)
    p["ctx_gate_w"] = xavier(ks[11], POOLING_DIM, NUM_REL_CLS)
    p["ctx_gate_b"] = 0.01 * jax.random.normal(ks[12], (1, NUM_REL_CLS), jnp.float32)
    p["freq_bias"] = 0.1 * jax.random.normal(
        ks[13], (NUM_PAIR, NUM_REL_CLS), jnp.float32)
    return p


def _pad_cols(x, width):
    return jnp.pad(x, ((0, 0), (0, width - x.shape[1])))


def pack_params(p):
    """Pack / pad params into the lane-dense, fused layout the kernel consumes."""
    # ctx_compress head padded to R_PAD lanes
    w_ctx = _pad_cols(p["ctx_compress_w"], R_PAD)                              # (P, 128)
    # merged gate+vis head: rows 0..P-1 act on post_ctx, rows P..2P-1 on union
    w_gv = jnp.concatenate([_pad_cols(p["ctx_gate_w"], R_PAD),
                            _pad_cols(p["vis_compress_w"], R_PAD)], axis=0)    # (128, 128)

    # bias slab (8, R_PAD): each bias vector on its own lane-0-aligned row
    rows = [_pad_cols(p["ctx_compress_b"], R_PAD),
            _pad_cols(p["post_cat_b"], R_PAD),
            _pad_cols(p["spt1_b"], R_PAD),
            _pad_cols(p["spt2_b"], R_PAD)]
    bias_slab = jnp.concatenate(
        rows + [jnp.zeros((8 - len(rows), R_PAD), jnp.float32)], axis=0)

    # frequency-bias table padded to (NUM_PAIR_PAD, R_PAD), vis/gate biases folded in
    frq = (_pad_cols(p["freq_bias"], R_PAD)
           + _pad_cols(p["vis_compress_b"], R_PAD)
           + _pad_cols(p["ctx_gate_b"], R_PAD))
    frq_table_vb = jnp.pad(frq, ((0, NUM_PAIR_PAD - NUM_PAIR), (0, 0)))

    return {"post_cat_w": p["post_cat_w"], "spt1_w": p["spt1_w"], "spt2_w": p["spt2_w"],
            "w_ctx": w_ctx, "w_gv": w_gv, "frq_table_vb": frq_table_vb,
            "bias_slab": bias_slab}


# ------------------------------ main --------------------------------
if __name__ == "__main__":
    key = jax.random.PRNGKey(0)
    params = init_params(key)
    packed = pack_params(params)

    num_objs = [10, 14]          # objects per image
    num_rels = [100, 120]        # relation pairs per image (ragged 220 -> 2 row tiles)
    n_obj = sum(num_objs)
    n_rel = sum(num_rels)

    kd = jax.random.split(jax.random.PRNGKey(0), 8)
    obj_dists = jax.random.normal(kd[0], (n_obj, NUM_OBJ_CLS), jnp.float32)
    edge_ctx = jax.random.normal(kd[1], (n_obj, HIDDEN_DIM), jnp.float32)
    union_features = jax.random.normal(kd[2], (n_rel, POOLING_DIM), jnp.float32)

    # object boxes (x1,y1,x2,y2) inside a 320x240 image
    xy = jax.random.uniform(kd[3], (n_obj, 2), jnp.float32, 0.0, 200.0)
    wh = jax.random.uniform(kd[4], (n_obj, 2), jnp.float32, 10.0, 100.0)
    boxes = jnp.concatenate([xy, xy + wh], axis=1)
    img_size = (320.0, 240.0)

    # per-image local pair indices -> global indices (mirrors the per-image split/loop)
    pair_idx_list = []
    obj_offset = 0
    for i, (no, nr) in enumerate(zip(num_objs, num_rels)):
        local = jax.random.randint(jax.random.fold_in(kd[5], i), (nr, 2), 0, no)
        pair_idx_list.append(local + obj_offset)
        obj_offset += no
    pair_idx_global = jnp.concatenate(pair_idx_list, axis=0)

    obj_dist_list, rel_dist_list, add_losses = causal_predictor_forward(
        params, packed, obj_dists, edge_ctx, boxes, img_size,
        pair_idx_global, union_features, num_objs, num_rels)
    rel_dists = jnp.concatenate(rel_dist_list, axis=0)
    jax.block_until_ready(rel_dists)

    # pure-JAX reference for the fused kernel path
    obj_preds = jnp.argmax(obj_dists, axis=-1)
    edge_rep_ref = edge_ctx @ params["post_emb_w"] + params["post_emb_b"]
    head_ref, tail_ref = edge_rep_ref[:, :HIDDEN_DIM], edge_rep_ref[:, HIDDEN_DIM:]
    h_idx, t_idx = pair_idx_global[:, 0], pair_idx_global[:, 1]
    ctx_rep_ref = jnp.concatenate(
        [jnp.take(head_ref, h_idx, axis=0), jnp.take(tail_ref, t_idx, axis=0)], axis=1)
    pair_pred = jnp.stack([jnp.take(obj_preds, h_idx), jnp.take(obj_preds, t_idx)], axis=1)
    frq_ref = jnp.take(params["freq_bias"],
                       pair_pred[:, 0] * NUM_OBJ_CLS + pair_pred[:, 1], axis=0)
    obj_box_info = get_box_info(boxes, need_norm=True, img_size=img_size)
    pair_bbox_ref = get_box_pair_info(
        jnp.take(obj_box_info, h_idx, axis=0), jnp.take(obj_box_info, t_idx, axis=0))
    rel_ref = _reference_rel_logits(ctx_rep_ref, pair_bbox_ref, union_features,
                                    frq_ref, params)

    assert rel_dists.shape == (n_rel, NUM_REL_CLS)
    assert jnp.allclose(rel_dists, rel_ref, rtol=1e-3, atol=1e-3)
    print("KERNEL_OK")
</pallas_src>

<mosaic_0001>
module attributes {stable_mosaic.version = 11 : i64} {
  func.func @_rel_logits_kernel(%arg0: i32, %arg1: memref<128x128xf32, #tpu.memory_space<vmem>>, %arg2: memref<128x32xf32, #tpu.memory_space<vmem>>, %arg3: memref<128x1xi32, #tpu.memory_space<vmem>>, %arg4: memref<64x64xf32, #tpu.memory_space<vmem>>, %arg5: memref<32x32xf32, #tpu.memory_space<vmem>>, %arg6: memref<32x64xf32, #tpu.memory_space<vmem>>, %arg7: memref<64x128xf32, #tpu.memory_space<vmem>>, %arg8: memref<128x128xf32, #tpu.memory_space<vmem>>, %arg9: memref<128x128xf32, #tpu.memory_space<vmem>>, %arg10: memref<8x128xf32, #tpu.memory_space<vmem>>, %arg11: memref<128x128xf32, #tpu.memory_space<vmem>>) attributes {dimension_semantics = [#tpu.dimension_semantics<parallel>], iteration_bounds = array<i64: 2>, scalar_prefetch = 0 : i64, scratch_operands = 0 : i64, tpu.core_type = #tpu.core_type<tc>, window_params = [{transform_indices = @transform_0, window_bounds = array<i64: 128, 128>}, {transform_indices = @transform_1, window_bounds = array<i64: 128, 32>}, {transform_indices = @transform_2, window_bounds = array<i64: 128, 1>}, {pipeline_mode = #tpu.pipeline_mode<synchronous>, transform_indices = @transform_3, window_bounds = array<i64: 64, 64>}, {pipeline_mode = #tpu.pipeline_mode<synchronous>, transform_indices = @transform_4, window_bounds = array<i64: 32, 32>}, {pipeline_mode = #tpu.pipeline_mode<synchronous>, transform_indices = @transform_5, window_bounds = array<i64: 32, 64>}, {pipeline_mode = #tpu.pipeline_mode<synchronous>, transform_indices = @transform_6, window_bounds = array<i64: 64, 128>}, {pipeline_mode = #tpu.pipeline_mode<synchronous>, transform_indices = @transform_7, window_bounds = array<i64: 128, 128>}, {pipeline_mode = #tpu.pipeline_mode<synchronous>, transform_indices = @transform_8, window_bounds = array<i64: 128, 128>}, {pipeline_mode = #tpu.pipeline_mode<synchronous>, transform_indices = @transform_9, window_bounds = array<i64: 8, 128>}, {transform_indices = @transform_10, window_bounds = array<i64: 128, 128>}]} {
    %c0 = arith.constant 0 : index
    %c0_0 = arith.constant 0 : index
    %0 = vector.load %arg10[%c0, %c0_0] : memref<8x128xf32, #tpu.memory_space<vmem>>, vector<1x128xf32>
    %c1 = arith.constant 1 : index
    %c0_1 = arith.constant 0 : index
    %1 = vector.load %arg10[%c1, %c0_1] : memref<8x128xf32, #tpu.memory_space<vmem>>, vector<1x64xf32>
    %c2 = arith.constant 2 : index
    %c0_2 = arith.constant 0 : index
    %2 = vector.load %arg10[%c2, %c0_2] : memref<8x128xf32, #tpu.memory_space<vmem>>, vector<1x32xf32>
    %c3 = arith.constant 3 : index
    %c0_3 = arith.constant 0 : index
    %3 = vector.load %arg10[%c3, %c0_3] : memref<8x128xf32, #tpu.memory_space<vmem>>, vector<1x64xf32>
    %c0_4 = arith.constant 0 : index
    %c0_5 = arith.constant 0 : index
    %4 = vector.load %arg1[%c0_4, %c0_5] : memref<128x128xf32, #tpu.memory_space<vmem>>, vector<128x128xf32>
    %5 = vector.extract_strided_slice %4 {offsets = [0, 0], sizes = [128, 64], strides = [1, 1]} : vector<128x128xf32> to vector<128x64xf32>
    %6 = vector.extract_strided_slice %4 {offsets = [0, 64], sizes = [128, 64], strides = [1, 1]} : vector<128x128xf32> to vector<128x64xf32>
    %c0_6 = arith.constant 0 : index
    %c0_7 = arith.constant 0 : index
    %7 = vector.load %arg4[%c0_6, %c0_7] : memref<64x64xf32, #tpu.memory_space<vmem>>, vector<64x64xf32>
    %cst = arith.constant dense<0.000000e+00> : vector<128x64xf32>
    %8 = tpu.matmul %5, %7, %cst {dimension_numbers = #tpu.dot_dimension_numbers<[1], [0], [0], [1], [0, 0, 1, 1], [], []>, precision = #tpu.contract_precision<fp32>} : vector<128x64xf32>, vector<64x64xf32>, vector<128x64xf32> -> vector<128x64xf32>
    %9 = vector.broadcast %1 : vector<1x64xf32> to vector<128x64xf32>
    %10 = arith.addf %8, %9 : vector<128x64xf32>
    %cst_8 = arith.constant 0.000000e+00 : f32
    %11 = vector.broadcast %cst_8 : f32 to vector<128x64xf32>
    %12 = arith.maximumf %10, %11 : vector<128x64xf32>
    %c0_9 = arith.constant 0 : index
    %c0_10 = arith.constant 0 : index
    %13 = vector.load %arg2[%c0_9, %c0_10] : memref<128x32xf32, #tpu.memory_space<vmem>>, vector<128x32xf32>
    %c0_11 = arith.constant 0 : index
    %c0_12 = arith.constant 0 : index
    %14 = vector.load %arg5[%c0_11, %c0_12] : memref<32x32xf32, #tpu.memory_space<vmem>>, vector<32x32xf32>
    %cst_13 = arith.constant dense<0.000000e+00> : vector<128x32xf32>
    %15 = tpu.matmul %13, %14, %cst_13 {dimension_numbers = #tpu.dot_dimension_numbers<[1], [0], [0], [1], [0, 0, 1, 1], [], []>, precision = #tpu.contract_precision<fp32>} : vector<128x32xf32>, vector<32x32xf32>, vector<128x32xf32> -> vector<128x32xf32>
    %16 = vector.broadcast %2 : vector<1x32xf32> to vector<128x32xf32>
    %17 = arith.addf %15, %16 : vector<128x32xf32>
    %cst_14 = arith.constant 0.000000e+00 : f32
    %18 = vector.broadcast %cst_14 : f32 to vector<128x32xf32>
    %19 = arith.maximumf %17, %18 : vector<128x32xf32>
    %c0_15 = arith.constant 0 : index
    %c0_16 = arith.constant 0 : index
    %20 = vector.load %arg6[%c0_15, %c0_16] : memref<32x64xf32, #tpu.memory_space<vmem>>, vector<32x64xf32>
    %cst_17 = arith.constant dense<0.000000e+00> : vector<128x64xf32>
    %21 = tpu.matmul %19, %20, %cst_17 {dimension_numbers = #tpu.dot_dimension_numbers<[1], [0], [0], [1], [0, 0, 1, 1], [], []>, precision = #tpu.contract_precision<fp32>} : vector<128x32xf32>, vector<32x64xf32>, vector<128x64xf32> -> vector<128x64xf32>
    %22 = vector.broadcast %3 : vector<1x64xf32> to vector<128x64xf32>
    %23 = arith.addf %21, %22 : vector<128x64xf32>
    %cst_18 = arith.constant 0.000000e+00 : f32
    %24 = vector.broadcast %cst_18 : f32 to vector<128x64xf32>
    %25 = arith.maximumf %23, %24 : vector<128x64xf32>
    %26 = arith.mulf %12, %25 : vector<128x64xf32>
    %c0_19 = arith.constant 0 : index
    %c0_20 = arith.constant 0 : index
    %27 = vector.load %arg7[%c0_19, %c0_20] : memref<64x128xf32, #tpu.memory_space<vmem>>, vector<64x128xf32>
    %cst_21 = arith.constant dense<0.000000e+00> : vector<128x128xf32>
    %28 = tpu.matmul %26, %27, %cst_21 {dimension_numbers = #tpu.dot_dimension_numbers<[1], [0], [0], [1], [0, 0, 1, 1], [], []>, precision = #tpu.contract_precision<fp32>} : vector<128x64xf32>, vector<64x128xf32>, vector<128x128xf32> -> vector<128x128xf32>
    %29 = vector.broadcast %0 : vector<1x128xf32> to vector<128x128xf32>
    %30 = arith.addf %28, %29 : vector<128x128xf32>
    %31 = tpu.concatenate %26, %6 in 1 : vector<128x64xf32>, vector<128x64xf32> -> vector<128x128xf32>
    %c0_22 = arith.constant 0 : index
    %c0_23 = arith.constant 0 : index
    %32 = vector.load %arg8[%c0_22, %c0_23] : memref<128x128xf32, #tpu.memory_space<vmem>>, vector<128x128xf32>
    %cst_24 = arith.constant dense<0.000000e+00> : vector<128x128xf32>
    %33 = tpu.matmul %31, %32, %cst_24 {dimension_numbers = #tpu.dot_dimension_numbers<[1], [0], [0], [1], [0, 0, 1, 1], [], []>, precision = #tpu.contract_precision<fp32>} : vector<128x128xf32>, vector<128x128xf32>, vector<128x128xf32> -> vector<128x128xf32>
    %c0_25 = arith.constant 0 : index
    %c0_26 = arith.constant 0 : index
    %34 = vector.load %arg3[%c0_25, %c0_26] : memref<128x1xi32, #tpu.memory_space<vmem>>, vector<128x1xi32>
    %35 = tpu.iota {dimensions = array<i32: 1>} : vector<128x128xi32>
    %36 = vector.broadcast %34 : vector<128x1xi32> to vector<128x128xi32>
    %37 = arith.cmpi eq, %36, %35 : vector<128x128xi32>
    %cst_27 = arith.constant 1.000000e+00 : f32
    %cst_28 = arith.constant 0.000000e+00 : f32
    %38 = vector.broadcast %cst_27 : f32 to vector<128x128xf32>
    %39 = vector.broadcast %cst_28 : f32 to vector<128x128xf32>
    %40 = arith.select %37, %38, %39 : vector<128x128xi1>, vector<128x128xf32>
    %c0_29 = arith.constant 0 : index
    %c0_30 = arith.constant 0 : index
    %41 = vector.load %arg9[%c0_29, %c0_30] : memref<128x128xf32, #tpu.memory_space<vmem>>, vector<128x128xf32>
    %cst_31 = arith.constant dense<0.000000e+00> : vector<128x128xf32>
    %42 = tpu.matmul %40, %41, %cst_31 {dimension_numbers = #tpu.dot_dimension_numbers<[1], [0], [0], [1], [0, 0, 1, 1], [], []>, precision = #tpu.contract_precision<fp32>} : vector<128x128xf32>, vector<128x128xf32>, vector<128x128xf32> -> vector<128x128xf32>
    %43 = arith.addf %33, %42 : vector<128x128xf32>
    %44 = arith.negf %43 : vector<128x128xf32>
    %45 = math.exp %44 : vector<128x128xf32>
    %cst_32 = arith.constant 1.000000e+00 : f32
    %46 = vector.broadcast %cst_32 : f32 to vector<128x128xf32>
    %47 = arith.addf %46, %45 : vector<128x128xf32>
    %48 = arith.divf %46, %47 : vector<128x128xf32>
    %49 = arith.mulf %30, %48 : vector<128x128xf32>
    %c0_33 = arith.constant 0 : index
    %c0_34 = arith.constant 0 : index
    %50 = vector.load %arg11[%c0_33, %c0_34] : memref<128x128xf32, #tpu.memory_space<vmem>>, vector<128x128xf32>
    tpu.vector_store %arg11[%c0_33, %c0_34], %49 {strides = array<i32>} : memref<128x128xf32, #tpu.memory_space<vmem>>, vector<128x128xf32>,
    return
  }
  func.func @transform_0(%arg0: i32) -> (i32, i32) {
    %c0_i32 = arith.constant 0 : i32
    %c0_i32_0 = arith.constant 0 : i32
    return %arg0, %c0_i32 : i32, i32
  }
  func.func @transform_1(%arg0: i32) -> (i32, i32) {
    %c0_i32 = arith.constant 0 : i32
    %c0_i32_0 = arith.constant 0 : i32
    return %arg0, %c0_i32 : i32, i32
  }
  func.func @transform_2(%arg0: i32) -> (i32, i32) {
    %c0_i32 = arith.constant 0 : i32
    %c0_i32_0 = arith.constant 0 : i32
    return %arg0, %c0_i32 : i32, i32
  }
  func.func @transform_3(%arg0: i32) -> (i32, i32) {
    %c0_i32 = arith.constant 0 : i32
    %c0_i32_0 = arith.constant 0 : i32
    %c0_i32_1 = arith.constant 0 : i32
    return %c0_i32, %c0_i32_0 : i32, i32
  }
  func.func @transform_4(%arg0: i32) -> (i32, i32) {
    %c0_i32 = arith.constant 0 : i32
    %c0_i32_0 = arith.constant 0 : i32
    %c0_i32_1 = arith.constant 0 : i32
    return %c0_i32, %c0_i32_0 : i32, i32
  }
  func.func @transform_5(%arg0: i32) -> (i32, i32) {
    %c0_i32 = arith.constant 0 : i32
    %c0_i32_0 = arith.constant 0 : i32
    %c0_i32_1 = arith.constant 0 : i32
    return %c0_i32, %c0_i32_0 : i32, i32
  }
  func.func @transform_6(%arg0: i32) -> (i32, i32) {
    %c0_i32 = arith.constant 0 : i32
    %c0_i32_0 = arith.constant 0 : i32
    %c0_i32_1 = arith.constant 0 : i32
    return %c0_i32, %c0_i32_0 : i32, i32
  }
  func.func @transform_7(%arg0: i32) -> (i32, i32) {
    %c0_i32 = arith.constant 0 : i32
    %c0_i32_0 = arith.constant 0 : i32
    %c0_i32_1 = arith.constant 0 : i32
    return %c0_i32, %c0_i32_0 : i32, i32
  }
  func.func @transform_8(%arg0: i32) -> (i32, i32) {
    %c0_i32 = arith.constant 0 : i32
    %c0_i32_0 = arith.constant 0 : i32
    %c0_i32_1 = arith.constant 0 : i32
    return %c0_i32, %c0_i32_0 : i32, i32
  }
  func.func @transform_9(%arg0: i32) -> (i32, i32) {
    %c0_i32 = arith.constant 0 : i32
    %c0_i32_0 = arith.constant 0 : i32
    %c0_i32_1 = arith.constant 0 : i32
    return %c0_i32, %c0_i32_0 : i32, i32
  }
  func.func @transform_10(%arg0: i32) -> (i32, i32) {
    %c0_i32 = arith.constant 0 : i32
    %c0_i32_0 = arith.constant 0 : i32
    return %arg0, %c0_i32 : i32, i32
  }
}

</mosaic_0001>

<llo_original>
// kernel: tpu_custom_call.1
$region0: #{tpu_custom_call.1}
  #allocation0 [shape = 'u32[]', space=smem, size = 0x4, offset = 0x4, fixed_abs, tag = 'smem constant byte address 0x4 - core index']
  #allocation1 [shape = 'u32[144,128]{1,0:T(1,128)}', space=vmem, size = 0x12000, scoped, tag = 'internal scratch']
  %s0 = inlined_call_operand.vmem [shape: f32[256,128], index: 0, kind: input, shape index: {}]
  %s1 = inlined_call_operand.vmem [shape: f32[256,32], index: 1, kind: input, shape index: {}]
  %s2 = inlined_call_operand.vmem [shape: s32[256,1], index: 2, kind: input, shape index: {}]
  %s3 = inlined_call_operand.vmem [shape: f32[64,64], index: 3, kind: input, shape index: {}]
  %s4 = inlined_call_operand.hbm [shape: f32[32,32], index: 4, kind: input, shape index: {}]
  %s5 = inlined_call_operand.hbm [shape: f32[32,64], index: 5, kind: input, shape index: {}]
  %s6 = inlined_call_operand.hbm [shape: f32[64,128], index: 6, kind: input, shape index: {}]
  %s7 = inlined_call_operand.vmem [shape: f32[128,128], index: 7, kind: input, shape index: {}]
  %s8 = inlined_call_operand.vmem [shape: f32[128,128], index: 8, kind: input, shape index: {}]
  %s9 = inlined_call_operand.vmem [shape: f32[8,128], index: 9, kind: input, shape index: {}]
  %s10 = inlined_call_operand.hbm [shape: f32[256,128], index: 10, kind: output, shape index: {}]
  %s11 = sld [smem:[#allocation0]]
  $region85: #{tpu_custom_call.1} parent=0
    _
  %s13 = ssub.s32 1, %s11
  %s14 = scalar_select 0, %s13, %s11
  $region1: #{tpu_custom_call.1} parent=0
    #allocation2 [shape = 'u8[16384]{0}', space=vmem, size = 0x4000, scoped, tag = 'input window, operand 4, single buffered']
    #allocation3 [shape = 's32[2]{0}', space=sflag, size = 0x8, scoped, tag = 'scoped memory for tpu_custom_call.1']
    #allocation4 [shape = 's32[2]{0}', space=sflag, size = 0x8, scoped, tag = 'scoped memory for tpu_custom_call.1']
    #allocation5 [shape = 'u8[16384]{0}', space=vmem, size = 0x4000, scoped, tag = 'input window, operand 5, single buffered']
    #allocation6 [shape = 's32[1]{0}', space=sflag, size = 0x4, scoped, tag = 'scoped memory for tpu_custom_call.1']
    #allocation7 [shape = 'u8[32768]{0}', space=vmem, size = 0x8000, scoped, tag = 'input window, operand 6, single buffered']
    #allocation8 [shape = 'u8[131072]{0}', space=vmem, size = 0x20000, scoped, tag = 'output window, operand 0']
    %15 = vsyncpa [#allocation3], 0
    %16 = vsyncpa [#allocation6], 0
    %17 = vsyncpa [#allocation4], 0
    %s18 = scalar_lea.sflag [#allocation4], 1
    %19 = vsyncpa %s18, 0
    loop: start=0, step=1, limit=4
    $region2: #{tpu_custom_call.1} parent=1 // loop_pre_header
      _
    $region3: #{tpu_custom_call.1} parent=1 // loop_header
      %s21 = sphi 0, %s25
      %p22 = scmp.ge.s32.totalorder %s21, 4
      %s31 = sphi 0, %s33
      %s34 = sphi 0, %s31
      %s35 = sphi 0, %s34
      %s51 = sphi 0, %s35
      %s57 = sphi 0, %s59
      %s60 = sphi 0, %s57
      %s61 = sphi 0, %s60
      %s77 = sphi 0, %s61
      %s83 = sphi 0, %s85
      %s86 = sphi 0, %s83
      %s87 = sphi 0, %s86
      %s103 = sphi 0, %s87
      %s107 = sphi 0, %s107
      %s109 = sphi 0, %s107
      %s110 = sphi 0, %s109
      %s124 = sphi 0, %s110
      %s128 = sphi 0, %s128
      %s130 = sphi 0, %s128
      %s131 = sphi 0, %s130
      %s145 = sphi 0, %s131
      %s149 = sphi 0, %s149
      %s151 = sphi 0, %s149
      %s152 = sphi 0, %s151
      %s166 = sphi 0, %s152
      %s170 = sphi 0, %s170
      %s172 = sphi 0, %s170
      %s173 = sphi 0, %s172
      %s187 = sphi 0, %s173
      %s191 = sphi 0, %s191
      %s193 = sphi 0, %s191
      %s194 = sphi 0, %s193
      %s208 = sphi 0, %s194
      %s212 = sphi 0, %s212
      %s214 = sphi 0, %s212
      %s215 = sphi 0, %s214
      %s229 = sphi 0, %s215
      %s233 = sphi 0, %s233
      %s235 = sphi 0, %s233
      %s236 = sphi 0, %s235
      %s250 = sphi 0, %s236
      %s256 = sphi 0, %s258
      %s259 = sphi 0, %s256
      %s260 = sphi 0, %s259
      %s276 = sphi 0, %s260
    $region4: #{tpu_custom_call.1} parent=1 // loop_header_branch
      %24 = sbr.rel (%p22) target = $region8
    $region5: #{tpu_custom_call.1} parent=1 // loop_body
      %s26 = ssub.s32 %s21, 1
      %s27 = ssub.s32 %s21, 2
      %s28 = sadd.s32 %s21, 1
      %s29 = ssub.s32 %s21, %s28
      %p30 = scmp.eq.s32.totalorder %s29, 0
      %s32 = sadd.s32 %s31, 1
      %s33 = scalar_select %p30, %s31, %s32
      %p36 = pneg %p30
      %p37 = scmp.eq.s32.totalorder %s21, 1
      %p38 = por %p36, %p37
      %p39 = scmp.ne.s32.totalorder %s31, %s34
      %p40 = scmp.eq.s32.totalorder %s21, 0
      %p41 = por %p39, %p40
      %p42 = scmp.ne.s32.totalorder %s31, %s34
      %p43 = scmp.eq.s32.totalorder %s26, 1
      %p44 = por %p42, %p43
      %p45 = scmp.ne.s32.totalorder %s34, %s35
      %p46 = scmp.eq.s32.totalorder %s26, 0
      %p47 = por %p45, %p46
      %p48 = scmp.ne.s32.totalorder %s34, %s35
      %p49 = scmp.eq.s32.totalorder %s27, 1
      %p50 = por %p48, %p49
      %p52 = scmp.ne.s32.totalorder %s35, %s51
      %p53 = scmp.eq.s32.totalorder %s27, 0
      %p54 = por %p52, %p53
      %s55 = ssub.s32 %s21, %s28
      %p56 = scmp.eq.s32.totalorder %s55, 0
      %s58 = sadd.s32 %s57, 1
      %s59 = scalar_select %p56, %s57, %s58
      %p62 = pneg %p56
      %p63 = scmp.eq.s32.totalorder %s21, 1
      %p64 = por %p62, %p63
      %p65 = scmp.ne.s32.totalorder %s57, %s60
      %p66 = scmp.eq.s32.totalorder %s21, 0
      %p67 = por %p65, %p66
      %p68 = scmp.ne.s32.totalorder %s57, %s60
      %p69 = scmp.eq.s32.totalorder %s26, 1
      %p70 = por %p68, %p69
      %p71 = scmp.ne.s32.totalorder %s60, %s61
      %p72 = scmp.eq.s32.totalorder %s26, 0
      %p73 = por %p71, %p72
      %p74 = scmp.ne.s32.totalorder %s60, %s61
      %p75 = scmp.eq.s32.totalorder %s27, 1
      %p76 = por %p74, %p75
      %p78 = scmp.ne.s32.totalorder %s61, %s77
      %p79 = scmp.eq.s32.totalorder %s27, 0
      %p80 = por %p78, %p79
      %s81 = ssub.s32 %s21, %s28
      %p82 = scmp.eq.s32.totalorder %s81, 0
      %s84 = sadd.s32 %s83, 1
      %s85 = scalar_select %p82, %s83, %s84
      %p88 = pneg %p82
      %p89 = scmp.eq.s32.totalorder %s21, 1
      %p90 = por %p88, %p89
      %p91 = scmp.ne.s32.totalorder %s83, %s86
      %p92 = scmp.eq.s32.totalorder %s21, 0
      %p93 = por %p91, %p92
      %p94 = scmp.ne.s32.totalorder %s83, %s86
      %p95 = scmp.eq.s32.totalorder %s26, 1
      %p96 = por %p94, %p95
      %p97 = scmp.ne.s32.totalorder %s86, %s87
      %p98 = scmp.eq.s32.totalorder %s26, 0
      %p99 = por %p97, %p98
      %p100 = scmp.ne.s32.totalorder %s86, %s87
      %p101 = scmp.eq.s32.totalorder %s27, 1
      %p102 = por %p100, %p101
      %p104 = scmp.ne.s32.totalorder %s87, %s103
      %p105 = scmp.eq.s32.totalorder %s27, 0
      %p106 = por %p104, %p105
      %s108 = sadd.s32 %s107, 1
      %p111 = scmp.eq.s32.totalorder %s21, 1
      %p112 = scmp.ne.s32.totalorder %s107, %s109
      %p113 = scmp.eq.s32.totalorder %s21, 0
      %p114 = por %p112, %p113
      %p115 = scmp.ne.s32.totalorder %s107, %s109
      %p116 = scmp.eq.s32.totalorder %s26, 1
      %p117 = por %p115, %p116
      %p118 = scmp.ne.s32.totalorder %s109, %s110
      %p119 = scmp.eq.s32.totalorder %s26, 0
      %p120 = por %p118, %p119
      %p121 = scmp.ne.s32.totalorder %s109, %s110
      %p122 = scmp.eq.s32.totalorder %s27, 1
      %p123 = por %p121, %p122
      %p125 = scmp.ne.s32.totalorder %s110, %s124
      %p126 = scmp.eq.s32.totalorder %s27, 0
      %p127 = por %p125, %p126
      %s129 = sadd.s32 %s128, 1
      %p132 = scmp.eq.s32.totalorder %s21, 1
      %p133 = scmp.ne.s32.totalorder %s128, %s130
      %p134 = scmp.eq.s32.totalorder %s21, 0
      %p135 = por %p133, %p134
      %p136 = scmp.ne.s32.totalorder %s128, %s130
      %p137 = scmp.eq.s32.totalorder %s26, 1
      %p138 = por %p136, %p137
      %p139 = scmp.ne.s32.totalorder %s130, %s131
      %p140 = scmp.eq.s32.totalorder %s26, 0
      %p141 = por %p139, %p140
      %p142 = scmp.ne.s32.totalorder %s130, %s131
      %p143 = scmp.eq.s32.totalorder %s27, 1
      %p144 = por %p142, %p143
      %p146 = scmp.ne.s32.totalorder %s131, %s145
      %p147 = scmp.eq.s32.totalorder %s27, 0
      %p148 = por %p146, %p147
      %s150 = sadd.s32 %s149, 1
      %p153 = scmp.eq.s32.totalorder %s21, 1
      %p154 = scmp.ne.s32.totalorder %s149, %s151
      %p155 = scmp.eq.s32.totalorder %s21, 0
      %p156 = por %p154, %p155
      %p157 = scmp.ne.s32.totalorder %s149, %s151
      %p158 = scmp.eq.s32.totalorder %s26, 1
      %p159 = por %p157, %p158
      %p160 = scmp.ne.s32.totalorder %s151, %s152
      %p161 = scmp.eq.s32.totalorder %s26, 0
      %p162 = por %p160, %p161
      %p163 = scmp.ne.s32.totalorder %s151, %s152
      %p164 = scmp.eq.s32.totalorder %s27, 1
      %p165 = por %p163, %p164
      %p167 = scmp.ne.s32.totalorder %s152, %s166
      %p168 = scmp.eq.s32.totalorder %s27, 0
      %p169 = por %p167, %p168
      %s171 = sadd.s32 %s170, 1
      %p174 = scmp.eq.s32.totalorder %s21, 1
      %p175 = scmp.ne.s32.totalorder %s170, %s172
      %p176 = scmp.eq.s32.totalorder %s21, 0
      %p177 = por %p175, %p176
      %p178 = scmp.ne.s32.totalorder %s170, %s172
      %p179 = scmp.eq.s32.totalorder %s26, 1
      %p180 = por %p178, %p179
      %p181 = scmp.ne.s32.totalorder %s172, %s173
      %p182 = scmp.eq.s32.totalorder %s26, 0
      %p183 = por %p181, %p182
      %p184 = scmp.ne.s32.totalorder %s172, %s173
      %p185 = scmp.eq.s32.totalorder %s27, 1
      %p186 = por %p184, %p185
      %p188 = scmp.ne.s32.totalorder %s173, %s187
      %p189 = scmp.eq.s32.totalorder %s27, 0
      %p190 = por %p188, %p189
      %s192 = sadd.s32 %s191, 1
      %p195 = scmp.eq.s32.totalorder %s21, 1
      %p196 = scmp.ne.s32.totalorder %s191, %s193
      %p197 = scmp.eq.s32.totalorder %s21, 0
      %p198 = por %p196, %p197
      %p199 = scmp.ne.s32.totalorder %s191, %s193
      %p200 = scmp.eq.s32.totalorder %s26, 1
      %p201 = por %p199, %p200
      %p202 = scmp.ne.s32.totalorder %s193, %s194
      %p203 = scmp.eq.s32.totalorder %s26, 0
      %p204 = por %p202, %p203
      %p205 = scmp.ne.s32.totalorder %s193, %s194
      %p206 = scmp.eq.s32.totalorder %s27, 1
      %p207 = por %p205, %p206
      %p209 = scmp.ne.s32.totalorder %s194, %s208
      %p210 = scmp.eq.s32.totalorder %s27, 0
      %p211 = por %p209, %p210
      %s213 = sadd.s32 %s212, 1
      %p216 = scmp.eq.s32.totalorder %s21, 1
      %p217 = scmp.ne.s32.totalorder %s212, %s214
      %p218 = scmp.eq.s32.totalorder %s21, 0
      %p219 = por %p217, %p218
      %p220 = scmp.ne.s32.totalorder %s212, %s214
      %p221 = scmp.eq.s32.totalorder %s26, 1
      %p222 = por %p220, %p221
      %p223 = scmp.ne.s32.totalorder %s214, %s215
      %p224 = scmp.eq.s32.totalorder %s26, 0
      %p225 = por %p223, %p224
      %p226 = scmp.ne.s32.totalorder %s214, %s215
      %p227 = scmp.eq.s32.totalorder %s27, 1
      %p228 = por %p226, %p227
      %p230 = scmp.ne.s32.totalorder %s215, %s229
      %p231 = scmp.eq.s32.totalorder %s27, 0
      %p232 = por %p230, %p231
      %s234 = sadd.s32 %s233, 1
      %p237 = scmp.eq.s32.totalorder %s21, 1
      %p238 = scmp.ne.s32.totalorder %s233, %s235
      %p239 = scmp.eq.s32.totalorder %s21, 0
      %p240 = por %p238, %p239
      %p241 = scmp.ne.s32.totalorder %s233, %s235
      %p242 = scmp.eq.s32.totalorder %s26, 1
      %p243 = por %p241, %p242
      %p244 = scmp.ne.s32.totalorder %s235, %s236
      %p245 = scmp.eq.s32.totalorder %s26, 0
      %p246 = por %p244, %p245
      %p247 = scmp.ne.s32.totalorder %s235, %s236
      %p248 = scmp.eq.s32.totalorder %s27, 1
      %p249 = por %p247, %p248
      %p251 = scmp.ne.s32.totalorder %s236, %s250
      %p252 = scmp.eq.s32.totalorder %s27, 0
      %p253 = por %p251, %p252
      %s254 = ssub.s32 %s21, %s28
      %p255 = scmp.eq.s32.totalorder %s254, 0
      %s257 = sadd.s32 %s256, 1
      %s258 = scalar_select %p255, %s256, %s257
      %p261 = pneg %p255
      %p262 = scmp.eq.s32.totalorder %s21, 1
      %p263 = por %p261, %p262
      %p264 = scmp.ne.s32.totalorder %s256, %s259
      %p265 = scmp.eq.s32.totalorder %s21, 0
      %p266 = por %p264, %p265
      %p267 = scmp.ne.s32.totalorder %s256, %s259
      %p268 = scmp.eq.s32.totalorder %s26, 1
      %p269 = por %p267, %p268
      %p270 = scmp.ne.s32.totalorder %s259, %s260
      %p271 = scmp.eq.s32.totalorder %s26, 0
      %p272 = por %p270, %p271
      %p273 = scmp.ne.s32.totalorder %s259, %s260
      %p274 = scmp.eq.s32.totalorder %s27, 1
      %p275 = por %p273, %p274
      %p277 = scmp.ne.s32.totalorder %s260, %s276
      %p278 = scmp.eq.s32.totalorder %s27, 0
      %p279 = por %p277, %p278
      %p280 = scmp.le.s32.totalorder 1, %s21
      %p281 = scmp.lt.s32.totalorder %s21, 3
      %p282 = pnand %p280, %p281
      %p283 = pneg %p282
      // Predicated region
      $region9: #{tpu_custom_call.1} parent=5 // pred_check
        _
      $region10: #{tpu_custom_call.1} parent=5 // pred_check_branch
        %285 = sbr.rel (%p282) target = $region12
      $region11: #{tpu_custom_call.1} parent=5 // pred_region
        %s286 = ssub.s32 %s21, 1
        // Predicated region
        $region13: #{tpu_custom_call.1} parent=11 // pred_check
          %p287 = pneg %p120
        $region14: #{tpu_custom_call.1} parent=11 // pred_check_branch
          %289 = sbr.rel (%p287) target = $region16
        $region15: #{tpu_custom_call.1} parent=11 // pred_region
          _
        $region16: #{tpu_custom_call.1} parent=11 // pred_fallthru
          _
        // Predicated region
        $region17: #{tpu_custom_call.1} parent=11 // pred_check
          %p290 = pneg %p141
        $region18: #{tpu_custom_call.1} parent=11 // pred_check_branch
          %292 = sbr.rel (%p290) target = $region20
        $region19: #{tpu_custom_call.1} parent=11 // pred_region
          %s294 = ssub.s32 512, 512
          %295 = vsyncadd [#allocation3], %s294
          %s296 = sshll.u32 [#allocation2], 4
          %s297 = int_to_ptr.vmem [resolvable:$true] %s296
          %302 = dma.hbm_to_vmem [thread:$0]  %s4, 512, %s297, [#allocation3], 128, 128, 8
        $region20: #{tpu_custom_call.1} parent=11 // pred_fallthru
          _
        // Predicated region
        $region21: #{tpu_custom_call.1} parent=11 // pred_check
          %p303 = pneg %p162
        $region22: #{tpu_custom_call.1} parent=11 // pred_check_branch
          %305 = sbr.rel (%p303) target = $region24
        $region23: #{tpu_custom_call.1} parent=11 // pred_region
          %s307 = ssub.s32 512, 512
          %308 = vsyncadd [#allocation6], %s307
          %s309 = sshll.u32 [#allocation5], 4
          %s310 = int_to_ptr.vmem [resolvable:$true] %s309
          %315 = dma.hbm_to_vmem [thread:$0]  %s5, 512, %s310, [#allocation6], 128, 128, 8
        $region24: #{tpu_custom_call.1} parent=11 // pred_fallthru
          _
        // Predicated region
        $region25: #{tpu_custom_call.1} parent=11 // pred_check
          %p316 = pneg %p183
        $region26: #{tpu_custom_call.1} parent=11 // pred_check_branch
          %318 = sbr.rel (%p316) target = $region28
        $region27: #{tpu_custom_call.1} parent=11 // pred_region
          %s320 = ssub.s32 1024, 1024
          %321 = vsyncadd [#allocation6], %s320
          %s322 = sshll.u32 [#allocation7], 4
          %s323 = int_to_ptr.vmem [resolvable:$true] %s322
          %328 = dma.hbm_to_vmem [thread:$0]  %s6, 1024, %s323, [#allocation6], 128, 128, 8
        $region28: #{tpu_custom_call.1} parent=11 // pred_fallthru
          _
        // Predicated region
        $region29: #{tpu_custom_call.1} parent=11 // pred_check
          %p329 = pneg %p204
        $region30: #{tpu_custom_call.1} parent=11 // pred_check_branch
          %331 = sbr.rel (%p329) target = $region32
        $region31: #{tpu_custom_call.1} parent=11 // pred_region
          _
        $region32: #{tpu_custom_call.1} parent=11 // pred_fallthru
          _
        // Predicated region
        $region33: #{tpu_custom_call.1} parent=11 // pred_check
          %p332 = pneg %p225
        $region34: #{tpu_custom_call.1} parent=11 // pred_check_branch
          %334 = sbr.rel (%p332) target = $region36
        $region35: #{tpu_custom_call.1} parent=11 // pred_region
          _
        $region36: #{tpu_custom_call.1} parent=11 // pred_fallthru
          _
        // Predicated region
        $region37: #{tpu_custom_call.1} parent=11 // pred_check
          %p335 = pneg %p246
        $region38: #{tpu_custom_call.1} parent=11 // pred_check_branch
          %337 = sbr.rel (%p335) target = $region40
        $region39: #{tpu_custom_call.1} parent=11 // pred_region
          _
        $region40: #{tpu_custom_call.1} parent=11 // pred_fallthru
          _
      $region12: #{tpu_custom_call.1} parent=5 // pred_fallthru
        _
      %p338 = scmp.lt.s32.totalorder %s21, 2
      // Predicated region
      $region41: #{tpu_custom_call.1} parent=5 // pred_check
        %p339 = pneg %p338
      $region42: #{tpu_custom_call.1} parent=5 // pred_check_branch
        %341 = sbr.rel (%p339) target = $region44
      $region43: #{tpu_custom_call.1} parent=5 // pred_region
        // Predicated region
        $region45: #{tpu_custom_call.1} parent=43 // pred_check
          %p342 = pneg %p41
        $region46: #{tpu_custom_call.1} parent=43 // pred_check_branch
          %344 = sbr.rel (%p342) target = $region48
        $region47: #{tpu_custom_call.1} parent=43 // pred_region
          %s345 = smul.u32 16, %s21
          %p346 = scmp.lt.s32.totalorder %s345, 31
          %s347 = scalar_select %p346, %s345, 31
          %s348 = smul.addr %s347, 8
          %s349 = scalar_lea.vmem %s0, %s348
          %s350 = smul.u32 16, %s21
        $region48: #{tpu_custom_call.1} parent=43 // pred_fallthru
          _
        // Predicated region
        $region49: #{tpu_custom_call.1} parent=43 // pred_check
          %p351 = pneg %p67
        $region50: #{tpu_custom_call.1} parent=43 // pred_check_branch
          %353 = sbr.rel (%p351) target = $region52
        $region51: #{tpu_custom_call.1} parent=43 // pred_region
          %s354 = smul.u32 16, %s21
          %p355 = scmp.lt.s32.totalorder %s354, 31
          %s356 = scalar_select %p355, %s354, 31
          %s357 = smul.addr %s356, 8
          %s358 = scalar_lea.vmem %s1, %s357
          %s359 = smul.u32 16, %s21
        $region52: #{tpu_custom_call.1} parent=43 // pred_fallthru
          _
        // Predicated region
        $region53: #{tpu_custom_call.1} parent=43 // pred_check
          %p360 = pneg %p93
        $region54: #{tpu_custom_call.1} parent=43 // pred_check_branch
          %362 = sbr.rel (%p360) target = $region56
        $region55: #{tpu_custom_call.1} parent=43 // pred_region
          %s363 = smul.u32 16, %s21
          %p364 = scmp.lt.s32.totalorder %s363, 31
          %s365 = scalar_select %p364, %s363, 31
          %s366 = smul.addr %s365, 8
          %s367 = scalar_lea.vmem %s2, %s366
          %s368 = smul.u32 16, %s21
        $region56: #{tpu_custom_call.1} parent=43 // pred_fallthru
          _
      $region44: #{tpu_custom_call.1} parent=5 // pred_fallthru
        _
      %p369 = scmp.le.s32.totalorder 1, %s21
      %p370 = scmp.lt.s32.totalorder %s21, 3
      %p371 = pnand %p369, %p370
      %p372 = pneg %p371
      // Predicated region
      $region57: #{tpu_custom_call.1} parent=5 // pred_check
        _
      $region58: #{tpu_custom_call.1} parent=5 // pred_check_branch
        %374 = sbr.rel (%p371) target = $region60
      $region59: #{tpu_custom_call.1} parent=5 // pred_region
        %s375 = ssub.s32 %s21, 1
        // Predicated region
        $region61: #{tpu_custom_call.1} parent=59 // pred_check
          %p376 = pneg %p141
        $region62: #{tpu_custom_call.1} parent=59 // pred_check_branch
          %378 = sbr.rel (%p376) target = $region64
        $region63: #{tpu_custom_call.1} parent=59 // pred_region
          %379 = dma.done [#allocation3], 512
        $region64: #{tpu_custom_call.1} parent=59 // pred_fallthru
          _
        // Predicated region
        $region65: #{tpu_custom_call.1} parent=59 // pred_check
          %p380 = pneg %p162
        $region66: #{tpu_custom_call.1} parent=59 // pred_check_branch
          %382 = sbr.rel (%p380) target = $region68
        $region67: #{tpu_custom_call.1} parent=59 // pred_region
          %383 = dma.done [#allocation6], 512
        $region68: #{tpu_custom_call.1} parent=59 // pred_fallthru
          _
        // Predicated region
        $region69: #{tpu_custom_call.1} parent=59 // pred_check
          %p384 = pneg %p183
        $region70: #{tpu_custom_call.1} parent=59 // pred_check_branch
          %386 = sbr.rel (%p384) target = $region72
        $region71: #{tpu_custom_call.1} parent=59 // pred_region
          %387 = dma.done [#allocation6], 1024
        $region72: #{tpu_custom_call.1} parent=59 // pred_fallthru
          _
        %s388 = smul.u32 16, %s26
        %p389 = scmp.lt.s32.totalorder %s388, 31
        %s390 = scalar_select %p389, %s388, 31
        %s391 = smul.addr %s390, 8
        %s392 = scalar_lea.vmem %s0, %s391
        %p393 = pneg %p47
        %p394 = pneg %p44
        %s395 = smul.u32 16, %s26
        %p396 = scmp.lt.s32.totalorder %s395, 31
        %s397 = scalar_select %p396, %s395, 31
        %s398 = smul.addr %s397, 8
        %s399 = scalar_lea.vmem %s1, %s398
        %p400 = pneg %p73
        %p401 = pneg %p70
        %s402 = smul.u32 16, %s26
        %p403 = scmp.lt.s32.totalorder %s402, 31
        %s404 = scalar_select %p403, %s402, 31
        %s405 = smul.addr %s404, 8
        %s406 = scalar_lea.vmem %s2, %s405
        %p407 = pneg %p99
        %p408 = pneg %p96
        %p409 = pneg %p120
        %p410 = pneg %p117
        %p411 = pneg %p141
        %p412 = pneg %p138
        %p413 = pneg %p162
        %p414 = pneg %p159
        %p415 = pneg %p183
        %p416 = pneg %p180
        %p417 = pneg %p204
        %p418 = pneg %p201
        %p419 = pneg %p225
        %p420 = pneg %p222
        %p421 = pneg %p246
        %p422 = pneg %p243
        %p423 = pneg %p272
        %p424 = pneg %p269
        %s425 = sand.u32 %s259, 1
        %s426 = scalar_lea.sflag [#allocation4], %s425
        %s427 = sand.u32 %s259, 1
        %s428 = smul.addr %s427, 128
        %s429 = scalar_lea.vmem [#allocation8], %s428
        %s430 = smul.u32 16, %s26
        %p431 = scmp.lt.s32.totalorder %s430, 31
        %s432 = scalar_select %p431, %s430, 31
        %s433 = smul.addr %s432, 8
        %s434 = scalar_lea.vmem %s0, %s433
        %s435 = smul.u32 16, %s26
        %s436 = smul.u32 16, %s26
        %p437 = scmp.lt.s32.totalorder %s436, 31
        %s438 = scalar_select %p437, %s436, 31
        %s439 = smul.addr %s438, 8
        %s440 = scalar_lea.vmem %s1, %s439
        %s441 = smul.u32 16, %s26
        %s442 = smul.u32 16, %s26
        %p443 = scmp.lt.s32.totalorder %s442, 31
        %s444 = scalar_select %p443, %s442, 31
        %s445 = smul.addr %s444, 8
        %s446 = scalar_lea.vmem %s2, %s445
        %s447 = smul.u32 16, %s26
        %s448 = smul.u32 16, %s26
        %v449 = vld [vmem:[%s9] sm:$0x1]
        %v450 = vld [vmem:[%s9 + $0x1] sm:$0x1]
        %v451 = vld [vmem:[%s9 + $0x2] sm:$0x1]
        %v452 = vld [vmem:[%s9 + $0x3] sm:$0x1]
        %v453 = vld [vmem:[%s434] sm:$0xff]
        %v454 = vld [vmem:[%s434 + $0x8] sm:$0xff]
        %v455 = vld [vmem:[%s434 + $0x10] sm:$0xff]
        %v456 = vld [vmem:[%s434 + $0x18] sm:$0xff]
        %v457 = vld [vmem:[%s434 + $0x20] sm:$0xff]
        %v458 = vld [vmem:[%s434 + $0x28] sm:$0xff]
        %v459 = vld [vmem:[%s434 + $0x30] sm:$0xff]
        %v460 = vld [vmem:[%s434 + $0x38] sm:$0xff]
        %v461 = vld [vmem:[%s434 + $0x40] sm:$0xff]
        %v462 = vld [vmem:[%s434 + $0x48] sm:$0xff]
        %v463 = vld [vmem:[%s434 + $0x50] sm:$0xff]
        %v464 = vld [vmem:[%s434 + $0x58] sm:$0xff]
        %v465 = vld [vmem:[%s434 + $0x60] sm:$0xff]
        %v466 = vld [vmem:[%s434 + $0x68] sm:$0xff]
        %v467 = vld [vmem:[%s434 + $0x70] sm:$0xff]
        %v468 = vld [vmem:[%s434 + $0x78] sm:$0xff]
        %v469 = vld [vmem:[%s3] sm:$0xff]
        %v470 = vld [vmem:[%s3 + $0x8] sm:$0xff]
        %v471 = vld [vmem:[%s3 + $0x10] sm:$0xff]
        %v472 = vld [vmem:[%s3 + $0x18] sm:$0xff]
        %v473 = vld [vmem:[%s3 + $0x20] sm:$0xff]
        %v474 = vld [vmem:[%s3 + $0x28] sm:$0xff]
        %v475 = vld [vmem:[%s3 + $0x30] sm:$0xff]
        %v476 = vld [vmem:[%s3 + $0x38] sm:$0xff]
        %v477 = vlaneseq
        %v478 = vshrl.u32 %v477, 7
        %v479 = vsub.s32 0, %v478
        %v480 = vrot.slane %v450, %v479
        %vm481 = vcmask 523264
        %v483 = vsel %vm481, %v453, 0
        %v486 = vsel %vm481, %v454, 0
        %v489 = vsel %vm481, %v455, 0
        %v492 = vsel %vm481, %v456, 0
        %v495 = vsel %vm481, %v457, 0
        %v498 = vsel %vm481, %v458, 0
        %v501 = vsel %vm481, %v459, 0
        %v504 = vsel %vm481, %v460, 0
        %v507 = vsel %vm481, %v461, 0
        %v510 = vsel %vm481, %v462, 0
        %v513 = vsel %vm481, %v463, 0
        %v516 = vsel %vm481, %v464, 0
        %v519 = vsel %vm481, %v465, 0
        %v522 = vsel %vm481, %v466, 0
        %v525 = vsel %vm481, %v467, 0
        %v528 = vsel %vm481, %v468, 0
        %530 = vmatprep.subr.mxu0 0.0
        %v531 = vand.u32 %v469, 4294901760
        %532 = vmatpush1.msra.mxu0 %v531
        %533 = vmatprep.subr.mxu0 0.0
        %v534 = vand.u32 %v470, 4294901760
        %535 = vmatpush1.msra.mxu0 %v534
        %536 = vmatprep.subr.mxu0 0.0
        %v537 = vand.u32 %v471, 4294901760
        %538 = vmatpush1.msra.mxu0 %v537
        %539 = vmatprep.subr.mxu0 0.0
        %v540 = vand.u32 %v472, 4294901760
        %541 = vmatpush1.msra.mxu0 %v540
        %542 = vmatprep.subr.mxu0 0.0
        %v543 = vand.u32 %v473, 4294901760
        %544 = vmatpush1.msra.mxu0 %v543
        %545 = vmatprep.subr.mxu0 0.0
        %v546 = vand.u32 %v474, 4294901760
        %547 = vmatpush1.msra.mxu0 %v546
        %548 = vmatprep.subr.mxu0 0.0
        %v549 = vand.u32 %v475, 4294901760
        %550 = vmatpush1.msra.mxu0 %v549
        %551 = vmatprep.subr.mxu0 0.0
        %v552 = vand.u32 %v476, 4294901760
        %553 = vmatpush1.msra.mxu0 %v552
        %554 = vmatprep.subr.mxu0 0.0
        %555 = vmatpush1.msra.mxu0 0.0
        %556 = vmatprep.subr.mxu0 0.0
        %557 = vmatpush1.msra.mxu0 0.0
        %558 = vmatprep.subr.mxu0 0.0
        %559 = vmatpush1.msra.mxu0 0.0
        %560 = vmatprep.subr.mxu0 0.0
        %561 = vmatpush1.msra.mxu0 0.0
        %562 = vmatprep.subr.mxu0 0.0
        %563 = vmatpush1.msra.mxu0 0.0
        %564 = vmatprep.subr.mxu0 0.0
        %565 = vmatpush1.msra.mxu0 0.0
        %566 = vmatprep.subr.mxu0 0.0
        %567 = vmatpush1.msra.mxu0 0.0
        %568 = vmatprep.subr.mxu0 0.0
        %569 = vmatpush1.msra.mxu0 0.0
        %570 = vmatprep.subr.mxu0 0.0
        %571 = vmatpush1.msra.mxu0 0.0
        %572 = vmatprep.subr.mxu0 0.0
        %573 = vmatpush1.msra.mxu0 0.0
        %574 = vmatprep.subr.mxu0 0.0
        %575 = vmatpush1.msra.mxu0 0.0
        %576 = vmatprep.subr.mxu0 0.0
        %577 = vmatpush1.msra.mxu0 0.0
        %578 = vmatprep.subr.mxu0 0.0
        %579 = vmatpush1.msra.mxu0 0.0
        %580 = vmatprep.subr.mxu0 0.0
        %581 = vmatpush1.msra.mxu0 0.0
        %582 = vmatprep.subr.mxu0 0.0
        %583 = vmatpush1.msra.mxu0 0.0
        %584 = vmatprep.subr.mxu0 0.0
        %585 = vmatpush1.msra.mxu0 0.0
        %586 = vmatprep.subr.mxu0 0.0
        %587 = vmatpush1.msra.mxu0 0.0
        %588 = vmatprep.subr.mxu0 0.0
        %589 = vmatpush1.msra.mxu0 0.0
        %590 = vmatprep.subr.mxu0 0.0
        %591 = vmatpush1.msra.mxu0 0.0
        %592 = vmatprep.subr.mxu0 0.0
        %593 = vmatpush1.msra.mxu0 0.0
        %594 = vmatprep.subr.mxu0 0.0
        %595 = vmatpush1.msra.mxu0 0.0
        %596 = vmatprep.subr.mxu0 0.0
        %597 = vmatpush1.msra.mxu0 0.0
        %598 = vmatprep.subr.mxu0 0.0
        %599 = vmatpush1.msra.mxu0 0.0
        %600 = vmatprep.subr.mxu0 0.0
        %601 = vmatpush1.msra.mxu0 0.0
        %602 = vmatprep.mubr.f32.mxu0 0.0
        %v603 = vand.u32 %v483, 4294901760
        %v604 = vsub.f32 %v483, %v603
        %v605 = vand.u32 %v604, 4294901760
        %v606 = vsub.f32 %v604, %v605
        %v607 = vand.u32 %v606, 4294901760
        %608 = vmatmul.mubr.f32.gmra.mrb[0].mxu0 %v607
        %v609 = vpop.f32.mrb[0].mxu0
        %v610 = vadd.f32 %v480, %v609
        %v611 = vpop.f32.mrb[0].mxu0
        %612 = vmatprep.mubr.f32.mxu0 0.0
        %v613 = vand.u32 %v486, 4294901760
        %v614 = vsub.f32 %v486, %v613
        %v615 = vand.u32 %v614, 4294901760
        %v616 = vsub.f32 %v614, %v615
        %v617 = vand.u32 %v616, 4294901760
        %618 = vmatmul.mubr.f32.gmra.mrb[0].mxu0 %v617
        %v619 = vpop.f32.mrb[0].mxu0
        %v620 = vadd.f32 %v480, %v619
        %v621 = vpop.f32.mrb[0].mxu0
        %622 = vmatprep.mubr.f32.mxu0 0.0
        %v623 = vand.u32 %v489, 4294901760
        %v624 = vsub.f32 %v489, %v623
        %v625 = vand.u32 %v624, 4294901760
        %v626 = vsub.f32 %v624, %v625
        %v627 = vand.u32 %v626, 4294901760
        %628 = vmatmul.mubr.f32.gmra.mrb[0].mxu0 %v627
        %v629 = vpop.f32.mrb[0].mxu0
        %v630 = vadd.f32 %v480, %v629
        %v631 = vpop.f32.mrb[0].mxu0
        %632 = vmatprep.mubr.f32.mxu0 0.0
        %v633 = vand.u32 %v492, 4294901760
        %v634 = vsub.f32 %v492, %v633
        %v635 = vand.u32 %v634, 4294901760
        %v636 = vsub.f32 %v634, %v635
        %v637 = vand.u32 %v636, 4294901760
        %638 = vmatmul.mubr.f32.gmra.mrb[0].mxu0 %v637
        %v639 = vpop.f32.mrb[0].mxu0
        %v640 = vadd.f32 %v480, %v639
        %v641 = vpop.f32.mrb[0].mxu0
        %642 = vmatprep.mubr.f32.mxu0 0.0
        %v643 = vand.u32 %v495, 4294901760
        %v644 = vsub.f32 %v495, %v643
        %v645 = vand.u32 %v644, 4294901760
        %v646 = vsub.f32 %v644, %v645
        %v647 = vand.u32 %v646, 4294901760
        %648 = vmatmul.mubr.f32.gmra.mrb[0].mxu0 %v647
        %v649 = vpop.f32.mrb[0].mxu0
        %v650 = vadd.f32 %v480, %v649
        %v651 = vpop.f32.mrb[0].mxu0
        %652 = vmatprep.mubr.f32.mxu0 0.0
        %v653 = vand.u32 %v498, 4294901760
        %v654 = vsub.f32 %v498, %v653
        %v655 = vand.u32 %v654, 4294901760
        %v656 = vsub.f32 %v654, %v655
        %v657 = vand.u32 %v656, 4294901760
        %658 = vmatmul.mubr.f32.gmra.mrb[0].mxu0 %v657
        %v659 = vpop.f32.mrb[0].mxu0
        %v660 = vadd.f32 %v480, %v659
        %v661 = vpop.f32.mrb[0].mxu0
        %662 = vmatprep.mubr.f32.mxu0 0.0
        %v663 = vand.u32 %v501, 4294901760
        %v664 = vsub.f32 %v501, %v663
        %v665 = vand.u32 %v664, 4294901760
        %v666 = vsub.f32 %v664, %v665
        %v667 = vand.u32 %v666, 4294901760
        %668 = vmatmul.mubr.f32.gmra.mrb[0].mxu0 %v667
        %v669 = vpop.f32.mrb[0].mxu0
        %v670 = vadd.f32 %v480, %v669
        %v671 = vpop.f32.mrb[0].mxu0
        %672 = vmatprep.mubr.f32.mxu0 0.0
        %v673 = vand.u32 %v504, 4294901760
        %v674 = vsub.f32 %v504, %v673
        %v675 = vand.u32 %v674, 4294901760
        %v676 = vsub.f32 %v674, %v675
        %v677 = vand.u32 %v676, 4294901760
        %678 = vmatmul.mubr.f32.gmra.mrb[0].mxu0 %v677
        %v679 = vpop.f32.mrb[0].mxu0
        %v680 = vadd.f32 %v480, %v679
        %v681 = vpop.f32.mrb[0].mxu0
        %682 = vmatprep.mubr.f32.mxu0 0.0
        %v683 = vand.u32 %v507, 4294901760
        %v684 = vsub.f32 %v507, %v683
        %v685 = vand.u32 %v684, 4294901760
        %v686 = vsub.f32 %v684, %v685
        %v687 = vand.u32 %v686, 4294901760
        %688 = vmatmul.mubr.f32.gmra.mrb[0].mxu0 %v687
        %v689 = vpop.f32.mrb[0].mxu0
        %v690 = vadd.f32 %v480, %v689
        %v691 = vpop.f32.mrb[0].mxu0
        %692 = vmatprep.mubr.f32.mxu0 0.0
        %v693 = vand.u32 %v510, 4294901760
        %v694 = vsub.f32 %v510, %v693
        %v695 = vand.u32 %v694, 4294901760
        %v696 = vsub.f32 %v694, %v695
        %v697 = vand.u32 %v696, 4294901760
        %698 = vmatmul.mubr.f32.gmra.mrb[0].mxu0 %v697
        %v699 = vpop.f32.mrb[0].mxu0
        %v700 = vadd.f32 %v480, %v699
        %v701 = vpop.f32.mrb[0].mxu0
        %702 = vmatprep.mubr.f32.mxu0 0.0
        %v703 = vand.u32 %v513, 4294901760
        %v704 = vsub.f32 %v513, %v703
        %v705 = vand.u32 %v704, 4294901760
        %v706 = vsub.f32 %v704, %v705
        %v707 = vand.u32 %v706, 4294901760
        %708 = vmatmul.mubr.f32.gmra.mrb[0].mxu0 %v707
        %v709 = vpop.f32.mrb[0].mxu0
        %v710 = vadd.f32 %v480, %v709
        %v711 = vpop.f32.mrb[0].mxu0
        %712 = vmatprep.mubr.f32.mxu0 0.0
        %v713 = vand.u32 %v516, 4294901760
        %v714 = vsub.f32 %v516, %v713
        %v715 = vand.u32 %v714, 4294901760
        %v716 = vsub.f32 %v714, %v715
        %v717 = vand.u32 %v716, 4294901760
        %718 = vmatmul.mubr.f32.gmra.mrb[0].mxu0 %v717
        %v719 = vpop.f32.mrb[0].mxu0
        %v720 = vadd.f32 %v480, %v719
        %v721 = vpop.f32.mrb[0].mxu0
        %722 = vmatprep.mubr.f32.mxu0 0.0
        %v723 = vand.u32 %v519, 4294901760
        %v724 = vsub.f32 %v519, %v723
        %v725 = vand.u32 %v724, 4294901760
        %v726 = vsub.f32 %v724, %v725
        %v727 = vand.u32 %v726, 4294901760
        %728 = vmatmul.mubr.f32.gmra.mrb[0].mxu0 %v727
        %v729 = vpop.f32.mrb[0].mxu0
        %v730 = vadd.f32 %v480, %v729
        %v731 = vpop.f32.mrb[0].mxu0
        %732 = vmatprep.mubr.f32.mxu0 0.0
        %v733 = vand.u32 %v522, 4294901760
        %v734 = vsub.f32 %v522, %v733
        %v735 = vand.u32 %v734, 4294901760
        %v736 = vsub.f32 %v734, %v735
        %v737 = vand.u32 %v736, 4294901760
        %738 = vmatmul.mubr.f32.gmra.mrb[0].mxu0 %v737
        %v739 = vpop.f32.mrb[0].mxu0
        %v740 = vadd.f32 %v480, %v739
        %v741 = vpop.f32.mrb[0].mxu0
        %742 = vmatprep.mubr.f32.mxu0 0.0
        %v743 = vand.u32 %v525, 4294901760
        %v744 = vsub.f32 %v525, %v743
        %v745 = vand.u32 %v744, 4294901760
        %v746 = vsub.f32 %v744, %v745
        %v747 = vand.u32 %v746, 4294901760
        %748 = vmatmul.mubr.f32.gmra.mrb[0].mxu0 %v747
        %v749 = vpop.f32.mrb[0].mxu0
        %v750 = vadd.f32 %v480, %v749
        %v751 = vpop.f32.mrb[0].mxu0
        %752 = vmatprep.mubr.f32.mxu0 0.0
        %v753 = vand.u32 %v528, 4294901760
        %v754 = vsub.f32 %v528, %v753
        %v755 = vand.u32 %v754, 4294901760
        %v756 = vsub.f32 %v754, %v755
        %v757 = vand.u32 %v756, 4294901760
        %758 = vmatmul.mubr.f32.gmra.mrb[0].mxu0 %v757
        %v759 = vpop.f32.mrb[0].mxu0
        %v760 = vadd.f32 %v480, %v759
        %v761 = vpop.f32.mrb[0].mxu0
        %762 = vdwg.mxu0
        %763 = vmatprep.subr.mxu0 0.0
        %v764 = vand.u32 %v469, 4294901760
        %v765 = vsub.f32 %v469, %v764
        %v766 = vand.u32 %v765, 4294901760
        %v767 = vsub.f32 %v765, %v766
        %v768 = vand.u32 %v767, 4294901760
        %769 = vmatpush1.msra.mxu0 %v768
        %770 = vmatprep.subr.mxu0 0.0
        %v771 = vand.u32 %v470, 4294901760
        %v772 = vsub.f32 %v470, %v771
        %v773 = vand.u32 %v772, 4294901760
        %v774 = vsub.f32 %v772, %v773
        %v775 = vand.u32 %v774, 4294901760
        %776 = vmatpush1.msra.mxu0 %v775
        %777 = vmatprep.subr.mxu0 0.0
        %v778 = vand.u32 %v471, 4294901760
        %v779 = vsub.f32 %v471, %v778
        %v780 = vand.u32 %v779, 4294901760
        %v781 = vsub.f32 %v779, %v780
        %v782 = vand.u32 %v781, 4294901760
        %783 = vmatpush1.msra.mxu0 %v782
        %784 = vmatprep.subr.mxu0 0.0
        %v785 = vand.u32 %v472, 4294901760
        %v786 = vsub.f32 %v472, %v785
        %v787 = vand.u32 %v786, 4294901760
        %v788 = vsub.f32 %v786, %v787
        %v789 = vand.u32 %v788, 4294901760
        %790 = vmatpush1.msra.mxu0 %v789
        %791 = vmatprep.subr.mxu0 0.0
        %v792 = vand.u32 %v473, 4294901760
        %v793 = vsub.f32 %v473, %v792
        %v794 = vand.u32 %v793, 4294901760
        %v795 = vsub.f32 %v793, %v794
        %v796 = vand.u32 %v795, 4294901760
        %797 = vmatpush1.msra.mxu0 %v796
        %798 = vmatprep.subr.mxu0 0.0
        %v799 = vand.u32 %v474, 4294901760
        %v800 = vsub.f32 %v474, %v799
        %v801 = vand.u32 %v800, 4294901760
        %v802 = vsub.f32 %v800, %v801
        %v803 = vand.u32 %v802, 4294901760
        %804 = vmatpush1.msra.mxu0 %v803
        %805 = vmatprep.subr.mxu0 0.0
        %v806 = vand.u32 %v475, 4294901760
        %v807 = vsub.f32 %v475, %v806
        %v808 = vand.u32 %v807, 4294901760
        %v809 = vsub.f32 %v807, %v808
        %v810 = vand.u32 %v809, 4294901760
        %811 = vmatpush1.msra.mxu0 %v810
        %812 = vmatprep.subr.mxu0 0.0
        %v813 = vand.u32 %v476, 4294901760
        %v814 = vsub.f32 %v476, %v813
        %v815 = vand.u32 %v814, 4294901760
        %v816 = vsub.f32 %v814, %v815
        %v817 = vand.u32 %v816, 4294901760
        %818 = vmatpush1.msra.mxu0 %v817
        %819 = vmatprep.subr.mxu0 0.0
        %820 = vmatpush1.msra.mxu0 0.0
        %821 = vmatprep.subr.mxu0 0.0
        %822 = vmatpush1.msra.mxu0 0.0
        %823 = vmatprep.subr.mxu0 0.0
        %824 = vmatpush1.msra.mxu0 0.0
        %825 = vmatprep.subr.mxu0 0.0
        %826 = vmatpush1.msra.mxu0 0.0
        %827 = vmatprep.subr.mxu0 0.0
        %828 = vmatpush1.msra.mxu0 0.0
        %829 = vmatprep.subr.mxu0 0.0
        %830 = vmatpush1.msra.mxu0 0.0
        %831 = vmatprep.subr.mxu0 0.0
        %832 = vmatpush1.msra.mxu0 0.0
        %833 = vmatprep.subr.mxu0 0.0
        %834 = vmatpush1.msra.mxu0 0.0
        %835 = vmatprep.subr.mxu0 0.0
        %836 = vmatpush1.msra.mxu0 0.0
        %837 = vmatprep.subr.mxu0 0.0
        %838 = vmatpush1.msra.mxu0 0.0
        %839 = vmatprep.subr.mxu0 0.0
        %840 = vmatpush1.msra.mxu0 0.0
        %841 = vmatprep.subr.mxu0 0.0
        %842 = vmatpush1.msra.mxu0 0.0
        %843 = vmatprep.subr.mxu0 0.0
        %844 = vmatpush1.msra.mxu0 0.0
        %845 = vmatprep.subr.mxu0 0.0
        %846 = vmatpush1.msra.mxu0 0.0
        %847 = vmatprep.subr.mxu0 0.0
        %848 = vmatpush1.msra.mxu0 0.0
        %849 = vmatprep.subr.mxu0 0.0
        %850 = vmatpush1.msra.mxu0 0.0
        %851 = vmatprep.subr.mxu0 0.0
        %852 = vmatpush1.msra.mxu0 0.0
        %853 = vmatprep.subr.mxu0 0.0
        %854 = vmatpush1.msra.mxu0 0.0
        %855 = vmatprep.subr.mxu0 0.0
        %856 = vmatpush1.msra.mxu0 0.0
        %857 = vmatprep.subr.mxu0 0.0
        %858 = vmatpush1.msra.mxu0 0.0
        %859 = vmatprep.subr.mxu0 0.0
        %860 = vmatpush1.msra.mxu0 0.0
        %861 = vmatprep.subr.mxu0 0.0
        %862 = vmatpush1.msra.mxu0 0.0
        %863 = vmatprep.subr.mxu0 0.0
        %864 = vmatpush1.msra.mxu0 0.0
        %865 = vmatprep.subr.mxu0 0.0
        %866 = vmatpush1.msra.mxu0 0.0
        %867 = vmatprep.mubr.f32.mxu0 0.0
        %v868 = vand.u32 %v483, 4294901760
        %869 = vmatmul.mubr.f32.gmra.mrb[0].mxu0 %v868
        %v870 = vpop.f32.mrb[0].mxu0
        %v871 = vadd.f32 %v610, %v870
        %v872 = vpop.f32.mrb[0].mxu0
        %873 = vmatprep.mubr.f32.mxu0 0.0
        %v874 = vand.u32 %v486, 4294901760
        %875 = vmatmul.mubr.f32.gmra.mrb[0].mxu0 %v874
        %v876 = vpop.f32.mrb[0].mxu0
        %v877 = vadd.f32 %v620, %v876
        %v878 = vpop.f32.mrb[0].mxu0
        %879 = vmatprep.mubr.f32.mxu0 0.0
        %v880 = vand.u32 %v489, 4294901760
        %881 = vmatmul.mubr.f32.gmra.mrb[0].mxu0 %v880
        %v882 = vpop.f32.mrb[0].mxu0
        %v883 = vadd.f32 %v630, %v882
        %v884 = vpop.f32.mrb[0].mxu0
        %885 = vmatprep.mubr.f32.mxu0 0.0
        %v886 = vand.u32 %v492, 4294901760
        %887 = vmatmul.mubr.f32.gmra.mrb[0].mxu0 %v886
        %v888 = vpop.f32.mrb[0].mxu0
        %v889 = vadd.f32 %v640, %v888
        %v890 = vpop.f32.mrb[0].mxu0
        %891 = vmatprep.mubr.f32.mxu0 0.0
        %v892 = vand.u32 %v495, 4294901760
        %893 = vmatmul.mubr.f32.gmra.mrb[0].mxu0 %v892
        %v894 = vpop.f32.mrb[0].mxu0
        %v895 = vadd.f32 %v650, %v894
        %v896 = vpop.f32.mrb[0].mxu0
        %897 = vmatprep.mubr.f32.mxu0 0.0
        %v898 = vand.u32 %v498, 4294901760
        %899 = vmatmul.mubr.f32.gmra.mrb[0].mxu0 %v898
        %v900 = vpop.f32.mrb[0].mxu0
        %v901 = vadd.f32 %v660, %v900
        %v902 = vpop.f32.mrb[0].mxu0
        %903 = vmatprep.mubr.f32.mxu0 0.0
        %v904 = vand.u32 %v501, 4294901760
        %905 = vmatmul.mubr.f32.gmra.mrb[0].mxu0 %v904
        %v906 = vpop.f32.mrb[0].mxu0
        %v907 = vadd.f32 %v670, %v906
        %v908 = vpop.f32.mrb[0].mxu0
        %909 = vmatprep.mubr.f32.mxu0 0.0
        %v910 = vand.u32 %v504, 4294901760
        %911 = vmatmul.mubr.f32.gmra.mrb[0].mxu0 %v910
        %v912 = vpop.f32.mrb[0].mxu0
        %v913 = vadd.f32 %v680, %v912
        %v914 = vpop.f32.mrb[0].mxu0
        %915 = vmatprep.mubr.f32.mxu0 0.0
        %v916 = vand.u32 %v507, 4294901760
        %917 = vmatmul.mubr.f32.gmra.mrb[0].mxu0 %v916
        %v918 = vpop.f32.mrb[0].mxu0
        %v919 = vadd.f32 %v690, %v918
        %v920 = vpop.f32.mrb[0].mxu0
        %921 = vmatprep.mubr.f32.mxu0 0.0
        %v922 = vand.u32 %v510, 4294901760
        %923 = vmatmul.mubr.f32.gmra.mrb[0].mxu0 %v922
        %v924 = vpop.f32.mrb[0].mxu0
        %v925 = vadd.f32 %v700, %v924
        %v926 = vpop.f32.mrb[0].mxu0
        %927 = vmatprep.mubr.f32.mxu0 0.0
        %v928 = vand.u32 %v513, 4294901760
        %929 = vmatmul.mubr.f32.gmra.mrb[0].mxu0 %v928
        %v930 = vpop.f32.mrb[0].mxu0
        %v931 = vadd.f32 %v710, %v930
        %v932 = vpop.f32.mrb[0].mxu0
        %933 = vmatprep.mubr.f32.mxu0 0.0
        %v934 = vand.u32 %v516, 4294901760
        %935 = vmatmul.mubr.f32.gmra.mrb[0].mxu0 %v934
        %v936 = vpop.f32.mrb[0].mxu0
        %v937 = vadd.f32 %v720, %v936
        %v938 = vpop.f32.mrb[0].mxu0
        %939 = vmatprep.mubr.f32.mxu0 0.0
        %v940 = vand.u32 %v519, 4294901760
        %941 = vmatmul.mubr.f32.gmra.mrb[0].mxu0 %v940
        %v942 = vpop.f32.mrb[0].mxu0
        %v943 = vadd.f32 %v730, %v942
        %v944 = vpop.f32.mrb[0].mxu0
        %945 = vmatprep.mubr.f32.mxu0 0.0
        %v946 = vand.u32 %v522, 4294901760
        %947 = vmatmul.mubr.f32.gmra.mrb[0].mxu0 %v946
        %v948 = vpop.f32.mrb[0].mxu0
        %v949 = vadd.f32 %v740, %v948
        %v950 = vpop.f32.mrb[0].mxu0
        %951 = vmatprep.mubr.f32.mxu0 0.0
        %v952 = vand.u32 %v525, 4294901760
        %953 = vmatmul.mubr.f32.gmra.mrb[0].mxu0 %v952
        %v954 = vpop.f32.mrb[0].mxu0
        %v955 = vadd.f32 %v750, %v954
        %v956 = vpop.f32.mrb[0].mxu0
        %957 = vmatprep.mubr.f32.mxu0 0.0
        %v958 = vand.u32 %v528, 4294901760
        %959 = vmatmul.mubr.f32.gmra.mrb[0].mxu0 %v958
        %v960 = vpop.f32.mrb[0].mxu0
        %v961 = vadd.f32 %v760, %v960
        %v962 = vpop.f32.mrb[0].mxu0
        %963 = vdwg.mxu0
        %964 = vmatprep.subr.mxu0 0.0
        %v965 = vand.u32 %v469, 4294901760
        %v966 = vsub.f32 %v469, %v965
        %967 = vmatpush1.msra.mxu0 %v966
        %968 = vmatprep.subr.mxu0 0.0
        %v969 = vand.u32 %v470, 4294901760
        %v970 = vsub.f32 %v470, %v969
        %971 = vmatpush1.msra.mxu0 %v970
        %972 = vmatprep.subr.mxu0 0.0
        %v973 = vand.u32 %v471, 4294901760
        %v974 = vsub.f32 %v471, %v973
        %975 = vmatpush1.msra.mxu0 %v974
        %976 = vmatprep.subr.mxu0 0.0
        %v977 = vand.u32 %v472, 4294901760
        %v978 = vsub.f32 %v472, %v977
        %979 = vmatpush1.msra.mxu0 %v978
        %980 = vmatprep.subr.mxu0 0.0
        %v981 = vand.u32 %v473, 4294901760
        %v982 = vsub.f32 %v473, %v981
        %983 = vmatpush1.msra.mxu0 %v982
        %984 = vmatprep.subr.mxu0 0.0
        %v985 = vand.u32 %v474, 4294901760
        %v986 = vsub.f32 %v474, %v985
        %987 = vmatpush1.msra.mxu0 %v986
        %988 = vmatprep.subr.mxu0 0.0
        %v989 = vand.u32 %v475, 4294901760
        %v990 = vsub.f32 %v475, %v989
        %991 = vmatpush1.msra.mxu0 %v990
        %992 = vmatprep.subr.mxu0 0.0
        %v993 = vand.u32 %v476, 4294901760
        %v994 = vsub.f32 %v476, %v993
        %995 = vmatpush1.msra.mxu0 %v994
        %996 = vmatprep.subr.mxu0 0.0
        %997 = vmatpush1.msra.mxu0 0.0
        %998 = vmatprep.subr.mxu0 0.0
        %999 = vmatpush1.msra.mxu0 0.0
        %1000 = vmatprep.subr.mxu0 0.0
        %1001 = vmatpush1.msra.mxu0 0.0
        %1002 = vmatprep.subr.mxu0 0.0
        %1003 = vmatpush1.msra.mxu0 0.0
        %1004 = vmatprep.subr.mxu0 0.0
        %1005 = vmatpush1.msra.mxu0 0.0
        %1006 = vmatprep.subr.mxu0 0.0
        %1007 = vmatpush1.msra.mxu0 0.0
        %1008 = vmatprep.subr.mxu0 0.0
        %1009 = vmatpush1.msra.mxu0 0.0
        %1010 = vmatprep.subr.mxu0 0.0
        %1011 = vmatpush1.msra.mxu0 0.0
        %1012 = vmatprep.subr.mxu0 0.0
        %1013 = vmatpush1.msra.mxu0 0.0
        %1014 = vmatprep.subr.mxu0 0.0
        %1015 = vmatpush1.msra.mxu0 0.0
        %1016 = vmatprep.subr.mxu0 0.0
        %1017 = vmatpush1.msra.mxu0 0.0
        %1018 = vmatprep.subr.mxu0 0.0
        %1019 = vmatpush1.msra.mxu0 0.0
        %1020 = vmatprep.subr.mxu0 0.0
        %1021 = vmatpush1.msra.mxu0 0.0
        %1022 = vmatprep.subr.mxu0 0.0
        %1023 = vmatpush1.msra.mxu0 0.0
        %1024 = vmatprep.subr.mxu0 0.0
        %1025 = vmatpush1.msra.mxu0 0.0
        %1026 = vmatprep.subr.mxu0 0.0
        %1027 = vmatpush1.msra.mxu0 0.0
        %1028 = vmatprep.subr.mxu0 0.0
        %1029 = vmatpush1.msra.mxu0 0.0
        %1030 = vmatprep.subr.mxu0 0.0
        %1031 = vmatpush1.msra.mxu0 0.0
        %1032 = vmatprep.subr.mxu0 0.0
        %1033 = vmatpush1.msra.mxu0 0.0
        %1034 = vmatprep.subr.mxu0 0.0
        %1035 = vmatpush1.msra.mxu0 0.0
        %1036 = vmatprep.subr.mxu0 0.0
        %1037 = vmatpush1.msra.mxu0 0.0
        %1038 = vmatprep.subr.mxu0 0.0
        %1039 = vmatpush1.msra.mxu0 0.0
        %1040 = vmatprep.subr.mxu0 0.0
        %1041 = vmatpush1.msra.mxu0 0.0
        %1042 = vmatprep.subr.mxu0 0.0
        %1043 = vmatpush1.msra.mxu0 0.0
        %1044 = vmatprep.mubr.f32.mxu0 0.0
        %v1045 = vand.u32 %v483, 4294901760
        %v1046 = vsub.f32 %v483, %v1045
        %1047 = vmatmul.mubr.f32.gmra.mrb[0].mxu0 %v1046
        %v1048 = vpop.f32.mrb[0].mxu0
        %v1049 = vadd.f32 %v871, %v1048
        %v1050 = vpop.f32.mrb[0].mxu0
        %1051 = vmatprep.mubr.f32.mxu0 0.0
        %v1052 = vand.u32 %v486, 4294901760
        %v1053 = vsub.f32 %v486, %v1052
        %1054 = vmatmul.mubr.f32.gmra.mrb[0].mxu0 %v1053
        %v1055 = vpop.f32.mrb[0].mxu0
        %v1056 = vadd.f32 %v877, %v1055
        %v1057 = vpop.f32.mrb[0].mxu0
        %1058 = vmatprep.mubr.f32.mxu0 0.0
        %v1059 = vand.u32 %v489, 4294901760
        %v1060 = vsub.f32 %v489, %v1059
        %1061 = vmatmul.mubr.f32.gmra.mrb[0].mxu0 %v1060
        %v1062 = vpop.f32.mrb[0].mxu0
        %v1063 = vadd.f32 %v883, %v1062
        %v1064 = vpop.f32.mrb[0].mxu0
        %1065 = vmatprep.mubr.f32.mxu0 0.0
        %v1066 = vand.u32 %v492, 4294901760
        %v1067 = vsub.f32 %v492, %v1066
        %1068 = vmatmul.mubr.f32.gmra.mrb[0].mxu0 %v1067
        %v1069 = vpop.f32.mrb[0].mxu0
        %v1070 = vadd.f32 %v889, %v1069
        %v1071 = vpop.f32.mrb[0].mxu0
        %1072 = vmatprep.mubr.f32.mxu0 0.0
        %v1073 = vand.u32 %v495, 4294901760
        %v1074 = vsub.f32 %v495, %v1073
        %1075 = vmatmul.mubr.f32.gmra.mrb[0].mxu0 %v1074
        %v1076 = vpop.f32.mrb[0].mxu0
        %v1077 = vadd.f32 %v895, %v1076
        %v1078 = vpop.f32.mrb[0].mxu0
        %1079 = vmatprep.mubr.f32.mxu0 0.0
        %v1080 = vand.u32 %v498, 4294901760
        %v1081 = vsub.f32 %v498, %v1080
        %1082 = vmatmul.mubr.f32.gmra.mrb[0].mxu0 %v1081
        %v1083 = vpop.f32.mrb[0].mxu0
        %v1084 = vadd.f32 %v901, %v1083
        %v1085 = vpop.f32.mrb[0].mxu0
        %1086 = vmatprep.mubr.f32.mxu0 0.0
        %v1087 = vand.u32 %v501, 4294901760
        %v1088 = vsub.f32 %v501, %v1087
        %1089 = vmatmul.mubr.f32.gmra.mrb[0].mxu0 %v1088
        %v1090 = vpop.f32.mrb[0].mxu0
        %v1091 = vadd.f32 %v907, %v1090
        %v1092 = vpop.f32.mrb[0].mxu0
        %1093 = vmatprep.mubr.f32.mxu0 0.0
        %v1094 = vand.u32 %v504, 4294901760
        %v1095 = vsub.f32 %v504, %v1094
        %1096 = vmatmul.mubr.f32.gmra.mrb[0].mxu0 %v1095
        %v1097 = vpop.f32.mrb[0].mxu0
        %v1098 = vadd.f32 %v913, %v1097
        %v1099 = vpop.f32.mrb[0].mxu0
        %1100 = vmatprep.mubr.f32.mxu0 0.0
        %v1101 = vand.u32 %v507, 4294901760
        %v1102 = vsub.f32 %v507, %v1101
        %1103 = vmatmul.mubr.f32.gmra.mrb[0].mxu0 %v1102
        %v1104 = vpop.f32.mrb[0].mxu0
        %v1105 = vadd.f32 %v919, %v1104
        %v1106 = vpop.f32.mrb[0].mxu0
        %1107 = vmatprep.mubr.f32.mxu0 0.0
        %v1108 = vand.u32 %v510, 4294901760
        %v1109 = vsub.f32 %v510, %v1108
        %1110 = vmatmul.mubr.f32.gmra.mrb[0].mxu0 %v1109
        %v1111 = vpop.f32.mrb[0].mxu0
        %v1112 = vadd.f32 %v925, %v1111
        %v1113 = vpop.f32.mrb[0].mxu0
        %1114 = vmatprep.mubr.f32.mxu0 0.0
        %v1115 = vand.u32 %v513, 4294901760
        %v1116 = vsub.f32 %v513, %v1115
        %1117 = vmatmul.mubr.f32.gmra.mrb[0].mxu0 %v1116
        %v1118 = vpop.f32.mrb[0].mxu0
        %v1119 = vadd.f32 %v931, %v1118
        %v1120 = vpop.f32.mrb[0].mxu0
        %1121 = vmatprep.mubr.f32.mxu0 0.0
        %v1122 = vand.u32 %v516, 4294901760
        %v1123 = vsub.f32 %v516, %v1122
        %1124 = vmatmul.mubr.f32.gmra.mrb[0].mxu0 %v1123
        %v1125 = vpop.f32.mrb[0].mxu0
        %v1126 = vadd.f32 %v937, %v1125
        %v1127 = vpop.f32.mrb[0].mxu0
        %1128 = vmatprep.mubr.f32.mxu0 0.0
        %v1129 = vand.u32 %v519, 4294901760
        %v1130 = vsub.f32 %v519, %v1129
        %1131 = vmatmul.mubr.f32.gmra.mrb[0].mxu0 %v1130
        %v1132 = vpop.f32.mrb[0].mxu0
        %v1133 = vadd.f32 %v943, %v1132
        %v1134 = vpop.f32.mrb[0].mxu0
        %1135 = vmatprep.mubr.f32.mxu0 0.0
        %v1136 = vand.u32 %v522, 4294901760
        %v1137 = vsub.f32 %v522, %v1136
        %1138 = vmatmul.mubr.f32.gmra.mrb[0].mxu0 %v1137
        %v1139 = vpop.f32.mrb[0].mxu0
        %v1140 = vadd.f32 %v949, %v1139
        %v1141 = vpop.f32.mrb[0].mxu0
        %1142 = vmatprep.mubr.f32.mxu0 0.0
        %v1143 = vand.u32 %v525, 4294901760
        %v1144 = vsub.f32 %v525, %v1143
        %1145 = vmatmul.mubr.f32.gmra.mrb[0].mxu0 %v1144
        %v1146 = vpop.f32.mrb[0].mxu0
        %v1147 = vadd.f32 %v955, %v1146
        %v1148 = vpop.f32.mrb[0].mxu0
        %1149 = vmatprep.mubr.f32.mxu0 0.0
        %v1150 = vand.u32 %v528, 4294901760
        %v1151 = vsub.f32 %v528, %v1150
        %1152 = vmatmul.mubr.f32.gmra.mrb[0].mxu0 %v1151
        %v1153 = vpop.f32.mrb[0].mxu0
        %v1154 = vadd.f32 %v961, %v1153
        %v1155 = vpop.f32.mrb[0].mxu0
        %1156 = vdwg.mxu0
        %1157 = vmatprep.subr.mxu0 0.0
        %v1158 = vand.u32 %v469, 4294901760
        %1159 = vmatpush1.msra.mxu0 %v1158
        %1160 = vmatprep.subr.mxu0 0.0
        %v1161 = vand.u32 %v470, 4294901760
        %1162 = vmatpush1.msra.mxu0 %v1161
        %1163 = vmatprep.subr.mxu0 0.0
        %v1164 = vand.u32 %v471, 4294901760
        %1165 = vmatpush1.msra.mxu0 %v1164
        %1166 = vmatprep.subr.mxu0 0.0
        %v1167 = vand.u32 %v472, 4294901760
        %1168 = vmatpush1.msra.mxu0 %v1167
        %1169 = vmatprep.subr.mxu0 0.0
        %v1170 = vand.u32 %v473, 4294901760
        %1171 = vmatpush1.msra.mxu0 %v1170
        %1172 = vmatprep.subr.mxu0 0.0
        %v1173 = vand.u32 %v474, 4294901760
        %1174 = vmatpush1.msra.mxu0 %v1173
        %1175 = vmatprep.subr.mxu0 0.0
        %v1176 = vand.u32 %v475, 4294901760
        %1177 = vmatpush1.msra.mxu0 %v1176
        %1178 = vmatprep.subr.mxu0 0.0
        %v1179 = vand.u32 %v476, 4294901760
        %1180 = vmatpush1.msra.mxu0 %v1179
        %1181 = vmatprep.subr.mxu0 0.0
        %1182 = vmatpush1.msra.mxu0 0.0
        %1183 = vmatprep.subr.mxu0 0.0
        %1184 = vmatpush1.msra.mxu0 0.0
        %1185 = vmatprep.subr.mxu0 0.0
        %1186 = vmatpush1.msra.mxu0 0.0
        %1187 = vmatprep.subr.mxu0 0.0
        %1188 = vmatpush1.msra.mxu0 0.0
        %1189 = vmatprep.subr.mxu0 0.0
        %1190 = vmatpush1.msra.mxu0 0.0
        %1191 = vmatprep.subr.mxu0 0.0
        %1192 = vmatpush1.msra.mxu0 0.0
        %1193 = vmatprep.subr.mxu0 0.0
        %1194 = vmatpush1.msra.mxu0 0.0
        %1195 = vmatprep.subr.mxu0 0.0
        %1196 = vmatpush1.msra.mxu0 0.0
        %1197 = vmatprep.subr.mxu0 0.0
        %1198 = vmatpush1.msra.mxu0 0.0
        %1199 = vmatprep.subr.mxu0 0.0
        %1200 = vmatpush1.msra.mxu0 0.0
        %1201 = vmatprep.subr.mxu0 0.0
        %1202 = vmatpush1.msra.mxu0 0.0
        %1203 = vmatprep.subr.mxu0 0.0
        %1204 = vmatpush1.msra.mxu0 0.0
        %1205 = vmatprep.subr.mxu0 0.0
        %1206 = vmatpush1.msra.mxu0 0.0
        %1207 = vmatprep.subr.mxu0 0.0
        %1208 = vmatpush1.msra.mxu0 0.0
        %1209 = vmatprep.subr.mxu0 0.0
        %1210 = vmatpush1.msra.mxu0 0.0
        %1211 = vmatprep.subr.mxu0 0.0
        %1212 = vmatpush1.msra.mxu0 0.0
        %1213 = vmatprep.subr.mxu0 0.0
        %1214 = vmatpush1.msra.mxu0 0.0
        %1215 = vmatprep.subr.mxu0 0.0
        %1216 = vmatpush1.msra.mxu0 0.0
        %1217 = vmatprep.subr.mxu0 0.0
        %1218 = vmatpush1.msra.mxu0 0.0
        %1219 = vmatprep.subr.mxu0 0.0
        %1220 = vmatpush1.msra.mxu0 0.0
        %1221 = vmatprep.subr.mxu0 0.0
        %1222 = vmatpush1.msra.mxu0 0.0
        %1223 = vmatprep.subr.mxu0 0.0
        %1224 = vmatpush1.msra.mxu0 0.0
        %1225 = vmatprep.subr.mxu0 0.0
        %1226 = vmatpush1.msra.mxu0 0.0
        %1227 = vmatprep.subr.mxu0 0.0
        %1228 = vmatpush1.msra.mxu0 0.0
        %1229 = vmatprep.mubr.f32.mxu0 0.0
        %v1230 = vand.u32 %v483, 4294901760
        %v1231 = vsub.f32 %v483, %v1230
        %v1232 = vand.u32 %v1231, 4294901760
        %1233 = vmatmul.mubr.f32.gmra.mrb[0].mxu0 %v1232
        %v1234 = vpop.f32.mrb[0].mxu0
        %v1235 = vadd.f32 %v1049, %v1234
        %v1236 = vpop.f32.mrb[0].mxu0
        %1237 = vmatprep.mubr.f32.mxu0 0.0
        %v1238 = vand.u32 %v486, 4294901760
        %v1239 = vsub.f32 %v486, %v1238
        %v1240 = vand.u32 %v1239, 4294901760
        %1241 = vmatmul.mubr.f32.gmra.mrb[0].mxu0 %v1240
        %v1242 = vpop.f32.mrb[0].mxu0
        %v1243 = vadd.f32 %v1056, %v1242
        %v1244 = vpop.f32.mrb[0].mxu0
        %1245 = vmatprep.mubr.f32.mxu0 0.0
        %v1246 = vand.u32 %v489, 4294901760
        %v1247 = vsub.f32 %v489, %v1246
        %v1248 = vand.u32 %v1247, 4294901760
        %1249 = vmatmul.mubr.f32.gmra.mrb[0].mxu0 %v1248
        %v1250 = vpop.f32.mrb[0].mxu0
        %v1251 = vadd.f32 %v1063, %v1250
        %v1252 = vpop.f32.mrb[0].mxu0
        %1253 = vmatprep.mubr.f32.mxu0 0.0
        %v1254 = vand.u32 %v492, 4294901760
        %v1255 = vsub.f32 %v492, %v1254
        %v1256 = vand.u32 %v1255, 4294901760
        %1257 = vmatmul.mubr.f32.gmra.mrb[0].mxu0 %v1256
        %v1258 = vpop.f32.mrb[0].mxu0
        %v1259 = vadd.f32 %v1070, %v1258
        %v1260 = vpop.f32.mrb[0].mxu0
        %1261 = vmatprep.mubr.f32.mxu0 0.0
        %v1262 = vand.u32 %v495, 4294901760
        %v1263 = vsub.f32 %v495, %v1262
        %v1264 = vand.u32 %v1263, 4294901760
        %1265 = vmatmul.mubr.f32.gmra.mrb[0].mxu0 %v1264
        %v1266 = vpop.f32.mrb[0].mxu0
        %v1267 = vadd.f32 %v1077, %v1266
        %v1268 = vpop.f32.mrb[0].mxu0
        %1269 = vmatprep.mubr.f32.mxu0 0.0
        %v1270 = vand.u32 %v498, 4294901760
        %v1271 = vsub.f32 %v498, %v1270
        %v1272 = vand.u32 %v1271, 4294901760
        %1273 = vmatmul.mubr.f32.gmra.mrb[0].mxu0 %v1272
        %v1274 = vpop.f32.mrb[0].mxu0
        %v1275 = vadd.f32 %v1084, %v1274
        %v1276 = vpop.f32.mrb[0].mxu0
        %1277 = vmatprep.mubr.f32.mxu0 0.0
        %v1278 = vand.u32 %v501, 4294901760
        %v1279 = vsub.f32 %v501, %v1278
        %v1280 = vand.u32 %v1279, 4294901760
        %1281 = vmatmul.mubr.f32.gmra.mrb[0].mxu0 %v1280
        %v1282 = vpop.f32.mrb[0].mxu0
        %v1283 = vadd.f32 %v1091, %v1282
        %v1284 = vpop.f32.mrb[0].mxu0
        %1285 = vmatprep.mubr.f32.mxu0 0.0
        %v1286 = vand.u32 %v504, 4294901760
        %v1287 = vsub.f32 %v504, %v1286
        %v1288 = vand.u32 %v1287, 4294901760
        %1289 = vmatmul.mubr.f32.gmra.mrb[0].mxu0 %v1288
        %v1290 = vpop.f32.mrb[0].mxu0
        %v1291 = vadd.f32 %v1098, %v1290
        %v1292 = vpop.f32.mrb[0].mxu0
        %1293 = vmatprep.mubr.f32.mxu0 0.0
        %v1294 = vand.u32 %v507, 4294901760
        %v1295 = vsub.f32 %v507, %v1294
        %v1296 = vand.u32 %v1295, 4294901760
        %1297 = vmatmul.mubr.f32.gmra.mrb[0].mxu0 %v1296
        %v1298 = vpop.f32.mrb[0].mxu0
        %v1299 = vadd.f32 %v1105, %v1298
        %v1300 = vpop.f32.mrb[0].mxu0
        %1301 = vmatprep.mubr.f32.mxu0 0.0
        %v1302 = vand.u32 %v510, 4294901760
        %v1303 = vsub.f32 %v510, %v1302
        %v1304 = vand.u32 %v1303, 4294901760
        %1305 = vmatmul.mubr.f32.gmra.mrb[0].mxu0 %v1304
        %v1306 = vpop.f32.mrb[0].mxu0
        %v1307 = vadd.f32 %v1112, %v1306
        %v1308 = vpop.f32.mrb[0].mxu0
        %1309 = vmatprep.mubr.f32.mxu0 0.0
        %v1310 = vand.u32 %v513, 4294901760
        %v1311 = vsub.f32 %v513, %v1310
        %v1312 = vand.u32 %v1311, 4294901760
        %1313 = vmatmul.mubr.f32.gmra.mrb[0].mxu0 %v1312
        %v1314 = vpop.f32.mrb[0].mxu0
        %v1315 = vadd.f32 %v1119, %v1314
        %v1316 = vpop.f32.mrb[0].mxu0
        %1317 = vmatprep.mubr.f32.mxu0 0.0
        %v1318 = vand.u32 %v516, 4294901760
        %v1319 = vsub.f32 %v516, %v1318
        %v1320 = vand.u32 %v1319, 4294901760
        %1321 = vmatmul.mubr.f32.gmra.mrb[0].mxu0 %v1320
        %v1322 = vpop.f32.mrb[0].mxu0
        %v1323 = vadd.f32 %v1126, %v1322
        %v1324 = vpop.f32.mrb[0].mxu0
        %1325 = vmatprep.mubr.f32.mxu0 0.0
        %v1326 = vand.u32 %v519, 4294901760
        %v1327 = vsub.f32 %v519, %v1326
        %v1328 = vand.u32 %v1327, 4294901760
        %1329 = vmatmul.mubr.f32.gmra.mrb[0].mxu0 %v1328
        %v1330 = vpop.f32.mrb[0].mxu0
        %v1331 = vadd.f32 %v1133, %v1330
        %v1332 = vpop.f32.mrb[0].mxu0
        %1333 = vmatprep.mubr.f32.mxu0 0.0
        %v1334 = vand.u32 %v522, 4294901760
        %v1335 = vsub.f32 %v522, %v1334
        %v1336 = vand.u32 %v1335, 4294901760
        %1337 = vmatmul.mubr.f32.gmra.mrb[0].mxu0 %v1336
        %v1338 = vpop.f32.mrb[0].mxu0
        %v1339 = vadd.f32 %v1140, %v1338
        %v1340 = vpop.f32.mrb[0].mxu0
        %1341 = vmatprep.mubr.f32.mxu0 0.0
        %v1342 = vand.u32 %v525, 4294901760
        %v1343 = vsub.f32 %v525, %v1342
        %v1344 = vand.u32 %v1343, 4294901760
        %1345 = vmatmul.mubr.f32.gmra.mrb[0].mxu0 %v1344
        %v1346 = vpop.f32.mrb[0].mxu0
        %v1347 = vadd.f32 %v1147, %v1346
        %v1348 = vpop.f32.mrb[0].mxu0
        %1349 = vmatprep.mubr.f32.mxu0 0.0
        %v1350 = vand.u32 %v528, 4294901760
        %v1351 = vsub.f32 %v528, %v1350
        %v1352 = vand.u32 %v1351, 4294901760
        %1353 = vmatmul.mubr.f32.gmra.mrb[0].mxu0 %v1352
        %v1354 = vpop.f32.mrb[0].mxu0
        %v1355 = vadd.f32 %v1154, %v1354
        %v1356 = vpop.f32.mrb[0].mxu0
        %1357 = vdwg.mxu0
        %1358 = vmatprep.subr.mxu0 0.0
        %v1359 = vand.u32 %v469, 4294901760
        %v1360 = vsub.f32 %v469, %v1359
        %v1361 = vand.u32 %v1360, 4294901760
        %1362 = vmatpush1.msra.mxu0 %v1361
        %1363 = vmatprep.subr.mxu0 0.0
        %v1364 = vand.u32 %v470, 4294901760
        %v1365 = vsub.f32 %v470, %v1364
        %v1366 = vand.u32 %v1365, 4294901760
        %1367 = vmatpush1.msra.mxu0 %v1366
        %1368 = vmatprep.subr.mxu0 0.0
        %v1369 = vand.u32 %v471, 4294901760
        %v1370 = vsub.f32 %v471, %v1369
        %v1371 = vand.u32 %v1370, 4294901760
        %1372 = vmatpush1.msra.mxu0 %v1371
        %1373 = vmatprep.subr.mxu0 0.0
        %v1374 = vand.u32 %v472, 4294901760
        %v1375 = vsub.f32 %v472, %v1374
        %v1376 = vand.u32 %v1375, 4294901760
        %1377 = vmatpush1.msra.mxu0 %v1376
        %1378 = vmatprep.subr.mxu0 0.0
        %v1379 = vand.u32 %v473, 4294901760
        %v1380 = vsub.f32 %v473, %v1379
        %v1381 = vand.u32 %v1380, 4294901760
        %1382 = vmatpush1.msra.mxu0 %v1381
        %1383 = vmatprep.subr.mxu0 0.0
        %v1384 = vand.u32 %v474, 4294901760
        %v1385 = vsub.f32 %v474, %v1384
        %v1386 = vand.u32 %v1385, 4294901760
        %1387 = vmatpush1.msra.mxu0 %v1386
        %1388 = vmatprep.subr.mxu0 0.0
        %v1389 = vand.u32 %v475, 4294901760
        %v1390 = vsub.f32 %v475, %v1389
        %v1391 = vand.u32 %v1390, 4294901760
        %1392 = vmatpush1.msra.mxu0 %v1391
        %1393 = vmatprep.subr.mxu0 0.0
        %v1394 = vand.u32 %v476, 4294901760
        %v1395 = vsub.f32 %v476, %v1394
        %v1396 = vand.u32 %v1395, 4294901760
        %1397 = vmatpush1.msra.mxu0 %v1396
        %1398 = vmatprep.subr.mxu0 0.0
        %1399 = vmatpush1.msra.mxu0 0.0
        %1400 = vmatprep.subr.mxu0 0.0
        %1401 = vmatpush1.msra.mxu0 0.0
        %1402 = vmatprep.subr.mxu0 0.0
        %1403 = vmatpush1.msra.mxu0 0.0
        %1404 = vmatprep.subr.mxu0 0.0
        %1405 = vmatpush1.msra.mxu0 0.0
        %1406 = vmatprep.subr.mxu0 0.0
        %1407 = vmatpush1.msra.mxu0 0.0
        %1408 = vmatprep.subr.mxu0 0.0
        %1409 = vmatpush1.msra.mxu0 0.0
        %1410 = vmatprep.subr.mxu0 0.0
        %1411 = vmatpush1.msra.mxu0 0.0
        %1412 = vmatprep.subr.mxu0 0.0
        %1413 = vmatpush1.msra.mxu0 0.0
        %1414 = vmatprep.subr.mxu0 0.0
        %1415 = vmatpush1.msra.mxu0 0.0
        %1416 = vmatprep.subr.mxu0 0.0
        %1417 = vmatpush1.msra.mxu0 0.0
        %1418 = vmatprep.subr.mxu0 0.0
        %1419 = vmatpush1.msra.mxu0 0.0
        %1420 = vmatprep.subr.mxu0 0.0
        %1421 = vmatpush1.msra.mxu0 0.0
        %1422 = vmatprep.subr.mxu0 0.0
        %1423 = vmatpush1.msra.mxu0 0.0
        %1424 = vmatprep.subr.mxu0 0.0
        %1425 = vmatpush1.msra.mxu0 0.0
        %1426 = vmatprep.subr.mxu0 0.0
        %1427 = vmatpush1.msra.mxu0 0.0
        %1428 = vmatprep.subr.mxu0 0.0
        %1429 = vmatpush1.msra.mxu0 0.0
        %1430 = vmatprep.subr.mxu0 0.0
        %1431 = vmatpush1.msra.mxu0 0.0
        %1432 = vmatprep.subr.mxu0 0.0
        %1433 = vmatpush1.msra.mxu0 0.0
        %1434 = vmatprep.subr.mxu0 0.0
        %1435 = vmatpush1.msra.mxu0 0.0
        %1436 = vmatprep.subr.mxu0 0.0
        %1437 = vmatpush1.msra.mxu0 0.0
        %1438 = vmatprep.subr.mxu0 0.0
        %1439 = vmatpush1.msra.mxu0 0.0
        %1440 = vmatprep.subr.mxu0 0.0
        %1441 = vmatpush1.msra.mxu0 0.0
        %1442 = vmatprep.subr.mxu0 0.0
        %1443 = vmatpush1.msra.mxu0 0.0
        %1444 = vmatprep.subr.mxu0 0.0
        %1445 = vmatpush1.msra.mxu0 0.0
        %1446 = vmatprep.mubr.f32.mxu0 0.0
        %v1447 = vand.u32 %v483, 4294901760
        %1448 = vmatmul.mubr.f32.gmra.mrb[0].mxu0 %v1447
        %v1449 = vpop.f32.mrb[0].mxu0
        %v1450 = vadd.f32 %v1235, %v1449
        %v1451 = vpop.f32.mrb[0].mxu0
        %1452 = vmatprep.mubr.f32.mxu0 0.0
        %v1453 = vand.u32 %v486, 4294901760
        %1454 = vmatmul.mubr.f32.gmra.mrb[0].mxu0 %v1453
        %v1455 = vpop.f32.mrb[0].mxu0
        %v1456 = vadd.f32 %v1243, %v1455
        %v1457 = vpop.f32.mrb[0].mxu0
        %1458 = vmatprep.mubr.f32.mxu0 0.0
        %v1459 = vand.u32 %v489, 4294901760
        %1460 = vmatmul.mubr.f32.gmra.mrb[0].mxu0 %v1459
        %v1461 = vpop.f32.mrb[0].mxu0
        %v1462 = vadd.f32 %v1251, %v1461
        %v1463 = vpop.f32.mrb[0].mxu0
        %1464 = vmatprep.mubr.f32.mxu0 0.0
        %v1465 = vand.u32 %v492, 4294901760
        %1466 = vmatmul.mubr.f32.gmra.mrb[0].mxu0 %v1465
        %v1467 = vpop.f32.mrb[0].mxu0
        %v1468 = vadd.f32 %v1259, %v1467
        %v1469 = vpop.f32.mrb[0].mxu0
        %1470 = vmatprep.mubr.f32.mxu0 0.0
        %v1471 = vand.u32 %v495, 4294901760
        %1472 = vmatmul.mubr.f32.gmra.mrb[0].mxu0 %v1471
        %v1473 = vpop.f32.mrb[0].mxu0
        %v1474 = vadd.f32 %v1267, %v1473
        %v1475 = vpop.f32.mrb[0].mxu0
        %1476 = vmatprep.mubr.f32.mxu0 0.0
        %v1477 = vand.u32 %v498, 4294901760
        %1478 = vmatmul.mubr.f32.gmra.mrb[0].mxu0 %v1477
        %v1479 = vpop.f32.mrb[0].mxu0
        %v1480 = vadd.f32 %v1275, %v1479
        %v1481 = vpop.f32.mrb[0].mxu0
        %1482 = vmatprep.mubr.f32.mxu0 0.0
        %v1483 = vand.u32 %v501, 4294901760
        %1484 = vmatmul.mubr.f32.gmra.mrb[0].mxu0 %v1483
        %v1485 = vpop.f32.mrb[0].mxu0
        %v1486 = vadd.f32 %v1283, %v1485
        %v1487 = vpop.f32.mrb[0].mxu0
        %1488 = vmatprep.mubr.f32.mxu0 0.0
        %v1489 = vand.u32 %v504, 4294901760
        %1490 = vmatmul.mubr.f32.gmra.mrb[0].mxu0 %v1489
        %v1491 = vpop.f32.mrb[0].mxu0
        %v1492 = vadd.f32 %v1291, %v1491
        %v1493 = vpop.f32.mrb[0].mxu0
        %1494 = vmatprep.mubr.f32.mxu0 0.0
        %v1495 = vand.u32 %v507, 4294901760
        %1496 = vmatmul.mubr.f32.gmra.mrb[0].mxu0 %v1495
        %v1497 = vpop.f32.mrb[0].mxu0
        %v1498 = vadd.f32 %v1299, %v1497
        %v1499 = vpop.f32.mrb[0].mxu0
        %1500 = vmatprep.mubr.f32.mxu0 0.0
        %v1501 = vand.u32 %v510, 4294901760
        %1502 = vmatmul.mubr.f32.gmra.mrb[0].mxu0 %v1501
        %v1503 = vpop.f32.mrb[0].mxu0
        %v1504 = vadd.f32 %v1307, %v1503
        %v1505 = vpop.f32.mrb[0].mxu0
        %1506 = vmatprep.mubr.f32.mxu0 0.0
        %v1507 = vand.u32 %v513, 4294901760
        %1508 = vmatmul.mubr.f32.gmra.mrb[0].mxu0 %v1507
        %v1509 = vpop.f32.mrb[0].mxu0
        %v1510 = vadd.f32 %v1315, %v1509
        %v1511 = vpop.f32.mrb[0].mxu0
        %1512 = vmatprep.mubr.f32.mxu0 0.0
        %v1513 = vand.u32 %v516, 4294901760
        %1514 = vmatmul.mubr.f32.gmra.mrb[0].mxu0 %v1513
        %v1515 = vpop.f32.mrb[0].mxu0
        %v1516 = vadd.f32 %v1323, %v1515
        %v1517 = vpop.f32.mrb[0].mxu0
        %1518 = vmatprep.mubr.f32.mxu0 0.0
        %v1519 = vand.u32 %v519, 4294901760
        %1520 = vmatmul.mubr.f32.gmra.mrb[0].mxu0 %v1519
        %v1521 = vpop.f32.mrb[0].mxu0
        %v1522 = vadd.f32 %v1331, %v1521
        %v1523 = vpop.f32.mrb[0].mxu0
        %1524 = vmatprep.mubr.f32.mxu0 0.0
        %v1525 = vand.u32 %v522, 4294901760
        %1526 = vmatmul.mubr.f32.gmra.mrb[0].mxu0 %v1525
        %v1527 = vpop.f32.mrb[0].mxu0
        %v1528 = vadd.f32 %v1339, %v1527
        %v1529 = vpop.f32.mrb[0].mxu0
        %1530 = vmatprep.mubr.f32.mxu0 0.0
        %v1531 = vand.u32 %v525, 4294901760
        %1532 = vmatmul.mubr.f32.gmra.mrb[0].mxu0 %v1531
        %v1533 = vpop.f32.mrb[0].mxu0
        %v1534 = vadd.f32 %v1347, %v1533
        %v1535 = vpop.f32.mrb[0].mxu0
        %1536 = vmatprep.mubr.f32.mxu0 0.0
        %v1537 = vand.u32 %v528, 4294901760
        %1538 = vmatmul.mubr.f32.gmra.mrb[0].mxu0 %v1537
        %v1539 = vpop.f32.mrb[0].mxu0
        %v1540 = vadd.f32 %v1355, %v1539
        %v1541 = vpop.f32.mrb[0].mxu0
        %1542 = vdwg.mxu0
        %1543 = vmatprep.subr.mxu0 0.0
        %v1544 = vand.u32 %v469, 4294901760
        %1545 = vmatpush1.msra.mxu0 %v1544
        %1546 = vmatprep.subr.mxu0 0.0
        %v1547 = vand.u32 %v470, 4294901760
        %1548 = vmatpush1.msra.mxu0 %v1547
        %1549 = vmatprep.subr.mxu0 0.0
        %v1550 = vand.u32 %v471, 4294901760
        %1551 = vmatpush1.msra.mxu0 %v1550
        %1552 = vmatprep.subr.mxu0 0.0
        %v1553 = vand.u32 %v472, 4294901760
        %1554 = vmatpush1.msra.mxu0 %v1553
        %1555 = vmatprep.subr.mxu0 0.0
        %v1556 = vand.u32 %v473, 4294901760
        %1557 = vmatpush1.msra.mxu0 %v1556
        %1558 = vmatprep.subr.mxu0 0.0
        %v1559 = vand.u32 %v474, 4294901760
        %1560 = vmatpush1.msra.mxu0 %v1559
        %1561 = vmatprep.subr.mxu0 0.0
        %v1562 = vand.u32 %v475, 4294901760
        %1563 = vmatpush1.msra.mxu0 %v1562
        %1564 = vmatprep.subr.mxu0 0.0
        %v1565 = vand.u32 %v476, 4294901760
        %1566 = vmatpush1.msra.mxu0 %v1565
        %1567 = vmatprep.subr.mxu0 0.0
        %1568 = vmatpush1.msra.mxu0 0.0
        %1569 = vmatprep.subr.mxu0 0.0
        %1570 = vmatpush1.msra.mxu0 0.0
        %1571 = vmatprep.subr.mxu0 0.0
        %1572 = vmatpush1.msra.mxu0 0.0
        %1573 = vmatprep.subr.mxu0 0.0
        %1574 = vmatpush1.msra.mxu0 0.0
        %1575 = vmatprep.subr.mxu0 0.0
        %1576 = vmatpush1.msra.mxu0 0.0
        %1577 = vmatprep.subr.mxu0 0.0
        %1578 = vmatpush1.msra.mxu0 0.0
        %1579 = vmatprep.subr.mxu0 0.0
        %1580 = vmatpush1.msra.mxu0 0.0
        %1581 = vmatprep.subr.mxu0 0.0
        %1582 = vmatpush1.msra.mxu0 0.0
        %1583 = vmatprep.subr.mxu0 0.0
        %1584 = vmatpush1.msra.mxu0 0.0
        %1585 = vmatprep.subr.mxu0 0.0
        %1586 = vmatpush1.msra.mxu0 0.0
        %1587 = vmatprep.subr.mxu0 0.0
        %1588 = vmatpush1.msra.mxu0 0.0
        %1589 = vmatprep.subr.mxu0 0.0
        %1590 = vmatpush1.msra.mxu0 0.0
        %1591 = vmatprep.subr.mxu0 0.0
        %1592 = vmatpush1.msra.mxu0 0.0
        %1593 = vmatprep.subr.mxu0 0.0
        %1594 = vmatpush1.msra.mxu0 0.0
        %1595 = vmatprep.subr.mxu0 0.0
        %1596 = vmatpush1.msra.mxu0 0.0
        %1597 = vmatprep.subr.mxu0 0.0
        %1598 = vmatpush1.msra.mxu0 0.0
        %1599 = vmatprep.subr.mxu0 0.0
        %1600 = vmatpush1.msra.mxu0 0.0
        %1601 = vmatprep.subr.mxu0 0.0
        %1602 = vmatpush1.msra.mxu0 0.0
        %1603 = vmatprep.subr.mxu0 0.0
        %1604 = vmatpush1.msra.mxu0 0.0
        %1605 = vmatprep.subr.mxu0 0.0
        %1606 = vmatpush1.msra.mxu0 0.0
        %1607 = vmatprep.subr.mxu0 0.0
        %1608 = vmatpush1.msra.mxu0 0.0
        %1609 = vmatprep.subr.mxu0 0.0
        %1610 = vmatpush1.msra.mxu0 0.0
        %1611 = vmatprep.subr.mxu0 0.0
        %1612 = vmatpush1.msra.mxu0 0.0
        %1613 = vmatprep.subr.mxu0 0.0
        %1614 = vmatpush1.msra.mxu0 0.0
        %1615 = vmatprep.mubr.f32.mxu0 0.0
        %v1616 = vand.u32 %v483, 4294901760
        %1617 = vmatmul.mubr.f32.gmra.mrb[0].mxu0 %v1616
        %v1618 = vpop.f32.mrb[0].mxu0
        %v1619 = vadd.f32 %v1450, %v1618
        %v1620 = vpop.f32.mrb[0].mxu0
        %1621 = vmatprep.mubr.f32.mxu0 0.0
        %v1622 = vand.u32 %v486, 4294901760
        %1623 = vmatmul.mubr.f32.gmra.mrb[0].mxu0 %v1622
        %v1624 = vpop.f32.mrb[0].mxu0
        %v1625 = vadd.f32 %v1456, %v1624
        %v1626 = vpop.f32.mrb[0].mxu0
        %1627 = vmatprep.mubr.f32.mxu0 0.0
        %v1628 = vand.u32 %v489, 4294901760
        %1629 = vmatmul.mubr.f32.gmra.mrb[0].mxu0 %v1628
        %v1630 = vpop.f32.mrb[0].mxu0
        %v1631 = vadd.f32 %v1462, %v1630
        %v1632 = vpop.f32.mrb[0].mxu0
        %1633 = vmatprep.mubr.f32.mxu0 0.0
        %v1634 = vand.u32 %v492, 4294901760
        %1635 = vmatmul.mubr.f32.gmra.mrb[0].mxu0 %v1634
        %v1636 = vpop.f32.mrb[0].mxu0
        %v1637 = vadd.f32 %v1468, %v1636
        %v1638 = vpop.f32.mrb[0].mxu0
        %1639 = vmatprep.mubr.f32.mxu0 0.0
        %v1640 = vand.u32 %v495, 4294901760
        %1641 = vmatmul.mubr.f32.gmra.mrb[0].mxu0 %v1640
        %v1642 = vpop.f32.mrb[0].mxu0
        %v1643 = vadd.f32 %v1474, %v1642
        %v1644 = vpop.f32.mrb[0].mxu0
        %1645 = vmatprep.mubr.f32.mxu0 0.0
        %v1646 = vand.u32 %v498, 4294901760
        %1647 = vmatmul.mubr.f32.gmra.mrb[0].mxu0 %v1646
        %v1648 = vpop.f32.mrb[0].mxu0
        %v1649 = vadd.f32 %v1480, %v1648
        %v1650 = vpop.f32.mrb[0].mxu0
        %1651 = vmatprep.mubr.f32.mxu0 0.0
        %v1652 = vand.u32 %v501, 4294901760
        %1653 = vmatmul.mubr.f32.gmra.mrb[0].mxu0 %v1652
        %v1654 = vpop.f32.mrb[0].mxu0
        %v1655 = vadd.f32 %v1486, %v1654
        %v1656 = vpop.f32.mrb[0].mxu0
        %1657 = vmatprep.mubr.f32.mxu0 0.0
        %v1658 = vand.u32 %v504, 4294901760
        %1659 = vmatmul.mubr.f32.gmra.mrb[0].mxu0 %v1658
        %v1660 = vpop.f32.mrb[0].mxu0
        %v1661 = vadd.f32 %v1492, %v1660
        %v1662 = vpop.f32.mrb[0].mxu0
        %1663 = vmatprep.mubr.f32.mxu0 0.0
        %v1664 = vand.u32 %v507, 4294901760
        %1665 = vmatmul.mubr.f32.gmra.mrb[0].mxu0 %v1664
        %v1666 = vpop.f32.mrb[0].mxu0
        %v1667 = vadd.f32 %v1498, %v1666
        %v1668 = vpop.f32.mrb[0].mxu0
        %1669 = vmatprep.mubr.f32.mxu0 0.0
        %v1670 = vand.u32 %v510, 4294901760
        %1671 = vmatmul.mubr.f32.gmra.mrb[0].mxu0 %v1670
        %v1672 = vpop.f32.mrb[0].mxu0
        %v1673 = vadd.f32 %v1504, %v1672
        %v1674 = vpop.f32.mrb[0].mxu0
        %1675 = vmatprep.mubr.f32.mxu0 0.0
        %v1676 = vand.u32 %v513, 4294901760
        %1677 = vmatmul.mubr.f32.gmra.mrb[0].mxu0 %v1676
        %v1678 = vpop.f32.mrb[0].mxu0
        %v1679 = vadd.f32 %v1510, %v1678
        %v1680 = vpop.f32.mrb[0].mxu0
        %1681 = vmatprep.mubr.f32.mxu0 0.0
        %v1682 = vand.u32 %v516, 4294901760
        %1683 = vmatmul.mubr.f32.gmra.mrb[0].mxu0 %v1682
        %v1684 = vpop.f32.mrb[0].mxu0
        %v1685 = vadd.f32 %v1516, %v1684
        %v1686 = vpop.f32.mrb[0].mxu0
        %1687 = vmatprep.mubr.f32.mxu0 0.0
        %v1688 = vand.u32 %v519, 4294901760
        %1689 = vmatmul.mubr.f32.gmra.mrb[0].mxu0 %v1688
        %v1690 = vpop.f32.mrb[0].mxu0
        %v1691 = vadd.f32 %v1522, %v1690
        %v1692 = vpop.f32.mrb[0].mxu0
        %1693 = vmatprep.mubr.f32.mxu0 0.0
        %v1694 = vand.u32 %v522, 4294901760
        %1695 = vmatmul.mubr.f32.gmra.mrb[0].mxu0 %v1694
        %v1696 = vpop.f32.mrb[0].mxu0
        %v1697 = vadd.f32 %v1528, %v1696
        %v1698 = vpop.f32.mrb[0].mxu0
        %1699 = vmatprep.mubr.f32.mxu0 0.0
        %v1700 = vand.u32 %v525, 4294901760
        %1701 = vmatmul.mubr.f32.gmra.mrb[0].mxu0 %v1700
        %v1702 = vpop.f32.mrb[0].mxu0
        %v1703 = vadd.f32 %v1534, %v1702
        %v1704 = vpop.f32.mrb[0].mxu0
        %1705 = vmatprep.mubr.f32.mxu0 0.0
        %v1706 = vand.u32 %v528, 4294901760
        %1707 = vmatmul.mubr.f32.gmra.mrb[0].mxu0 %v1706
        %v1708 = vpop.f32.mrb[0].mxu0
        %v1709 = vadd.f32 %v1540, %v1708
        %v1710 = vpop.f32.mrb[0].mxu0
        %1711 = vdwg.mxu0
        %v1712 = vmax.f32 %v1619, 0.0
        %v1713 = vmax.f32 %v1625, 0.0
        %v1714 = vmax.f32 %v1631, 0.0
        %v1715 = vmax.f32 %v1637, 0.0
        %v1716 = vmax.f32 %v1643, 0.0
        %v1717 = vmax.f32 %v1649, 0.0
        %v1718 = vmax.f32 %v1655, 0.0
        %v1719 = vmax.f32 %v1661, 0.0
        %v1720 = vmax.f32 %v1667, 0.0
        %v1721 = vmax.f32 %v1673, 0.0
        %v1722 = vmax.f32 %v1679, 0.0
        %v1723 = vmax.f32 %v1685, 0.0
        %v1724 = vmax.f32 %v1691, 0.0
        %v1725 = vmax.f32 %v1697, 0.0
        %v1726 = vmax.f32 %v1703, 0.0
        %v1727 = vmax.f32 %v1709, 0.0
        %v1728 = vld [vmem:[%s440] sm:$0xff]
        %v1729 = vld [vmem:[%s440 + $0x8] sm:$0xff]
        %v1730 = vld [vmem:[%s440 + $0x10] sm:$0xff]
        %v1731 = vld [vmem:[%s440 + $0x18] sm:$0xff]
        %v1732 = vld [vmem:[%s440 + $0x20] sm:$0xff]
        %v1733 = vld [vmem:[%s440 + $0x28] sm:$0xff]
        %v1734 = vld [vmem:[%s440 + $0x30] sm:$0xff]
        %v1735 = vld [vmem:[%s440 + $0x38] sm:$0xff]
        %v1736 = vld [vmem:[%s440 + $0x40] sm:$0xff]
        %v1737 = vld [vmem:[%s440 + $0x48] sm:$0xff]
        %v1738 = vld [vmem:[%s440 + $0x50] sm:$0xff]
        %v1739 = vld [vmem:[%s440 + $0x58] sm:$0xff]
        %v1740 = vld [vmem:[%s440 + $0x60] sm:$0xff]
        %v1741 = vld [vmem:[%s440 + $0x68] sm:$0xff]
        %v1742 = vld [vmem:[%s440 + $0x70] sm:$0xff]
        %v1743 = vld [vmem:[%s440 + $0x78] sm:$0xff]
        %v1744 = vld [vmem:[#allocation2] sm:$0xff]
        %v1745 = vld [vmem:[#allocation2 + $0x8] sm:$0xff]
        %v1746 = vld [vmem:[#allocation2 + $0x10] sm:$0xff]
        %v1747 = vld [vmem:[#allocation2 + $0x18] sm:$0xff]
        %v1748 = vlaneseq
        %v1749 = vshrl.u32 %v1748, 7
        %v1750 = vsub.s32 0, %v1749
        %v1751 = vrot.slane %v451, %v1750
        %vm1752 = vcmask 261120
        %v1754 = vsel %vm1752, %v1728, 0
        %v1757 = vsel %vm1752, %v1729, 0
        %v1760 = vsel %vm1752, %v1730, 0
        %v1763 = vsel %vm1752, %v1731, 0
        %v1766 = vsel %vm1752, %v1732, 0
        %v1769 = vsel %vm1752, %v1733, 0
        %v1772 = vsel %vm1752, %v1734, 0
        %v1775 = vsel %vm1752, %v1735, 0
        %v1778 = vsel %vm1752, %v1736, 0
        %v1781 = vsel %vm1752, %v1737, 0
        %v1784 = vsel %vm1752, %v1738, 0
        %v1787 = vsel %vm1752, %v1739, 0
        %v1790 = vsel %vm1752, %v1740, 0
        %v1793 = vsel %vm1752, %v1741, 0
        %v1796 = vsel %vm1752, %v1742, 0
        %v1799 = vsel %vm1752, %v1743, 0
        %1801 = vmatprep.subr.mxu0 0.0
        %v1802 = vand.u32 %v1744, 4294901760
        %1803 = vmatpush1.msra.mxu0 %v1802
        %1804 = vmatprep.subr.mxu0 0.0
        %v1805 = vand.u32 %v1745, 4294901760
        %1806 = vmatpush1.msra.mxu0 %v1805
        %1807 = vmatprep.subr.mxu0 0.0
        %v1808 = vand.u32 %v1746, 4294901760
        %1809 = vmatpush1.msra.mxu0 %v1808
        %1810 = vmatprep.subr.mxu0 0.0
        %v1811 = vand.u32 %v1747, 4294901760
        %1812 = vmatpush1.msra.mxu0 %v1811
        %1813 = vmatprep.subr.mxu0 0.0
        %1814 = vmatpush1.msra.mxu0 0.0
        %1815 = vmatprep.subr.mxu0 0.0
        %1816 = vmatpush1.msra.mxu0 0.0
        %1817 = vmatprep.subr.mxu0 0.0
        %1818 = vmatpush1.msra.mxu0 0.0
        %1819 = vmatprep.subr.mxu0 0.0
        %1820 = vmatpush1.msra.mxu0 0.0
        %1821 = vmatprep.subr.mxu0 0.0
        %1822 = vmatpush1.msra.mxu0 0.0
        %1823 = vmatprep.subr.mxu0 0.0
        %1824 = vmatpush1.msra.mxu0 0.0
        %1825 = vmatprep.subr.mxu0 0.0
        %1826 = vmatpush1.msra.mxu0 0.0
        %1827 = vmatprep.subr.mxu0 0.0
        %1828 = vmatpush1.msra.mxu0 0.0
        %1829 = vmatprep.subr.mxu0 0.0
        %1830 = vmatpush1.msra.mxu0 0.0
        %1831 = vmatprep.subr.mxu0 0.0
        %1832 = vmatpush1.msra.mxu0 0.0
        %1833 = vmatprep.subr.mxu0 0.0
        %1834 = vmatpush1.msra.mxu0 0.0
        %1835 = vmatprep.subr.mxu0 0.0
        %1836 = vmatpush1.msra.mxu0 0.0
        %1837 = vmatprep.subr.mxu0 0.0
        %1838 = vmatpush1.msra.mxu0 0.0
        %1839 = vmatprep.subr.mxu0 0.0
        %1840 = vmatpush1.msra.mxu0 0.0
        %1841 = vmatprep.subr.mxu0 0.0
        %1842 = vmatpush1.msra.mxu0 0.0
        %1843 = vmatprep.subr.mxu0 0.0
        %1844 = vmatpush1.msra.mxu0 0.0
        %1845 = vmatprep.subr.mxu0 0.0
        %1846 = vmatpush1.msra.mxu0 0.0
        %1847 = vmatprep.subr.mxu0 0.0
        %1848 = vmatpush1.msra.mxu0 0.0
        %1849 = vmatprep.subr.mxu0 0.0
        %1850 = vmatpush1.msra.mxu0 0.0
        %1851 = vmatprep.subr.mxu0 0.0
        %1852 = vmatpush1.msra.mxu0 0.0
        %1853 = vmatprep.subr.mxu0 0.0
        %1854 = vmatpush1.msra.mxu0 0.0
        %1855 = vmatprep.subr.mxu0 0.0
        %1856 = vmatpush1.msra.mxu0 0.0
        %1857 = vmatprep.subr.mxu0 0.0
        %1858 = vmatpush1.msra.mxu0 0.0
        %1859 = vmatprep.subr.mxu0 0.0
        %1860 = vmatpush1.msra.mxu0 0.0
        %1861 = vmatprep.subr.mxu0 0.0
        %1862 = vmatpush1.msra.mxu0 0.0
        %1863 = vmatprep.subr.mxu0 0.0
        %1864 = vmatpush1.msra.mxu0 0.0
        %1865 = vmatprep.subr.mxu0 0.0
        %1866 = vmatpush1.msra.mxu0 0.0
        %1867 = vmatprep.subr.mxu0 0.0
        %1868 = vmatpush1.msra.mxu0 0.0
        %1869 = vmatprep.mubr.f32.mxu0 0.0
        %v1870 = vand.u32 %v1754, 4294901760
        %v1871 = vsub.f32 %v1754, %v1870
        %v1872 = vand.u32 %v1871, 4294901760
        %v1873 = vsub.f32 %v1871, %v1872
        %v1874 = vand.u32 %v1873, 4294901760
        %1875 = vmatmul.mubr.f32.gmra.mrb[0].mxu0 %v1874
        %v1876 = vpop.f32.mrb[0].mxu0
        %v1877 = vadd.f32 %v1751, %v1876
        %v1878 = vpop.f32.mrb[0].mxu0
        %1879 = vmatprep.mubr.f32.mxu0 0.0
        %v1880 = vand.u32 %v1757, 4294901760
        %v1881 = vsub.f32 %v1757, %v1880
        %v1882 = vand.u32 %v1881, 4294901760
        %v1883 = vsub.f32 %v1881, %v1882
        %v1884 = vand.u32 %v1883, 4294901760
        %1885 = vmatmul.mubr.f32.gmra.mrb[0].mxu0 %v1884
        %v1886 = vpop.f32.mrb[0].mxu0
        %v1887 = vadd.f32 %v1751, %v1886
        %v1888 = vpop.f32.mrb[0].mxu0
        %1889 = vmatprep.mubr.f32.mxu0 0.0
        %v1890 = vand.u32 %v1760, 4294901760
        %v1891 = vsub.f32 %v1760, %v1890
        %v1892 = vand.u32 %v1891, 4294901760
        %v1893 = vsub.f32 %v1891, %v1892
        %v1894 = vand.u32 %v1893, 4294901760
        %1895 = vmatmul.mubr.f32.gmra.mrb[0].mxu0 %v1894
        %v1896 = vpop.f32.mrb[0].mxu0
        %v1897 = vadd.f32 %v1751, %v1896
        %v1898 = vpop.f32.mrb[0].mxu0
        %1899 = vmatprep.mubr.f32.mxu0 0.0
        %v1900 = vand.u32 %v1763, 4294901760
        %v1901 = vsub.f32 %v1763, %v1900
        %v1902 = vand.u32 %v1901, 4294901760
        %v1903 = vsub.f32 %v1901, %v1902
        %v1904 = vand.u32 %v1903, 4294901760
        %1905 = vmatmul.mubr.f32.gmra.mrb[0].mxu0 %v1904
        %v1906 = vpop.f32.mrb[0].mxu0
        %v1907 = vadd.f32 %v1751, %v1906
        %v1908 = vpop.f32.mrb[0].mxu0
        %1909 = vmatprep.mubr.f32.mxu0 0.0
        %v1910 = vand.u32 %v1766, 4294901760
        %v1911 = vsub.f32 %v1766, %v1910
        %v1912 = vand.u32 %v1911, 4294901760
        %v1913 = vsub.f32 %v1911, %v1912
        %v1914 = vand.u32 %v1913, 4294901760
        %1915 = vmatmul.mubr.f32.gmra.mrb[0].mxu0 %v1914
        %v1916 = vpop.f32.mrb[0].mxu0
        %v1917 = vadd.f32 %v1751, %v1916
        %v1918 = vpop.f32.mrb[0].mxu0
        %1919 = vmatprep.mubr.f32.mxu0 0.0
        %v1920 = vand.u32 %v1769, 4294901760
        %v1921 = vsub.f32 %v1769, %v1920
        %v1922 = vand.u32 %v1921, 4294901760
        %v1923 = vsub.f32 %v1921, %v1922
        %v1924 = vand.u32 %v1923, 4294901760
        %1925 = vmatmul.mubr.f32.gmra.mrb[0].mxu0 %v1924
        %v1926 = vpop.f32.mrb[0].mxu0
        %v1927 = vadd.f32 %v1751, %v1926
        %v1928 = vpop.f32.mrb[0].mxu0
        %1929 = vmatprep.mubr.f32.mxu0 0.0
        %v1930 = vand.u32 %v1772, 4294901760
        %v1931 = vsub.f32 %v1772, %v1930
        %v1932 = vand.u32 %v1931, 4294901760
        %v1933 = vsub.f32 %v1931, %v1932
        %v1934 = vand.u32 %v1933, 4294901760
        %1935 = vmatmul.mubr.f32.gmra.mrb[0].mxu0 %v1934
        %v1936 = vpop.f32.mrb[0].mxu0
        %v1937 = vadd.f32 %v1751, %v1936
        %v1938 = vpop.f32.mrb[0].mxu0
        %1939 = vmatprep.mubr.f32.mxu0 0.0
        %v1940 = vand.u32 %v1775, 4294901760
        %v1941 = vsub.f32 %v1775, %v1940
        %v1942 = vand.u32 %v1941, 4294901760
        %v1943 = vsub.f32 %v1941, %v1942
        %v1944 = vand.u32 %v1943, 4294901760
        %1945 = vmatmul.mubr.f32.gmra.mrb[0].mxu0 %v1944
        %v1946 = vpop.f32.mrb[0].mxu0
        %v1947 = vadd.f32 %v1751, %v1946
        %v1948 = vpop.f32.mrb[0].mxu0
        %1949 = vmatprep.mubr.f32.mxu0 0.0
        %v1950 = vand.u32 %v1778, 4294901760
        %v1951 = vsub.f32 %v1778, %v1950
        %v1952 = vand.u32 %v1951, 4294901760
        %v1953 = vsub.f32 %v1951, %v1952
        %v1954 = vand.u32 %v1953, 4294901760
        %1955 = vmatmul.mubr.f32.gmra.mrb[0].mxu0 %v1954
        %v1956 = vpop.f32.mrb[0].mxu0
        %v1957 = vadd.f32 %v1751, %v1956
        %v1958 = vpop.f32.mrb[0].mxu0
        %1959 = vmatprep.mubr.f32.mxu0 0.0
        %v1960 = vand.u32 %v1781, 4294901760
        %v1961 = vsub.f32 %v1781, %v1960
        %v1962 = vand.u32 %v1961, 4294901760
        %v1963 = vsub.f32 %v1961, %v1962
        %v1964 = vand.u32 %v1963, 4294901760
        %1965 = vmatmul.mubr.f32.gmra.mrb[0].mxu0 %v1964
        %v1966 = vpop.f32.mrb[0].mxu0
        %v1967 = vadd.f32 %v1751, %v1966
        %v1968 = vpop.f32.mrb[0].mxu0
        %1969 = vmatprep.mubr.f32.mxu0 0.0
        %v1970 = vand.u32 %v1784, 4294901760
        %v1971 = vsub.f32 %v1784, %v1970
        %v1972 = vand.u32 %v1971, 4294901760
        %v1973 = vsub.f32 %v1971, %v1972
        %v1974 = vand.u32 %v1973, 4294901760
        %1975 = vmatmul.mubr.f32.gmra.mrb[0].mxu0 %v1974
        %v1976 = vpop.f32.mrb[0].mxu0
        %v1977 = vadd.f32 %v1751, %v1976
        %v1978 = vpop.f32.mrb[0].mxu0
        %1979 = vmatprep.mubr.f32.mxu0 0.0
        %v1980 = vand.u32 %v1787, 4294901760
        %v1981 = vsub.f32 %v1787, %v1980
        %v1982 = vand.u32 %v1981, 4294901760
        %v1983 = vsub.f32 %v1981, %v1982
        %v1984 = vand.u32 %v1983, 4294901760
        %1985 = vmatmul.mubr.f32.gmra.mrb[0].mxu0 %v1984
        %v1986 = vpop.f32.mrb[0].mxu0
        %v1987 = vadd.f32 %v1751, %v1986
        %v1988 = vpop.f32.mrb[0].mxu0
        %1989 = vmatprep.mubr.f32.mxu0 0.0
        %v1990 = vand.u32 %v1790, 4294901760
        %v1991 = vsub.f32 %v1790, %v1990
        %v1992 = vand.u32 %v1991, 4294901760
        %v1993 = vsub.f32 %v1991, %v1992
        %v1994 = vand.u32 %v1993, 4294901760
        %1995 = vmatmul.mubr.f32.gmra.mrb[0].mxu0 %v1994
        %v1996 = vpop.f32.mrb[0].mxu0
        %v1997 = vadd.f32 %v1751, %v1996
        %v1998 = vpop.f32.mrb[0].mxu0
        %1999 = vmatprep.mubr.f32.mxu0 0.0
        %v2000 = vand.u32 %v1793, 4294901760
        %v2001 = vsub.f32 %v1793, %v2000
        %v2002 = vand.u32 %v2001, 4294901760
        %v2003 = vsub.f32 %v2001, %v2002
        %v2004 = vand.u32 %v2003, 4294901760
        %2005 = vmatmul.mubr.f32.gmra.mrb[0].mxu0 %v2004
        %v2006 = vpop.f32.mrb[0].mxu0
        %v2007 = vadd.f32 %v1751, %v2006
        %v2008 = vpop.f32.mrb[0].mxu0
        %2009 = vmatprep.mubr.f32.mxu0 0.0
        %v2010 = vand.u32 %v1796, 4294901760
        %v2011 = vsub.f32 %v1796, %v2010
        %v2012 = vand.u32 %v2011, 4294901760
        %v2013 = vsub.f32 %v2011, %v2012
        %v2014 = vand.u32 %v2013, 4294901760
        %2015 = vmatmul.mubr.f32.gmra.mrb[0].mxu0 %v2014
        %v2016 = vpop.f32.mrb[0].mxu0
        %v2017 = vadd.f32 %v1751, %v2016
        %v2018 = vpop.f32.mrb[0].mxu0
        %2019 = vmatprep.mubr.f32.mxu0 0.0
        %v2020 = vand.u32 %v1799, 4294901760
        %v2021 = vsub.f32 %v1799, %v2020
        %v2022 = vand.u32 %v2021, 4294901760
        %v2023 = vsub.f32 %v2021, %v2022
        %v2024 = vand.u32 %v2023, 4294901760
        %2025 = vmatmul.mubr.f32.gmra.mrb[0].mxu0 %v2024
        %v2026 = vpop.f32.mrb[0].mxu0
        %v2027 = vadd.f32 %v1751, %v2026
        %v2028 = vpop.f32.mrb[0].mxu0
        %2029 = vdwg.mxu0
        %2030 = vmatprep.subr.mxu0 0.0
        %v2031 = vand.u32 %v1744, 4294901760
        %v2032 = vsub.f32 %v1744, %v2031
        %v2033 = vand.u32 %v2032, 4294901760
        %v2034 = vsub.f32 %v2032, %v2033
        %v2035 = vand.u32 %v2034, 4294901760
        %2036 = vmatpush1.msra.mxu0 %v2035
        %2037 = vmatprep.subr.mxu0 0.0
        %v2038 = vand.u32 %v1745, 4294901760
        %v2039 = vsub.f32 %v1745, %v2038
        %v2040 = vand.u32 %v2039, 4294901760
        %v2041 = vsub.f32 %v2039, %v2040
        %v2042 = vand.u32 %v2041, 4294901760
        %2043 = vmatpush1.msra.mxu0 %v2042
        %2044 = vmatprep.subr.mxu0 0.0
        %v2045 = vand.u32 %v1746, 4294901760
        %v2046 = vsub.f32 %v1746, %v2045
        %v2047 = vand.u32 %v2046, 4294901760
        %v2048 = vsub.f32 %v2046, %v2047
        %v2049 = vand.u32 %v2048, 4294901760
        %2050 = vmatpush1.msra.mxu0 %v2049
        %2051 = vmatprep.subr.mxu0 0.0
        %v2052 = vand.u32 %v1747, 4294901760
        %v2053 = vsub.f32 %v1747, %v2052
        %v2054 = vand.u32 %v2053, 4294901760
        %v2055 = vsub.f32 %v2053, %v2054
        %v2056 = vand.u32 %v2055, 4294901760
        %2057 = vmatpush1.msra.mxu0 %v2056
        %2058 = vmatprep.subr.mxu0 0.0
        %2059 = vmatpush1.msra.mxu0 0.0
        %2060 = vmatprep.subr.mxu0 0.0
        %2061 = vmatpush1.msra.mxu0 0.0
        %2062 = vmatprep.subr.mxu0 0.0
        %2063 = vmatpush1.msra.mxu0 0.0
        %2064 = vmatprep.subr.mxu0 0.0
        %2065 = vmatpush1.msra.mxu0 0.0
        %2066 = vmatprep.subr.mxu0 0.0
        %2067 = vmatpush1.msra.mxu0 0.0
        %2068 = vmatprep.subr.mxu0 0.0
        %2069 = vmatpush1.msra.mxu0 0.0
        %2070 = vmatprep.subr.mxu0 0.0
        %2071 = vmatpush1.msra.mxu0 0.0
        %2072 = vmatprep.subr.mxu0 0.0
        %2073 = vmatpush1.msra.mxu0 0.0
        %2074 = vmatprep.subr.mxu0 0.0
        %2075 = vmatpush1.msra.mxu0 0.0
        %2076 = vmatprep.subr.mxu0 0.0
        %2077 = vmatpush1.msra.mxu0 0.0
        %2078 = vmatprep.subr.mxu0 0.0
        %2079 = vmatpush1.msra.mxu0 0.0
        %2080 = vmatprep.subr.mxu0 0.0
        %2081 = vmatpush1.msra.mxu0 0.0
        %2082 = vmatprep.subr.mxu0 0.0
        %2083 = vmatpush1.msra.mxu0 0.0
        %2084 = vmatprep.subr.mxu0 0.0
        %2085 = vmatpush1.msra.mxu0 0.0
        %2086 = vmatprep.subr.mxu0 0.0
        %2087 = vmatpush1.msra.mxu0 0.0
        %2088 = vmatprep.subr.mxu0 0.0
        %2089 = vmatpush1.msra.mxu0 0.0
        %2090 = vmatprep.subr.mxu0 0.0
        %2091 = vmatpush1.msra.mxu0 0.0
        %2092 = vmatprep.subr.mxu0 0.0
        %2093 = vmatpush1.msra.mxu0 0.0
        %2094 = vmatprep.subr.mxu0 0.0
        %2095 = vmatpush1.msra.mxu0 0.0
        %2096 = vmatprep.subr.mxu0 0.0
        %2097 = vmatpush1.msra.mxu0 0.0
        %2098 = vmatprep.subr.mxu0 0.0
        %2099 = vmatpush1.msra.mxu0 0.0
        %2100 = vmatprep.subr.mxu0 0.0
        %2101 = vmatpush1.msra.mxu0 0.0
        %2102 = vmatprep.subr.mxu0 0.0
        %2103 = vmatpush1.msra.mxu0 0.0
        %2104 = vmatprep.subr.mxu0 0.0
        %2105 = vmatpush1.msra.mxu0 0.0
        %2106 = vmatprep.subr.mxu0 0.0
        %2107 = vmatpush1.msra.mxu0 0.0
        %2108 = vmatprep.subr.mxu0 0.0
        %2109 = vmatpush1.msra.mxu0 0.0
        %2110 = vmatprep.subr.mxu0 0.0
        %2111 = vmatpush1.msra.mxu0 0.0
        %2112 = vmatprep.subr.mxu0 0.0
        %2113 = vmatpush1.msra.mxu0 0.0
        %2114 = vmatprep.mubr.f32.mxu0 0.0
        %v2115 = vand.u32 %v1754, 4294901760
        %2116 = vmatmul.mubr.f32.gmra.mrb[0].mxu0 %v2115
        %v2117 = vpop.f32.mrb[0].mxu0
        %v2118 = vadd.f32 %v1877, %v2117
        %v2119 = vpop.f32.mrb[0].mxu0
        %2120 = vmatprep.mubr.f32.mxu0 0.0
        %v2121 = vand.u32 %v1757, 4294901760
        %2122 = vmatmul.mubr.f32.gmra.mrb[0].mxu0 %v2121
        %v2123 = vpop.f32.mrb[0].mxu0
        %v2124 = vadd.f32 %v1887, %v2123
        %v2125 = vpop.f32.mrb[0].mxu0
        %2126 = vmatprep.mubr.f32.mxu0 0.0
        %v2127 = vand.u32 %v1760, 4294901760
        %2128 = vmatmul.mubr.f32.gmra.mrb[0].mxu0 %v2127
        %v2129 = vpop.f32.mrb[0].mxu0
        %v2130 = vadd.f32 %v1897, %v2129
        %v2131 = vpop.f32.mrb[0].mxu0
        %2132 = vmatprep.mubr.f32.mxu0 0.0
        %v2133 = vand.u32 %v1763, 4294901760
        %2134 = vmatmul.mubr.f32.gmra.mrb[0].mxu0 %v2133
        %v2135 = vpop.f32.mrb[0].mxu0
        %v2136 = vadd.f32 %v1907, %v2135
        %v2137 = vpop.f32.mrb[0].mxu0
        %2138 = vmatprep.mubr.f32.mxu0 0.0
        %v2139 = vand.u32 %v1766, 4294901760
        %2140 = vmatmul.mubr.f32.gmra.mrb[0].mxu0 %v2139
        %v2141 = vpop.f32.mrb[0].mxu0
        %v2142 = vadd.f32 %v1917, %v2141
        %v2143 = vpop.f32.mrb[0].mxu0
        %2144 = vmatprep.mubr.f32.mxu0 0.0
        %v2145 = vand.u32 %v1769, 4294901760
        %2146 = vmatmul.mubr.f32.gmra.mrb[0].mxu0 %v2145
        %v2147 = vpop.f32.mrb[0].mxu0
        %v2148 = vadd.f32 %v1927, %v2147
        %v2149 = vpop.f32.mrb[0].mxu0
        %2150 = vmatprep.mubr.f32.mxu0 0.0
        %v2151 = vand.u32 %v1772, 4294901760
        %2152 = vmatmul.mubr.f32.gmra.mrb[0].mxu0 %v2151
        %v2153 = vpop.f32.mrb[0].mxu0
        %v2154 = vadd.f32 %v1937, %v2153
        %v2155 = vpop.f32.mrb[0].mxu0
        %2156 = vmatprep.mubr.f32.mxu0 0.0
        %v2157 = vand.u32 %v1775, 4294901760
        %2158 = vmatmul.mubr.f32.gmra.mrb[0].mxu0 %v2157
        %v2159 = vpop.f32.mrb[0].mxu0
        %v2160 = vadd.f32 %v1947, %v2159
        %v2161 = vpop.f32.mrb[0].mxu0
        %2162 = vmatprep.mubr.f32.mxu0 0.0
        %v2163 = vand.u32 %v1778, 4294901760
        %2164 = vmatmul.mubr.f32.gmra.mrb[0].mxu0 %v2163
        %v2165 = vpop.f32.mrb[0].mxu0
        %v2166 = vadd.f32 %v1957, %v2165
        %v2167 = vpop.f32.mrb[0].mxu0
        %2168 = vmatprep.mubr.f32.mxu0 0.0
        %v2169 = vand.u32 %v1781, 4294901760
        %2170 = vmatmul.mubr.f32.gmra.mrb[0].mxu0 %v2169
        %v2171 = vpop.f32.mrb[0].mxu0
        %v2172 = vadd.f32 %v1967, %v2171
        %v2173 = vpop.f32.mrb[0].mxu0
        %2174 = vmatprep.mubr.f32.mxu0 0.0
        %v2175 = vand.u32 %v1784, 4294901760
        %2176 = vmatmul.mubr.f32.gmra.mrb[0].mxu0 %v2175
        %v2177 = vpop.f32.mrb[0].mxu0
        %v2178 = vadd.f32 %v1977, %v2177
        %v2179 = vpop.f32.mrb[0].mxu0
        %2180 = vmatprep.mubr.f32.mxu0 0.0
        %v2181 = vand.u32 %v1787, 4294901760
        %2182 = vmatmul.mubr.f32.gmra.mrb[0].mxu0 %v2181
        %v2183 = vpop.f32.mrb[0].mxu0
        %v2184 = vadd.f32 %v1987, %v2183
        %v2185 = vpop.f32.mrb[0].mxu0
        %2186 = vmatprep.mubr.f32.mxu0 0.0
        %v2187 = vand.u32 %v1790, 4294901760
        %2188 = vmatmul.mubr.f32.gmra.mrb[0].mxu0 %v2187
        %v2189 = vpop.f32.mrb[0].mxu0
        %v2190 = vadd.f32 %v1997, %v2189
        %v2191 = vpop.f32.mrb[0].mxu0
        %2192 = vmatprep.mubr.f32.mxu0 0.0
        %v2193 = vand.u32 %v1793, 4294901760
        %2194 = vmatmul.mubr.f32.gmra.mrb[0].mxu0 %v2193
        %v2195 = vpop.f32.mrb[0].mxu0
        %v2196 = vadd.f32 %v2007, %v2195
        %v2197 = vpop.f32.mrb[0].mxu0
        %2198 = vmatprep.mubr.f32.mxu0 0.0
        %v2199 = vand.u32 %v1796, 4294901760
        %2200 = vmatmul.mubr.f32.gmra.mrb[0].mxu0 %v2199
        %v2201 = vpop.f32.mrb[0].mxu0
        %v2202 = vadd.f32 %v2017, %v2201
        %v2203 = vpop.f32.mrb[0].mxu0
        %2204 = vmatprep.mubr.f32.mxu0 0.0
        %v2205 = vand.u32 %v1799, 4294901760
        %2206 = vmatmul.mubr.f32.gmra.mrb[0].mxu0 %v2205
        %v2207 = vpop.f32.mrb[0].mxu0
        %v2208 = vadd.f32 %v2027, %v2207
        %v2209 = vpop.f32.mrb[0].mxu0
        %2210 = vdwg.mxu0
        %2211 = vmatprep.subr.mxu0 0.0
        %v2212 = vand.u32 %v1744, 4294901760
        %v2213 = vsub.f32 %v1744, %v2212
        %2214 = vmatpush1.msra.mxu0 %v2213
        %2215 = vmatprep.subr.mxu0 0.0
        %v2216 = vand.u32 %v1745, 4294901760
        %v2217 = vsub.f32 %v1745, %v2216
        %2218 = vmatpush1.msra.mxu0 %v2217
        %2219 = vmatprep.subr.mxu0 0.0
        %v2220 = vand.u32 %v1746, 4294901760
        %v2221 = vsub.f32 %v1746, %v2220
        %2222 = vmatpush1.msra.mxu0 %v2221
        %2223 = vmatprep.subr.mxu0 0.0
        %v2224 = vand.u32 %v1747, 4294901760
        %v2225 = vsub.f32 %v1747, %v2224
        %2226 = vmatpush1.msra.mxu0 %v2225
        %2227 = vmatprep.subr.mxu0 0.0
        %2228 = vmatpush1.msra.mxu0 0.0
        %2229 = vmatprep.subr.mxu0 0.0
        %2230 = vmatpush1.msra.mxu0 0.0
        %2231 = vmatprep.subr.mxu0 0.0
        %2232 = vmatpush1.msra.mxu0 0.0
        %2233 = vmatprep.subr.mxu0 0.0
        %2234 = vmatpush1.msra.mxu0 0.0
        %2235 = vmatprep.subr.mxu0 0.0
        %2236 = vmatpush1.msra.mxu0 0.0
        %2237 = vmatprep.subr.mxu0 0.0
        %2238 = vmatpush1.msra.mxu0 0.0
        %2239 = vmatprep.subr.mxu0 0.0
        %2240 = vmatpush1.msra.mxu0 0.0
        %2241 = vmatprep.subr.mxu0 0.0
        %2242 = vmatpush1.msra.mxu0 0.0
        %2243 = vmatprep.subr.mxu0 0.0
        %2244 = vmatpush1.msra.mxu0 0.0
        %2245 = vmatprep.subr.mxu0 0.0
        %2246 = vmatpush1.msra.mxu0 0.0
        %2247 = vmatprep.subr.mxu0 0.0
        %2248 = vmatpush1.msra.mxu0 0.0
        %2249 = vmatprep.subr.mxu0 0.0
        %2250 = vmatpush1.msra.mxu0 0.0
        %2251 = vmatprep.subr.mxu0 0.0
        %2252 = vmatpush1.msra.mxu0 0.0
        %2253 = vmatprep.subr.mxu0 0.0
        %2254 = vmatpush1.msra.mxu0 0.0
        %2255 = vmatprep.subr.mxu0 0.0
        %2256 = vmatpush1.msra.mxu0 0.0
        %2257 = vmatprep.subr.mxu0 0.0
        %2258 = vmatpush1.msra.mxu0 0.0
        %2259 = vmatprep.subr.mxu0 0.0
        %2260 = vmatpush1.msra.mxu0 0.0
        %2261 = vmatprep.subr.mxu0 0.0
        %2262 = vmatpush1.msra.mxu0 0.0
        %2263 = vmatprep.subr.mxu0 0.0
        %2264 = vmatpush1.msra.mxu0 0.0
        %2265 = vmatprep.subr.mxu0 0.0
        %2266 = vmatpush1.msra.mxu0 0.0
        %2267 = vmatprep.subr.mxu0 0.0
        %2268 = vmatpush1.msra.mxu0 0.0
        %2269 = vmatprep.subr.mxu0 0.0
        %2270 = vmatpush1.msra.mxu0 0.0
        %2271 = vmatprep.subr.mxu0 0.0
        %2272 = vmatpush1.msra.mxu0 0.0
        %2273 = vmatprep.subr.mxu0 0.0
        %2274 = vmatpush1.msra.mxu0 0.0
        %2275 = vmatprep.subr.mxu0 0.0
        %2276 = vmatpush1.msra.mxu0 0.0
        %2277 = vmatprep.subr.mxu0 0.0
        %2278 = vmatpush1.msra.mxu0 0.0
        %2279 = vmatprep.subr.mxu0 0.0
        %2280 = vmatpush1.msra.mxu0 0.0
        %2281 = vmatprep.subr.mxu0 0.0
        %2282 = vmatpush1.msra.mxu0 0.0
        %2283 = vmatprep.mubr.f32.mxu0 0.0
        %v2284 = vand.u32 %v1754, 4294901760
        %v2285 = vsub.f32 %v1754, %v2284
        %2286 = vmatmul.mubr.f32.gmra.mrb[0].mxu0 %v2285
        %v2287 = vpop.f32.mrb[0].mxu0
        %v2288 = vadd.f32 %v2118, %v2287
        %v2289 = vpop.f32.mrb[0].mxu0
        %2290 = vmatprep.mubr.f32.mxu0 0.0
        %v2291 = vand.u32 %v1757, 4294901760
        %v2292 = vsub.f32 %v1757, %v2291
        %2293 = vmatmul.mubr.f32.gmra.mrb[0].mxu0 %v2292
        %v2294 = vpop.f32.mrb[0].mxu0
        %v2295 = vadd.f32 %v2124, %v2294
        %v2296 = vpop.f32.mrb[0].mxu0
        %2297 = vmatprep.mubr.f32.mxu0 0.0
        %v2298 = vand.u32 %v1760, 4294901760
        %v2299 = vsub.f32 %v1760, %v2298
        %2300 = vmatmul.mubr.f32.gmra.mrb[0].mxu0 %v2299
        %v2301 = vpop.f32.mrb[0].mxu0
        %v2302 = vadd.f32 %v2130, %v2301
        %v2303 = vpop.f32.mrb[0].mxu0
        %2304 = vmatprep.mubr.f32.mxu0 0.0
        %v2305 = vand.u32 %v1763, 4294901760
        %v2306 = vsub.f32 %v1763, %v2305
        %2307 = vmatmul.mubr.f32.gmra.mrb[0].mxu0 %v2306
        %v2308 = vpop.f32.mrb[0].mxu0
        %v2309 = vadd.f32 %v2136, %v2308
        %v2310 = vpop.f32.mrb[0].mxu0
        %2311 = vmatprep.mubr.f32.mxu0 0.0
        %v2312 = vand.u32 %v1766, 4294901760
        %v2313 = vsub.f32 %v1766, %v2312
        %2314 = vmatmul.mubr.f32.gmra.mrb[0].mxu0 %v2313
        %v2315 = vpop.f32.mrb[0].mxu0
        %v2316 = vadd.f32 %v2142, %v2315
        %v2317 = vpop.f32.mrb[0].mxu0
        %2318 = vmatprep.mubr.f32.mxu0 0.0
        %v2319 = vand.u32 %v1769, 4294901760
        %v2320 = vsub.f32 %v1769, %v2319
        %2321 = vmatmul.mubr.f32.gmra.mrb[0].mxu0 %v2320
        %v2322 = vpop.f32.mrb[0].mxu0
        %v2323 = vadd.f32 %v2148, %v2322
        %v2324 = vpop.f32.mrb[0].mxu0
        %2325 = vmatprep.mubr.f32.mxu0 0.0
        %v2326 = vand.u32 %v1772, 4294901760
        %v2327 = vsub.f32 %v1772, %v2326
        %2328 = vmatmul.mubr.f32.gmra.mrb[0].mxu0 %v2327
        %v2329 = vpop.f32.mrb[0].mxu0
        %v2330 = vadd.f32 %v2154, %v2329
        %v2331 = vpop.f32.mrb[0].mxu0
        %2332 = vmatprep.mubr.f32.mxu0 0.0
        %v2333 = vand.u32 %v1775, 4294901760
        %v2334 = vsub.f32 %v1775, %v2333
        %2335 = vmatmul.mubr.f32.gmra.mrb[0].mxu0 %v2334
        %v2336 = vpop.f32.mrb[0].mxu0
        %v2337 = vadd.f32 %v2160, %v2336
        %v2338 = vpop.f32.mrb[0].mxu0
        %2339 = vmatprep.mubr.f32.mxu0 0.0
        %v2340 = vand.u32 %v1778, 4294901760
        %v2341 = vsub.f32 %v1778, %v2340
        %2342 = vmatmul.mubr.f32.gmra.mrb[0].mxu0 %v2341
        %v2343 = vpop.f32.mrb[0].mxu0
        %v2344 = vadd.f32 %v2166, %v2343
        %v2345 = vpop.f32.mrb[0].mxu0
        %2346 = vmatprep.mubr.f32.mxu0 0.0
        %v2347 = vand.u32 %v1781, 4294901760
        %v2348 = vsub.f32 %v1781, %v2347
        %2349 = vmatmul.mubr.f32.gmra.mrb[0].mxu0 %v2348
        %v2350 = vpop.f32.mrb[0].mxu0
        %v2351 = vadd.f32 %v2172, %v2350
        %v2352 = vpop.f32.mrb[0].mxu0
        %2353 = vmatprep.mubr.f32.mxu0 0.0
        %v2354 = vand.u32 %v1784, 4294901760
        %v2355 = vsub.f32 %v1784, %v2354
        %2356 = vmatmul.mubr.f32.gmra.mrb[0].mxu0 %v2355
        %v2357 = vpop.f32.mrb[0].mxu0
        %v2358 = vadd.f32 %v2178, %v2357
        %v2359 = vpop.f32.mrb[0].mxu0
        %2360 = vmatprep.mubr.f32.mxu0 0.0
        %v2361 = vand.u32 %v1787, 4294901760
        %v2362 = vsub.f32 %v1787, %v2361
        %2363 = vmatmul.mubr.f32.gmra.mrb[0].mxu0 %v2362
        %v2364 = vpop.f32.mrb[0].mxu0
        %v2365 = vadd.f32 %v2184, %v2364
        %v2366 = vpop.f32.mrb[0].mxu0
        %2367 = vmatprep.mubr.f32.mxu0 0.0
        %v2368 = vand.u32 %v1790, 4294901760
        %v2369 = vsub.f32 %v1790, %v2368
        %2370 = vmatmul.mubr.f32.gmra.mrb[0].mxu0 %v2369
        %v2371 = vpop.f32.mrb[0].mxu0
        %v2372 = vadd.f32 %v2190, %v2371
        %v2373 = vpop.f32.mrb[0].mxu0
        %2374 = vmatprep.mubr.f32.mxu0 0.0
        %v2375 = vand.u32 %v1793, 4294901760
        %v2376 = vsub.f32 %v1793, %v2375
        %2377 = vmatmul.mubr.f32.gmra.mrb[0].mxu0 %v2376
        %v2378 = vpop.f32.mrb[0].mxu0
        %v2379 = vadd.f32 %v2196, %v2378
        %v2380 = vpop.f32.mrb[0].mxu0
        %2381 = vmatprep.mubr.f32.mxu0 0.0
        %v2382 = vand.u32 %v1796, 4294901760
        %v2383 = vsub.f32 %v1796, %v2382
        %2384 = vmatmul.mubr.f32.gmra.mrb[0].mxu0 %v2383
        %v2385 = vpop.f32.mrb[0].mxu0
        %v2386 = vadd.f32 %v2202, %v2385
        %v2387 = vpop.f32.mrb[0].mxu0
        %2388 = vmatprep.mubr.f32.mxu0 0.0
        %v2389 = vand.u32 %v1799, 4294901760
        %v2390 = vsub.f32 %v1799, %v2389
        %2391 = vmatmul.mubr.f32.gmra.mrb[0].mxu0 %v2390
        %v2392 = vpop.f32.mrb[0].mxu0
        %v2393 = vadd.f32 %v2208, %v2392
        %v2394 = vpop.f32.mrb[0].mxu0
        %2395 = vdwg.mxu0
        %2396 = vmatprep.subr.mxu0 0.0
        %v2397 = vand.u32 %v1744, 4294901760
        %2398 = vmatpush1.msra.mxu0 %v2397
        %2399 = vmatprep.subr.mxu0 0.0
        %v2400 = vand.u32 %v1745, 4294901760
        %2401 = vmatpush1.msra.mxu0 %v2400
        %2402 = vmatprep.subr.mxu0 0.0
        %v2403 = vand.u32 %v1746, 4294901760
        %2404 = vmatpush1.msra.mxu0 %v2403
        %2405 = vmatprep.subr.mxu0 0.0
        %v2406 = vand.u32 %v1747, 4294901760
        %2407 = vmatpush1.msra.mxu0 %v2406
        %2408 = vmatprep.subr.mxu0 0.0
        %2409 = vmatpush1.msra.mxu0 0.0
        %2410 = vmatprep.subr.mxu0 0.0
        %2411 = vmatpush1.msra.mxu0 0.0
        %2412 = vmatprep.subr.mxu0 0.0
        %2413 = vmatpush1.msra.mxu0 0.0
        %2414 = vmatprep.subr.mxu0 0.0
        %2415 = vmatpush1.msra.mxu0 0.0
        %2416 = vmatprep.subr.mxu0 0.0
        %2417 = vmatpush1.msra.mxu0 0.0
        %2418 = vmatprep.subr.mxu0 0.0
        %2419 = vmatpush1.msra.mxu0 0.0
        %2420 = vmatprep.subr.mxu0 0.0
        %2421 = vmatpush1.msra.mxu0 0.0
        %2422 = vmatprep.subr.mxu0 0.0
        %2423 = vmatpush1.msra.mxu0 0.0
        %2424 = vmatprep.subr.mxu0 0.0
        %2425 = vmatpush1.msra.mxu0 0.0
        %2426 = vmatprep.subr.mxu0 0.0
        %2427 = vmatpush1.msra.mxu0 0.0
        %2428 = vmatprep.subr.mxu0 0.0
        %2429 = vmatpush1.msra.mxu0 0.0
        %2430 = vmatprep.subr.mxu0 0.0
        %2431 = vmatpush1.msra.mxu0 0.0
        %2432 = vmatprep.subr.mxu0 0.0
        %2433 = vmatpush1.msra.mxu0 0.0
        %2434 = vmatprep.subr.mxu0 0.0
        %2435 = vmatpush1.msra.mxu0 0.0
        %2436 = vmatprep.subr.mxu0 0.0
        %2437 = vmatpush1.msra.mxu0 0.0
        %2438 = vmatprep.subr.mxu0 0.0
        %2439 = vmatpush1.msra.mxu0 0.0
        %2440 = vmatprep.subr.mxu0 0.0
        %2441 = vmatpush1.msra.mxu0 0.0
        %2442 = vmatprep.subr.mxu0 0.0
        %2443 = vmatpush1.msra.mxu0 0.0
        %2444 = vmatprep.subr.mxu0 0.0
        %2445 = vmatpush1.msra.mxu0 0.0
        %2446 = vmatprep.subr.mxu0 0.0
        %2447 = vmatpush1.msra.mxu0 0.0
        %2448 = vmatprep.subr.mxu0 0.0
        %2449 = vmatpush1.msra.mxu0 0.0
        %2450 = vmatprep.subr.mxu0 0.0
        %2451 = vmatpush1.msra.mxu0 0.0
        %2452 = vmatprep.subr.mxu0 0.0
        %2453 = vmatpush1.msra.mxu0 0.0
        %2454 = vmatprep.subr.mxu0 0.0
        %2455 = vmatpush1.msra.mxu0 0.0
        %2456 = vmatprep.subr.mxu0 0.0
        %2457 = vmatpush1.msra.mxu0 0.0
        %2458 = vmatprep.subr.mxu0 0.0
        %2459 = vmatpush1.msra.mxu0 0.0
        %2460 = vmatprep.subr.mxu0 0.0
        %2461 = vmatpush1.msra.mxu0 0.0
        %2462 = vmatprep.subr.mxu0 0.0
        %2463 = vmatpush1.msra.mxu0 0.0
        %2464 = vmatprep.mubr.f32.mxu0 0.0
        %v2465 = vand.u32 %v1754, 4294901760
        %v2466 = vsub.f32 %v1754, %v2465
        %v2467 = vand.u32 %v2466, 4294901760
        %2468 = vmatmul.mubr.f32.gmra.mrb[0].mxu0 %v2467
        %v2469 = vpop.f32.mrb[0].mxu0
        %v2470 = vadd.f32 %v2288, %v2469
        %v2471 = vpop.f32.mrb[0].mxu0
        %2472 = vmatprep.mubr.f32.mxu0 0.0
        %v2473 = vand.u32 %v1757, 4294901760
        %v2474 = vsub.f32 %v1757, %v2473
        %v2475 = vand.u32 %v2474, 4294901760
        %2476 = vmatmul.mubr.f32.gmra.mrb[0].mxu0 %v2475
        %v2477 = vpop.f32.mrb[0].mxu0
        %v2478 = vadd.f32 %v2295, %v2477
        %v2479 = vpop.f32.mrb[0].mxu0
        %2480 = vmatprep.mubr.f32.mxu0 0.0
        %v2481 = vand.u32 %v1760, 4294901760
        %v2482 = vsub.f32 %v1760, %v2481
        %v2483 = vand.u32 %v2482, 4294901760
        %2484 = vmatmul.mubr.f32.gmra.mrb[0].mxu0 %v2483
        %v2485 = vpop.f32.mrb[0].mxu0
        %v2486 = vadd.f32 %v2302, %v2485
        %v2487 = vpop.f32.mrb[0].mxu0
        %2488 = vmatprep.mubr.f32.mxu0 0.0
        %v2489 = vand.u32 %v1763, 4294901760
        %v2490 = vsub.f32 %v1763, %v2489
        %v2491 = vand.u32 %v2490, 4294901760
        %2492 = vmatmul.mubr.f32.gmra.mrb[0].mxu0 %v2491
        %v2493 = vpop.f32.mrb[0].mxu0
        %v2494 = vadd.f32 %v2309, %v2493
        %v2495 = vpop.f32.mrb[0].mxu0
        %2496 = vmatprep.mubr.f32.mxu0 0.0
        %v2497 = vand.u32 %v1766, 4294901760
        %v2498 = vsub.f32 %v1766, %v2497
        %v2499 = vand.u32 %v2498, 4294901760
        %2500 = vmatmul.mubr.f32.gmra.mrb[0].mxu0 %v2499
        %v2501 = vpop.f32.mrb[0].mxu0
        %v2502 = vadd.f32 %v2316, %v2501
        %v2503 = vpop.f32.mrb[0].mxu0
        %2504 = vmatprep.mubr.f32.mxu0 0.0
        %v2505 = vand.u32 %v1769, 4294901760
        %v2506 = vsub.f32 %v1769, %v2505
        %v2507 = vand.u32 %v2506, 4294901760
        %2508 = vmatmul.mubr.f32.gmra.mrb[0].mxu0 %v2507
        %v2509 = vpop.f32.mrb[0].mxu0
        %v2510 = vadd.f32 %v2323, %v2509
        %v2511 = vpop.f32.mrb[0].mxu0
        %2512 = vmatprep.mubr.f32.mxu0 0.0
        %v2513 = vand.u32 %v1772, 4294901760
        %v2514 = vsub.f32 %v1772, %v2513
        %v2515 = vand.u32 %v2514, 4294901760
        %2516 = vmatmul.mubr.f32.gmra.mrb[0].mxu0 %v2515
        %v2517 = vpop.f32.mrb[0].mxu0
        %v2518 = vadd.f32 %v2330, %v2517
        %v2519 = vpop.f32.mrb[0].mxu0
        %2520 = vmatprep.mubr.f32.mxu0 0.0
        %v2521 = vand.u32 %v1775, 4294901760
        %v2522 = vsub.f32 %v1775, %v2521
        %v2523 = vand.u32 %v2522, 4294901760
        %2524 = vmatmul.mubr.f32.gmra.mrb[0].mxu0 %v2523
        %v2525 = vpop.f32.mrb[0].mxu0
        %v2526 = vadd.f32 %v2337, %v2525
        %v2527 = vpop.f32.mrb[0].mxu0
        %2528 = vmatprep.mubr.f32.mxu0 0.0
        %v2529 = vand.u32 %v1778, 4294901760
        %v2530 = vsub.f32 %v1778, %v2529
        %v2531 = vand.u32 %v2530, 4294901760
        %2532 = vmatmul.mubr.f32.gmra.mrb[0].mxu0 %v2531
        %v2533 = vpop.f32.mrb[0].mxu0
        %v2534 = vadd.f32 %v2344, %v2533
        %v2535 = vpop.f32.mrb[0].mxu0
        %2536 = vmatprep.mubr.f32.mxu0 0.0
        %v2537 = vand.u32 %v1781, 4294901760
        %v2538 = vsub.f32 %v1781, %v2537
        %v2539 = vand.u32 %v2538, 4294901760
        %2540 = vmatmul.mubr.f32.gmra.mrb[0].mxu0 %v2539
        %v2541 = vpop.f32.mrb[0].mxu0
        %v2542 = vadd.f32 %v2351, %v2541
        %v2543 = vpop.f32.mrb[0].mxu0
        %2544 = vmatprep.mubr.f32.mxu0 0.0
        %v2545 = vand.u32 %v1784, 4294901760
        %v2546 = vsub.f32 %v1784, %v2545
        %v2547 = vand.u32 %v2546, 4294901760
        %2548 = vmatmul.mubr.f32.gmra.mrb[0].mxu0 %v2547
        %v2549 = vpop.f32.mrb[0].mxu0
        %v2550 = vadd.f32 %v2358, %v2549
        %v2551 = vpop.f32.mrb[0].mxu0
        %2552 = vmatprep.mubr.f32.mxu0 0.0
        %v2553 = vand.u32 %v1787, 4294901760
        %v2554 = vsub.f32 %v1787, %v2553
        %v2555 = vand.u32 %v2554, 4294901760
        %2556 = vmatmul.mubr.f32.gmra.mrb[0].mxu0 %v2555
        %v2557 = vpop.f32.mrb[0].mxu0
        %v2558 = vadd.f32 %v2365, %v2557
        %v2559 = vpop.f32.mrb[0].mxu0
        %2560 = vmatprep.mubr.f32.mxu0 0.0
        %v2561 = vand.u32 %v1790, 4294901760
        %v2562 = vsub.f32 %v1790, %v2561
        %v2563 = vand.u32 %v2562, 4294901760
        %2564 = vmatmul.mubr.f32.gmra.mrb[0].mxu0 %v2563
        %v2565 = vpop.f32.mrb[0].mxu0
        %v2566 = vadd.f32 %v2372, %v2565
        %v2567 = vpop.f32.mrb[0].mxu0
        %2568 = vmatprep.mubr.f32.mxu0 0.0
        %v2569 = vand.u32 %v1793, 4294901760
        %v2570 = vsub.f32 %v1793, %v2569
        %v2571 = vand.u32 %v2570, 4294901760
        %2572 = vmatmul.mubr.f32.gmra.mrb[0].mxu0 %v2571
        %v2573 = vpop.f32.mrb[0].mxu0
        %v2574 = vadd.f32 %v2379, %v2573
        %v2575 = vpop.f32.mrb[0].mxu0
        %2576 = vmatprep.mubr.f32.mxu0 0.0
        %v2577 = vand.u32 %v1796, 4294901760
        %v2578 = vsub.f32 %v1796, %v2577
        %v2579 = vand.u32 %v2578, 4294901760
        %2580 = vmatmul.mubr.f32.gmra.mrb[0].mxu0 %v2579
        %v2581 = vpop.f32.mrb[0].mxu0
        %v2582 = vadd.f32 %v2386, %v2581
        %v2583 = vpop.f32.mrb[0].mxu0
        %2584 = vmatprep.mubr.f32.mxu0 0.0
        %v2585 = vand.u32 %v1799, 4294901760
        %v2586 = vsub.f32 %v1799, %v2585
        %v2587 = vand.u32 %v2586, 4294901760
        %2588 = vmatmul.mubr.f32.gmra.mrb[0].mxu0 %v2587
        %v2589 = vpop.f32.mrb[0].mxu0
        %v2590 = vadd.f32 %v2393, %v2589
        %v2591 = vpop.f32.mrb[0].mxu0
        %2592 = vdwg.mxu0
        %2593 = vmatprep.subr.mxu0 0.0
        %v2594 = vand.u32 %v1744, 4294901760
        %v2595 = vsub.f32 %v1744, %v2594
        %v2596 = vand.u32 %v2595, 4294901760
        %2597 = vmatpush1.msra.mxu0 %v2596
        %2598 = vmatprep.subr.mxu0 0.0
        %v2599 = vand.u32 %v1745, 4294901760
        %v2600 = vsub.f32 %v1745, %v2599
        %v2601 = vand.u32 %v2600, 4294901760
        %2602 = vmatpush1.msra.mxu0 %v2601
        %2603 = vmatprep.subr.mxu0 0.0
        %v2604 = vand.u32 %v1746, 4294901760
        %v2605 = vsub.f32 %v1746, %v2604
        %v2606 = vand.u32 %v2605, 4294901760
        %2607 = vmatpush1.msra.mxu0 %v2606
        %2608 = vmatprep.subr.mxu0 0.0
        %v2609 = vand.u32 %v1747, 4294901760
        %v2610 = vsub.f32 %v1747, %v2609
        %v2611 = vand.u32 %v2610, 4294901760
        %2612 = vmatpush1.msra.mxu0 %v2611
        %2613 = vmatprep.subr.mxu0 0.0
        %2614 = vmatpush1.msra.mxu0 0.0
        %2615 = vmatprep.subr.mxu0 0.0
        %2616 = vmatpush1.msra.mxu0 0.0
        %2617 = vmatprep.subr.mxu0 0.0
        %2618 = vmatpush1.msra.mxu0 0.0
        %2619 = vmatprep.subr.mxu0 0.0
        %2620 = vmatpush1.msra.mxu0 0.0
        %2621 = vmatprep.subr.mxu0 0.0
        %2622 = vmatpush1.msra.mxu0 0.0
        %2623 = vmatprep.subr.mxu0 0.0
        %2624 = vmatpush1.msra.mxu0 0.0
        %2625 = vmatprep.subr.mxu0 0.0
        %2626 = vmatpush1.msra.mxu0 0.0
        %2627 = vmatprep.subr.mxu0 0.0
        %2628 = vmatpush1.msra.mxu0 0.0
        %2629 = vmatprep.subr.mxu0 0.0
        %2630 = vmatpush1.msra.mxu0 0.0
        %2631 = vmatprep.subr.mxu0 0.0
        %2632 = vmatpush1.msra.mxu0 0.0
        %2633 = vmatprep.subr.mxu0 0.0
        %2634 = vmatpush1.msra.mxu0 0.0
        %2635 = vmatprep.subr.mxu0 0.0
        %2636 = vmatpush1.msra.mxu0 0.0
        %2637 = vmatprep.subr.mxu0 0.0
        %2638 = vmatpush1.msra.mxu0 0.0
        %2639 = vmatprep.subr.mxu0 0.0
        %2640 = vmatpush1.msra.mxu0 0.0
        %2641 = vmatprep.subr.mxu0 0.0
        %2642 = vmatpush1.msra.mxu0 0.0
        %2643 = vmatprep.subr.mxu0 0.0
        %2644 = vmatpush1.msra.mxu0 0.0
        %2645 = vmatprep.subr.mxu0 0.0
        %2646 = vmatpush1.msra.mxu0 0.0
        %2647 = vmatprep.subr.mxu0 0.0
        %2648 = vmatpush1.msra.mxu0 0.0
        %2649 = vmatprep.subr.mxu0 0.0
        %2650 = vmatpush1.msra.mxu0 0.0
        %2651 = vmatprep.subr.mxu0 0.0
        %2652 = vmatpush1.msra.mxu0 0.0
        %2653 = vmatprep.subr.mxu0 0.0
        %2654 = vmatpush1.msra.mxu0 0.0
        %2655 = vmatprep.subr.mxu0 0.0
        %2656 = vmatpush1.msra.mxu0 0.0
        %2657 = vmatprep.subr.mxu0 0.0
        %2658 = vmatpush1.msra.mxu0 0.0
        %2659 = vmatprep.subr.mxu0 0.0
        %2660 = vmatpush1.msra.mxu0 0.0
        %2661 = vmatprep.subr.mxu0 0.0
        %2662 = vmatpush1.msra.mxu0 0.0
        %2663 = vmatprep.subr.mxu0 0.0
        %2664 = vmatpush1.msra.mxu0 0.0
        %2665 = vmatprep.subr.mxu0 0.0
        %2666 = vmatpush1.msra.mxu0 0.0
        %2667 = vmatprep.subr.mxu0 0.0
        %2668 = vmatpush1.msra.mxu0 0.0
        %2669 = vmatprep.mubr.f32.mxu0 0.0
        %v2670 = vand.u32 %v1754, 4294901760
        %2671 = vmatmul.mubr.f32.gmra.mrb[0].mxu0 %v2670
        %v2672 = vpop.f32.mrb[0].mxu0
        %v2673 = vadd.f32 %v2470, %v2672
        %v2674 = vpop.f32.mrb[0].mxu0
        %2675 = vmatprep.mubr.f32.mxu0 0.0
        %v2676 = vand.u32 %v1757, 4294901760
        %2677 = vmatmul.mubr.f32.gmra.mrb[0].mxu0 %v2676
        %v2678 = vpop.f32.mrb[0].mxu0
        %v2679 = vadd.f32 %v2478, %v2678
        %v2680 = vpop.f32.mrb[0].mxu0
        %2681 = vmatprep.mubr.f32.mxu0 0.0
        %v2682 = vand.u32 %v1760, 4294901760
        %2683 = vmatmul.mubr.f32.gmra.mrb[0].mxu0 %v2682
        %v2684 = vpop.f32.mrb[0].mxu0
        %v2685 = vadd.f32 %v2486, %v2684
        %v2686 = vpop.f32.mrb[0].mxu0
        %2687 = vmatprep.mubr.f32.mxu0 0.0
        %v2688 = vand.u32 %v1763, 4294901760
        %2689 = vmatmul.mubr.f32.gmra.mrb[0].mxu0 %v2688
        %v2690 = vpop.f32.mrb[0].mxu0
        %v2691 = vadd.f32 %v2494, %v2690
        %v2692 = vpop.f32.mrb[0].mxu0
        %2693 = vmatprep.mubr.f32.mxu0 0.0
        %v2694 = vand.u32 %v1766, 4294901760
        %2695 = vmatmul.mubr.f32.gmra.mrb[0].mxu0 %v2694
        %v2696 = vpop.f32.mrb[0].mxu0
        %v2697 = vadd.f32 %v2502, %v2696
        %v2698 = vpop.f32.mrb[0].mxu0
        %2699 = vmatprep.mubr.f32.mxu0 0.0
        %v2700 = vand.u32 %v1769, 4294901760
        %2701 = vmatmul.mubr.f32.gmra.mrb[0].mxu0 %v2700
        %v2702 = vpop.f32.mrb[0].mxu0
        %v2703 = vadd.f32 %v2510, %v2702
        %v2704 = vpop.f32.mrb[0].mxu0
        %2705 = vmatprep.mubr.f32.mxu0 0.0
        %v2706 = vand.u32 %v1772, 4294901760
        %2707 = vmatmul.mubr.f32.gmra.mrb[0].mxu0 %v2706
        %v2708 = vpop.f32.mrb[0].mxu0
        %v2709 = vadd.f32 %v2518, %v2708
        %v2710 = vpop.f32.mrb[0].mxu0
        %2711 = vmatprep.mubr.f32.mxu0 0.0
        %v2712 = vand.u32 %v1775, 4294901760
        %2713 = vmatmul.mubr.f32.gmra.mrb[0].mxu0 %v2712
        %v2714 = vpop.f32.mrb[0].mxu0
        %v2715 = vadd.f32 %v2526, %v2714
        %v2716 = vpop.f32.mrb[0].mxu0
        %2717 = vmatprep.mubr.f32.mxu0 0.0
        %v2718 = vand.u32 %v1778, 4294901760
        %2719 = vmatmul.mubr.f32.gmra.mrb[0].mxu0 %v2718
        %v2720 = vpop.f32.mrb[0].mxu0
        %v2721 = vadd.f32 %v2534, %v2720
        %v2722 = vpop.f32.mrb[0].mxu0
        %2723 = vmatprep.mubr.f32.mxu0 0.0
        %v2724 = vand.u32 %v1781, 4294901760
        %2725 = vmatmul.mubr.f32.gmra.mrb[0].mxu0 %v2724
        %v2726 = vpop.f32.mrb[0].mxu0
        %v2727 = vadd.f32 %v2542, %v2726
        %v2728 = vpop.f32.mrb[0].mxu0
        %2729 = vmatprep.mubr.f32.mxu0 0.0
        %v2730 = vand.u32 %v1784, 4294901760
        %2731 = vmatmul.mubr.f32.gmra.mrb[0].mxu0 %v2730
        %v2732 = vpop.f32.mrb[0].mxu0
        %v2733 = vadd.f32 %v2550, %v2732
        %v2734 = vpop.f32.mrb[0].mxu0
        %2735 = vmatprep.mubr.f32.mxu0 0.0
        %v2736 = vand.u32 %v1787, 4294901760
        %2737 = vmatmul.mubr.f32.gmra.mrb[0].mxu0 %v2736
        %v2738 = vpop.f32.mrb[0].mxu0
        %v2739 = vadd.f32 %v2558, %v2738
        %v2740 = vpop.f32.mrb[0].mxu0
        %2741 = vmatprep.mubr.f32.mxu0 0.0
        %v2742 = vand.u32 %v1790, 4294901760
        %2743 = vmatmul.mubr.f32.gmra.mrb[0].mxu0 %v2742
        %v2744 = vpop.f32.mrb[0].mxu0
        %v2745 = vadd.f32 %v2566, %v2744
        %v2746 = vpop.f32.mrb[0].mxu0
        %2747 = vmatprep.mubr.f32.mxu0 0.0
        %v2748 = vand.u32 %v1793, 4294901760
        %2749 = vmatmul.mubr.f32.gmra.mrb[0].mxu0 %v2748
        %v2750 = vpop.f32.mrb[0].mxu0
        %v2751 = vadd.f32 %v2574, %v2750
        %v2752 = vpop.f32.mrb[0].mxu0
        %2753 = vmatprep.mubr.f32.mxu0 0.0
        %v2754 = vand.u32 %v1796, 4294901760
        %2755 = vmatmul.mubr.f32.gmra.mrb[0].mxu0 %v2754
        %v2756 = vpop.f32.mrb[0].mxu0
        %v2757 = vadd.f32 %v2582, %v2756
        %v2758 = vpop.f32.mrb[0].mxu0
        %2759 = vmatprep.mubr.f32.mxu0 0.0
        %v2760 = vand.u32 %v1799, 4294901760
        %2761 = vmatmul.mubr.f32.gmra.mrb[0].mxu0 %v2760
        %v2762 = vpop.f32.mrb[0].mxu0
        %v2763 = vadd.f32 %v2590, %v2762
        %v2764 = vpop.f32.mrb[0].mxu0
        %2765 = vdwg.mxu0
        %2766 = vmatprep.subr.mxu0 0.0
        %v2767 = vand.u32 %v1744, 4294901760
        %2768 = vmatpush1.msra.mxu0 %v2767
        %2769 = vmatprep.subr.mxu0 0.0
        %v2770 = vand.u32 %v1745, 4294901760
        %2771 = vmatpush1.msra.mxu0 %v2770
        %2772 = vmatprep.subr.mxu0 0.0
        %v2773 = vand.u32 %v1746, 4294901760
        %2774 = vmatpush1.msra.mxu0 %v2773
        %2775 = vmatprep.subr.mxu0 0.0
        %v2776 = vand.u32 %v1747, 4294901760
        %2777 = vmatpush1.msra.mxu0 %v2776
        %2778 = vmatprep.subr.mxu0 0.0
        %2779 = vmatpush1.msra.mxu0 0.0
        %2780 = vmatprep.subr.mxu0 0.0
        %2781 = vmatpush1.msra.mxu0 0.0
        %2782 = vmatprep.subr.mxu0 0.0
        %2783 = vmatpush1.msra.mxu0 0.0
        %2784 = vmatprep.subr.mxu0 0.0
        %2785 = vmatpush1.msra.mxu0 0.0
        %2786 = vmatprep.subr.mxu0 0.0
        %2787 = vmatpush1.msra.mxu0 0.0
        %2788 = vmatprep.subr.mxu0 0.0
        %2789 = vmatpush1.msra.mxu0 0.0
        %2790 = vmatprep.subr.mxu0 0.0
        %2791 = vmatpush1.msra.mxu0 0.0
        %2792 = vmatprep.subr.mxu0 0.0
        %2793 = vmatpush1.msra.mxu0 0.0
        %2794 = vmatprep.subr.mxu0 0.0
        %2795 = vmatpush1.msra.mxu0 0.0
        %2796 = vmatprep.subr.mxu0 0.0
        %2797 = vmatpush1.msra.mxu0 0.0
        %2798 = vmatprep.subr.mxu0 0.0
        %2799 = vmatpush1.msra.mxu0 0.0
        %2800 = vmatprep.subr.mxu0 0.0
        %2801 = vmatpush1.msra.mxu0 0.0
        %2802 = vmatprep.subr.mxu0 0.0
        %2803 = vmatpush1.msra.mxu0 0.0
        %2804 = vmatprep.subr.mxu0 0.0
        %2805 = vmatpush1.msra.mxu0 0.0
        %2806 = vmatprep.subr.mxu0 0.0
        %2807 = vmatpush1.msra.mxu0 0.0
        %2808 = vmatprep.subr.mxu0 0.0
        %2809 = vmatpush1.msra.mxu0 0.0
        %2810 = vmatprep.subr.mxu0 0.0
        %2811 = vmatpush1.msra.mxu0 0.0
        %2812 = vmatprep.subr.mxu0 0.0
        %2813 = vmatpush1.msra.mxu0 0.0
        %2814 = vmatprep.subr.mxu0 0.0
        %2815 = vmatpush1.msra.mxu0 0.0
        %2816 = vmatprep.subr.mxu0 0.0
        %2817 = vmatpush1.msra.mxu0 0.0
        %2818 = vmatprep.subr.mxu0 0.0
        %2819 = vmatpush1.msra.mxu0 0.0
        %2820 = vmatprep.subr.mxu0 0.0
        %2821 = vmatpush1.msra.mxu0 0.0
        %2822 = vmatprep.subr.mxu0 0.0
        %2823 = vmatpush1.msra.mxu0 0.0
        %2824 = vmatprep.subr.mxu0 0.0
        %2825 = vmatpush1.msra.mxu0 0.0
        %2826 = vmatprep.subr.mxu0 0.0
        %2827 = vmatpush1.msra.mxu0 0.0
        %2828 = vmatprep.subr.mxu0 0.0
        %2829 = vmatpush1.msra.mxu0 0.0
        %2830 = vmatprep.subr.mxu0 0.0
        %2831 = vmatpush1.msra.mxu0 0.0
        %2832 = vmatprep.subr.mxu0 0.0
        %2833 = vmatpush1.msra.mxu0 0.0
        %2834 = vmatprep.mubr.f32.mxu0 0.0
        %v2835 = vand.u32 %v1754, 4294901760
        %2836 = vmatmul.mubr.f32.gmra.mrb[0].mxu0 %v2835
        %v2837 = vpop.f32.mrb[0].mxu0
        %v2838 = vadd.f32 %v2673, %v2837
        %v2839 = vpop.f32.mrb[0].mxu0
        %2840 = vmatprep.mubr.f32.mxu0 0.0
        %v2841 = vand.u32 %v1757, 4294901760
        %2842 = vmatmul.mubr.f32.gmra.mrb[0].mxu0 %v2841
        %v2843 = vpop.f32.mrb[0].mxu0
        %v2844 = vadd.f32 %v2679, %v2843
        %v2845 = vpop.f32.mrb[0].mxu0
        %2846 = vmatprep.mubr.f32.mxu0 0.0
        %v2847 = vand.u32 %v1760, 4294901760
        %2848 = vmatmul.mubr.f32.gmra.mrb[0].mxu0 %v2847
        %v2849 = vpop.f32.mrb[0].mxu0
        %v2850 = vadd.f32 %v2685, %v2849
        %v2851 = vpop.f32.mrb[0].mxu0
        %2852 = vmatprep.mubr.f32.mxu0 0.0
        %v2853 = vand.u32 %v1763, 4294901760
        %2854 = vmatmul.mubr.f32.gmra.mrb[0].mxu0 %v2853
        %v2855 = vpop.f32.mrb[0].mxu0
        %v2856 = vadd.f32 %v2691, %v2855
        %v2857 = vpop.f32.mrb[0].mxu0
        %2858 = vmatprep.mubr.f32.mxu0 0.0
        %v2859 = vand.u32 %v1766, 4294901760
        %2860 = vmatmul.mubr.f32.gmra.mrb[0].mxu0 %v2859
        %v2861 = vpop.f32.mrb[0].mxu0
        %v2862 = vadd.f32 %v2697, %v2861
        %v2863 = vpop.f32.mrb[0].mxu0
        %2864 = vmatprep.mubr.f32.mxu0 0.0
        %v2865 = vand.u32 %v1769, 4294901760
        %2866 = vmatmul.mubr.f32.gmra.mrb[0].mxu0 %v2865
        %v2867 = vpop.f32.mrb[0].mxu0
        %v2868 = vadd.f32 %v2703, %v2867
        %v2869 = vpop.f32.mrb[0].mxu0
        %2870 = vmatprep.mubr.f32.mxu0 0.0
        %v2871 = vand.u32 %v1772, 4294901760
        %2872 = vmatmul.mubr.f32.gmra.mrb[0].mxu0 %v2871
        %v2873 = vpop.f32.mrb[0].mxu0
        %v2874 = vadd.f32 %v2709, %v2873
        %v2875 = vpop.f32.mrb[0].mxu0
        %2876 = vmatprep.mubr.f32.mxu0 0.0
        %v2877 = vand.u32 %v1775, 4294901760
        %2878 = vmatmul.mubr.f32.gmra.mrb[0].mxu0 %v2877
        %v2879 = vpop.f32.mrb[0].mxu0
        %v2880 = vadd.f32 %v2715, %v2879
        %v2881 = vpop.f32.mrb[0].mxu0
        %2882 = vmatprep.mubr.f32.mxu0 0.0
        %v2883 = vand.u32 %v1778, 4294901760
        %2884 = vmatmul.mubr.f32.gmra.mrb[0].mxu0 %v2883
        %v2885 = vpop.f32.mrb[0].mxu0
        %v2886 = vadd.f32 %v2721, %v2885
        %v2887 = vpop.f32.mrb[0].mxu0
        %2888 = vmatprep.mubr.f32.mxu0 0.0
        %v2889 = vand.u32 %v1781, 4294901760
        %2890 = vmatmul.mubr.f32.gmra.mrb[0].mxu0 %v2889
        %v2891 = vpop.f32.mrb[0].mxu0
        %v2892 = vadd.f32 %v2727, %v2891
        %v2893 = vpop.f32.mrb[0].mxu0
        %2894 = vmatprep.mubr.f32.mxu0 0.0
        %v2895 = vand.u32 %v1784, 4294901760
        %2896 = vmatmul.mubr.f32.gmra.mrb[0].mxu0 %v2895
        %v2897 = vpop.f32.mrb[0].mxu0
        %v2898 = vadd.f32 %v2733, %v2897
        %v2899 = vpop.f32.mrb[0].mxu0
        %2900 = vmatprep.mubr.f32.mxu0 0.0
        %v2901 = vand.u32 %v1787, 4294901760
        %2902 = vmatmul.mubr.f32.gmra.mrb[0].mxu0 %v2901
        %v2903 = vpop.f32.mrb[0].mxu0
        %v2904 = vadd.f32 %v2739, %v2903
        %v2905 = vpop.f32.mrb[0].mxu0
        %2906 = vmatprep.mubr.f32.mxu0 0.0
        %v2907 = vand.u32 %v1790, 4294901760
        %2908 = vmatmul.mubr.f32.gmra.mrb[0].mxu0 %v2907
        %v2909 = vpop.f32.mrb[0].mxu0
        %v2910 = vadd.f32 %v2745, %v2909
        %v2911 = vpop.f32.mrb[0].mxu0
        %2912 = vmatprep.mubr.f32.mxu0 0.0
        %v2913 = vand.u32 %v1793, 4294901760
        %2914 = vmatmul.mubr.f32.gmra.mrb[0].mxu0 %v2913
        %v2915 = vpop.f32.mrb[0].mxu0
        %v2916 = vadd.f32 %v2751, %v2915
        %v2917 = vpop.f32.mrb[0].mxu0
        %2918 = vmatprep.mubr.f32.mxu0 0.0
        %v2919 = vand.u32 %v1796, 4294901760
        %2920 = vmatmul.mubr.f32.gmra.mrb[0].mxu0 %v2919
        %v2921 = vpop.f32.mrb[0].mxu0
        %v2922 = vadd.f32 %v2757, %v2921
        %v2923 = vpop.f32.mrb[0].mxu0
        %2924 = vmatprep.mubr.f32.mxu0 0.0
        %v2925 = vand.u32 %v1799, 4294901760
        %2926 = vmatmul.mubr.f32.gmra.mrb[0].mxu0 %v2925
        %v2927 = vpop.f32.mrb[0].mxu0
        %v2928 = vadd.f32 %v2763, %v2927
        %v2929 = vpop.f32.mrb[0].mxu0
        %2930 = vdwg.mxu0
        %v2931 = vmax.f32 %v2838, 0.0
        %v2932 = vmax.f32 %v2844, 0.0
        %v2933 = vmax.f32 %v2850, 0.0
        %v2934 = vmax.f32 %v2856, 0.0
        %v2935 = vmax.f32 %v2862, 0.0
        %v2936 = vmax.f32 %v2868, 0.0
        %v2937 = vmax.f32 %v2874, 0.0
        %v2938 = vmax.f32 %v2880, 0.0
        %v2939 = vmax.f32 %v2886, 0.0
        %v2940 = vmax.f32 %v2892, 0.0
        %v2941 = vmax.f32 %v2898, 0.0
        %v2942 = vmax.f32 %v2904, 0.0
        %v2943 = vmax.f32 %v2910, 0.0
        %v2944 = vmax.f32 %v2916, 0.0
        %v2945 = vmax.f32 %v2922, 0.0
        %v2946 = vmax.f32 %v2928, 0.0
        %v2947 = vld [vmem:[#allocation5] sm:$0xff]
        %v2948 = vld [vmem:[#allocation5 + $0x8] sm:$0xff]
        %v2949 = vld [vmem:[#allocation5 + $0x10] sm:$0xff]
        %v2950 = vld [vmem:[#allocation5 + $0x18] sm:$0xff]
        %v2951 = vlaneseq
        %v2952 = vshrl.u32 %v2951, 7
        %v2953 = vsub.s32 0, %v2952
        %v2954 = vrot.slane %v452, %v2953
        %v2956 = vsel %vm1752, %v2931, 0
        %v2959 = vsel %vm1752, %v2932, 0
        %v2962 = vsel %vm1752, %v2933, 0
        %v2965 = vsel %vm1752, %v2934, 0
        %v2968 = vsel %vm1752, %v2935, 0
        %v2971 = vsel %vm1752, %v2936, 0
        %v2974 = vsel %vm1752, %v2937, 0
        %v2977 = vsel %vm1752, %v2938, 0
        %v2980 = vsel %vm1752, %v2939, 0
        %v2983 = vsel %vm1752, %v2940, 0
        %v2986 = vsel %vm1752, %v2941, 0
        %v2989 = vsel %vm1752, %v2942, 0
        %v2992 = vsel %vm1752, %v2943, 0
        %v2995 = vsel %vm1752, %v2944, 0
        %v2998 = vsel %vm1752, %v2945, 0
        %v3001 = vsel %vm1752, %v2946, 0
        %3003 = vmatprep.subr.mxu0 0.0
        %v3004 = vand.u32 %v2947, 4294901760
        %3005 = vmatpush1.msra.mxu0 %v3004
        %3006 = vmatprep.subr.mxu0 0.0
        %v3007 = vand.u32 %v2948, 4294901760
        %3008 = vmatpush1.msra.mxu0 %v3007
        %3009 = vmatprep.subr.mxu0 0.0
        %v3010 = vand.u32 %v2949, 4294901760
        %3011 = vmatpush1.msra.mxu0 %v3010
        %3012 = vmatprep.subr.mxu0 0.0
        %v3013 = vand.u32 %v2950, 4294901760
        %3014 = vmatpush1.msra.mxu0 %v3013
        %3015 = vmatprep.subr.mxu0 0.0
        %3016 = vmatpush1.msra.mxu0 0.0
        %3017 = vmatprep.subr.mxu0 0.0
        %3018 = vmatpush1.msra.mxu0 0.0
        %3019 = vmatprep.subr.mxu0 0.0
        %3020 = vmatpush1.msra.mxu0 0.0
        %3021 = vmatprep.subr.mxu0 0.0
        %3022 = vmatpush1.msra.mxu0 0.0
        %3023 = vmatprep.subr.mxu0 0.0
        %3024 = vmatpush1.msra.mxu0 0.0
        %3025 = vmatprep.subr.mxu0 0.0
        %3026 = vmatpush1.msra.mxu0 0.0
        %3027 = vmatprep.subr.mxu0 0.0
        %3028 = vmatpush1.msra.mxu0 0.0
        %3029 = vmatprep.subr.mxu0 0.0
        %3030 = vmatpush1.msra.mxu0 0.0
        %3031 = vmatprep.subr.mxu0 0.0
        %3032 = vmatpush1.msra.mxu0 0.0
        %3033 = vmatprep.subr.mxu0 0.0
        %3034 = vmatpush1.msra.mxu0 0.0
        %3035 = vmatprep.subr.mxu0 0.0
        %3036 = vmatpush1.msra.mxu0 0.0
        %3037 = vmatprep.subr.mxu0 0.0
        %3038 = vmatpush1.msra.mxu0 0.0
        %3039 = vmatprep.subr.mxu0 0.0
        %3040 = vmatpush1.msra.mxu0 0.0
        %3041 = vmatprep.subr.mxu0 0.0
        %3042 = vmatpush1.msra.mxu0 0.0
        %3043 = vmatprep.subr.mxu0 0.0
        %3044 = vmatpush1.msra.mxu0 0.0
        %3045 = vmatprep.subr.mxu0 0.0
        %3046 = vmatpush1.msra.mxu0 0.0
        %3047 = vmatprep.subr.mxu0 0.0
        %3048 = vmatpush1.msra.mxu0 0.0
        %3049 = vmatprep.subr.mxu0 0.0
        %3050 = vmatpush1.msra.mxu0 0.0
        %3051 = vmatprep.subr.mxu0 0.0
        %3052 = vmatpush1.msra.mxu0 0.0
        %3053 = vmatprep.subr.mxu0 0.0
        %3054 = vmatpush1.msra.mxu0 0.0
        %3055 = vmatprep.subr.mxu0 0.0
        %3056 = vmatpush1.msra.mxu0 0.0
        %3057 = vmatprep.subr.mxu0 0.0
        %3058 = vmatpush1.msra.mxu0 0.0
        %3059 = vmatprep.subr.mxu0 0.0
        %3060 = vmatpush1.msra.mxu0 0.0
        %3061 = vmatprep.subr.mxu0 0.0
        %3062 = vmatpush1.msra.mxu0 0.0
        %3063 = vmatprep.subr.mxu0 0.0
        %3064 = vmatpush1.msra.mxu0 0.0
        %3065 = vmatprep.subr.mxu0 0.0
        %3066 = vmatpush1.msra.mxu0 0.0
        %3067 = vmatprep.subr.mxu0 0.0
        %3068 = vmatpush1.msra.mxu0 0.0
        %3069 = vmatprep.subr.mxu0 0.0
        %3070 = vmatpush1.msra.mxu0 0.0
        %3071 = vmatprep.mubr.f32.mxu0 0.0
        %v3072 = vand.u32 %v2956, 4294901760
        %v3073 = vsub.f32 %v2956, %v3072
        %v3074 = vand.u32 %v3073, 4294901760
        %v3075 = vsub.f32 %v3073, %v3074
        %v3076 = vand.u32 %v3075, 4294901760
        %3077 = vmatmul.mubr.f32.gmra.mrb[0].mxu0 %v3076
        %v3078 = vpop.f32.mrb[0].mxu0
        %v3079 = vadd.f32 %v2954, %v3078
        %v3080 = vpop.f32.mrb[0].mxu0
        %3081 = vmatprep.mubr.f32.mxu0 0.0
        %v3082 = vand.u32 %v2959, 4294901760
        %v3083 = vsub.f32 %v2959, %v3082
        %v3084 = vand.u32 %v3083, 4294901760
        %v3085 = vsub.f32 %v3083, %v3084
        %v3086 = vand.u32 %v3085, 4294901760
        %3087 = vmatmul.mubr.f32.gmra.mrb[0].mxu0 %v3086
        %v3088 = vpop.f32.mrb[0].mxu0
        %v3089 = vadd.f32 %v2954, %v3088
        %v3090 = vpop.f32.mrb[0].mxu0
        %3091 = vmatprep.mubr.f32.mxu0 0.0
        %v3092 = vand.u32 %v2962, 4294901760
        %v3093 = vsub.f32 %v2962, %v3092
        %v3094 = vand.u32 %v3093, 4294901760
        %v3095 = vsub.f32 %v3093, %v3094
        %v3096 = vand.u32 %v3095, 4294901760
        %3097 = vmatmul.mubr.f32.gmra.mrb[0].mxu0 %v3096
        %v3098 = vpop.f32.mrb[0].mxu0
        %v3099 = vadd.f32 %v2954, %v3098
        %v3100 = vpop.f32.mrb[0].mxu0
        %3101 = vmatprep.mubr.f32.mxu0 0.0
        %v3102 = vand.u32 %v2965, 4294901760
        %v3103 = vsub.f32 %v2965, %v3102
        %v3104 = vand.u32 %v3103, 4294901760
        %v3105 = vsub.f32 %v3103, %v3104
        %v3106 = vand.u32 %v3105, 4294901760
        %3107 = vmatmul.mubr.f32.gmra.mrb[0].mxu0 %v3106
        %v3108 = vpop.f32.mrb[0].mxu0
        %v3109 = vadd.f32 %v2954, %v3108
        %v3110 = vpop.f32.mrb[0].mxu0
        %3111 = vmatprep.mubr.f32.mxu0 0.0
        %v3112 = vand.u32 %v2968, 4294901760
        %v3113 = vsub.f32 %v2968, %v3112
        %v3114 = vand.u32 %v3113, 4294901760
        %v3115 = vsub.f32 %v3113, %v3114
        %v3116 = vand.u32 %v3115, 4294901760
        %3117 = vmatmul.mubr.f32.gmra.mrb[0].mxu0 %v3116
        %v3118 = vpop.f32.mrb[0].mxu0
        %v3119 = vadd.f32 %v2954, %v3118
        %v3120 = vpop.f32.mrb[0].mxu0
        %3121 = vmatprep.mubr.f32.mxu0 0.0
        %v3122 = vand.u32 %v2971, 4294901760
        %v3123 = vsub.f32 %v2971, %v3122
        %v3124 = vand.u32 %v3123, 4294901760
        %v3125 = vsub.f32 %v3123, %v3124
        %v3126 = vand.u32 %v3125, 4294901760
        %3127 = vmatmul.mubr.f32.gmra.mrb[0].mxu0 %v3126
        %v3128 = vpop.f32.mrb[0].mxu0
        %v3129 = vadd.f32 %v2954, %v3128
        %v3130 = vpop.f32.mrb[0].mxu0
        %3131 = vmatprep.mubr.f32.mxu0 0.0
        %v3132 = vand.u32 %v2974, 4294901760
        %v3133 = vsub.f32 %v2974, %v3132
        %v3134 = vand.u32 %v3133, 4294901760
        %v3135 = vsub.f32 %v3133, %v3134
        %v3136 = vand.u32 %v3135, 4294901760
        %3137 = vmatmul.mubr.f32.gmra.mrb[0].mxu0 %v3136
        %v3138 = vpop.f32.mrb[0].mxu0
        %v3139 = vadd.f32 %v2954, %v3138
        %v3140 = vpop.f32.mrb[0].mxu0
        %3141 = vmatprep.mubr.f32.mxu0 0.0
        %v3142 = vand.u32 %v2977, 4294901760
        %v3143 = vsub.f32 %v2977, %v3142
        %v3144 = vand.u32 %v3143, 4294901760
        %v3145 = vsub.f32 %v3143, %v3144
        %v3146 = vand.u32 %v3145, 4294901760
        %3147 = vmatmul.mubr.f32.gmra.mrb[0].mxu0 %v3146
        %v3148 = vpop.f32.mrb[0].mxu0
        %v3149 = vadd.f32 %v2954, %v3148
        %v3150 = vpop.f32.mrb[0].mxu0
        %3151 = vmatprep.mubr.f32.mxu0 0.0
        %v3152 = vand.u32 %v2980, 4294901760
        %v3153 = vsub.f32 %v2980, %v3152
        %v3154 = vand.u32 %v3153, 4294901760
        %v3155 = vsub.f32 %v3153, %v3154
        %v3156 = vand.u32 %v3155, 4294901760
        %3157 = vmatmul.mubr.f32.gmra.mrb[0].mxu0 %v3156
        %v3158 = vpop.f32.mrb[0].mxu0
        %v3159 = vadd.f32 %v2954, %v3158
        %v3160 = vpop.f32.mrb[0].mxu0
        %3161 = vmatprep.mubr.f32.mxu0 0.0
        %v3162 = vand.u32 %v2983, 4294901760
        %v3163 = vsub.f32 %v2983, %v3162
        %v3164 = vand.u32 %v3163, 4294901760
        %v3165 = vsub.f32 %v3163, %v3164
        %v3166 = vand.u32 %v3165, 4294901760
        %3167 = vmatmul.mubr.f32.gmra.mrb[0].mxu0 %v3166
        %v3168 = vpop.f32.mrb[0].mxu0
        %v3169 = vadd.f32 %v2954, %v3168
        %v3170 = vpop.f32.mrb[0].mxu0
        %3171 = vmatprep.mubr.f32.mxu0 0.0
        %v3172 = vand.u32 %v2986, 4294901760
        %v3173 = vsub.f32 %v2986, %v3172
        %v3174 = vand.u32 %v3173, 4294901760
        %v3175 = vsub.f32 %v3173, %v3174
        %v3176 = vand.u32 %v3175, 4294901760
        %3177 = vmatmul.mubr.f32.gmra.mrb[0].mxu0 %v3176
        %v3178 = vpop.f32.mrb[0].mxu0
        %v3179 = vadd.f32 %v2954, %v3178
        %v3180 = vpop.f32.mrb[0].mxu0
        %3181 = vmatprep.mubr.f32.mxu0 0.0
        %v3182 = vand.u32 %v2989, 4294901760
        %v3183 = vsub.f32 %v2989, %v3182
        %v3184 = vand.u32 %v3183, 4294901760
        %v3185 = vsub.f32 %v3183, %v3184
        %v3186 = vand.u32 %v3185, 4294901760
        %3187 = vmatmul.mubr.f32.gmra.mrb[0].mxu0 %v3186
        %v3188 = vpop.f32.mrb[0].mxu0
        %v3189 = vadd.f32 %v2954, %v3188
        %v3190 = vpop.f32.mrb[0].mxu0
        %3191 = vmatprep.mubr.f32.mxu0 0.0
        %v3192 = vand.u32 %v2992, 4294901760
        %v3193 = vsub.f32 %v2992, %v3192
        %v3194 = vand.u32 %v3193, 4294901760
        %v3195 = vsub.f32 %v3193, %v3194
        %v3196 = vand.u32 %v3195, 4294901760
        %3197 = vmatmul.mubr.f32.gmra.mrb[0].mxu0 %v3196
        %v3198 = vpop.f32.mrb[0].mxu0
        %v3199 = vadd.f32 %v2954, %v3198
        %v3200 = vpop.f32.mrb[0].mxu0
        %3201 = vmatprep.mubr.f32.mxu0 0.0
        %v3202 = vand.u32 %v2995, 4294901760
        %v3203 = vsub.f32 %v2995, %v3202
        %v3204 = vand.u32 %v3203, 4294901760
        %v3205 = vsub.f32 %v3203, %v3204
        %v3206 = vand.u32 %v3205, 4294901760
        %3207 = vmatmul.mubr.f32.gmra.mrb[0].mxu0 %v3206
        %v3208 = vpop.f32.mrb[0].mxu0
        %v3209 = vadd.f32 %v2954, %v3208
        %v3210 = vpop.f32.mrb[0].mxu0
        %3211 = vmatprep.mubr.f32.mxu0 0.0
        %v3212 = vand.u32 %v2998, 4294901760
        %v3213 = vsub.f32 %v2998, %v3212
        %v3214 = vand.u32 %v3213, 4294901760
        %v3215 = vsub.f32 %v3213, %v3214
        %v3216 = vand.u32 %v3215, 4294901760
        %3217 = vmatmul.mubr.f32.gmra.mrb[0].mxu0 %v3216
        %v3218 = vpop.f32.mrb[0].mxu0
        %v3219 = vadd.f32 %v2954, %v3218
        %v3220 = vpop.f32.mrb[0].mxu0
        %3221 = vmatprep.mubr.f32.mxu0 0.0
        %v3222 = vand.u32 %v3001, 4294901760
        %v3223 = vsub.f32 %v3001, %v3222
        %v3224 = vand.u32 %v3223, 4294901760
        %v3225 = vsub.f32 %v3223, %v3224
        %v3226 = vand.u32 %v3225, 4294901760
        %3227 = vmatmul.mubr.f32.gmra.mrb[0].mxu0 %v3226
        %v3228 = vpop.f32.mrb[0].mxu0
        %v3229 = vadd.f32 %v2954, %v3228
        %v3230 = vpop.f32.mrb[0].mxu0
        %3231 = vdwg.mxu0
        %3232 = vmatprep.subr.mxu0 0.0
        %v3233 = vand.u32 %v2947, 4294901760
        %v3234 = vsub.f32 %v2947, %v3233
        %v3235 = vand.u32 %v3234, 4294901760
        %v3236 = vsub.f32 %v3234, %v3235
        %v3237 = vand.u32 %v3236, 4294901760
        %3238 = vmatpush1.msra.mxu0 %v3237
        %3239 = vmatprep.subr.mxu0 0.0
        %v3240 = vand.u32 %v2948, 4294901760
        %v3241 = vsub.f32 %v2948, %v3240
        %v3242 = vand.u32 %v3241, 4294901760
        %v3243 = vsub.f32 %v3241, %v3242
        %v3244 = vand.u32 %v3243, 4294901760
        %3245 = vmatpush1.msra.mxu0 %v3244
        %3246 = vmatprep.subr.mxu0 0.0
        %v3247 = vand.u32 %v2949, 4294901760
        %v3248 = vsub.f32 %v2949, %v3247
        %v3249 = vand.u32 %v3248, 4294901760
        %v3250 = vsub.f32 %v3248, %v3249
        %v3251 = vand.u32 %v3250, 4294901760
        %3252 = vmatpush1.msra.mxu0 %v3251
        %3253 = vmatprep.subr.mxu0 0.0
        %v3254 = vand.u32 %v2950, 4294901760
        %v3255 = vsub.f32 %v2950, %v3254
        %v3256 = vand.u32 %v3255, 4294901760
        %v3257 = vsub.f32 %v3255, %v3256
        %v3258 = vand.u32 %v3257, 4294901760
        %3259 = vmatpush1.msra.mxu0 %v3258
        %3260 = vmatprep.subr.mxu0 0.0
        %3261 = vmatpush1.msra.mxu0 0.0
        %3262 = vmatprep.subr.mxu0 0.0
        %3263 = vmatpush1.msra.mxu0 0.0
        %3264 = vmatprep.subr.mxu0 0.0
        %3265 = vmatpush1.msra.mxu0 0.0
        %3266 = vmatprep.subr.mxu0 0.0
        %3267 = vmatpush1.msra.mxu0 0.0
        %3268 = vmatprep.subr.mxu0 0.0
        %3269 = vmatpush1.msra.mxu0 0.0
        %3270 = vmatprep.subr.mxu0 0.0
        %3271 = vmatpush1.msra.mxu0 0.0
        %3272 = vmatprep.subr.mxu0 0.0
        %3273 = vmatpush1.msra.mxu0 0.0
        %3274 = vmatprep.subr.mxu0 0.0
        %3275 = vmatpush1.msra.mxu0 0.0
        %3276 = vmatprep.subr.mxu0 0.0
        %3277 = vmatpush1.msra.mxu0 0.0
        %3278 = vmatprep.subr.mxu0 0.0
        %3279 = vmatpush1.msra.mxu0 0.0
        %3280 = vmatprep.subr.mxu0 0.0
        %3281 = vmatpush1.msra.mxu0 0.0
        %3282 = vmatprep.subr.mxu0 0.0
        %3283 = vmatpush1.msra.mxu0 0.0
        %3284 = vmatprep.subr.mxu0 0.0
        %3285 = vmatpush1.msra.mxu0 0.0
        %3286 = vmatprep.subr.mxu0 0.0
        %3287 = vmatpush1.msra.mxu0 0.0
        %3288 = vmatprep.subr.mxu0 0.0
        %3289 = vmatpush1.msra.mxu0 0.0
        %3290 = vmatprep.subr.mxu0 0.0
        %3291 = vmatpush1.msra.mxu0 0.0
        %3292 = vmatprep.subr.mxu0 0.0
        %3293 = vmatpush1.msra.mxu0 0.0
        %3294 = vmatprep.subr.mxu0 0.0
        %3295 = vmatpush1.msra.mxu0 0.0
        %3296 = vmatprep.subr.mxu0 0.0
        %3297 = vmatpush1.msra.mxu0 0.0
        %3298 = vmatprep.subr.mxu0 0.0
        %3299 = vmatpush1.msra.mxu0 0.0
        %3300 = vmatprep.subr.mxu0 0.0
        %3301 = vmatpush1.msra.mxu0 0.0
        %3302 = vmatprep.subr.mxu0 0.0
        %3303 = vmatpush1.msra.mxu0 0.0
        %3304 = vmatprep.subr.mxu0 0.0
        %3305 = vmatpush1.msra.mxu0 0.0
        %3306 = vmatprep.subr.mxu0 0.0
        %3307 = vmatpush1.msra.mxu0 0.0
        %3308 = vmatprep.subr.mxu0 0.0
        %3309 = vmatpush1.msra.mxu0 0.0
        %3310 = vmatprep.subr.mxu0 0.0
        %3311 = vmatpush1.msra.mxu0 0.0
        %3312 = vmatprep.subr.mxu0 0.0
        %3313 = vmatpush1.msra.mxu0 0.0
        %3314 = vmatprep.subr.mxu0 0.0
        %3315 = vmatpush1.msra.mxu0 0.0
        %3316 = vmatprep.mubr.f32.mxu0 0.0
        %v3317 = vand.u32 %v2956, 4294901760
        %3318 = vmatmul.mubr.f32.gmra.mrb[0].mxu0 %v3317
        %v3319 = vpop.f32.mrb[0].mxu0
        %v3320 = vadd.f32 %v3079, %v3319
        %v3321 = vpop.f32.mrb[0].mxu0
        %3322 = vmatprep.mubr.f32.mxu0 0.0
        %v3323 = vand.u32 %v2959, 4294901760
        %3324 = vmatmul.mubr.f32.gmra.mrb[0].mxu0 %v3323
        %v3325 = vpop.f32.mrb[0].mxu0
        %v3326 = vadd.f32 %v3089, %v3325
        %v3327 = vpop.f32.mrb[0].mxu0
        %3328 = vmatprep.mubr.f32.mxu0 0.0
        %v3329 = vand.u32 %v2962, 4294901760
        %3330 = vmatmul.mubr.f32.gmra.mrb[0].mxu0 %v3329
        %v3331 = vpop.f32.mrb[0].mxu0
        %v3332 = vadd.f32 %v3099, %v3331
        %v3333 = vpop.f32.mrb[0].mxu0
        %3334 = vmatprep.mubr.f32.mxu0 0.0
        %v3335 = vand.u32 %v2965, 4294901760
        %3336 = vmatmul.mubr.f32.gmra.mrb[0].mxu0 %v3335
        %v3337 = vpop.f32.mrb[0].mxu0
        %v3338 = vadd.f32 %v3109, %v3337
        %v3339 = vpop.f32.mrb[0].mxu0
        %3340 = vmatprep.mubr.f32.mxu0 0.0
        %v3341 = vand.u32 %v2968, 4294901760
        %3342 = vmatmul.mubr.f32.gmra.mrb[0].mxu0 %v3341
        %v3343 = vpop.f32.mrb[0].mxu0
        %v3344 = vadd.f32 %v3119, %v3343
        %v3345 = vpop.f32.mrb[0].mxu0
        %3346 = vmatprep.mubr.f32.mxu0 0.0
        %v3347 = vand.u32 %v2971, 4294901760
        %3348 = vmatmul.mubr.f32.gmra.mrb[0].mxu0 %v3347
        %v3349 = vpop.f32.mrb[0].mxu0
        %v3350 = vadd.f32 %v3129, %v3349
        %v3351 = vpop.f32.mrb[0].mxu0
        %3352 = vmatprep.mubr.f32.mxu0 0.0
        %v3353 = vand.u32 %v2974, 4294901760
        %3354 = vmatmul.mubr.f32.gmra.mrb[0].mxu0 %v3353
        %v3355 = vpop.f32.mrb[0].mxu0
        %v3356 = vadd.f32 %v3139, %v3355
        %v3357 = vpop.f32.mrb[0].mxu0
        %3358 = vmatprep.mubr.f32.mxu0 0.0
        %v3359 = vand.u32 %v2977, 4294901760
        %3360 = vmatmul.mubr.f32.gmra.mrb[0].mxu0 %v3359
        %v3361 = vpop.f32.mrb[0].mxu0
        %v3362 = vadd.f32 %v3149, %v3361
        %v3363 = vpop.f32.mrb[0].mxu0
        %3364 = vmatprep.mubr.f32.mxu0 0.0
        %v3365 = vand.u32 %v2980, 4294901760
        %3366 = vmatmul.mubr.f32.gmra.mrb[0].mxu0 %v3365
        %v3367 = vpop.f32.mrb[0].mxu0
        %v3368 = vadd.f32 %v3159, %v3367
        %v3369 = vpop.f32.mrb[0].mxu0
        %3370 = vmatprep.mubr.f32.mxu0 0.0
        %v3371 = vand.u32 %v2983, 4294901760
        %3372 = vmatmul.mubr.f32.gmra.mrb[0].mxu0 %v3371
        %v3373 = vpop.f32.mrb[0].mxu0
        %v3374 = vadd.f32 %v3169, %v3373
        %v3375 = vpop.f32.mrb[0].mxu0
        %3376 = vmatprep.mubr.f32.mxu0 0.0
        %v3377 = vand.u32 %v2986, 4294901760
        %3378 = vmatmul.mubr.f32.gmra.mrb[0].mxu0 %v3377
        %v3379 = vpop.f32.mrb[0].mxu0
        %v3380 = vadd.f32 %v3179, %v3379
        %v3381 = vpop.f32.mrb[0].mxu0
        %3382 = vmatprep.mubr.f32.mxu0 0.0
        %v3383 = vand.u32 %v2989, 4294901760
        %3384 = vmatmul.mubr.f32.gmra.mrb[0].mxu0 %v3383
        %v3385 = vpop.f32.mrb[0].mxu0
        %v3386 = vadd.f32 %v3189, %v3385
        %v3387 = vpop.f32.mrb[0].mxu0
        %3388 = vmatprep.mubr.f32.mxu0 0.0
        %v3389 = vand.u32 %v2992, 4294901760
        %3390 = vmatmul.mubr.f32.gmra.mrb[0].mxu0 %v3389
        %v3391 = vpop.f32.mrb[0].mxu0
        %v3392 = vadd.f32 %v3199, %v3391
        %v3393 = vpop.f32.mrb[0].mxu0
        %3394 = vmatprep.mubr.f32.mxu0 0.0
        %v3395 = vand.u32 %v2995, 4294901760
        %3396 = vmatmul.mubr.f32.gmra.mrb[0].mxu0 %v3395
        %v3397 = vpop.f32.mrb[0].mxu0
        %v3398 = vadd.f32 %v3209, %v3397
        %v3399 = vpop.f32.mrb[0].mxu0
        %3400 = vmatprep.mubr.f32.mxu0 0.0
        %v3401 = vand.u32 %v2998, 4294901760
        %3402 = vmatmul.mubr.f32.gmra.mrb[0].mxu0 %v3401
        %v3403 = vpop.f32.mrb[0].mxu0
        %v3404 = vadd.f32 %v3219, %v3403
        %v3405 = vpop.f32.mrb[0].mxu0
        %3406 = vmatprep.mubr.f32.mxu0 0.0
        %v3407 = vand.u32 %v3001, 4294901760
        %3408 = vmatmul.mubr.f32.gmra.mrb[0].mxu0 %v3407
        %v3409 = vpop.f32.mrb[0].mxu0
        %v3410 = vadd.f32 %v3229, %v3409
        %v3411 = vpop.f32.mrb[0].mxu0
        %3412 = vdwg.mxu0
        %3413 = vmatprep.subr.mxu0 0.0
        %v3414 = vand.u32 %v2947, 4294901760
        %v3415 = vsub.f32 %v2947, %v3414
        %3416 = vmatpush1.msra.mxu0 %v3415
        %3417 = vmatprep.subr.mxu0 0.0
        %v3418 = vand.u32 %v2948, 4294901760
        %v3419 = vsub.f32 %v2948, %v3418
        %3420 = vmatpush1.msra.mxu0 %v3419
        %3421 = vmatprep.subr.mxu0 0.0
        %v3422 = vand.u32 %v2949, 4294901760
        %v3423 = vsub.f32 %v2949, %v3422
        %3424 = vmatpush1.msra.mxu0 %v3423
        %3425 = vmatprep.subr.mxu0 0.0
        %v3426 = vand.u32 %v2950, 4294901760
        %v3427 = vsub.f32 %v2950, %v3426
        %3428 = vmatpush1.msra.mxu0 %v3427
        %3429 = vmatprep.subr.mxu0 0.0
        %3430 = vmatpush1.msra.mxu0 0.0
        %3431 = vmatprep.subr.mxu0 0.0
        %3432 = vmatpush1.msra.mxu0 0.0
        %3433 = vmatprep.subr.mxu0 0.0
        %3434 = vmatpush1.msra.mxu0 0.0
        %3435 = vmatprep.subr.mxu0 0.0
        %3436 = vmatpush1.msra.mxu0 0.0
        %3437 = vmatprep.subr.mxu0 0.0
        %3438 = vmatpush1.msra.mxu0 0.0
        %3439 = vmatprep.subr.mxu0 0.0
        %3440 = vmatpush1.msra.mxu0 0.0
        %3441 = vmatprep.subr.mxu0 0.0
        %3442 = vmatpush1.msra.mxu0 0.0
        %3443 = vmatprep.subr.mxu0 0.0
        %3444 = vmatpush1.msra.mxu0 0.0
        %3445 = vmatprep.subr.mxu0 0.0
        %3446 = vmatpush1.msra.mxu0 0.0
        %3447 = vmatprep.subr.mxu0 0.0
        %3448 = vmatpush1.msra.mxu0 0.0
        %3449 = vmatprep.subr.mxu0 0.0
        %3450 = vmatpush1.msra.mxu0 0.0
        %3451 = vmatprep.subr.mxu0 0.0
        %3452 = vmatpush1.msra.mxu0 0.0
        %3453 = vmatprep.subr.mxu0 0.0
        %3454 = vmatpush1.msra.mxu0 0.0
        %3455 = vmatprep.subr.mxu0 0.0
        %3456 = vmatpush1.msra.mxu0 0.0
        %3457 = vmatprep.subr.mxu0 0.0
        %3458 = vmatpush1.msra.mxu0 0.0
        %3459 = vmatprep.subr.mxu0 0.0
        %3460 = vmatpush1.msra.mxu0 0.0
        %3461 = vmatprep.subr.mxu0 0.0
        %3462 = vmatpush1.msra.mxu0 0.0
        %3463 = vmatprep.subr.mxu0 0.0
        %3464 = vmatpush1.msra.mxu0 0.0
        %3465 = vmatprep.subr.mxu0 0.0
        %3466 = vmatpush1.msra.mxu0 0.0
        %3467 = vmatprep.subr.mxu0 0.0
        %3468 = vmatpush1.msra.mxu0 0.0
        %3469 = vmatprep.subr.mxu0 0.0
        %3470 = vmatpush1.msra.mxu0 0.0
        %3471 = vmatprep.subr.mxu0 0.0
        %3472 = vmatpush1.msra.mxu0 0.0
        %3473 = vmatprep.subr.mxu0 0.0
        %3474 = vmatpush1.msra.mxu0 0.0
        %3475 = vmatprep.subr.mxu0 0.0
        %3476 = vmatpush1.msra.mxu0 0.0
        %3477 = vmatprep.subr.mxu0 0.0
        %3478 = vmatpush1.msra.mxu0 0.0
        %3479 = vmatprep.subr.mxu0 0.0
        %3480 = vmatpush1.msra.mxu0 0.0
        %3481 = vmatprep.subr.mxu0 0.0
        %3482 = vmatpush1.msra.mxu0 0.0
        %3483 = vmatprep.subr.mxu0 0.0
        %3484 = vmatpush1.msra.mxu0 0.0
        %3485 = vmatprep.mubr.f32.mxu0 0.0
        %v3486 = vand.u32 %v2956, 4294901760
        %v3487 = vsub.f32 %v2956, %v3486
        %3488 = vmatmul.mubr.f32.gmra.mrb[0].mxu0 %v3487
        %v3489 = vpop.f32.mrb[0].mxu0
        %v3490 = vadd.f32 %v3320, %v3489
        %v3491 = vpop.f32.mrb[0].mxu0
        %3492 = vmatprep.mubr.f32.mxu0 0.0
        %v3493 = vand.u32 %v2959, 4294901760
        %v3494 = vsub.f32 %v2959, %v3493
        %3495 = vmatmul.mubr.f32.gmra.mrb[0].mxu0 %v3494
        %v3496 = vpop.f32.mrb[0].mxu0
        %v3497 = vadd.f32 %v3326, %v3496
        %v3498 = vpop.f32.mrb[0].mxu0
        %3499 = vmatprep.mubr.f32.mxu0 0.0
        %v3500 = vand.u32 %v2962, 4294901760
        %v3501 = vsub.f32 %v2962, %v3500
        %3502 = vmatmul.mubr.f32.gmra.mrb[0].mxu0 %v3501
        %v3503 = vpop.f32.mrb[0].mxu0
        %v3504 = vadd.f32 %v3332, %v3503
        %v3505 = vpop.f32.mrb[0].mxu0
        %3506 = vmatprep.mubr.f32.mxu0 0.0
        %v3507 = vand.u32 %v2965, 4294901760
        %v3508 = vsub.f32 %v2965, %v3507
        %3509 = vmatmul.mubr.f32.gmra.mrb[0].mxu0 %v3508
        %v3510 = vpop.f32.mrb[0].mxu0
        %v3511 = vadd.f32 %v3338, %v3510
        %v3512 = vpop.f32.mrb[0].mxu0
        %3513 = vmatprep.mubr.f32.mxu0 0.0
        %v3514 = vand.u32 %v2968, 4294901760
        %v3515 = vsub.f32 %v2968, %v3514
        %3516 = vmatmul.mubr.f32.gmra.mrb[0].mxu0 %v3515
        %v3517 = vpop.f32.mrb[0].mxu0
        %v3518 = vadd.f32 %v3344, %v3517
        %v3519 = vpop.f32.mrb[0].mxu0
        %3520 = vmatprep.mubr.f32.mxu0 0.0
        %v3521 = vand.u32 %v2971, 4294901760
        %v3522 = vsub.f32 %v2971, %v3521
        %3523 = vmatmul.mubr.f32.gmra.mrb[0].mxu0 %v3522
        %v3524 = vpop.f32.mrb[0].mxu0
        %v3525 = vadd.f32 %v3350, %v3524
        %v3526 = vpop.f32.mrb[0].mxu0
        %3527 = vmatprep.mubr.f32.mxu0 0.0
        %v3528 = vand.u32 %v2974, 4294901760
        %v3529 = vsub.f32 %v2974, %v3528
        %3530 = vmatmul.mubr.f32.gmra.mrb[0].mxu0 %v3529
        %v3531 = vpop.f32.mrb[0].mxu0
        %v3532 = vadd.f32 %v3356, %v3531
        %v3533 = vpop.f32.mrb[0].mxu0
        %3534 = vmatprep.mubr.f32.mxu0 0.0
        %v3535 = vand.u32 %v2977, 4294901760
        %v3536 = vsub.f32 %v2977, %v3535
        %3537 = vmatmul.mubr.f32.gmra.mrb[0].mxu0 %v3536
        %v3538 = vpop.f32.mrb[0].mxu0
        %v3539 = vadd.f32 %v3362, %v3538
        %v3540 = vpop.f32.mrb[0].mxu0
        %3541 = vmatprep.mubr.f32.mxu0 0.0
        %v3542 = vand.u32 %v2980, 4294901760
        %v3543 = vsub.f32 %v2980, %v3542
        %3544 = vmatmul.mubr.f32.gmra.mrb[0].mxu0 %v3543
        %v3545 = vpop.f32.mrb[0].mxu0
        %v3546 = vadd.f32 %v3368, %v3545
        %v3547 = vpop.f32.mrb[0].mxu0
        %3548 = vmatprep.mubr.f32.mxu0 0.0
        %v3549 = vand.u32 %v2983, 4294901760
        %v3550 = vsub.f32 %v2983, %v3549
        %3551 = vmatmul.mubr.f32.gmra.mrb[0].mxu0 %v3550
        %v3552 = vpop.f32.mrb[0].mxu0
        %v3553 = vadd.f32 %v3374, %v3552
        %v3554 = vpop.f32.mrb[0].mxu0
        %3555 = vmatprep.mubr.f32.mxu0 0.0
        %v3556 = vand.u32 %v2986, 4294901760
        %v3557 = vsub.f32 %v2986, %v3556
        %3558 = vmatmul.mubr.f32.gmra.mrb[0].mxu0 %v3557
        %v3559 = vpop.f32.mrb[0].mxu0
        %v3560 = vadd.f32 %v3380, %v3559
        %v3561 = vpop.f32.mrb[0].mxu0
        %3562 = vmatprep.mubr.f32.mxu0 0.0
        %v3563 = vand.u32 %v2989, 4294901760
        %v3564 = vsub.f32 %v2989, %v3563
        %3565 = vmatmul.mubr.f32.gmra.mrb[0].mxu0 %v3564
        %v3566 = vpop.f32.mrb[0].mxu0
        %v3567 = vadd.f32 %v3386, %v3566
        %v3568 = vpop.f32.mrb[0].mxu0
        %3569 = vmatprep.mubr.f32.mxu0 0.0
        %v3570 = vand.u32 %v2992, 4294901760
        %v3571 = vsub.f32 %v2992, %v3570
        %3572 = vmatmul.mubr.f32.gmra.mrb[0].mxu0 %v3571
        %v3573 = vpop.f32.mrb[0].mxu0
        %v3574 = vadd.f32 %v3392, %v3573
        %v3575 = vpop.f32.mrb[0].mxu0
        %3576 = vmatprep.mubr.f32.mxu0 0.0
        %v3577 = vand.u32 %v2995, 4294901760
        %v3578 = vsub.f32 %v2995, %v3577
        %3579 = vmatmul.mubr.f32.gmra.mrb[0].mxu0 %v3578
        %v3580 = vpop.f32.mrb[0].mxu0
        %v3581 = vadd.f32 %v3398, %v3580
        %v3582 = vpop.f32.mrb[0].mxu0
        %3583 = vmatprep.mubr.f32.mxu0 0.0
        %v3584 = vand.u32 %v2998, 4294901760
        %v3585 = vsub.f32 %v2998, %v3584
        %3586 = vmatmul.mubr.f32.gmra.mrb[0].mxu0 %v3585
        %v3587 = vpop.f32.mrb[0].mxu0
        %v3588 = vadd.f32 %v3404, %v3587
        %v3589 = vpop.f32.mrb[0].mxu0
        %3590 = vmatprep.mubr.f32.mxu0 0.0
        %v3591 = vand.u32 %v3001, 4294901760
        %v3592 = vsub.f32 %v3001, %v3591
        %3593 = vmatmul.mubr.f32.gmra.mrb[0].mxu0 %v3592
        %v3594 = vpop.f32.mrb[0].mxu0
        %v3595 = vadd.f32 %v3410, %v3594
        %v3596 = vpop.f32.mrb[0].mxu0
        %3597 = vdwg.mxu0
        %3598 = vmatprep.subr.mxu0 0.0
        %v3599 = vand.u32 %v2947, 4294901760
        %3600 = vmatpush1.msra.mxu0 %v3599
        %3601 = vmatprep.subr.mxu0 0.0
        %v3602 = vand.u32 %v2948, 4294901760
        %3603 = vmatpush1.msra.mxu0 %v3602
        %3604 = vmatprep.subr.mxu0 0.0
        %v3605 = vand.u32 %v2949, 4294901760
        %3606 = vmatpush1.msra.mxu0 %v3605
        %3607 = vmatprep.subr.mxu0 0.0
        %v3608 = vand.u32 %v2950, 4294901760
        %3609 = vmatpush1.msra.mxu0 %v3608
        %3610 = vmatprep.subr.mxu0 0.0
        %3611 = vmatpush1.msra.mxu0 0.0
        %3612 = vmatprep.subr.mxu0 0.0
        %3613 = vmatpush1.msra.mxu0 0.0
        %3614 = vmatprep.subr.mxu0 0.0
        %3615 = vmatpush1.msra.mxu0 0.0
        %3616 = vmatprep.subr.mxu0 0.0
        %3617 = vmatpush1.msra.mxu0 0.0
        %3618 = vmatprep.subr.mxu0 0.0
        %3619 = vmatpush1.msra.mxu0 0.0
        %3620 = vmatprep.subr.mxu0 0.0
        %3621 = vmatpush1.msra.mxu0 0.0
        %3622 = vmatprep.subr.mxu0 0.0
        %3623 = vmatpush1.msra.mxu0 0.0
        %3624 = vmatprep.subr.mxu0 0.0
        %3625 = vmatpush1.msra.mxu0 0.0
        %3626 = vmatprep.subr.mxu0 0.0
        %3627 = vmatpush1.msra.mxu0 0.0
        %3628 = vmatprep.subr.mxu0 0.0
        %3629 = vmatpush1.msra.mxu0 0.0
        %3630 = vmatprep.subr.mxu0 0.0
        %3631 = vmatpush1.msra.mxu0 0.0
        %3632 = vmatprep.subr.mxu0 0.0
        %3633 = vmatpush1.msra.mxu0 0.0
        %3634 = vmatprep.subr.mxu0 0.0
        %3635 = vmatpush1.msra.mxu0 0.0
        %3636 = vmatprep.subr.mxu0 0.0
        %3637 = vmatpush1.msra.mxu0 0.0
        %3638 = vmatprep.subr.mxu0 0.0
        %3639 = vmatpush1.msra.mxu0 0.0
        %3640 = vmatprep.subr.mxu0 0.0
        %3641 = vmatpush1.msra.mxu0 0.0
        %3642 = vmatprep.subr.mxu0 0.0
        %3643 = vmatpush1.msra.mxu0 0.0
        %3644 = vmatprep.subr.mxu0 0.0
        %3645 = vmatpush1.msra.mxu0 0.0
        %3646 = vmatprep.subr.mxu0 0.0
        %3647 = vmatpush1.msra.mxu0 0.0
        %3648 = vmatprep.subr.mxu0 0.0
        %3649 = vmatpush1.msra.mxu0 0.0
        %3650 = vmatprep.subr.mxu0 0.0
        %3651 = vmatpush1.msra.mxu0 0.0
        %3652 = vmatprep.subr.mxu0 0.0
        %3653 = vmatpush1.msra.mxu0 0.0
        %3654 = vmatprep.subr.mxu0 0.0
        %3655 = vmatpush1.msra.mxu0 0.0
        %3656 = vmatprep.subr.mxu0 0.0
        %3657 = vmatpush1.msra.mxu0 0.0
        %3658 = vmatprep.subr.mxu0 0.0
        %3659 = vmatpush1.msra.mxu0 0.0
        %3660 = vmatprep.subr.mxu0 0.0
        %3661 = vmatpush1.msra.mxu0 0.0
        %3662 = vmatprep.subr.mxu0 0.0
        %3663 = vmatpush1.msra.mxu0 0.0
        %3664 = vmatprep.subr.mxu0 0.0
        %3665 = vmatpush1.msra.mxu0 0.0
        %3666 = vmatprep.mubr.f32.mxu0 0.0
        %v3667 = vand.u32 %v2956, 4294901760
        %v3668 = vsub.f32 %v2956, %v3667
        %v3669 = vand.u32 %v3668, 4294901760
        %3670 = vmatmul.mubr.f32.gmra.mrb[0].mxu0 %v3669
        %v3671 = vpop.f32.mrb[0].mxu0
        %v3672 = vadd.f32 %v3490, %v3671
        %v3673 = vpop.f32.mrb[0].mxu0
        %3674 = vmatprep.mubr.f32.mxu0 0.0
        %v3675 = vand.u32 %v2959, 4294901760
        %v3676 = vsub.f32 %v2959, %v3675
        %v3677 = vand.u32 %v3676, 4294901760
        %3678 = vmatmul.mubr.f32.gmra.mrb[0].mxu0 %v3677
        %v3679 = vpop.f32.mrb[0].mxu0
        %v3680 = vadd.f32 %v3497, %v3679
        %v3681 = vpop.f32.mrb[0].mxu0
        %3682 = vmatprep.mubr.f32.mxu0 0.0
        %v3683 = vand.u32 %v2962, 4294901760
        %v3684 = vsub.f32 %v2962, %v3683
        %v3685 = vand.u32 %v3684, 4294901760
        %3686 = vmatmul.mubr.f32.gmra.mrb[0].mxu0 %v3685
        %v3687 = vpop.f32.mrb[0].mxu0
        %v3688 = vadd.f32 %v3504, %v3687
        %v3689 = vpop.f32.mrb[0].mxu0
        %3690 = vmatprep.mubr.f32.mxu0 0.0
        %v3691 = vand.u32 %v2965, 4294901760
        %v3692 = vsub.f32 %v2965, %v3691
        %v3693 = vand.u32 %v3692, 4294901760
        %3694 = vmatmul.mubr.f32.gmra.mrb[0].mxu0 %v3693
        %v3695 = vpop.f32.mrb[0].mxu0
        %v3696 = vadd.f32 %v3511, %v3695
        %v3697 = vpop.f32.mrb[0].mxu0
        %3698 = vmatprep.mubr.f32.mxu0 0.0
        %v3699 = vand.u32 %v2968, 4294901760
        %v3700 = vsub.f32 %v2968, %v3699
        %v3701 = vand.u32 %v3700, 4294901760
        %3702 = vmatmul.mubr.f32.gmra.mrb[0].mxu0 %v3701
        %v3703 = vpop.f32.mrb[0].mxu0
        %v3704 = vadd.f32 %v3518, %v3703
        %v3705 = vpop.f32.mrb[0].mxu0
        %3706 = vmatprep.mubr.f32.mxu0 0.0
        %v3707 = vand.u32 %v2971, 4294901760
        %v3708 = vsub.f32 %v2971, %v3707
        %v3709 = vand.u32 %v3708, 4294901760
        %3710 = vmatmul.mubr.f32.gmra.mrb[0].mxu0 %v3709
        %v3711 = vpop.f32.mrb[0].mxu0
        %v3712 = vadd.f32 %v3525, %v3711
        %v3713 = vpop.f32.mrb[0].mxu0
        %3714 = vmatprep.mubr.f32.mxu0 0.0
        %v3715 = vand.u32 %v2974, 4294901760
        %v3716 = vsub.f32 %v2974, %v3715
        %v3717 = vand.u32 %v3716, 4294901760
        %3718 = vmatmul.mubr.f32.gmra.mrb[0].mxu0 %v3717
        %v3719 = vpop.f32.mrb[0].mxu0
        %v3720 = vadd.f32 %v3532, %v3719
        %v3721 = vpop.f32.mrb[0].mxu0
        %3722 = vmatprep.mubr.f32.mxu0 0.0
        %v3723 = vand.u32 %v2977, 4294901760
        %v3724 = vsub.f32 %v2977, %v3723
        %v3725 = vand.u32 %v3724, 4294901760
        %3726 = vmatmul.mubr.f32.gmra.mrb[0].mxu0 %v3725
        %v3727 = vpop.f32.mrb[0].mxu0
        %v3728 = vadd.f32 %v3539, %v3727
        %v3729 = vpop.f32.mrb[0].mxu0
        %3730 = vmatprep.mubr.f32.mxu0 0.0
        %v3731 = vand.u32 %v2980, 4294901760
        %v3732 = vsub.f32 %v2980, %v3731
        %v3733 = vand.u32 %v3732, 4294901760
        %3734 = vmatmul.mubr.f32.gmra.mrb[0].mxu0 %v3733
        %v3735 = vpop.f32.mrb[0].mxu0
        %v3736 = vadd.f32 %v3546, %v3735
        %v3737 = vpop.f32.mrb[0].mxu0
        %3738 = vmatprep.mubr.f32.mxu0 0.0
        %v3739 = vand.u32 %v2983, 4294901760
        %v3740 = vsub.f32 %v2983, %v3739
        %v3741 = vand.u32 %v3740, 4294901760
        %3742 = vmatmul.mubr.f32.gmra.mrb[0].mxu0 %v3741
        %v3743 = vpop.f32.mrb[0].mxu0
        %v3744 = vadd.f32 %v3553, %v3743
        %v3745 = vpop.f32.mrb[0].mxu0
        %3746 = vmatprep.mubr.f32.mxu0 0.0
        %v3747 = vand.u32 %v2986, 4294901760
        %v3748 = vsub.f32 %v2986, %v3747
        %v3749 = vand.u32 %v3748, 4294901760
        %3750 = vmatmul.mubr.f32.gmra.mrb[0].mxu0 %v3749
        %v3751 = vpop.f32.mrb[0].mxu0
        %v3752 = vadd.f32 %v3560, %v3751
        %v3753 = vpop.f32.mrb[0].mxu0
        %3754 = vmatprep.mubr.f32.mxu0 0.0
        %v3755 = vand.u32 %v2989, 4294901760
        %v3756 = vsub.f32 %v2989, %v3755
        %v3757 = vand.u32 %v3756, 4294901760
        %3758 = vmatmul.mubr.f32.gmra.mrb[0].mxu0 %v3757
        %v3759 = vpop.f32.mrb[0].mxu0
        %v3760 = vadd.f32 %v3567, %v3759
        %v3761 = vpop.f32.mrb[0].mxu0
        %3762 = vmatprep.mubr.f32.mxu0 0.0
        %v3763 = vand.u32 %v2992, 4294901760
        %v3764 = vsub.f32 %v2992, %v3763
        %v3765 = vand.u32 %v3764, 4294901760
        %3766 = vmatmul.mubr.f32.gmra.mrb[0].mxu0 %v3765
        %v3767 = vpop.f32.mrb[0].mxu0
        %v3768 = vadd.f32 %v3574, %v3767
        %v3769 = vpop.f32.mrb[0].mxu0
        %3770 = vmatprep.mubr.f32.mxu0 0.0
        %v3771 = vand.u32 %v2995, 4294901760
        %v3772 = vsub.f32 %v2995, %v3771
        %v3773 = vand.u32 %v3772, 4294901760
        %3774 = vmatmul.mubr.f32.gmra.mrb[0].mxu0 %v3773
        %v3775 = vpop.f32.mrb[0].mxu0
        %v3776 = vadd.f32 %v3581, %v3775
        %v3777 = vpop.f32.mrb[0].mxu0
        %3778 = vmatprep.mubr.f32.mxu0 0.0
        %v3779 = vand.u32 %v2998, 4294901760
        %v3780 = vsub.f32 %v2998, %v3779
        %v3781 = vand.u32 %v3780, 4294901760
        %3782 = vmatmul.mubr.f32.gmra.mrb[0].mxu0 %v3781
        %v3783 = vpop.f32.mrb[0].mxu0
        %v3784 = vadd.f32 %v3588, %v3783
        %v3785 = vpop.f32.mrb[0].mxu0
        %3786 = vmatprep.mubr.f32.mxu0 0.0
        %v3787 = vand.u32 %v3001, 4294901760
        %v3788 = vsub.f32 %v3001, %v3787
        %v3789 = vand.u32 %v3788, 4294901760
        %3790 = vmatmul.mubr.f32.gmra.mrb[0].mxu0 %v3789
        %v3791 = vpop.f32.mrb[0].mxu0
        %v3792 = vadd.f32 %v3595, %v3791
        %v3793 = vpop.f32.mrb[0].mxu0
        %3794 = vdwg.mxu0
        %3795 = vmatprep.subr.mxu0 0.0
        %v3796 = vand.u32 %v2947, 4294901760
        %v3797 = vsub.f32 %v2947, %v3796
        %v3798 = vand.u32 %v3797, 4294901760
        %3799 = vmatpush1.msra.mxu0 %v3798
        %3800 = vmatprep.subr.mxu0 0.0
        %v3801 = vand.u32 %v2948, 4294901760
        %v3802 = vsub.f32 %v2948, %v3801
        %v3803 = vand.u32 %v3802, 4294901760
        %3804 = vmatpush1.msra.mxu0 %v3803
        %3805 = vmatprep.subr.mxu0 0.0
        %v3806 = vand.u32 %v2949, 4294901760
        %v3807 = vsub.f32 %v2949, %v3806
        %v3808 = vand.u32 %v3807, 4294901760
        %3809 = vmatpush1.msra.mxu0 %v3808
        %3810 = vmatprep.subr.mxu0 0.0
        %v3811 = vand.u32 %v2950, 4294901760
        %v3812 = vsub.f32 %v2950, %v3811
        %v3813 = vand.u32 %v3812, 4294901760
        %3814 = vmatpush1.msra.mxu0 %v3813
        %3815 = vmatprep.subr.mxu0 0.0
        %3816 = vmatpush1.msra.mxu0 0.0
        %3817 = vmatprep.subr.mxu0 0.0
        %3818 = vmatpush1.msra.mxu0 0.0
        %3819 = vmatprep.subr.mxu0 0.0
        %3820 = vmatpush1.msra.mxu0 0.0
        %3821 = vmatprep.subr.mxu0 0.0
        %3822 = vmatpush1.msra.mxu0 0.0
        %3823 = vmatprep.subr.mxu0 0.0
        %3824 = vmatpush1.msra.mxu0 0.0
        %3825 = vmatprep.subr.mxu0 0.0
        %3826 = vmatpush1.msra.mxu0 0.0
        %3827 = vmatprep.subr.mxu0 0.0
        %3828 = vmatpush1.msra.mxu0 0.0
        %3829 = vmatprep.subr.mxu0 0.0
        %3830 = vmatpush1.msra.mxu0 0.0
        %3831 = vmatprep.subr.mxu0 0.0
        %3832 = vmatpush1.msra.mxu0 0.0
        %3833 = vmatprep.subr.mxu0 0.0
        %3834 = vmatpush1.msra.mxu0 0.0
        %3835 = vmatprep.subr.mxu0 0.0
        %3836 = vmatpush1.msra.mxu0 0.0
        %3837 = vmatprep.subr.mxu0 0.0
        %3838 = vmatpush1.msra.mxu0 0.0
        %3839 = vmatprep.subr.mxu0 0.0
        %3840 = vmatpush1.msra.mxu0 0.0
        %3841 = vmatprep.subr.mxu0 0.0
        %3842 = vmatpush1.msra.mxu0 0.0
        %3843 = vmatprep.subr.mxu0 0.0
        %3844 = vmatpush1.msra.mxu0 0.0
        %3845 = vmatprep.subr.mxu0 0.0
        %3846 = vmatpush1.msra.mxu0 0.0
        %3847 = vmatprep.subr.mxu0 0.0
        %3848 = vmatpush1.msra.mxu0 0.0
        %3849 = vmatprep.subr.mxu0 0.0
        %3850 = vmatpush1.msra.mxu0 0.0
        %3851 = vmatprep.subr.mxu0 0.0
        %3852 = vmatpush1.msra.mxu0 0.0
        %3853 = vmatprep.subr.mxu0 0.0
        %3854 = vmatpush1.msra.mxu0 0.0
        %3855 = vmatprep.subr.mxu0 0.0
        %3856 = vmatpush1.msra.mxu0 0.0
        %3857 = vmatprep.subr.mxu0 0.0
        %3858 = vmatpush1.msra.mxu0 0.0
        %3859 = vmatprep.subr.mxu0 0.0
        %3860 = vmatpush1.msra.mxu0 0.0
        %3861 = vmatprep.subr.mxu0 0.0
        %3862 = vmatpush1.msra.mxu0 0.0
        %3863 = vmatprep.subr.mxu0 0.0
        %3864 = vmatpush1.msra.mxu0 0.0
        %3865 = vmatprep.subr.mxu0 0.0
        %3866 = vmatpush1.msra.mxu0 0.0
        %3867 = vmatprep.subr.mxu0 0.0
        %3868 = vmatpush1.msra.mxu0 0.0
        %3869 = vmatprep.subr.mxu0 0.0
        %3870 = vmatpush1.msra.mxu0 0.0
        %3871 = vmatprep.mubr.f32.mxu0 0.0
        %v3872 = vand.u32 %v2956, 4294901760
        %3873 = vmatmul.mubr.f32.gmra.mrb[0].mxu0 %v3872
        %v3874 = vpop.f32.mrb[0].mxu0
        %v3875 = vadd.f32 %v3672, %v3874
        %v3876 = vpop.f32.mrb[0].mxu0
        %3877 = vmatprep.mubr.f32.mxu0 0.0
        %v3878 = vand.u32 %v2959, 4294901760
        %3879 = vmatmul.mubr.f32.gmra.mrb[0].mxu0 %v3878
        %v3880 = vpop.f32.mrb[0].mxu0
        %v3881 = vadd.f32 %v3680, %v3880
        %v3882 = vpop.f32.mrb[0].mxu0
        %3883 = vmatprep.mubr.f32.mxu0 0.0
        %v3884 = vand.u32 %v2962, 4294901760
        %3885 = vmatmul.mubr.f32.gmra.mrb[0].mxu0 %v3884
        %v3886 = vpop.f32.mrb[0].mxu0
        %v3887 = vadd.f32 %v3688, %v3886
        %v3888 = vpop.f32.mrb[0].mxu0
        %3889 = vmatprep.mubr.f32.mxu0 0.0
        %v3890 = vand.u32 %v2965, 4294901760
        %3891 = vmatmul.mubr.f32.gmra.mrb[0].mxu0 %v3890
        %v3892 = vpop.f32.mrb[0].mxu0
        %v3893 = vadd.f32 %v3696, %v3892
        %v3894 = vpop.f32.mrb[0].mxu0
        %3895 = vmatprep.mubr.f32.mxu0 0.0
        %v3896 = vand.u32 %v2968, 4294901760
        %3897 = vmatmul.mubr.f32.gmra.mrb[0].mxu0 %v3896
        %v3898 = vpop.f32.mrb[0].mxu0
        %v3899 = vadd.f32 %v3704, %v3898
        %v3900 = vpop.f32.mrb[0].mxu0
        %3901 = vmatprep.mubr.f32.mxu0 0.0
        %v3902 = vand.u32 %v2971, 4294901760
        %3903 = vmatmul.mubr.f32.gmra.mrb[0].mxu0 %v3902
        %v3904 = vpop.f32.mrb[0].mxu0
        %v3905 = vadd.f32 %v3712, %v3904
        %v3906 = vpop.f32.mrb[0].mxu0
        %3907 = vmatprep.mubr.f32.mxu0 0.0
        %v3908 = vand.u32 %v2974, 4294901760
        %3909 = vmatmul.mubr.f32.gmra.mrb[0].mxu0 %v3908
        %v3910 = vpop.f32.mrb[0].mxu0
        %v3911 = vadd.f32 %v3720, %v3910
        %v3912 = vpop.f32.mrb[0].mxu0
        %3913 = vmatprep.mubr.f32.mxu0 0.0
        %v3914 = vand.u32 %v2977, 4294901760
        %3915 = vmatmul.mubr.f32.gmra.mrb[0].mxu0 %v3914
        %v3916 = vpop.f32.mrb[0].mxu0
        %v3917 = vadd.f32 %v3728, %v3916
        %v3918 = vpop.f32.mrb[0].mxu0
        %3919 = vmatprep.mubr.f32.mxu0 0.0
        %v3920 = vand.u32 %v2980, 4294901760
        %3921 = vmatmul.mubr.f32.gmra.mrb[0].mxu0 %v3920
        %v3922 = vpop.f32.mrb[0].mxu0
        %v3923 = vadd.f32 %v3736, %v3922
        %v3924 = vpop.f32.mrb[0].mxu0
        %3925 = vmatprep.mubr.f32.mxu0 0.0
        %v3926 = vand.u32 %v2983, 4294901760
        %3927 = vmatmul.mubr.f32.gmra.mrb[0].mxu0 %v3926
        %v3928 = vpop.f32.mrb[0].mxu0
        %v3929 = vadd.f32 %v3744, %v3928
        %v3930 = vpop.f32.mrb[0].mxu0
        %3931 = vmatprep.mubr.f32.mxu0 0.0
        %v3932 = vand.u32 %v2986, 4294901760
        %3933 = vmatmul.mubr.f32.gmra.mrb[0].mxu0 %v3932
        %v3934 = vpop.f32.mrb[0].mxu0
        %v3935 = vadd.f32 %v3752, %v3934
        %v3936 = vpop.f32.mrb[0].mxu0
        %3937 = vmatprep.mubr.f32.mxu0 0.0
        %v3938 = vand.u32 %v2989, 4294901760
        %3939 = vmatmul.mubr.f32.gmra.mrb[0].mxu0 %v3938
        %v3940 = vpop.f32.mrb[0].mxu0
        %v3941 = vadd.f32 %v3760, %v3940
        %v3942 = vpop.f32.mrb[0].mxu0
        %3943 = vmatprep.mubr.f32.mxu0 0.0
        %v3944 = vand.u32 %v2992, 4294901760
        %3945 = vmatmul.mubr.f32.gmra.mrb[0].mxu0 %v3944
        %v3946 = vpop.f32.mrb[0].mxu0
        %v3947 = vadd.f32 %v3768, %v3946
        %v3948 = vpop.f32.mrb[0].mxu0
        %3949 = vmatprep.mubr.f32.mxu0 0.0
        %v3950 = vand.u32 %v2995, 4294901760
        %3951 = vmatmul.mubr.f32.gmra.mrb[0].mxu0 %v3950
        %v3952 = vpop.f32.mrb[0].mxu0
        %v3953 = vadd.f32 %v3776, %v3952
        %v3954 = vpop.f32.mrb[0].mxu0
        %3955 = vmatprep.mubr.f32.mxu0 0.0
        %v3956 = vand.u32 %v2998, 4294901760
        %3957 = vmatmul.mubr.f32.gmra.mrb[0].mxu0 %v3956
        %v3958 = vpop.f32.mrb[0].mxu0
        %v3959 = vadd.f32 %v3784, %v3958
        %v3960 = vpop.f32.mrb[0].mxu0
        %3961 = vmatprep.mubr.f32.mxu0 0.0
        %v3962 = vand.u32 %v3001, 4294901760
        %3963 = vmatmul.mubr.f32.gmra.mrb[0].mxu0 %v3962
        %v3964 = vpop.f32.mrb[0].mxu0
        %v3965 = vadd.f32 %v3792, %v3964
        %v3966 = vpop.f32.mrb[0].mxu0
        %3967 = vdwg.mxu0
        %3968 = vmatprep.subr.mxu0 0.0
        %v3969 = vand.u32 %v2947, 4294901760
        %3970 = vmatpush1.msra.mxu0 %v3969
        %3971 = vmatprep.subr.mxu0 0.0
        %v3972 = vand.u32 %v2948, 4294901760
        %3973 = vmatpush1.msra.mxu0 %v3972
        %3974 = vmatprep.subr.mxu0 0.0
        %v3975 = vand.u32 %v2949, 4294901760
        %3976 = vmatpush1.msra.mxu0 %v3975
        %3977 = vmatprep.subr.mxu0 0.0
        %v3978 = vand.u32 %v2950, 4294901760
        %3979 = vmatpush1.msra.mxu0 %v3978
        %3980 = vmatprep.subr.mxu0 0.0
        %3981 = vmatpush1.msra.mxu0 0.0
        %3982 = vmatprep.subr.mxu0 0.0
        %3983 = vmatpush1.msra.mxu0 0.0
        %3984 = vmatprep.subr.mxu0 0.0
        %3985 = vmatpush1.msra.mxu0 0.0
        %3986 = vmatprep.subr.mxu0 0.0
        %3987 = vmatpush1.msra.mxu0 0.0
        %3988 = vmatprep.subr.mxu0 0.0
        %3989 = vmatpush1.msra.mxu0 0.0
        %3990 = vmatprep.subr.mxu0 0.0
        %3991 = vmatpush1.msra.mxu0 0.0
        %3992 = vmatprep.subr.mxu0 0.0
        %3993 = vmatpush1.msra.mxu0 0.0
        %3994 = vmatprep.subr.mxu0 0.0
        %3995 = vmatpush1.msra.mxu0 0.0
        %3996 = vmatprep.subr.mxu0 0.0
        %3997 = vmatpush1.msra.mxu0 0.0
        %3998 = vmatprep.subr.mxu0 0.0
        %3999 = vmatpush1.msra.mxu0 0.0
        %4000 = vmatprep.subr.mxu0 0.0
        %4001 = vmatpush1.msra.mxu0 0.0
        %4002 = vmatprep.subr.mxu0 0.0
        %4003 = vmatpush1.msra.mxu0 0.0
        %4004 = vmatprep.subr.mxu0 0.0
        %4005 = vmatpush1.msra.mxu0 0.0
        %4006 = vmatprep.subr.mxu0 0.0
        %4007 = vmatpush1.msra.mxu0 0.0
        %4008 = vmatprep.subr.mxu0 0.0
        %4009 = vmatpush1.msra.mxu0 0.0
        %4010 = vmatprep.subr.mxu0 0.0
        %4011 = vmatpush1.msra.mxu0 0.0
        %4012 = vmatprep.subr.mxu0 0.0
        %4013 = vmatpush1.msra.mxu0 0.0
        %4014 = vmatprep.subr.mxu0 0.0
        %4015 = vmatpush1.msra.mxu0 0.0
        %4016 = vmatprep.subr.mxu0 0.0
        %4017 = vmatpush1.msra.mxu0 0.0
        %4018 = vmatprep.subr.mxu0 0.0
        %4019 = vmatpush1.msra.mxu0 0.0
        %4020 = vmatprep.subr.mxu0 0.0
        %4021 = vmatpush1.msra.mxu0 0.0
        %4022 = vmatprep.subr.mxu0 0.0
        %4023 = vmatpush1.msra.mxu0 0.0
        %4024 = vmatprep.subr.mxu0 0.0
        %4025 = vmatpush1.msra.mxu0 0.0
        %4026 = vmatprep.subr.mxu0 0.0
        %4027 = vmatpush1.msra.mxu0 0.0
        %4028 = vmatprep.subr.mxu0 0.0
        %4029 = vmatpush1.msra.mxu0 0.0
        %4030 = vmatprep.subr.mxu0 0.0
        %4031 = vmatpush1.msra.mxu0 0.0
        %4032 = vmatprep.subr.mxu0 0.0
        %4033 = vmatpush1.msra.mxu0 0.0
        %4034 = vmatprep.subr.mxu0 0.0
        %4035 = vmatpush1.msra.mxu0 0.0
        %4036 = vmatprep.mubr.f32.mxu0 0.0
        %v4037 = vand.u32 %v2956, 4294901760
        %4038 = vmatmul.mubr.f32.gmra.mrb[0].mxu0 %v4037
        %v4039 = vpop.f32.mrb[0].mxu0
        %v4040 = vadd.f32 %v3875, %v4039
        %v4041 = vpop.f32.mrb[0].mxu0
        %4042 = vmatprep.mubr.f32.mxu0 0.0
        %v4043 = vand.u32 %v2959, 4294901760
        %4044 = vmatmul.mubr.f32.gmra.mrb[0].mxu0 %v4043
        %v4045 = vpop.f32.mrb[0].mxu0
        %v4046 = vadd.f32 %v3881, %v4045
        %v4047 = vpop.f32.mrb[0].mxu0
        %4048 = vmatprep.mubr.f32.mxu0 0.0
        %v4049 = vand.u32 %v2962, 4294901760
        %4050 = vmatmul.mubr.f32.gmra.mrb[0].mxu0 %v4049
        %v4051 = vpop.f32.mrb[0].mxu0
        %v4052 = vadd.f32 %v3887, %v4051
        %v4053 = vpop.f32.mrb[0].mxu0
        %4054 = vmatprep.mubr.f32.mxu0 0.0
        %v4055 = vand.u32 %v2965, 4294901760
        %4056 = vmatmul.mubr.f32.gmra.mrb[0].mxu0 %v4055
        %v4057 = vpop.f32.mrb[0].mxu0
        %v4058 = vadd.f32 %v3893, %v4057
        %v4059 = vpop.f32.mrb[0].mxu0
        %4060 = vmatprep.mubr.f32.mxu0 0.0
        %v4061 = vand.u32 %v2968, 4294901760
        %4062 = vmatmul.mubr.f32.gmra.mrb[0].mxu0 %v4061
        %v4063 = vpop.f32.mrb[0].mxu0
        %v4064 = vadd.f32 %v3899, %v4063
        %v4065 = vpop.f32.mrb[0].mxu0
        %4066 = vmatprep.mubr.f32.mxu0 0.0
        %v4067 = vand.u32 %v2971, 4294901760
        %4068 = vmatmul.mubr.f32.gmra.mrb[0].mxu0 %v4067
        %v4069 = vpop.f32.mrb[0].mxu0
        %v4070 = vadd.f32 %v3905, %v4069
        %v4071 = vpop.f32.mrb[0].mxu0
        %4072 = vmatprep.mubr.f32.mxu0 0.0
        %v4073 = vand.u32 %v2974, 4294901760
        %4074 = vmatmul.mubr.f32.gmra.mrb[0].mxu0 %v4073
        %v4075 = vpop.f32.mrb[0].mxu0
        %v4076 = vadd.f32 %v3911, %v4075
        %v4077 = vpop.f32.mrb[0].mxu0
        %4078 = vmatprep.mubr.f32.mxu0 0.0
        %v4079 = vand.u32 %v2977, 4294901760
        %4080 = vmatmul.mubr.f32.gmra.mrb[0].mxu0 %v4079
        %v4081 = vpop.f32.mrb[0].mxu0
        %v4082 = vadd.f32 %v3917, %v4081
        %v4083 = vpop.f32.mrb[0].mxu0
        %4084 = vmatprep.mubr.f32.mxu0 0.0
        %v4085 = vand.u32 %v2980, 4294901760
        %4086 = vmatmul.mubr.f32.gmra.mrb[0].mxu0 %v4085
        %v4087 = vpop.f32.mrb[0].mxu0
        %v4088 = vadd.f32 %v3923, %v4087
        %v4089 = vpop.f32.mrb[0].mxu0
        %4090 = vmatprep.mubr.f32.mxu0 0.0
        %v4091 = vand.u32 %v2983, 4294901760
        %4092 = vmatmul.mubr.f32.gmra.mrb[0].mxu0 %v4091
        %v4093 = vpop.f32.mrb[0].mxu0
        %v4094 = vadd.f32 %v3929, %v4093
        %v4095 = vpop.f32.mrb[0].mxu0
        %4096 = vmatprep.mubr.f32.mxu0 0.0
        %v4097 = vand.u32 %v2986, 4294901760
        %4098 = vmatmul.mubr.f32.gmra.mrb[0].mxu0 %v4097
        %v4099 = vpop.f32.mrb[0].mxu0
        %v4100 = vadd.f32 %v3935, %v4099
        %v4101 = vpop.f32.mrb[0].mxu0
        %4102 = vmatprep.mubr.f32.mxu0 0.0
        %v4103 = vand.u32 %v2989, 4294901760
        %4104 = vmatmul.mubr.f32.gmra.mrb[0].mxu0 %v4103
        %v4105 = vpop.f32.mrb[0].mxu0
        %v4106 = vadd.f32 %v3941, %v4105
        %v4107 = vpop.f32.mrb[0].mxu0
        %4108 = vmatprep.mubr.f32.mxu0 0.0
        %v4109 = vand.u32 %v2992, 4294901760
        %4110 = vmatmul.mubr.f32.gmra.mrb[0].mxu0 %v4109
        %v4111 = vpop.f32.mrb[0].mxu0
        %v4112 = vadd.f32 %v3947, %v4111
        %v4113 = vpop.f32.mrb[0].mxu0
        %4114 = vmatprep.mubr.f32.mxu0 0.0
        %v4115 = vand.u32 %v2995, 4294901760
        %4116 = vmatmul.mubr.f32.gmra.mrb[0].mxu0 %v4115
        %v4117 = vpop.f32.mrb[0].mxu0
        %v4118 = vadd.f32 %v3953, %v4117
        %v4119 = vpop.f32.mrb[0].mxu0
        %4120 = vmatprep.mubr.f32.mxu0 0.0
        %v4121 = vand.u32 %v2998, 4294901760
        %4122 = vmatmul.mubr.f32.gmra.mrb[0].mxu0 %v4121
        %v4123 = vpop.f32.mrb[0].mxu0
        %v4124 = vadd.f32 %v3959, %v4123
        %v4125 = vpop.f32.mrb[0].mxu0
        %4126 = vmatprep.mubr.f32.mxu0 0.0
        %v4127 = vand.u32 %v3001, 4294901760
        %4128 = vmatmul.mubr.f32.gmra.mrb[0].mxu0 %v4127
        %v4129 = vpop.f32.mrb[0].mxu0
        %v4130 = vadd.f32 %v3965, %v4129
        %v4131 = vpop.f32.mrb[0].mxu0
        %4132 = vdwg.mxu0
        %v4133 = vmax.f32 %v4040, 0.0
        %v4134 = vmax.f32 %v4046, 0.0
        %v4135 = vmax.f32 %v4052, 0.0
        %v4136 = vmax.f32 %v4058, 0.0
        %v4137 = vmax.f32 %v4064, 0.0
        %v4138 = vmax.f32 %v4070, 0.0
        %v4139 = vmax.f32 %v4076, 0.0
        %v4140 = vmax.f32 %v4082, 0.0
        %v4141 = vmax.f32 %v4088, 0.0
        %v4142 = vmax.f32 %v4094, 0.0
        %v4143 = vmax.f32 %v4100, 0.0
        %v4144 = vmax.f32 %v4106, 0.0
        %v4145 = vmax.f32 %v4112, 0.0
        %v4146 = vmax.f32 %v4118, 0.0
        %v4147 = vmax.f32 %v4124, 0.0
        %v4148 = vmax.f32 %v4130, 0.0
        %v4149 = vmul.f32 %v1712, %v4133
        %v4150 = vmul.f32 %v1713, %v4134
        %v4151 = vmul.f32 %v1714, %v4135
        %v4152 = vmul.f32 %v1715, %v4136
        %v4153 = vmul.f32 %v1716, %v4137
        %v4154 = vmul.f32 %v1717, %v4138
        %v4155 = vmul.f32 %v1718, %v4139
        %v4156 = vmul.f32 %v1719, %v4140
        %v4157 = vmul.f32 %v1720, %v4141
        %v4158 = vmul.f32 %v1721, %v4142
        %v4159 = vmul.f32 %v1722, %v4143
        %v4160 = vmul.f32 %v1723, %v4144
        %v4161 = vmul.f32 %v1724, %v4145
        %v4162 = vmul.f32 %v1725, %v4146
        %v4163 = vmul.f32 %v1726, %v4147
        %v4164 = vmul.f32 %v1727, %v4148
        %v4165 = vld [vmem:[#allocation7] sm:$0xff]
        %v4166 = vld [vmem:[#allocation7 + $0x8] sm:$0xff]
        %v4167 = vld [vmem:[#allocation7 + $0x10] sm:$0xff]
        %v4168 = vld [vmem:[#allocation7 + $0x18] sm:$0xff]
        %v4169 = vld [vmem:[#allocation7 + $0x20] sm:$0xff]
        %v4170 = vld [vmem:[#allocation7 + $0x28] sm:$0xff]
        %v4171 = vld [vmem:[#allocation7 + $0x30] sm:$0xff]
        %v4172 = vld [vmem:[#allocation7 + $0x38] sm:$0xff]
        %v4173 = vlaneseq
        %v4174 = vshrl.u32 %v4173, 7
        %v4175 = vsub.s32 0, %v4174
        %v4176 = vrot.slane %v449, %v4175
        %v4178 = vsel %vm481, %v4149, 0
        %v4181 = vsel %vm481, %v4150, 0
        %v4184 = vsel %vm481, %v4151, 0
        %v4187 = vsel %vm481, %v4152, 0
        %v4190 = vsel %vm481, %v4153, 0
        %v4193 = vsel %vm481, %v4154, 0
        %v4196 = vsel %vm481, %v4155, 0
        %v4199 = vsel %vm481, %v4156, 0
        %v4202 = vsel %vm481, %v4157, 0
        %v4205 = vsel %vm481, %v4158, 0
        %v4208 = vsel %vm481, %v4159, 0
        %v4211 = vsel %vm481, %v4160, 0
        %v4214 = vsel %vm481, %v4161, 0
        %v4217 = vsel %vm481, %v4162, 0
        %v4220 = vsel %vm481, %v4163, 0
        %v4223 = vsel %vm481, %v4164, 0
        %4225 = vmatprep.subr.mxu0 0.0
        %v4226 = vand.u32 %v4165, 4294901760
        %4227 = vmatpush1.msra.mxu0 %v4226
        %4228 = vmatprep.subr.mxu0 0.0
        %v4229 = vand.u32 %v4166, 4294901760
        %4230 = vmatpush1.msra.mxu0 %v4229
        %4231 = vmatprep.subr.mxu0 0.0
        %v4232 = vand.u32 %v4167, 4294901760
        %4233 = vmatpush1.msra.mxu0 %v4232
        %4234 = vmatprep.subr.mxu0 0.0
        %v4235 = vand.u32 %v4168, 4294901760
        %4236 = vmatpush1.msra.mxu0 %v4235
        %4237 = vmatprep.subr.mxu0 0.0
        %v4238 = vand.u32 %v4169, 4294901760
        %4239 = vmatpush1.msra.mxu0 %v4238
        %4240 = vmatprep.subr.mxu0 0.0
        %v4241 = vand.u32 %v4170, 4294901760
        %4242 = vmatpush1.msra.mxu0 %v4241
        %4243 = vmatprep.subr.mxu0 0.0
        %v4244 = vand.u32 %v4171, 4294901760
        %4245 = vmatpush1.msra.mxu0 %v4244
        %4246 = vmatprep.subr.mxu0 0.0
        %v4247 = vand.u32 %v4172, 4294901760
        %4248 = vmatpush1.msra.mxu0 %v4247
        %4249 = vmatprep.subr.mxu0 0.0
        %4250 = vmatpush1.msra.mxu0 0.0
        %4251 = vmatprep.subr.mxu0 0.0
        %4252 = vmatpush1.msra.mxu0 0.0
        %4253 = vmatprep.subr.mxu0 0.0
        %4254 = vmatpush1.msra.mxu0 0.0
        %4255 = vmatprep.subr.mxu0 0.0
        %4256 = vmatpush1.msra.mxu0 0.0
        %4257 = vmatprep.subr.mxu0 0.0
        %4258 = vmatpush1.msra.mxu0 0.0
        %4259 = vmatprep.subr.mxu0 0.0
        %4260 = vmatpush1.msra.mxu0 0.0
        %4261 = vmatprep.subr.mxu0 0.0
        %4262 = vmatpush1.msra.mxu0 0.0
        %4263 = vmatprep.subr.mxu0 0.0
        %4264 = vmatpush1.msra.mxu0 0.0
        %4265 = vmatprep.subr.mxu0 0.0
        %4266 = vmatpush1.msra.mxu0 0.0
        %4267 = vmatprep.subr.mxu0 0.0
        %4268 = vmatpush1.msra.mxu0 0.0
        %4269 = vmatprep.subr.mxu0 0.0
        %4270 = vmatpush1.msra.mxu0 0.0
        %4271 = vmatprep.subr.mxu0 0.0
        %4272 = vmatpush1.msra.mxu0 0.0
        %4273 = vmatprep.subr.mxu0 0.0
        %4274 = vmatpush1.msra.mxu0 0.0
        %4275 = vmatprep.subr.mxu0 0.0
        %4276 = vmatpush1.msra.mxu0 0.0
        %4277 = vmatprep.subr.mxu0 0.0
        %4278 = vmatpush1.msra.mxu0 0.0
        %4279 = vmatprep.subr.mxu0 0.0
        %4280 = vmatpush1.msra.mxu0 0.0
        %4281 = vmatprep.subr.mxu0 0.0
        %4282 = vmatpush1.msra.mxu0 0.0
        %4283 = vmatprep.subr.mxu0 0.0
        %4284 = vmatpush1.msra.mxu0 0.0
        %4285 = vmatprep.subr.mxu0 0.0
        %4286 = vmatpush1.msra.mxu0 0.0
        %4287 = vmatprep.subr.mxu0 0.0
        %4288 = vmatpush1.msra.mxu0 0.0
        %4289 = vmatprep.subr.mxu0 0.0
        %4290 = vmatpush1.msra.mxu0 0.0
        %4291 = vmatprep.subr.mxu0 0.0
        %4292 = vmatpush1.msra.mxu0 0.0
        %4293 = vmatprep.subr.mxu0 0.0
        %4294 = vmatpush1.msra.mxu0 0.0
        %4295 = vmatprep.subr.mxu0 0.0
        %4296 = vmatpush1.msra.mxu0 0.0
        %4297 = vmatprep.mubr.f32.mxu0 0.0
        %v4298 = vand.u32 %v4178, 4294901760
        %v4299 = vsub.f32 %v4178, %v4298
        %v4300 = vand.u32 %v4299, 4294901760
        %v4301 = vsub.f32 %v4299, %v4300
        %v4302 = vand.u32 %v4301, 4294901760
        %4303 = vmatmul.mubr.f32.gmra.mrb[0].mxu0 %v4302
        %v4304 = vpop.f32.mrb[0].mxu0
        %v4305 = vadd.f32 %v4176, %v4304
        %v4306 = vpop.f32.mrb[0].mxu0
        %4307 = vmatprep.mubr.f32.mxu0 0.0
        %v4308 = vand.u32 %v4181, 4294901760
        %v4309 = vsub.f32 %v4181, %v4308
        %v4310 = vand.u32 %v4309, 4294901760
        %v4311 = vsub.f32 %v4309, %v4310
        %v4312 = vand.u32 %v4311, 4294901760
        %4313 = vmatmul.mubr.f32.gmra.mrb[0].mxu0 %v4312
        %v4314 = vpop.f32.mrb[0].mxu0
        %v4315 = vadd.f32 %v4176, %v4314
        %v4316 = vpop.f32.mrb[0].mxu0
        %4317 = vmatprep.mubr.f32.mxu0 0.0
        %v4318 = vand.u32 %v4184, 4294901760
        %v4319 = vsub.f32 %v4184, %v4318
        %v4320 = vand.u32 %v4319, 4294901760
        %v4321 = vsub.f32 %v4319, %v4320
        %v4322 = vand.u32 %v4321, 4294901760
        %4323 = vmatmul.mubr.f32.gmra.mrb[0].mxu0 %v4322
        %v4324 = vpop.f32.mrb[0].mxu0
        %v4325 = vadd.f32 %v4176, %v4324
        %v4326 = vpop.f32.mrb[0].mxu0
        %4327 = vmatprep.mubr.f32.mxu0 0.0
        %v4328 = vand.u32 %v4187, 4294901760
        %v4329 = vsub.f32 %v4187, %v4328
        %v4330 = vand.u32 %v4329, 4294901760
        %v4331 = vsub.f32 %v4329, %v4330
        %v4332 = vand.u32 %v4331, 4294901760
        %4333 = vmatmul.mubr.f32.gmra.mrb[0].mxu0 %v4332
        %v4334 = vpop.f32.mrb[0].mxu0
        %v4335 = vadd.f32 %v4176, %v4334
        %v4336 = vpop.f32.mrb[0].mxu0
        %4337 = vmatprep.mubr.f32.mxu0 0.0
        %v4338 = vand.u32 %v4190, 4294901760
        %v4339 = vsub.f32 %v4190, %v4338
        %v4340 = vand.u32 %v4339, 4294901760
        %v4341 = vsub.f32 %v4339, %v4340
        %v4342 = vand.u32 %v4341, 4294901760
        %4343 = vmatmul.mubr.f32.gmra.mrb[0].mxu0 %v4342
        %v4344 = vpop.f32.mrb[0].mxu0
        %v4345 = vadd.f32 %v4176, %v4344
        %v4346 = vpop.f32.mrb[0].mxu0
        %4347 = vmatprep.mubr.f32.mxu0 0.0
        %v4348 = vand.u32 %v4193, 4294901760
        %v4349 = vsub.f32 %v4193, %v4348
        %v4350 = vand.u32 %v4349, 4294901760
        %v4351 = vsub.f32 %v4349, %v4350
        %v4352 = vand.u32 %v4351, 4294901760
        %4353 = vmatmul.mubr.f32.gmra.mrb[0].mxu0 %v4352
        %v4354 = vpop.f32.mrb[0].mxu0
        %v4355 = vadd.f32 %v4176, %v4354
        %v4356 = vpop.f32.mrb[0].mxu0
        %4357 = vmatprep.mubr.f32.mxu0 0.0
        %v4358 = vand.u32 %v4196, 4294901760
        %v4359 = vsub.f32 %v4196, %v4358
        %v4360 = vand.u32 %v4359, 4294901760
        %v4361 = vsub.f32 %v4359, %v4360
        %v4362 = vand.u32 %v4361, 4294901760
        %4363 = vmatmul.mubr.f32.gmra.mrb[0].mxu0 %v4362
        %v4364 = vpop.f32.mrb[0].mxu0
        %v4365 = vadd.f32 %v4176, %v4364
        %v4366 = vpop.f32.mrb[0].mxu0
        %4367 = vmatprep.mubr.f32.mxu0 0.0
        %v4368 = vand.u32 %v4199, 4294901760
        %v4369 = vsub.f32 %v4199, %v4368
        %v4370 = vand.u32 %v4369, 4294901760
        %v4371 = vsub.f32 %v4369, %v4370
        %v4372 = vand.u32 %v4371, 4294901760
        %4373 = vmatmul.mubr.f32.gmra.mrb[0].mxu0 %v4372
        %v4374 = vpop.f32.mrb[0].mxu0
        %v4375 = vadd.f32 %v4176, %v4374
        %v4376 = vpop.f32.mrb[0].mxu0
        %4377 = vmatprep.mubr.f32.mxu0 0.0
        %v4378 = vand.u32 %v4202, 4294901760
        %v4379 = vsub.f32 %v4202, %v4378
        %v4380 = vand.u32 %v4379, 4294901760
        %v4381 = vsub.f32 %v4379, %v4380
        %v4382 = vand.u32 %v4381, 4294901760
        %4383 = vmatmul.mubr.f32.gmra.mrb[0].mxu0 %v4382
        %v4384 = vpop.f32.mrb[0].mxu0
        %v4385 = vadd.f32 %v4176, %v4384
        %v4386 = vpop.f32.mrb[0].mxu0
        %4387 = vmatprep.mubr.f32.mxu0 0.0
        %v4388 = vand.u32 %v4205, 4294901760
        %v4389 = vsub.f32 %v4205, %v4388
        %v4390 = vand.u32 %v4389, 4294901760
        %v4391 = vsub.f32 %v4389, %v4390
        %v4392 = vand.u32 %v4391, 4294901760
        %4393 = vmatmul.mubr.f32.gmra.mrb[0].mxu0 %v4392
        %v4394 = vpop.f32.mrb[0].mxu0
        %v4395 = vadd.f32 %v4176, %v4394
        %v4396 = vpop.f32.mrb[0].mxu0
        %4397 = vmatprep.mubr.f32.mxu0 0.0
        %v4398 = vand.u32 %v4208, 4294901760
        %v4399 = vsub.f32 %v4208, %v4398
        %v4400 = vand.u32 %v4399, 4294901760
        %v4401 = vsub.f32 %v4399, %v4400
        %v4402 = vand.u32 %v4401, 4294901760
        %4403 = vmatmul.mubr.f32.gmra.mrb[0].mxu0 %v4402
        %v4404 = vpop.f32.mrb[0].mxu0
        %v4405 = vadd.f32 %v4176, %v4404
        %v4406 = vpop.f32.mrb[0].mxu0
        %4407 = vmatprep.mubr.f32.mxu0 0.0
        %v4408 = vand.u32 %v4211, 4294901760
        %v4409 = vsub.f32 %v4211, %v4408
        %v4410 = vand.u32 %v4409, 4294901760
        %v4411 = vsub.f32 %v4409, %v4410
        %v4412 = vand.u32 %v4411, 4294901760
        %4413 = vmatmul.mubr.f32.gmra.mrb[0].mxu0 %v4412
        %v4414 = vpop.f32.mrb[0].mxu0
        %v4415 = vadd.f32 %v4176, %v4414
        %v4416 = vpop.f32.mrb[0].mxu0
        %4417 = vmatprep.mubr.f32.mxu0 0.0
        %v4418 = vand.u32 %v4214, 4294901760
        %v4419 = vsub.f32 %v4214, %v4418
        %v4420 = vand.u32 %v4419, 4294901760
        %v4421 = vsub.f32 %v4419, %v4420
        %v4422 = vand.u32 %v4421, 4294901760
        %4423 = vmatmul.mubr.f32.gmra.mrb[0].mxu0 %v4422
        %v4424 = vpop.f32.mrb[0].mxu0
        %v4425 = vadd.f32 %v4176, %v4424
        %v4426 = vpop.f32.mrb[0].mxu0
        %4427 = vmatprep.mubr.f32.mxu0 0.0
        %v4428 = vand.u32 %v4217, 4294901760
        %v4429 = vsub.f32 %v4217, %v4428
        %v4430 = vand.u32 %v4429, 4294901760
        %v4431 = vsub.f32 %v4429, %v4430
        %v4432 = vand.u32 %v4431, 4294901760
        %4433 = vmatmul.mubr.f32.gmra.mrb[0].mxu0 %v4432
        %v4434 = vpop.f32.mrb[0].mxu0
        %v4435 = vadd.f32 %v4176, %v4434
        %v4436 = vpop.f32.mrb[0].mxu0
        %4437 = vmatprep.mubr.f32.mxu0 0.0
        %v4438 = vand.u32 %v4220, 4294901760
        %v4439 = vsub.f32 %v4220, %v4438
        %v4440 = vand.u32 %v4439, 4294901760
        %v4441 = vsub.f32 %v4439, %v4440
        %v4442 = vand.u32 %v4441, 4294901760
        %4443 = vmatmul.mubr.f32.gmra.mrb[0].mxu0 %v4442
        %v4444 = vpop.f32.mrb[0].mxu0
        %v4445 = vadd.f32 %v4176, %v4444
        %v4446 = vpop.f32.mrb[0].mxu0
        %4447 = vmatprep.mubr.f32.mxu0 0.0
        %v4448 = vand.u32 %v4223, 4294901760
        %v4449 = vsub.f32 %v4223, %v4448
        %v4450 = vand.u32 %v4449, 4294901760
        %v4451 = vsub.f32 %v4449, %v4450
        %v4452 = vand.u32 %v4451, 4294901760
        %4453 = vmatmul.mubr.f32.gmra.mrb[0].mxu0 %v4452
        %v4454 = vpop.f32.mrb[0].mxu0
        %v4455 = vadd.f32 %v4176, %v4454
        %v4456 = vpop.f32.mrb[0].mxu0
        %4457 = vdwg.mxu0
        %4458 = vmatprep.subr.mxu0 0.0
        %v4459 = vand.u32 %v4165, 4294901760
        %v4460 = vsub.f32 %v4165, %v4459
        %v4461 = vand.u32 %v4460, 4294901760
        %v4462 = vsub.f32 %v4460, %v4461
        %v4463 = vand.u32 %v4462, 4294901760
        %4464 = vmatpush1.msra.mxu0 %v4463
        %4465 = vmatprep.subr.mxu0 0.0
        %v4466 = vand.u32 %v4166, 4294901760
        %v4467 = vsub.f32 %v4166, %v4466
        %v4468 = vand.u32 %v4467, 4294901760
        %v4469 = vsub.f32 %v4467, %v4468
        %v4470 = vand.u32 %v4469, 4294901760
        %4471 = vmatpush1.msra.mxu0 %v4470
        %4472 = vmatprep.subr.mxu0 0.0
        %v4473 = vand.u32 %v4167, 4294901760
        %v4474 = vsub.f32 %v4167, %v4473
        %v4475 = vand.u32 %v4474, 4294901760
        %v4476 = vsub.f32 %v4474, %v4475
        %v4477 = vand.u32 %v4476, 4294901760
        %4478 = vmatpush1.msra.mxu0 %v4477
        %4479 = vmatprep.subr.mxu0 0.0
        %v4480 = vand.u32 %v4168, 4294901760
        %v4481 = vsub.f32 %v4168, %v4480
        %v4482 = vand.u32 %v4481, 4294901760
        %v4483 = vsub.f32 %v4481, %v4482
        %v4484 = vand.u32 %v4483, 4294901760
        %4485 = vmatpush1.msra.mxu0 %v4484
        %4486 = vmatprep.subr.mxu0 0.0
        %v4487 = vand.u32 %v4169, 4294901760
        %v4488 = vsub.f32 %v4169, %v4487
        %v4489 = vand.u32 %v4488, 4294901760
        %v4490 = vsub.f32 %v4488, %v4489
        %v4491 = vand.u32 %v4490, 4294901760
        %4492 = vmatpush1.msra.mxu0 %v4491
        %4493 = vmatprep.subr.mxu0 0.0
        %v4494 = vand.u32 %v4170, 4294901760
        %v4495 = vsub.f32 %v4170, %v4494
        %v4496 = vand.u32 %v4495, 4294901760
        %v4497 = vsub.f32 %v4495, %v4496
        %v4498 = vand.u32 %v4497, 4294901760
        %4499 = vmatpush1.msra.mxu0 %v4498
        %4500 = vmatprep.subr.mxu0 0.0
        %v4501 = vand.u32 %v4171, 4294901760
        %v4502 = vsub.f32 %v4171, %v4501
        %v4503 = vand.u32 %v4502, 4294901760
        %v4504 = vsub.f32 %v4502, %v4503
        %v4505 = vand.u32 %v4504, 4294901760
        %4506 = vmatpush1.msra.mxu0 %v4505
        %4507 = vmatprep.subr.mxu0 0.0
        %v4508 = vand.u32 %v4172, 4294901760
        %v4509 = vsub.f32 %v4172, %v4508
        %v4510 = vand.u32 %v4509, 4294901760
        %v4511 = vsub.f32 %v4509, %v4510
        %v4512 = vand.u32 %v4511, 4294901760
        %4513 = vmatpush1.msra.mxu0 %v4512
        %4514 = vmatprep.subr.mxu0 0.0
        %4515 = vmatpush1.msra.mxu0 0.0
        %4516 = vmatprep.subr.mxu0 0.0
        %4517 = vmatpush1.msra.mxu0 0.0
        %4518 = vmatprep.subr.mxu0 0.0
        %4519 = vmatpush1.msra.mxu0 0.0
        %4520 = vmatprep.subr.mxu0 0.0
        %4521 = vmatpush1.msra.mxu0 0.0
        %4522 = vmatprep.subr.mxu0 0.0
        %4523 = vmatpush1.msra.mxu0 0.0
        %4524 = vmatprep.subr.mxu0 0.0
        %4525 = vmatpush1.msra.mxu0 0.0
        %4526 = vmatprep.subr.mxu0 0.0
        %4527 = vmatpush1.msra.mxu0 0.0
        %4528 = vmatprep.subr.mxu0 0.0
        %4529 = vmatpush1.msra.mxu0 0.0
        %4530 = vmatprep.subr.mxu0 0.0
        %4531 = vmatpush1.msra.mxu0 0.0
        %4532 = vmatprep.subr.mxu0 0.0
        %4533 = vmatpush1.msra.mxu0 0.0
        %4534 = vmatprep.subr.mxu0 0.0
        %4535 = vmatpush1.msra.mxu0 0.0
        %4536 = vmatprep.subr.mxu0 0.0
        %4537 = vmatpush1.msra.mxu0 0.0
        %4538 = vmatprep.subr.mxu0 0.0
        %4539 = vmatpush1.msra.mxu0 0.0
        %4540 = vmatprep.subr.mxu0 0.0
        %4541 = vmatpush1.msra.mxu0 0.0
        %4542 = vmatprep.subr.mxu0 0.0
        %4543 = vmatpush1.msra.mxu0 0.0
        %4544 = vmatprep.subr.mxu0 0.0
        %4545 = vmatpush1.msra.mxu0 0.0
        %4546 = vmatprep.subr.mxu0 0.0
        %4547 = vmatpush1.msra.mxu0 0.0
        %4548 = vmatprep.subr.mxu0 0.0
        %4549 = vmatpush1.msra.mxu0 0.0
        %4550 = vmatprep.subr.mxu0 0.0
        %4551 = vmatpush1.msra.mxu0 0.0
        %4552 = vmatprep.subr.mxu0 0.0
        %4553 = vmatpush1.msra.mxu0 0.0
        %4554 = vmatprep.subr.mxu0 0.0
        %4555 = vmatpush1.msra.mxu0 0.0
        %4556 = vmatprep.subr.mxu0 0.0
        %4557 = vmatpush1.msra.mxu0 0.0
        %4558 = vmatprep.subr.mxu0 0.0
        %4559 = vmatpush1.msra.mxu0 0.0
        %4560 = vmatprep.subr.mxu0 0.0
        %4561 = vmatpush1.msra.mxu0 0.0
        %4562 = vmatprep.mubr.f32.mxu0 0.0
        %v4563 = vand.u32 %v4178, 4294901760
        %4564 = vmatmul.mubr.f32.gmra.mrb[0].mxu0 %v4563
        %v4565 = vpop.f32.mrb[0].mxu0
        %v4566 = vadd.f32 %v4305, %v4565
        %v4567 = vpop.f32.mrb[0].mxu0
        %4568 = vmatprep.mubr.f32.mxu0 0.0
        %v4569 = vand.u32 %v4181, 4294901760
        %4570 = vmatmul.mubr.f32.gmra.mrb[0].mxu0 %v4569
        %v4571 = vpop.f32.mrb[0].mxu0
        %v4572 = vadd.f32 %v4315, %v4571
        %v4573 = vpop.f32.mrb[0].mxu0
        %4574 = vmatprep.mubr.f32.mxu0 0.0
        %v4575 = vand.u32 %v4184, 4294901760
        %4576 = vmatmul.mubr.f32.gmra.mrb[0].mxu0 %v4575
        %v4577 = vpop.f32.mrb[0].mxu0
        %v4578 = vadd.f32 %v4325, %v4577
        %v4579 = vpop.f32.mrb[0].mxu0
        %4580 = vmatprep.mubr.f32.mxu0 0.0
        %v4581 = vand.u32 %v4187, 4294901760
        %4582 = vmatmul.mubr.f32.gmra.mrb[0].mxu0 %v4581
        %v4583 = vpop.f32.mrb[0].mxu0
        %v4584 = vadd.f32 %v4335, %v4583
        %v4585 = vpop.f32.mrb[0].mxu0
        %4586 = vmatprep.mubr.f32.mxu0 0.0
        %v4587 = vand.u32 %v4190, 4294901760
        %4588 = vmatmul.mubr.f32.gmra.mrb[0].mxu0 %v4587
        %v4589 = vpop.f32.mrb[0].mxu0
        %v4590 = vadd.f32 %v4345, %v4589
        %v4591 = vpop.f32.mrb[0].mxu0
        %4592 = vmatprep.mubr.f32.mxu0 0.0
        %v4593 = vand.u32 %v4193, 4294901760
        %4594 = vmatmul.mubr.f32.gmra.mrb[0].mxu0 %v4593
        %v4595 = vpop.f32.mrb[0].mxu0
        %v4596 = vadd.f32 %v4355, %v4595
        %v4597 = vpop.f32.mrb[0].mxu0
        %4598 = vmatprep.mubr.f32.mxu0 0.0
        %v4599 = vand.u32 %v4196, 4294901760
        %4600 = vmatmul.mubr.f32.gmra.mrb[0].mxu0 %v4599
        %v4601 = vpop.f32.mrb[0].mxu0
        %v4602 = vadd.f32 %v4365, %v4601
        %v4603 = vpop.f32.mrb[0].mxu0
        %4604 = vmatprep.mubr.f32.mxu0 0.0
        %v4605 = vand.u32 %v4199, 4294901760
        %4606 = vmatmul.mubr.f32.gmra.mrb[0].mxu0 %v4605
        %v4607 = vpop.f32.mrb[0].mxu0
        %v4608 = vadd.f32 %v4375, %v4607
        %v4609 = vpop.f32.mrb[0].mxu0
        %4610 = vmatprep.mubr.f32.mxu0 0.0
        %v4611 = vand.u32 %v4202, 4294901760
        %4612 = vmatmul.mubr.f32.gmra.mrb[0].mxu0 %v4611
        %v4613 = vpop.f32.mrb[0].mxu0
        %v4614 = vadd.f32 %v4385, %v4613
        %v4615 = vpop.f32.mrb[0].mxu0
        %4616 = vmatprep.mubr.f32.mxu0 0.0
        %v4617 = vand.u32 %v4205, 4294901760
        %4618 = vmatmul.mubr.f32.gmra.mrb[0].mxu0 %v4617
        %v4619 = vpop.f32.mrb[0].mxu0
        %v4620 = vadd.f32 %v4395, %v4619
        %v4621 = vpop.f32.mrb[0].mxu0
        %4622 = vmatprep.mubr.f32.mxu0 0.0
        %v4623 = vand.u32 %v4208, 4294901760
        %4624 = vmatmul.mubr.f32.gmra.mrb[0].mxu0 %v4623
        %v4625 = vpop.f32.mrb[0].mxu0
        %v4626 = vadd.f32 %v4405, %v4625
        %v4627 = vpop.f32.mrb[0].mxu0
        %4628 = vmatprep.mubr.f32.mxu0 0.0
        %v4629 = vand.u32 %v4211, 4294901760
        %4630 = vmatmul.mubr.f32.gmra.mrb[0].mxu0 %v4629
        %v4631 = vpop.f32.mrb[0].mxu0
        %v4632 = vadd.f32 %v4415, %v4631
        %v4633 = vpop.f32.mrb[0].mxu0
        %4634 = vmatprep.mubr.f32.mxu0 0.0
        %v4635 = vand.u32 %v4214, 4294901760
        %4636 = vmatmul.mubr.f32.gmra.mrb[0].mxu0 %v4635
        %v4637 = vpop.f32.mrb[0].mxu0
        %v4638 = vadd.f32 %v4425, %v4637
        %v4639 = vpop.f32.mrb[0].mxu0
        %4640 = vmatprep.mubr.f32.mxu0 0.0
        %v4641 = vand.u32 %v4217, 4294901760
        %4642 = vmatmul.mubr.f32.gmra.mrb[0].mxu0 %v4641
        %v4643 = vpop.f32.mrb[0].mxu0
        %v4644 = vadd.f32 %v4435, %v4643
        %v4645 = vpop.f32.mrb[0].mxu0
        %4646 = vmatprep.mubr.f32.mxu0 0.0
        %v4647 = vand.u32 %v4220, 4294901760
        %4648 = vmatmul.mubr.f32.gmra.mrb[0].mxu0 %v4647
        %v4649 = vpop.f32.mrb[0].mxu0
        %v4650 = vadd.f32 %v4445, %v4649
        %v4651 = vpop.f32.mrb[0].mxu0
        %4652 = vmatprep.mubr.f32.mxu0 0.0
        %v4653 = vand.u32 %v4223, 4294901760
        %4654 = vmatmul.mubr.f32.gmra.mrb[0].mxu0 %v4653
        %v4655 = vpop.f32.mrb[0].mxu0
        %v4656 = vadd.f32 %v4455, %v4655
        %v4657 = vpop.f32.mrb[0].mxu0
        %4658 = vdwg.mxu0
        %4659 = vmatprep.subr.mxu0 0.0
        %v4660 = vand.u32 %v4165, 4294901760
        %v4661 = vsub.f32 %v4165, %v4660
        %4662 = vmatpush1.msra.mxu0 %v4661
        %4663 = vmatprep.subr.mxu0 0.0
        %v4664 = vand.u32 %v4166, 4294901760
        %v4665 = vsub.f32 %v4166, %v4664
        %4666 = vmatpush1.msra.mxu0 %v4665
        %4667 = vmatprep.subr.mxu0 0.0
        %v4668 = vand.u32 %v4167, 4294901760
        %v4669 = vsub.f32 %v4167, %v4668
        %4670 = vmatpush1.msra.mxu0 %v4669
        %4671 = vmatprep.subr.mxu0 0.0
        %v4672 = vand.u32 %v4168, 4294901760
        %v4673 = vsub.f32 %v4168, %v4672
        %4674 = vmatpush1.msra.mxu0 %v4673
        %4675 = vmatprep.subr.mxu0 0.0
        %v4676 = vand.u32 %v4169, 4294901760
        %v4677 = vsub.f32 %v4169, %v4676
        %4678 = vmatpush1.msra.mxu0 %v4677
        %4679 = vmatprep.subr.mxu0 0.0
        %v4680 = vand.u32 %v4170, 4294901760
        %v4681 = vsub.f32 %v4170, %v4680
        %4682 = vmatpush1.msra.mxu0 %v4681
        %4683 = vmatprep.subr.mxu0 0.0
        %v4684 = vand.u32 %v4171, 4294901760
        %v4685 = vsub.f32 %v4171, %v4684
        %4686 = vmatpush1.msra.mxu0 %v4685
        %4687 = vmatprep.subr.mxu0 0.0
        %v4688 = vand.u32 %v4172, 4294901760
        %v4689 = vsub.f32 %v4172, %v4688
        %4690 = vmatpush1.msra.mxu0 %v4689
        %4691 = vmatprep.subr.mxu0 0.0
        %4692 = vmatpush1.msra.mxu0 0.0
        %4693 = vmatprep.subr.mxu0 0.0
        %4694 = vmatpush1.msra.mxu0 0.0
        %4695 = vmatprep.subr.mxu0 0.0
        %4696 = vmatpush1.msra.mxu0 0.0
        %4697 = vmatprep.subr.mxu0 0.0
        %4698 = vmatpush1.msra.mxu0 0.0
        %4699 = vmatprep.subr.mxu0 0.0
        %4700 = vmatpush1.msra.mxu0 0.0
        %4701 = vmatprep.subr.mxu0 0.0
        %4702 = vmatpush1.msra.mxu0 0.0
        %4703 = vmatprep.subr.mxu0 0.0
        %4704 = vmatpush1.msra.mxu0 0.0
        %4705 = vmatprep.subr.mxu0 0.0
        %4706 = vmatpush1.msra.mxu0 0.0
        %4707 = vmatprep.subr.mxu0 0.0
        %4708 = vmatpush1.msra.mxu0 0.0
        %4709 = vmatprep.subr.mxu0 0.0
        %4710 = vmatpush1.msra.mxu0 0.0
        %4711 = vmatprep.subr.mxu0 0.0
        %4712 = vmatpush1.msra.mxu0 0.0
        %4713 = vmatprep.subr.mxu0 0.0
        %4714 = vmatpush1.msra.mxu0 0.0
        %4715 = vmatprep.subr.mxu0 0.0
        %4716 = vmatpush1.msra.mxu0 0.0
        %4717 = vmatprep.subr.mxu0 0.0
        %4718 = vmatpush1.msra.mxu0 0.0
        %4719 = vmatprep.subr.mxu0 0.0
        %4720 = vmatpush1.msra.mxu0 0.0
        %4721 = vmatprep.subr.mxu0 0.0
        %4722 = vmatpush1.msra.mxu0 0.0
        %4723 = vmatprep.subr.mxu0 0.0
        %4724 = vmatpush1.msra.mxu0 0.0
        %4725 = vmatprep.subr.mxu0 0.0
        %4726 = vmatpush1.msra.mxu0 0.0
        %4727 = vmatprep.subr.mxu0 0.0
        %4728 = vmatpush1.msra.mxu0 0.0
        %4729 = vmatprep.subr.mxu0 0.0
        %4730 = vmatpush1.msra.mxu0 0.0
        %4731 = vmatprep.subr.mxu0 0.0
        %4732 = vmatpush1.msra.mxu0 0.0
        %4733 = vmatprep.subr.mxu0 0.0
        %4734 = vmatpush1.msra.mxu0 0.0
        %4735 = vmatprep.subr.mxu0 0.0
        %4736 = vmatpush1.msra.mxu0 0.0
        %4737 = vmatprep.subr.mxu0 0.0
        %4738 = vmatpush1.msra.mxu0 0.0
        %4739 = vmatprep.mubr.f32.mxu0 0.0
        %v4740 = vand.u32 %v4178, 4294901760
        %v4741 = vsub.f32 %v4178, %v4740
        %4742 = vmatmul.mubr.f32.gmra.mrb[0].mxu0 %v4741
        %v4743 = vpop.f32.mrb[0].mxu0
        %v4744 = vadd.f32 %v4566, %v4743
        %v4745 = vpop.f32.mrb[0].mxu0
        %4746 = vmatprep.mubr.f32.mxu0 0.0
        %v4747 = vand.u32 %v4181, 4294901760
        %v4748 = vsub.f32 %v4181, %v4747
        %4749 = vmatmul.mubr.f32.gmra.mrb[0].mxu0 %v4748
        %v4750 = vpop.f32.mrb[0].mxu0
        %v4751 = vadd.f32 %v4572, %v4750
        %v4752 = vpop.f32.mrb[0].mxu0
        %4753 = vmatprep.mubr.f32.mxu0 0.0
        %v4754 = vand.u32 %v4184, 4294901760
        %v4755 = vsub.f32 %v4184, %v4754
        %4756 = vmatmul.mubr.f32.gmra.mrb[0].mxu0 %v4755
        %v4757 = vpop.f32.mrb[0].mxu0
        %v4758 = vadd.f32 %v4578, %v4757
        %v4759 = vpop.f32.mrb[0].mxu0
        %4760 = vmatprep.mubr.f32.mxu0 0.0
        %v4761 = vand.u32 %v4187, 4294901760
        %v4762 = vsub.f32 %v4187, %v4761
        %4763 = vmatmul.mubr.f32.gmra.mrb[0].mxu0 %v4762
        %v4764 = vpop.f32.mrb[0].mxu0
        %v4765 = vadd.f32 %v4584, %v4764
        %v4766 = vpop.f32.mrb[0].mxu0
        %4767 = vmatprep.mubr.f32.mxu0 0.0
        %v4768 = vand.u32 %v4190, 4294901760
        %v4769 = vsub.f32 %v4190, %v4768
        %4770 = vmatmul.mubr.f32.gmra.mrb[0].mxu0 %v4769
        %v4771 = vpop.f32.mrb[0].mxu0
        %v4772 = vadd.f32 %v4590, %v4771
        %v4773 = vpop.f32.mrb[0].mxu0
        %4774 = vmatprep.mubr.f32.mxu0 0.0
        %v4775 = vand.u32 %v4193, 4294901760
        %v4776 = vsub.f32 %v4193, %v4775
        %4777 = vmatmul.mubr.f32.gmra.mrb[0].mxu0 %v4776
        %v4778 = vpop.f32.mrb[0].mxu0
        %v4779 = vadd.f32 %v4596, %v4778
        %v4780 = vpop.f32.mrb[0].mxu0
        %4781 = vmatprep.mubr.f32.mxu0 0.0
        %v4782 = vand.u32 %v4196, 4294901760
        %v4783 = vsub.f32 %v4196, %v4782
        %4784 = vmatmul.mubr.f32.gmra.mrb[0].mxu0 %v4783
        %v4785 = vpop.f32.mrb[0].mxu0
        %v4786 = vadd.f32 %v4602, %v4785
        %v4787 = vpop.f32.mrb[0].mxu0
        %4788 = vmatprep.mubr.f32.mxu0 0.0
        %v4789 = vand.u32 %v4199, 4294901760
        %v4790 = vsub.f32 %v4199, %v4789
        %4791 = vmatmul.mubr.f32.gmra.mrb[0].mxu0 %v4790
        %v4792 = vpop.f32.mrb[0].mxu0
        %v4793 = vadd.f32 %v4608, %v4792
        %v4794 = vpop.f32.mrb[0].mxu0
        %4795 = vmatprep.mubr.f32.mxu0 0.0
        %v4796 = vand.u32 %v4202, 4294901760
        %v4797 = vsub.f32 %v4202, %v4796
        %4798 = vmatmul.mubr.f32.gmra.mrb[0].mxu0 %v4797
        %v4799 = vpop.f32.mrb[0].mxu0
        %v4800 = vadd.f32 %v4614, %v4799
        %v4801 = vpop.f32.mrb[0].mxu0
        %4802 = vmatprep.mubr.f32.mxu0 0.0
        %v4803 = vand.u32 %v4205, 4294901760
        %v4804 = vsub.f32 %v4205, %v4803
        %4805 = vmatmul.mubr.f32.gmra.mrb[0].mxu0 %v4804
        %v4806 = vpop.f32.mrb[0].mxu0
        %v4807 = vadd.f32 %v4620, %v4806
        %v4808 = vpop.f32.mrb[0].mxu0
        %4809 = vmatprep.mubr.f32.mxu0 0.0
        %v4810 = vand.u32 %v4208, 4294901760
        %v4811 = vsub.f32 %v4208, %v4810
        %4812 = vmatmul.mubr.f32.gmra.mrb[0].mxu0 %v4811
        %v4813 = vpop.f32.mrb[0].mxu0
        %v4814 = vadd.f32 %v4626, %v4813
        %v4815 = vpop.f32.mrb[0].mxu0
        %4816 = vmatprep.mubr.f32.mxu0 0.0
        %v4817 = vand.u32 %v4211, 4294901760
        %v4818 = vsub.f32 %v4211, %v4817
        %4819 = vmatmul.mubr.f32.gmra.mrb[0].mxu0 %v4818
        %v4820 = vpop.f32.mrb[0].mxu0
        %v4821 = vadd.f32 %v4632, %v4820
        %v4822 = vpop.f32.mrb[0].mxu0
        %4823 = vmatprep.mubr.f32.mxu0 0.0
        %v4824 = vand.u32 %v4214, 4294901760
        %v4825 = vsub.f32 %v4214, %v4824
        %4826 = vmatmul.mubr.f32.gmra.mrb[0].mxu0 %v4825
        %v4827 = vpop.f32.mrb[0].mxu0
        %v4828 = vadd.f32 %v4638, %v4827
        %v4829 = vpop.f32.mrb[0].mxu0
        %4830 = vmatprep.mubr.f32.mxu0 0.0
        %v4831 = vand.u32 %v4217, 4294901760
        %v4832 = vsub.f32 %v4217, %v4831
        %4833 = vmatmul.mubr.f32.gmra.mrb[0].mxu0 %v4832
        %v4834 = vpop.f32.mrb[0].mxu0
        %v4835 = vadd.f32 %v4644, %v4834
        %v4836 = vpop.f32.mrb[0].mxu0
        %4837 = vmatprep.mubr.f32.mxu0 0.0
        %v4838 = vand.u32 %v4220, 4294901760
        %v4839 = vsub.f32 %v4220, %v4838
        %4840 = vmatmul.mubr.f32.gmra.mrb[0].mxu0 %v4839
        %v4841 = vpop.f32.mrb[0].mxu0
        %v4842 = vadd.f32 %v4650, %v4841
        %v4843 = vpop.f32.mrb[0].mxu0
        %4844 = vmatprep.mubr.f32.mxu0 0.0
        %v4845 = vand.u32 %v4223, 4294901760
        %v4846 = vsub.f32 %v4223, %v4845
        %4847 = vmatmul.mubr.f32.gmra.mrb[0].mxu0 %v4846
        %v4848 = vpop.f32.mrb[0].mxu0
        %v4849 = vadd.f32 %v4656, %v4848
        %v4850 = vpop.f32.mrb[0].mxu0
        %4851 = vdwg.mxu0
        %4852 = vmatprep.subr.mxu0 0.0
        %v4853 = vand.u32 %v4165, 4294901760
        %4854 = vmatpush1.msra.mxu0 %v4853
        %4855 = vmatprep.subr.mxu0 0.0
        %v4856 = vand.u32 %v4166, 4294901760
        %4857 = vmatpush1.msra.mxu0 %v4856
        %4858 = vmatprep.subr.mxu0 0.0
        %v4859 = vand.u32 %v4167, 4294901760
        %4860 = vmatpush1.msra.mxu0 %v4859
        %4861 = vmatprep.subr.mxu0 0.0
        %v4862 = vand.u32 %v4168, 4294901760
        %4863 = vmatpush1.msra.mxu0 %v4862
        %4864 = vmatprep.subr.mxu0 0.0
        %v4865 = vand.u32 %v4169, 4294901760
        %4866 = vmatpush1.msra.mxu0 %v4865
        %4867 = vmatprep.subr.mxu0 0.0
        %v4868 = vand.u32 %v4170, 4294901760
        %4869 = vmatpush1.msra.mxu0 %v4868
        %4870 = vmatprep.subr.mxu0 0.0
        %v4871 = vand.u32 %v4171, 4294901760
        %4872 = vmatpush1.msra.mxu0 %v4871
        %4873 = vmatprep.subr.mxu0 0.0
        %v4874 = vand.u32 %v4172, 4294901760
        %4875 = vmatpush1.msra.mxu0 %v4874
        %4876 = vmatprep.subr.mxu0 0.0
        %4877 = vmatpush1.msra.mxu0 0.0
        %4878 = vmatprep.subr.mxu0 0.0
        %4879 = vmatpush1.msra.mxu0 0.0
        %4880 = vmatprep.subr.mxu0 0.0
        %4881 = vmatpush1.msra.mxu0 0.0
        %4882 = vmatprep.subr.mxu0 0.0
        %4883 = vmatpush1.msra.mxu0 0.0
        %4884 = vmatprep.subr.mxu0 0.0
        %4885 = vmatpush1.msra.mxu0 0.0
        %4886 = vmatprep.subr.mxu0 0.0
        %4887 = vmatpush1.msra.mxu0 0.0
        %4888 = vmatprep.subr.mxu0 0.0
        %4889 = vmatpush1.msra.mxu0 0.0
        %4890 = vmatprep.subr.mxu0 0.0
        %4891 = vmatpush1.msra.mxu0 0.0
        %4892 = vmatprep.subr.mxu0 0.0
        %4893 = vmatpush1.msra.mxu0 0.0
        %4894 = vmatprep.subr.mxu0 0.0
        %4895 = vmatpush1.msra.mxu0 0.0
        %4896 = vmatprep.subr.mxu0 0.0
        %4897 = vmatpush1.msra.mxu0 0.0
        %4898 = vmatprep.subr.mxu0 0.0
        %4899 = vmatpush1.msra.mxu0 0.0
        %4900 = vmatprep.subr.mxu0 0.0
        %4901 = vmatpush1.msra.mxu0 0.0
        %4902 = vmatprep.subr.mxu0 0.0
        %4903 = vmatpush1.msra.mxu0 0.0
        %4904 = vmatprep.subr.mxu0 0.0
        %4905 = vmatpush1.msra.mxu0 0.0
        %4906 = vmatprep.subr.mxu0 0.0
        %4907 = vmatpush1.msra.mxu0 0.0
        %4908 = vmatprep.subr.mxu0 0.0
        %4909 = vmatpush1.msra.mxu0 0.0
        %4910 = vmatprep.subr.mxu0 0.0
        %4911 = vmatpush1.msra.mxu0 0.0
        %4912 = vmatprep.subr.mxu0 0.0
        %4913 = vmatpush1.msra.mxu0 0.0
        %4914 = vmatprep.subr.mxu0 0.0
        %4915 = vmatpush1.msra.mxu0 0.0
        %4916 = vmatprep.subr.mxu0 0.0
        %4917 = vmatpush1.msra.mxu0 0.0
        %4918 = vmatprep.subr.mxu0 0.0
        %4919 = vmatpush1.msra.mxu0 0.0
        %4920 = vmatprep.subr.mxu0 0.0
        %4921 = vmatpush1.msra.mxu0 0.0
        %4922 = vmatprep.subr.mxu0 0.0
        %4923 = vmatpush1.msra.mxu0 0.0
        %4924 = vmatprep.mubr.f32.mxu0 0.0
        %v4925 = vand.u32 %v4178, 4294901760
        %v4926 = vsub.f32 %v4178, %v4925
        %v4927 = vand.u32 %v4926, 4294901760
        %4928 = vmatmul.mubr.f32.gmra.mrb[0].mxu0 %v4927
        %v4929 = vpop.f32.mrb[0].mxu0
        %v4930 = vadd.f32 %v4744, %v4929
        %v4931 = vpop.f32.mrb[0].mxu0
        %4932 = vmatprep.mubr.f32.mxu0 0.0
        %v4933 = vand.u32 %v4181, 4294901760
        %v4934 = vsub.f32 %v4181, %v4933
        %v4935 = vand.u32 %v4934, 4294901760
        %4936 = vmatmul.mubr.f32.gmra.mrb[0].mxu0 %v4935
        %v4937 = vpop.f32.mrb[0].mxu0
        %v4938 = vadd.f32 %v4751, %v4937
        %v4939 = vpop.f32.mrb[0].mxu0
        %4940 = vmatprep.mubr.f32.mxu0 0.0
        %v4941 = vand.u32 %v4184, 4294901760
        %v4942 = vsub.f32 %v4184, %v4941
        %v4943 = vand.u32 %v4942, 4294901760
        %4944 = vmatmul.mubr.f32.gmra.mrb[0].mxu0 %v4943
        %v4945 = vpop.f32.mrb[0].mxu0
        %v4946 = vadd.f32 %v4758, %v4945
        %v4947 = vpop.f32.mrb[0].mxu0
        %4948 = vmatprep.mubr.f32.mxu0 0.0
        %v4949 = vand.u32 %v4187, 4294901760
        %v4950 = vsub.f32 %v4187, %v4949
        %v4951 = vand.u32 %v4950, 4294901760
        %4952 = vmatmul.mubr.f32.gmra.mrb[0].mxu0 %v4951
        %v4953 = vpop.f32.mrb[0].mxu0
        %v4954 = vadd.f32 %v4765, %v4953
        %v4955 = vpop.f32.mrb[0].mxu0
        %4956 = vmatprep.mubr.f32.mxu0 0.0
        %v4957 = vand.u32 %v4190, 4294901760
        %v4958 = vsub.f32 %v4190, %v4957
        %v4959 = vand.u32 %v4958, 4294901760
        %4960 = vmatmul.mubr.f32.gmra.mrb[0].mxu0 %v4959
        %v4961 = vpop.f32.mrb[0].mxu0
        %v4962 = vadd.f32 %v4772, %v4961
        %v4963 = vpop.f32.mrb[0].mxu0
        %4964 = vmatprep.mubr.f32.mxu0 0.0
        %v4965 = vand.u32 %v4193, 4294901760
        %v4966 = vsub.f32 %v4193, %v4965
        %v4967 = vand.u32 %v4966, 4294901760
        %4968 = vmatmul.mubr.f32.gmra.mrb[0].mxu0 %v4967
        %v4969 = vpop.f32.mrb[0].mxu0
        %v4970 = vadd.f32 %v4779, %v4969
        %v4971 = vpop.f32.mrb[0].mxu0
        %4972 = vmatprep.mubr.f32.mxu0 0.0
        %v4973 = vand.u32 %v4196, 4294901760
        %v4974 = vsub.f32 %v4196, %v4973
        %v4975 = vand.u32 %v4974, 4294901760
        %4976 = vmatmul.mubr.f32.gmra.mrb[0].mxu0 %v4975
        %v4977 = vpop.f32.mrb[0].mxu0
        %v4978 = vadd.f32 %v4786, %v4977
        %v4979 = vpop.f32.mrb[0].mxu0
        %4980 = vmatprep.mubr.f32.mxu0 0.0
        %v4981 = vand.u32 %v4199, 4294901760
        %v4982 = vsub.f32 %v4199, %v4981
        %v4983 = vand.u32 %v4982, 4294901760
        %4984 = vmatmul.mubr.f32.gmra.mrb[0].mxu0 %v4983
        %v4985 = vpop.f32.mrb[0].mxu0
        %v4986 = vadd.f32 %v4793, %v4985
        %v4987 = vpop.f32.mrb[0].mxu0
        %4988 = vmatprep.mubr.f32.mxu0 0.0
        %v4989 = vand.u32 %v4202, 4294901760
        %v4990 = vsub.f32 %v4202, %v4989
        %v4991 = vand.u32 %v4990, 4294901760
        %4992 = vmatmul.mubr.f32.gmra.mrb[0].mxu0 %v4991
        %v4993 = vpop.f32.mrb[0].mxu0
        %v4994 = vadd.f32 %v4800, %v4993
        %v4995 = vpop.f32.mrb[0].mxu0
        %4996 = vmatprep.mubr.f32.mxu0 0.0
        %v4997 = vand.u32 %v4205, 4294901760
        %v4998 = vsub.f32 %v4205, %v4997
        %v4999 = vand.u32 %v4998, 4294901760
        %5000 = vmatmul.mubr.f32.gmra.mrb[0].mxu0 %v4999
        %v5001 = vpop.f32.mrb[0].mxu0
        %v5002 = vadd.f32 %v4807, %v5001
        %v5003 = vpop.f32.mrb[0].mxu0
        %5004 = vmatprep.mubr.f32.mxu0 0.0
        %v5005 = vand.u32 %v4208, 4294901760
        %v5006 = vsub.f32 %v4208, %v5005
        %v5007 = vand.u32 %v5006, 4294901760
        %5008 = vmatmul.mubr.f32.gmra.mrb[0].mxu0 %v5007
        %v5009 = vpop.f32.mrb[0].mxu0
        %v5010 = vadd.f32 %v4814, %v5009
        %v5011 = vpop.f32.mrb[0].mxu0
        %5012 = vmatprep.mubr.f32.mxu0 0.0
        %v5013 = vand.u32 %v4211, 4294901760
        %v5014 = vsub.f32 %v4211, %v5013
        %v5015 = vand.u32 %v5014, 4294901760
        %5016 = vmatmul.mubr.f32.gmra.mrb[0].mxu0 %v5015
        %v5017 = vpop.f32.mrb[0].mxu0
        %v5018 = vadd.f32 %v4821, %v5017
        %v5019 = vpop.f32.mrb[0].mxu0
        %5020 = vmatprep.mubr.f32.mxu0 0.0
        %v5021 = vand.u32 %v4214, 4294901760
        %v5022 = vsub.f32 %v4214, %v5021
        %v5023 = vand.u32 %v5022, 4294901760
        %5024 = vmatmul.mubr.f32.gmra.mrb[0].mxu0 %v5023
        %v5025 = vpop.f32.mrb[0].mxu0
        %v5026 = vadd.f32 %v4828, %v5025
        %v5027 = vpop.f32.mrb[0].mxu0
        %5028 = vmatprep.mubr.f32.mxu0 0.0
        %v5029 = vand.u32 %v4217, 4294901760
        %v5030 = vsub.f32 %v4217, %v5029
        %v5031 = vand.u32 %v5030, 4294901760
        %5032 = vmatmul.mubr.f32.gmra.mrb[0].mxu0 %v5031
        %v5033 = vpop.f32.mrb[0].mxu0
        %v5034 = vadd.f32 %v4835, %v5033
        %v5035 = vpop.f32.mrb[0].mxu0
        %5036 = vmatprep.mubr.f32.mxu0 0.0
        %v5037 = vand.u32 %v4220, 4294901760
        %v5038 = vsub.f32 %v4220, %v5037
        %v5039 = vand.u32 %v5038, 4294901760
        %5040 = vmatmul.mubr.f32.gmra.mrb[0].mxu0 %v5039
        %v5041 = vpop.f32.mrb[0].mxu0
        %v5042 = vadd.f32 %v4842, %v5041
        %v5043 = vpop.f32.mrb[0].mxu0
        %5044 = vmatprep.mubr.f32.mxu0 0.0
        %v5045 = vand.u32 %v4223, 4294901760
        %v5046 = vsub.f32 %v4223, %v5045
        %v5047 = vand.u32 %v5046, 4294901760
        %5048 = vmatmul.mubr.f32.gmra.mrb[0].mxu0 %v5047
        %v5049 = vpop.f32.mrb[0].mxu0
        %v5050 = vadd.f32 %v4849, %v5049
        %v5051 = vpop.f32.mrb[0].mxu0
        %5052 = vdwg.mxu0
        %5053 = vmatprep.subr.mxu0 0.0
        %v5054 = vand.u32 %v4165, 4294901760
        %v5055 = vsub.f32 %v4165, %v5054
        %v5056 = vand.u32 %v5055, 4294901760
        %5057 = vmatpush1.msra.mxu0 %v5056
        %5058 = vmatprep.subr.mxu0 0.0
        %v5059 = vand.u32 %v4166, 4294901760
        %v5060 = vsub.f32 %v4166, %v5059
        %v5061 = vand.u32 %v5060, 4294901760
        %5062 = vmatpush1.msra.mxu0 %v5061
        %5063 = vmatprep.subr.mxu0 0.0
        %v5064 = vand.u32 %v4167, 4294901760
        %v5065 = vsub.f32 %v4167, %v5064
        %v5066 = vand.u32 %v5065, 4294901760
        %5067 = vmatpush1.msra.mxu0 %v5066
        %5068 = vmatprep.subr.mxu0 0.0
        %v5069 = vand.u32 %v4168, 4294901760
        %v5070 = vsub.f32 %v4168, %v5069
        %v5071 = vand.u32 %v5070, 4294901760
        %5072 = vmatpush1.msra.mxu0 %v5071
        %5073 = vmatprep.subr.mxu0 0.0
        %v5074 = vand.u32 %v4169, 4294901760
        %v5075 = vsub.f32 %v4169, %v5074
        %v5076 = vand.u32 %v5075, 4294901760
        %5077 = vmatpush1.msra.mxu0 %v5076
        %5078 = vmatprep.subr.mxu0 0.0
        %v5079 = vand.u32 %v4170, 4294901760
        %v5080 = vsub.f32 %v4170, %v5079
        %v5081 = vand.u32 %v5080, 4294901760
        %5082 = vmatpush1.msra.mxu0 %v5081
        %5083 = vmatprep.subr.mxu0 0.0
        %v5084 = vand.u32 %v4171, 4294901760
        %v5085 = vsub.f32 %v4171, %v5084
        %v5086 = vand.u32 %v5085, 4294901760
        %5087 = vmatpush1.msra.mxu0 %v5086
        %5088 = vmatprep.subr.mxu0 0.0
        %v5089 = vand.u32 %v4172, 4294901760
        %v5090 = vsub.f32 %v4172, %v5089
        %v5091 = vand.u32 %v5090, 4294901760
        %5092 = vmatpush1.msra.mxu0 %v5091
        %5093 = vmatprep.subr.mxu0 0.0
        %5094 = vmatpush1.msra.mxu0 0.0
        %5095 = vmatprep.subr.mxu0 0.0
        %5096 = vmatpush1.msra.mxu0 0.0
        %5097 = vmatprep.subr.mxu0 0.0
        %5098 = vmatpush1.msra.mxu0 0.0
        %5099 = vmatprep.subr.mxu0 0.0
        %5100 = vmatpush1.msra.mxu0 0.0
        %5101 = vmatprep.subr.mxu0 0.0
        %5102 = vmatpush1.msra.mxu0 0.0
        %5103 = vmatprep.subr.mxu0 0.0
        %5104 = vmatpush1.msra.mxu0 0.0
        %5105 = vmatprep.subr.mxu0 0.0
        %5106 = vmatpush1.msra.mxu0 0.0
        %5107 = vmatprep.subr.mxu0 0.0
        %5108 = vmatpush1.msra.mxu0 0.0
        %5109 = vmatprep.subr.mxu0 0.0
        %5110 = vmatpush1.msra.mxu0 0.0
        %5111 = vmatprep.subr.mxu0 0.0
        %5112 = vmatpush1.msra.mxu0 0.0
        %5113 = vmatprep.subr.mxu0 0.0
        %5114 = vmatpush1.msra.mxu0 0.0
        %5115 = vmatprep.subr.mxu0 0.0
        %5116 = vmatpush1.msra.mxu0 0.0
        %5117 = vmatprep.subr.mxu0 0.0
        %5118 = vmatpush1.msra.mxu0 0.0
        %5119 = vmatprep.subr.mxu0 0.0
        %5120 = vmatpush1.msra.mxu0 0.0
        %5121 = vmatprep.subr.mxu0 0.0
        %5122 = vmatpush1.msra.mxu0 0.0
        %5123 = vmatprep.subr.mxu0 0.0
        %5124 = vmatpush1.msra.mxu0 0.0
        %5125 = vmatprep.subr.mxu0 0.0
        %5126 = vmatpush1.msra.mxu0 0.0
        %5127 = vmatprep.subr.mxu0 0.0
        %5128 = vmatpush1.msra.mxu0 0.0
        %5129 = vmatprep.subr.mxu0 0.0
        %5130 = vmatpush1.msra.mxu0 0.0
        %5131 = vmatprep.subr.mxu0 0.0
        %5132 = vmatpush1.msra.mxu0 0.0
        %5133 = vmatprep.subr.mxu0 0.0
        %5134 = vmatpush1.msra.mxu0 0.0
        %5135 = vmatprep.subr.mxu0 0.0
        %5136 = vmatpush1.msra.mxu0 0.0
        %5137 = vmatprep.subr.mxu0 0.0
        %5138 = vmatpush1.msra.mxu0 0.0
        %5139 = vmatprep.subr.mxu0 0.0
        %5140 = vmatpush1.msra.mxu0 0.0
        %5141 = vmatprep.mubr.f32.mxu0 0.0
        %v5142 = vand.u32 %v4178, 4294901760
        %5143 = vmatmul.mubr.f32.gmra.mrb[0].mxu0 %v5142
        %v5144 = vpop.f32.mrb[0].mxu0
        %v5145 = vadd.f32 %v4930, %v5144
        %v5146 = vpop.f32.mrb[0].mxu0
        %5147 = vmatprep.mubr.f32.mxu0 0.0
        %v5148 = vand.u32 %v4181, 4294901760
        %5149 = vmatmul.mubr.f32.gmra.mrb[0].mxu0 %v5148
        %v5150 = vpop.f32.mrb[0].mxu0
        %v5151 = vadd.f32 %v4938, %v5150
        %v5152 = vpop.f32.mrb[0].mxu0
        %5153 = vmatprep.mubr.f32.mxu0 0.0
        %v5154 = vand.u32 %v4184, 4294901760
        %5155 = vmatmul.mubr.f32.gmra.mrb[0].mxu0 %v5154
        %v5156 = vpop.f32.mrb[0].mxu0
        %v5157 = vadd.f32 %v4946, %v5156
        %v5158 = vpop.f32.mrb[0].mxu0
        %5159 = vmatprep.mubr.f32.mxu0 0.0
        %v5160 = vand.u32 %v4187, 4294901760
        %5161 = vmatmul.mubr.f32.gmra.mrb[0].mxu0 %v5160
        %v5162 = vpop.f32.mrb[0].mxu0
        %v5163 = vadd.f32 %v4954, %v5162
        %v5164 = vpop.f32.mrb[0].mxu0
        %5165 = vmatprep.mubr.f32.mxu0 0.0
        %v5166 = vand.u32 %v4190, 4294901760
        %5167 = vmatmul.mubr.f32.gmra.mrb[0].mxu0 %v5166
        %v5168 = vpop.f32.mrb[0].mxu0
        %v5169 = vadd.f32 %v4962, %v5168
        %v5170 = vpop.f32.mrb[0].mxu0
        %5171 = vmatprep.mubr.f32.mxu0 0.0
        %v5172 = vand.u32 %v4193, 4294901760
        %5173 = vmatmul.mubr.f32.gmra.mrb[0].mxu0 %v5172
        %v5174 = vpop.f32.mrb[0].mxu0
        %v5175 = vadd.f32 %v4970, %v5174
        %v5176 = vpop.f32.mrb[0].mxu0
        %5177 = vmatprep.mubr.f32.mxu0 0.0
        %v5178 = vand.u32 %v4196, 4294901760
        %5179 = vmatmul.mubr.f32.gmra.mrb[0].mxu0 %v5178
        %v5180 = vpop.f32.mrb[0].mxu0
        %v5181 = vadd.f32 %v4978, %v5180
        %v5182 = vpop.f32.mrb[0].mxu0
        %5183 = vmatprep.mubr.f32.mxu0 0.0
        %v5184 = vand.u32 %v4199, 4294901760
        %5185 = vmatmul.mubr.f32.gmra.mrb[0].mxu0 %v5184
        %v5186 = vpop.f32.mrb[0].mxu0
        %v5187 = vadd.f32 %v4986, %v5186
        %v5188 = vpop.f32.mrb[0].mxu0
        %5189 = vmatprep.mubr.f32.mxu0 0.0
        %v5190 = vand.u32 %v4202, 4294901760
        %5191 = vmatmul.mubr.f32.gmra.mrb[0].mxu0 %v5190
        %v5192 = vpop.f32.mrb[0].mxu0
        %v5193 = vadd.f32 %v4994, %v5192
        %v5194 = vpop.f32.mrb[0].mxu0
        %5195 = vmatprep.mubr.f32.mxu0 0.0
        %v5196 = vand.u32 %v4205, 4294901760
        %5197 = vmatmul.mubr.f32.gmra.mrb[0].mxu0 %v5196
        %v5198 = vpop.f32.mrb[0].mxu0
        %v5199 = vadd.f32 %v5002, %v5198
        %v5200 = vpop.f32.mrb[0].mxu0
        %5201 = vmatprep.mubr.f32.mxu0 0.0
        %v5202 = vand.u32 %v4208, 4294901760
        %5203 = vmatmul.mubr.f32.gmra.mrb[0].mxu0 %v5202
        %v5204 = vpop.f32.mrb[0].mxu0
        %v5205 = vadd.f32 %v5010, %v5204
        %v5206 = vpop.f32.mrb[0].mxu0
        %5207 = vmatprep.mubr.f32.mxu0 0.0
        %v5208 = vand.u32 %v4211, 4294901760
        %5209 = vmatmul.mubr.f32.gmra.mrb[0].mxu0 %v5208
        %v5210 = vpop.f32.mrb[0].mxu0
        %v5211 = vadd.f32 %v5018, %v5210
        %v5212 = vpop.f32.mrb[0].mxu0
        %5213 = vmatprep.mubr.f32.mxu0 0.0
        %v5214 = vand.u32 %v4214, 4294901760
        %5215 = vmatmul.mubr.f32.gmra.mrb[0].mxu0 %v5214
        %v5216 = vpop.f32.mrb[0].mxu0
        %v5217 = vadd.f32 %v5026, %v5216
        %v5218 = vpop.f32.mrb[0].mxu0
        %5219 = vmatprep.mubr.f32.mxu0 0.0
        %v5220 = vand.u32 %v4217, 4294901760
        %5221 = vmatmul.mubr.f32.gmra.mrb[0].mxu0 %v5220
        %v5222 = vpop.f32.mrb[0].mxu0
        %v5223 = vadd.f32 %v5034, %v5222
        %v5224 = vpop.f32.mrb[0].mxu0
        %5225 = vmatprep.mubr.f32.mxu0 0.0
        %v5226 = vand.u32 %v4220, 4294901760
        %5227 = vmatmul.mubr.f32.gmra.mrb[0].mxu0 %v5226
        %v5228 = vpop.f32.mrb[0].mxu0
        %v5229 = vadd.f32 %v5042, %v5228
        %v5230 = vpop.f32.mrb[0].mxu0
        %5231 = vmatprep.mubr.f32.mxu0 0.0
        %v5232 = vand.u32 %v4223, 4294901760
        %5233 = vmatmul.mubr.f32.gmra.mrb[0].mxu0 %v5232
        %v5234 = vpop.f32.mrb[0].mxu0
        %v5235 = vadd.f32 %v5050, %v5234
        %v5236 = vpop.f32.mrb[0].mxu0
        %5237 = vdwg.mxu0
        %5238 = vmatprep.subr.mxu0 0.0
        %v5239 = vand.u32 %v4165, 4294901760
        %5240 = vmatpush1.msra.mxu0 %v5239
        %5241 = vmatprep.subr.mxu0 0.0
        %v5242 = vand.u32 %v4166, 4294901760
        %5243 = vmatpush1.msra.mxu0 %v5242
        %5244 = vmatprep.subr.mxu0 0.0
        %v5245 = vand.u32 %v4167, 4294901760
        %5246 = vmatpush1.msra.mxu0 %v5245
        %5247 = vmatprep.subr.mxu0 0.0
        %v5248 = vand.u32 %v4168, 4294901760
        %5249 = vmatpush1.msra.mxu0 %v5248
        %5250 = vmatprep.subr.mxu0 0.0
        %v5251 = vand.u32 %v4169, 4294901760
        %5252 = vmatpush1.msra.mxu0 %v5251
        %5253 = vmatprep.subr.mxu0 0.0
        %v5254 = vand.u32 %v4170, 4294901760
        %5255 = vmatpush1.msra.mxu0 %v5254
        %5256 = vmatprep.subr.mxu0 0.0
        %v5257 = vand.u32 %v4171, 4294901760
        %5258 = vmatpush1.msra.mxu0 %v5257
        %5259 = vmatprep.subr.mxu0 0.0
        %v5260 = vand.u32 %v4172, 4294901760
        %5261 = vmatpush1.msra.mxu0 %v5260
        %5262 = vmatprep.subr.mxu0 0.0
        %5263 = vmatpush1.msra.mxu0 0.0
        %5264 = vmatprep.subr.mxu0 0.0
        %5265 = vmatpush1.msra.mxu0 0.0
        %5266 = vmatprep.subr.mxu0 0.0
        %5267 = vmatpush1.msra.mxu0 0.0
        %5268 = vmatprep.subr.mxu0 0.0
        %5269 = vmatpush1.msra.mxu0 0.0
        %5270 = vmatprep.subr.mxu0 0.0
        %5271 = vmatpush1.msra.mxu0 0.0
        %5272 = vmatprep.subr.mxu0 0.0
        %5273 = vmatpush1.msra.mxu0 0.0
        %5274 = vmatprep.subr.mxu0 0.0
        %5275 = vmatpush1.msra.mxu0 0.0
        %5276 = vmatprep.subr.mxu0 0.0
        %5277 = vmatpush1.msra.mxu0 0.0
        %5278 = vmatprep.subr.mxu0 0.0
        %5279 = vmatpush1.msra.mxu0 0.0
        %5280 = vmatprep.subr.mxu0 0.0
        %5281 = vmatpush1.msra.mxu0 0.0
        %5282 = vmatprep.subr.mxu0 0.0
        %5283 = vmatpush1.msra.mxu0 0.0
        %5284 = vmatprep.subr.mxu0 0.0
        %5285 = vmatpush1.msra.mxu0 0.0
        %5286 = vmatprep.subr.mxu0 0.0
        %5287 = vmatpush1.msra.mxu0 0.0
        %5288 = vmatprep.subr.mxu0 0.0
        %5289 = vmatpush1.msra.mxu0 0.0
        %5290 = vmatprep.subr.mxu0 0.0
        %5291 = vmatpush1.msra.mxu0 0.0
        %5292 = vmatprep.subr.mxu0 0.0
        %5293 = vmatpush1.msra.mxu0 0.0
        %5294 = vmatprep.subr.mxu0 0.0
        %5295 = vmatpush1.msra.mxu0 0.0
        %5296 = vmatprep.subr.mxu0 0.0
        %5297 = vmatpush1.msra.mxu0 0.0
        %5298 = vmatprep.subr.mxu0 0.0
        %5299 = vmatpush1.msra.mxu0 0.0
        %5300 = vmatprep.subr.mxu0 0.0
        %5301 = vmatpush1.msra.mxu0 0.0
        %5302 = vmatprep.subr.mxu0 0.0
        %5303 = vmatpush1.msra.mxu0 0.0
        %5304 = vmatprep.subr.mxu0 0.0
        %5305 = vmatpush1.msra.mxu0 0.0
        %5306 = vmatprep.subr.mxu0 0.0
        %5307 = vmatpush1.msra.mxu0 0.0
        %5308 = vmatprep.subr.mxu0 0.0
        %5309 = vmatpush1.msra.mxu0 0.0
        %5310 = vmatprep.mubr.f32.mxu0 0.0
        %v5311 = vand.u32 %v4178, 4294901760
        %5312 = vmatmul.mubr.f32.gmra.mrb[0].mxu0 %v5311
        %v5313 = vpop.f32.mrb[0].mxu0
        %v5314 = vadd.f32 %v5145, %v5313
        %v5315 = vpop.f32.mrb[0].mxu0
        %5316 = vmatprep.mubr.f32.mxu0 0.0
        %v5317 = vand.u32 %v4181, 4294901760
        %5318 = vmatmul.mubr.f32.gmra.mrb[0].mxu0 %v5317
        %v5319 = vpop.f32.mrb[0].mxu0
        %v5320 = vadd.f32 %v5151, %v5319
        %v5321 = vpop.f32.mrb[0].mxu0
        %5322 = vmatprep.mubr.f32.mxu0 0.0
        %v5323 = vand.u32 %v4184, 4294901760
        %5324 = vmatmul.mubr.f32.gmra.mrb[0].mxu0 %v5323
        %v5325 = vpop.f32.mrb[0].mxu0
        %v5326 = vadd.f32 %v5157, %v5325
        %v5327 = vpop.f32.mrb[0].mxu0
        %5328 = vmatprep.mubr.f32.mxu0 0.0
        %v5329 = vand.u32 %v4187, 4294901760
        %5330 = vmatmul.mubr.f32.gmra.mrb[0].mxu0 %v5329
        %v5331 = vpop.f32.mrb[0].mxu0
        %v5332 = vadd.f32 %v5163, %v5331
        %v5333 = vpop.f32.mrb[0].mxu0
        %5334 = vmatprep.mubr.f32.mxu0 0.0
        %v5335 = vand.u32 %v4190, 4294901760
        %5336 = vmatmul.mubr.f32.gmra.mrb[0].mxu0 %v5335
        %v5337 = vpop.f32.mrb[0].mxu0
        %v5338 = vadd.f32 %v5169, %v5337
        %v5339 = vpop.f32.mrb[0].mxu0
        %5340 = vmatprep.mubr.f32.mxu0 0.0
        %v5341 = vand.u32 %v4193, 4294901760
        %5342 = vmatmul.mubr.f32.gmra.mrb[0].mxu0 %v5341
        %v5343 = vpop.f32.mrb[0].mxu0
        %v5344 = vadd.f32 %v5175, %v5343
        %v5345 = vpop.f32.mrb[0].mxu0
        %5346 = vmatprep.mubr.f32.mxu0 0.0
        %v5347 = vand.u32 %v4196, 4294901760
        %5348 = vmatmul.mubr.f32.gmra.mrb[0].mxu0 %v5347
        %v5349 = vpop.f32.mrb[0].mxu0
        %v5350 = vadd.f32 %v5181, %v5349
        %v5351 = vpop.f32.mrb[0].mxu0
        %5352 = vmatprep.mubr.f32.mxu0 0.0
        %v5353 = vand.u32 %v4199, 4294901760
        %5354 = vmatmul.mubr.f32.gmra.mrb[0].mxu0 %v5353
        %v5355 = vpop.f32.mrb[0].mxu0
        %v5356 = vadd.f32 %v5187, %v5355
        %v5357 = vpop.f32.mrb[0].mxu0
        %5358 = vmatprep.mubr.f32.mxu0 0.0
        %v5359 = vand.u32 %v4202, 4294901760
        %5360 = vmatmul.mubr.f32.gmra.mrb[0].mxu0 %v5359
        %v5361 = vpop.f32.mrb[0].mxu0
        %v5362 = vadd.f32 %v5193, %v5361
        %v5363 = vpop.f32.mrb[0].mxu0
        %5364 = vmatprep.mubr.f32.mxu0 0.0
        %v5365 = vand.u32 %v4205, 4294901760
        %5366 = vmatmul.mubr.f32.gmra.mrb[0].mxu0 %v5365
        %v5367 = vpop.f32.mrb[0].mxu0
        %v5368 = vadd.f32 %v5199, %v5367
        %v5369 = vpop.f32.mrb[0].mxu0
        %5370 = vmatprep.mubr.f32.mxu0 0.0
        %v5371 = vand.u32 %v4208, 4294901760
        %5372 = vmatmul.mubr.f32.gmra.mrb[0].mxu0 %v5371
        %v5373 = vpop.f32.mrb[0].mxu0
        %v5374 = vadd.f32 %v5205, %v5373
        %v5375 = vpop.f32.mrb[0].mxu0
        %5376 = vmatprep.mubr.f32.mxu0 0.0
        %v5377 = vand.u32 %v4211, 4294901760
        %5378 = vmatmul.mubr.f32.gmra.mrb[0].mxu0 %v5377
        %v5379 = vpop.f32.mrb[0].mxu0
        %v5380 = vadd.f32 %v5211, %v5379
        %v5381 = vpop.f32.mrb[0].mxu0
        %5382 = vmatprep.mubr.f32.mxu0 0.0
        %v5383 = vand.u32 %v4214, 4294901760
        %5384 = vmatmul.mubr.f32.gmra.mrb[0].mxu0 %v5383
        %v5385 = vpop.f32.mrb[0].mxu0
        %v5386 = vadd.f32 %v5217, %v5385
        %v5387 = vpop.f32.mrb[0].mxu0
        %5388 = vmatprep.mubr.f32.mxu0 0.0
        %v5389 = vand.u32 %v4217, 4294901760
        %5390 = vmatmul.mubr.f32.gmra.mrb[0].mxu0 %v5389
        %v5391 = vpop.f32.mrb[0].mxu0
        %v5392 = vadd.f32 %v5223, %v5391
        %v5393 = vpop.f32.mrb[0].mxu0
        %5394 = vmatprep.mubr.f32.mxu0 0.0
        %v5395 = vand.u32 %v4220, 4294901760
        %5396 = vmatmul.mubr.f32.gmra.mrb[0].mxu0 %v5395
        %v5397 = vpop.f32.mrb[0].mxu0
        %v5398 = vadd.f32 %v5229, %v5397
        %v5399 = vpop.f32.mrb[0].mxu0
        %5400 = vmatprep.mubr.f32.mxu0 0.0
        %v5401 = vand.u32 %v4223, 4294901760
        %5402 = vmatmul.mubr.f32.gmra.mrb[0].mxu0 %v5401
        %v5403 = vpop.f32.mrb[0].mxu0
        %v5404 = vadd.f32 %v5235, %v5403
        %v5405 = vpop.f32.mrb[0].mxu0
        %5406 = vdwg.mxu0
        %v5407 = vsel %vm481, %v4149, %v453
        %v5408 = vsel %vm481, %v4150, %v454
        %v5409 = vsel %vm481, %v4151, %v455
        %v5410 = vsel %vm481, %v4152, %v456
        %v5411 = vsel %vm481, %v4153, %v457
        %v5412 = vsel %vm481, %v4154, %v458
        %v5413 = vsel %vm481, %v4155, %v459
        %v5414 = vsel %vm481, %v4156, %v460
        %v5415 = vsel %vm481, %v4157, %v461
        %v5416 = vsel %vm481, %v4158, %v462
        %v5417 = vsel %vm481, %v4159, %v463
        %v5418 = vsel %vm481, %v4160, %v464
        %v5419 = vsel %vm481, %v4161, %v465
        %v5420 = vsel %vm481, %v4162, %v466
        %v5421 = vsel %vm481, %v4163, %v467
        %v5422 = vsel %vm481, %v4164, %v468
        %v5423 = vld [vmem:[%s7] sm:$0xff]
        %v5424 = vld [vmem:[%s7 + $0x8] sm:$0xff]
        %v5425 = vld [vmem:[%s7 + $0x10] sm:$0xff]
        %v5426 = vld [vmem:[%s7 + $0x18] sm:$0xff]
        %v5427 = vld [vmem:[%s7 + $0x20] sm:$0xff]
        %v5428 = vld [vmem:[%s7 + $0x28] sm:$0xff]
        %v5429 = vld [vmem:[%s7 + $0x30] sm:$0xff]
        %v5430 = vld [vmem:[%s7 + $0x38] sm:$0xff]
        %v5431 = vld [vmem:[%s7 + $0x40] sm:$0xff]
        %v5432 = vld [vmem:[%s7 + $0x48] sm:$0xff]
        %v5433 = vld [vmem:[%s7 + $0x50] sm:$0xff]
        %v5434 = vld [vmem:[%s7 + $0x58] sm:$0xff]
        %v5435 = vld [vmem:[%s7 + $0x60] sm:$0xff]
        %v5436 = vld [vmem:[%s7 + $0x68] sm:$0xff]
        %v5437 = vld [vmem:[%s7 + $0x70] sm:$0xff]
        %v5438 = vld [vmem:[%s7 + $0x78] sm:$0xff]
        %v5439 = vld [vmem:[%s446] sm:$0xff]
        %v5440 = vld [vmem:[%s446 + $0x8] sm:$0xff]
        %v5441 = vld [vmem:[%s446 + $0x10] sm:$0xff]
        %v5442 = vld [vmem:[%s446 + $0x18] sm:$0xff]
        %v5443 = vld [vmem:[%s446 + $0x20] sm:$0xff]
        %v5444 = vld [vmem:[%s446 + $0x28] sm:$0xff]
        %v5445 = vld [vmem:[%s446 + $0x30] sm:$0xff]
        %v5446 = vld [vmem:[%s446 + $0x38] sm:$0xff]
        %v5447 = vld [vmem:[%s446 + $0x40] sm:$0xff]
        %v5448 = vld [vmem:[%s446 + $0x48] sm:$0xff]
        %v5449 = vld [vmem:[%s446 + $0x50] sm:$0xff]
        %v5450 = vld [vmem:[%s446 + $0x58] sm:$0xff]
        %v5451 = vld [vmem:[%s446 + $0x60] sm:$0xff]
        %v5452 = vld [vmem:[%s446 + $0x68] sm:$0xff]
        %v5453 = vld [vmem:[%s446 + $0x70] sm:$0xff]
        %v5454 = vld [vmem:[%s446 + $0x78] sm:$0xff]
        %v5455 = vlaneseq
        %v5456 = vand.u32 %v5455, 127
        %5457 = vset.pattern.permute.xlu0 0
        %5458 = vperm.xlu0 %5457, %v5439
        %v5459 = vpop.permute.xlu0 %5458
        %5460 = vset.pattern.permute.xlu0 0
        %5461 = vperm.xlu0 %5460, %v5440
        %v5462 = vpop.permute.xlu0 %5461
        %5463 = vset.pattern.permute.xlu0 0
        %5464 = vperm.xlu0 %5463, %v5441
        %v5465 = vpop.permute.xlu0 %5464
        %5466 = vset.pattern.permute.xlu0 0
        %5467 = vperm.xlu0 %5466, %v5442
        %v5468 = vpop.permute.xlu0 %5467
        %5469 = vset.pattern.permute.xlu0 0
        %5470 = vperm.xlu0 %5469, %v5443
        %v5471 = vpop.permute.xlu0 %5470
        %5472 = vset.pattern.permute.xlu0 0
        %5473 = vperm.xlu0 %5472, %v5444
        %v5474 = vpop.permute.xlu0 %5473
        %5475 = vset.pattern.permute.xlu0 0
        %5476 = vperm.xlu0 %5475, %v5445
        %v5477 = vpop.permute.xlu0 %5476
        %5478 = vset.pattern.permute.xlu0 0
        %5479 = vperm.xlu0 %5478, %v5446
        %v5480 = vpop.permute.xlu0 %5479
        %5481 = vset.pattern.permute.xlu0 0
        %5482 = vperm.xlu0 %5481, %v5447
        %v5483 = vpop.permute.xlu0 %5482
        %5484 = vset.pattern.permute.xlu0 0
        %5485 = vperm.xlu0 %5484, %v5448
        %v5486 = vpop.permute.xlu0 %5485
        %5487 = vset.pattern.permute.xlu0 0
        %5488 = vperm.xlu0 %5487, %v5449
        %v5489 = vpop.permute.xlu0 %5488
        %5490 = vset.pattern.permute.xlu0 0
        %5491 = vperm.xlu0 %5490, %v5450
        %v5492 = vpop.permute.xlu0 %5491
        %5493 = vset.pattern.permute.xlu0 0
        %5494 = vperm.xlu0 %5493, %v5451
        %v5495 = vpop.permute.xlu0 %5494
        %5496 = vset.pattern.permute.xlu0 0
        %5497 = vperm.xlu0 %5496, %v5452
        %v5498 = vpop.permute.xlu0 %5497
        %5499 = vset.pattern.permute.xlu0 0
        %5500 = vperm.xlu0 %5499, %v5453
        %v5501 = vpop.permute.xlu0 %5500
        %5502 = vset.pattern.permute.xlu0 0
        %5503 = vperm.xlu0 %5502, %v5454
        %v5504 = vpop.permute.xlu0 %5503
        %vm5505 = vcmp.eq.s32.totalorder %v5459, %v5456
        %vm5506 = vcmp.eq.s32.totalorder %v5462, %v5456
        %vm5507 = vcmp.eq.s32.totalorder %v5465, %v5456
        %vm5508 = vcmp.eq.s32.totalorder %v5468, %v5456
        %vm5509 = vcmp.eq.s32.totalorder %v5471, %v5456
        %vm5510 = vcmp.eq.s32.totalorder %v5474, %v5456
        %vm5511 = vcmp.eq.s32.totalorder %v5477, %v5456
        %vm5512 = vcmp.eq.s32.totalorder %v5480, %v5456
        %vm5513 = vcmp.eq.s32.totalorder %v5483, %v5456
        %vm5514 = vcmp.eq.s32.totalorder %v5486, %v5456
        %vm5515 = vcmp.eq.s32.totalorder %v5489, %v5456
        %vm5516 = vcmp.eq.s32.totalorder %v5492, %v5456
        %vm5517 = vcmp.eq.s32.totalorder %v5495, %v5456
        %vm5518 = vcmp.eq.s32.totalorder %v5498, %v5456
        %vm5519 = vcmp.eq.s32.totalorder %v5501, %v5456
        %vm5520 = vcmp.eq.s32.totalorder %v5504, %v5456
        %v5521 = vsel %vm5505, 1.0, 0.0
        %v5522 = vsel %vm5506, 1.0, 0.0
        %v5523 = vsel %vm5507, 1.0, 0.0
        %v5524 = vsel %vm5508, 1.0, 0.0
        %v5525 = vsel %vm5509, 1.0, 0.0
        %v5526 = vsel %vm5510, 1.0, 0.0
        %v5527 = vsel %vm5511, 1.0, 0.0
        %v5528 = vsel %vm5512, 1.0, 0.0
        %v5529 = vsel %vm5513, 1.0, 0.0
        %v5530 = vsel %vm5514, 1.0, 0.0
        %v5531 = vsel %vm5515, 1.0, 0.0
        %v5532 = vsel %vm5516, 1.0, 0.0
        %v5533 = vsel %vm5517, 1.0, 0.0
        %v5534 = vsel %vm5518, 1.0, 0.0
        %v5535 = vsel %vm5519, 1.0, 0.0
        %v5536 = vsel %vm5520, 1.0, 0.0
        %v5537 = vld [vmem:[%s8] sm:$0xff]
        %v5538 = vld [vmem:[%s8 + $0x8] sm:$0xff]
        %v5539 = vld [vmem:[%s8 + $0x10] sm:$0xff]
        %v5540 = vld [vmem:[%s8 + $0x18] sm:$0xff]
        %v5541 = vld [vmem:[%s8 + $0x20] sm:$0xff]
        %v5542 = vld [vmem:[%s8 + $0x28] sm:$0xff]
        %v5543 = vld [vmem:[%s8 + $0x30] sm:$0xff]
        %v5544 = vld [vmem:[%s8 + $0x38] sm:$0xff]
        %v5545 = vld [vmem:[%s8 + $0x40] sm:$0xff]
        %v5546 = vld [vmem:[%s8 + $0x48] sm:$0xff]
        %v5547 = vld [vmem:[%s8 + $0x50] sm:$0xff]
        %v5548 = vld [vmem:[%s8 + $0x58] sm:$0xff]
        %v5549 = vld [vmem:[%s8 + $0x60] sm:$0xff]
        %v5550 = vld [vmem:[%s8 + $0x68] sm:$0xff]
        %v5551 = vld [vmem:[%s8 + $0x70] sm:$0xff]
        %v5552 = vld [vmem:[%s8 + $0x78] sm:$0xff]
        %5553 = vmatprep.subr.mxu0 0.0
        %v5554 = vand.u32 %v5537, 4294901760
        %5555 = vmatpush1.msra.mxu0 %v5554
        %5556 = vmatprep.subr.mxu0 0.0
        %v5557 = vand.u32 %v5538, 4294901760
        %5558 = vmatpush1.msra.mxu0 %v5557
        %5559 = vmatprep.subr.mxu0 0.0
        %v5560 = vand.u32 %v5539, 4294901760
        %5561 = vmatpush1.msra.mxu0 %v5560
        %5562 = vmatprep.subr.mxu0 0.0
        %v5563 = vand.u32 %v5540, 4294901760
        %5564 = vmatpush1.msra.mxu0 %v5563
        %5565 = vmatprep.subr.mxu0 0.0
        %v5566 = vand.u32 %v5541, 4294901760
        %5567 = vmatpush1.msra.mxu0 %v5566
        %5568 = vmatprep.subr.mxu0 0.0
        %v5569 = vand.u32 %v5542, 4294901760
        %5570 = vmatpush1.msra.mxu0 %v5569
        %5571 = vmatprep.subr.mxu0 0.0
        %v5572 = vand.u32 %v5543, 4294901760
        %5573 = vmatpush1.msra.mxu0 %v5572
        %5574 = vmatprep.subr.mxu0 0.0
        %v5575 = vand.u32 %v5544, 4294901760
        %5576 = vmatpush1.msra.mxu0 %v5575
        %5577 = vmatprep.subr.mxu0 0.0
        %v5578 = vand.u32 %v5545, 4294901760
        %5579 = vmatpush1.msra.mxu0 %v5578
        %5580 = vmatprep.subr.mxu0 0.0
        %v5581 = vand.u32 %v5546, 4294901760
        %5582 = vmatpush1.msra.mxu0 %v5581
        %5583 = vmatprep.subr.mxu0 0.0
        %v5584 = vand.u32 %v5547, 4294901760
        %5585 = vmatpush1.msra.mxu0 %v5584
        %5586 = vmatprep.subr.mxu0 0.0
        %v5587 = vand.u32 %v5548, 4294901760
        %5588 = vmatpush1.msra.mxu0 %v5587
        %5589 = vmatprep.subr.mxu0 0.0
        %v5590 = vand.u32 %v5549, 4294901760
        %5591 = vmatpush1.msra.mxu0 %v5590
        %5592 = vmatprep.subr.mxu0 0.0
        %v5593 = vand.u32 %v5550, 4294901760
        %5594 = vmatpush1.msra.mxu0 %v5593
        %5595 = vmatprep.subr.mxu0 0.0
        %v5596 = vand.u32 %v5551, 4294901760
        %5597 = vmatpush1.msra.mxu0 %v5596
        %5598 = vmatprep.subr.mxu0 0.0
        %v5599 = vand.u32 %v5552, 4294901760
        %5600 = vmatpush1.msra.mxu0 %v5599
        %5601 = vmatprep.subr.mxu0 0.0
        %5602 = vmatpush1.msra.mxu0 0.0
        %5603 = vmatprep.subr.mxu0 0.0
        %5604 = vmatpush1.msra.mxu0 0.0
        %5605 = vmatprep.subr.mxu0 0.0
        %5606 = vmatpush1.msra.mxu0 0.0
        %5607 = vmatprep.subr.mxu0 0.0
        %5608 = vmatpush1.msra.mxu0 0.0
        %5609 = vmatprep.subr.mxu0 0.0
        %5610 = vmatpush1.msra.mxu0 0.0
        %5611 = vmatprep.subr.mxu0 0.0
        %5612 = vmatpush1.msra.mxu0 0.0
        %5613 = vmatprep.subr.mxu0 0.0
        %5614 = vmatpush1.msra.mxu0 0.0
        %5615 = vmatprep.subr.mxu0 0.0
        %5616 = vmatpush1.msra.mxu0 0.0
        %5617 = vmatprep.subr.mxu0 0.0
        %5618 = vmatpush1.msra.mxu0 0.0
        %5619 = vmatprep.subr.mxu0 0.0
        %5620 = vmatpush1.msra.mxu0 0.0
        %5621 = vmatprep.subr.mxu0 0.0
        %5622 = vmatpush1.msra.mxu0 0.0
        %5623 = vmatprep.subr.mxu0 0.0
        %5624 = vmatpush1.msra.mxu0 0.0
        %5625 = vmatprep.subr.mxu0 0.0
        %5626 = vmatpush1.msra.mxu0 0.0
        %5627 = vmatprep.subr.mxu0 0.0
        %5628 = vmatpush1.msra.mxu0 0.0
        %5629 = vmatprep.subr.mxu0 0.0
        %5630 = vmatpush1.msra.mxu0 0.0
        %5631 = vmatprep.subr.mxu0 0.0
        %5632 = vmatpush1.msra.mxu0 0.0
        %5633 = vmatprep.mubr.f32.mxu0 0.0
        %v5634 = vsub.f32 %v5521, %v5521
        %v5635 = vand.u32 %v5634, 4294901760
        %v5636 = vsub.f32 %v5634, %v5635
        %v5637 = vand.u32 %v5636, 4294901760
        %5638 = vmatmul.mubr.f32.gmra.mrb[0].mxu0 %v5637
        %v5639 = vpop.f32.mrb[0].mxu0
        %v5640 = vadd.f32 0.0, %v5639
        %v5641 = vpop.f32.mrb[0].mxu0
        %5642 = vmatprep.mubr.f32.mxu0 0.0
        %v5643 = vsub.f32 %v5522, %v5522
        %v5644 = vand.u32 %v5643, 4294901760
        %v5645 = vsub.f32 %v5643, %v5644
        %v5646 = vand.u32 %v5645, 4294901760
        %5647 = vmatmul.mubr.f32.gmra.mrb[0].mxu0 %v5646
        %v5648 = vpop.f32.mrb[0].mxu0
        %v5649 = vadd.f32 0.0, %v5648
        %v5650 = vpop.f32.mrb[0].mxu0
        %5651 = vmatprep.mubr.f32.mxu0 0.0
        %v5652 = vsub.f32 %v5523, %v5523
        %v5653 = vand.u32 %v5652, 4294901760
        %v5654 = vsub.f32 %v5652, %v5653
        %v5655 = vand.u32 %v5654, 4294901760
        %5656 = vmatmul.mubr.f32.gmra.mrb[0].mxu0 %v5655
        %v5657 = vpop.f32.mrb[0].mxu0
        %v5658 = vadd.f32 0.0, %v5657
        %v5659 = vpop.f32.mrb[0].mxu0
        %5660 = vmatprep.mubr.f32.mxu0 0.0
        %v5661 = vsub.f32 %v5524, %v5524
        %v5662 = vand.u32 %v5661, 4294901760
        %v5663 = vsub.f32 %v5661, %v5662
        %v5664 = vand.u32 %v5663, 4294901760
        %5665 = vmatmul.mubr.f32.gmra.mrb[0].mxu0 %v5664
        %v5666 = vpop.f32.mrb[0].mxu0
        %v5667 = vadd.f32 0.0, %v5666
        %v5668 = vpop.f32.mrb[0].mxu0
        %5669 = vmatprep.mubr.f32.mxu0 0.0
        %v5670 = vsub.f32 %v5525, %v5525
        %v5671 = vand.u32 %v5670, 4294901760
        %v5672 = vsub.f32 %v5670, %v5671
        %v5673 = vand.u32 %v5672, 4294901760
        %5674 = vmatmul.mubr.f32.gmra.mrb[0].mxu0 %v5673
        %v5675 = vpop.f32.mrb[0].mxu0
        %v5676 = vadd.f32 0.0, %v5675
        %v5677 = vpop.f32.mrb[0].mxu0
        %5678 = vmatprep.mubr.f32.mxu0 0.0
        %v5679 = vsub.f32 %v5526, %v5526
        %v5680 = vand.u32 %v5679, 4294901760
        %v5681 = vsub.f32 %v5679, %v5680
        %v5682 = vand.u32 %v5681, 4294901760
        %5683 = vmatmul.mubr.f32.gmra.mrb[0].mxu0 %v5682
        %v5684 = vpop.f32.mrb[0].mxu0
        %v5685 = vadd.f32 0.0, %v5684
        %v5686 = vpop.f32.mrb[0].mxu0
        %5687 = vmatprep.mubr.f32.mxu0 0.0
        %v5688 = vsub.f32 %v5527, %v5527
        %v5689 = vand.u32 %v5688, 4294901760
        %v5690 = vsub.f32 %v5688, %v5689
        %v5691 = vand.u32 %v5690, 4294901760
        %5692 = vmatmul.mubr.f32.gmra.mrb[0].mxu0 %v5691
        %v5693 = vpop.f32.mrb[0].mxu0
        %v5694 = vadd.f32 0.0, %v5693
        %v5695 = vpop.f32.mrb[0].mxu0
        %5696 = vmatprep.mubr.f32.mxu0 0.0
        %v5697 = vsub.f32 %v5528, %v5528
        %v5698 = vand.u32 %v5697, 4294901760
        %v5699 = vsub.f32 %v5697, %v5698
        %v5700 = vand.u32 %v5699, 4294901760
        %5701 = vmatmul.mubr.f32.gmra.mrb[0].mxu0 %v5700
        %v5702 = vpop.f32.mrb[0].mxu0
        %v5703 = vadd.f32 0.0, %v5702
        %v5704 = vpop.f32.mrb[0].mxu0
        %5705 = vmatprep.mubr.f32.mxu0 0.0
        %v5706 = vsub.f32 %v5529, %v5529
        %v5707 = vand.u32 %v5706, 4294901760
        %v5708 = vsub.f32 %v5706, %v5707
        %v5709 = vand.u32 %v5708, 4294901760
        %5710 = vmatmul.mubr.f32.gmra.mrb[0].mxu0 %v5709
        %v5711 = vpop.f32.mrb[0].mxu0
        %v5712 = vadd.f32 0.0, %v5711
        %v5713 = vpop.f32.mrb[0].mxu0
        %5714 = vmatprep.mubr.f32.mxu0 0.0
        %v5715 = vsub.f32 %v5530, %v5530
        %v5716 = vand.u32 %v5715, 4294901760
        %v5717 = vsub.f32 %v5715, %v5716
        %v5718 = vand.u32 %v5717, 4294901760
        %5719 = vmatmul.mubr.f32.gmra.mrb[0].mxu0 %v5718
        %v5720 = vpop.f32.mrb[0].mxu0
        %v5721 = vadd.f32 0.0, %v5720
        %v5722 = vpop.f32.mrb[0].mxu0
        %5723 = vmatprep.mubr.f32.mxu0 0.0
        %v5724 = vsub.f32 %v5531, %v5531
        %v5725 = vand.u32 %v5724, 4294901760
        %v5726 = vsub.f32 %v5724, %v5725
        %v5727 = vand.u32 %v5726, 4294901760
        %5728 = vmatmul.mubr.f32.gmra.mrb[0].mxu0 %v5727
        %v5729 = vpop.f32.mrb[0].mxu0
        %v5730 = vadd.f32 0.0, %v5729
        %v5731 = vpop.f32.mrb[0].mxu0
        %5732 = vmatprep.mubr.f32.mxu0 0.0
        %v5733 = vsub.f32 %v5532, %v5532
        %v5734 = vand.u32 %v5733, 4294901760
        %v5735 = vsub.f32 %v5733, %v5734
        %v5736 = vand.u32 %v5735, 4294901760
        %5737 = vmatmul.mubr.f32.gmra.mrb[0].mxu0 %v5736
        %v5738 = vpop.f32.mrb[0].mxu0
        %v5739 = vadd.f32 0.0, %v5738
        %v5740 = vpop.f32.mrb[0].mxu0
        %5741 = vmatprep.mubr.f32.mxu0 0.0
        %v5742 = vsub.f32 %v5533, %v5533
        %v5743 = vand.u32 %v5742, 4294901760
        %v5744 = vsub.f32 %v5742, %v5743
        %v5745 = vand.u32 %v5744, 4294901760
        %5746 = vmatmul.mubr.f32.gmra.mrb[0].mxu0 %v5745
        %v5747 = vpop.f32.mrb[0].mxu0
        %v5748 = vadd.f32 0.0, %v5747
        %v5749 = vpop.f32.mrb[0].mxu0
        %5750 = vmatprep.mubr.f32.mxu0 0.0
        %v5751 = vsub.f32 %v5534, %v5534
        %v5752 = vand.u32 %v5751, 4294901760
        %v5753 = vsub.f32 %v5751, %v5752
        %v5754 = vand.u32 %v5753, 4294901760
        %5755 = vmatmul.mubr.f32.gmra.mrb[0].mxu0 %v5754
        %v5756 = vpop.f32.mrb[0].mxu0
        %v5757 = vadd.f32 0.0, %v5756
        %v5758 = vpop.f32.mrb[0].mxu0
        %5759 = vmatprep.mubr.f32.mxu0 0.0
        %v5760 = vsub.f32 %v5535, %v5535
        %v5761 = vand.u32 %v5760, 4294901760
        %v5762 = vsub.f32 %v5760, %v5761
        %v5763 = vand.u32 %v5762, 4294901760
        %5764 = vmatmul.mubr.f32.gmra.mrb[0].mxu0 %v5763
        %v5765 = vpop.f32.mrb[0].mxu0
        %v5766 = vadd.f32 0.0, %v5765
        %v5767 = vpop.f32.mrb[0].mxu0
        %5768 = vmatprep.mubr.f32.mxu0 0.0
        %v5769 = vsub.f32 %v5536, %v5536
        %v5770 = vand.u32 %v5769, 4294901760
        %v5771 = vsub.f32 %v5769, %v5770
        %v5772 = vand.u32 %v5771, 4294901760
        %5773 = vmatmul.mubr.f32.gmra.mrb[0].mxu0 %v5772
        %v5774 = vpop.f32.mrb[0].mxu0
        %v5775 = vadd.f32 0.0, %v5774
        %v5776 = vpop.f32.mrb[0].mxu0
        %5777 = vdwg.mxu0
        %5778 = vmatprep.subr.mxu0 0.0
        %v5779 = vand.u32 %v5537, 4294901760
        %v5780 = vsub.f32 %v5537, %v5779
        %v5781 = vand.u32 %v5780, 4294901760
        %v5782 = vsub.f32 %v5780, %v5781
        %v5783 = vand.u32 %v5782, 4294901760
        %5784 = vmatpush1.msra.mxu0 %v5783
        %5785 = vmatprep.subr.mxu0 0.0
        %v5786 = vand.u32 %v5538, 4294901760
        %v5787 = vsub.f32 %v5538, %v5786
        %v5788 = vand.u32 %v5787, 4294901760
        %v5789 = vsub.f32 %v5787, %v5788
        %v5790 = vand.u32 %v5789, 4294901760
        %5791 = vmatpush1.msra.mxu0 %v5790
        %5792 = vmatprep.subr.mxu0 0.0
        %v5793 = vand.u32 %v5539, 4294901760
        %v5794 = vsub.f32 %v5539, %v5793
        %v5795 = vand.u32 %v5794, 4294901760
        %v5796 = vsub.f32 %v5794, %v5795
        %v5797 = vand.u32 %v5796, 4294901760
        %5798 = vmatpush1.msra.mxu0 %v5797
        %5799 = vmatprep.subr.mxu0 0.0
        %v5800 = vand.u32 %v5540, 4294901760
        %v5801 = vsub.f32 %v5540, %v5800
        %v5802 = vand.u32 %v5801, 4294901760
        %v5803 = vsub.f32 %v5801, %v5802
        %v5804 = vand.u32 %v5803, 4294901760
        %5805 = vmatpush1.msra.mxu0 %v5804
        %5806 = vmatprep.subr.mxu0 0.0
        %v5807 = vand.u32 %v5541, 4294901760
        %v5808 = vsub.f32 %v5541, %v5807
        %v5809 = vand.u32 %v5808, 4294901760
        %v5810 = vsub.f32 %v5808, %v5809
        %v5811 = vand.u32 %v5810, 4294901760
        %5812 = vmatpush1.msra.mxu0 %v5811
        %5813 = vmatprep.subr.mxu0 0.0
        %v5814 = vand.u32 %v5542, 4294901760
        %v5815 = vsub.f32 %v5542, %v5814
        %v5816 = vand.u32 %v5815, 4294901760
        %v5817 = vsub.f32 %v5815, %v5816
        %v5818 = vand.u32 %v5817, 4294901760
        %5819 = vmatpush1.msra.mxu0 %v5818
        %5820 = vmatprep.subr.mxu0 0.0
        %v5821 = vand.u32 %v5543, 4294901760
        %v5822 = vsub.f32 %v5543, %v5821
        %v5823 = vand.u32 %v5822, 4294901760
        %v5824 = vsub.f32 %v5822, %v5823
        %v5825 = vand.u32 %v5824, 4294901760
        %5826 = vmatpush1.msra.mxu0 %v5825
        %5827 = vmatprep.subr.mxu0 0.0
        %v5828 = vand.u32 %v5544, 4294901760
        %v5829 = vsub.f32 %v5544, %v5828
        %v5830 = vand.u32 %v5829, 4294901760
        %v5831 = vsub.f32 %v5829, %v5830
        %v5832 = vand.u32 %v5831, 4294901760
        %5833 = vmatpush1.msra.mxu0 %v5832
        %5834 = vmatprep.subr.mxu0 0.0
        %v5835 = vand.u32 %v5545, 4294901760
        %v5836 = vsub.f32 %v5545, %v5835
        %v5837 = vand.u32 %v5836, 4294901760
        %v5838 = vsub.f32 %v5836, %v5837
        %v5839 = vand.u32 %v5838, 4294901760
        %5840 = vmatpush1.msra.mxu0 %v5839
        %5841 = vmatprep.subr.mxu0 0.0
        %v5842 = vand.u32 %v5546, 4294901760
        %v5843 = vsub.f32 %v5546, %v5842
        %v5844 = vand.u32 %v5843, 4294901760
        %v5845 = vsub.f32 %v5843, %v5844
        %v5846 = vand.u32 %v5845, 4294901760
        %5847 = vmatpush1.msra.mxu0 %v5846
        %5848 = vmatprep.subr.mxu0 0.0
        %v5849 = vand.u32 %v5547, 4294901760
        %v5850 = vsub.f32 %v5547, %v5849
        %v5851 = vand.u32 %v5850, 4294901760
        %v5852 = vsub.f32 %v5850, %v5851
        %v5853 = vand.u32 %v5852, 4294901760
        %5854 = vmatpush1.msra.mxu0 %v5853
        %5855 = vmatprep.subr.mxu0 0.0
        %v5856 = vand.u32 %v5548, 4294901760
        %v5857 = vsub.f32 %v5548, %v5856
        %v5858 = vand.u32 %v5857, 4294901760
        %v5859 = vsub.f32 %v5857, %v5858
        %v5860 = vand.u32 %v5859, 4294901760
        %5861 = vmatpush1.msra.mxu0 %v5860
        %5862 = vmatprep.subr.mxu0 0.0
        %v5863 = vand.u32 %v5549, 4294901760
        %v5864 = vsub.f32 %v5549, %v5863
        %v5865 = vand.u32 %v5864, 4294901760
        %v5866 = vsub.f32 %v5864, %v5865
        %v5867 = vand.u32 %v5866, 4294901760
        %5868 = vmatpush1.msra.mxu0 %v5867
        %5869 = vmatprep.subr.mxu0 0.0
        %v5870 = vand.u32 %v5550, 4294901760
        %v5871 = vsub.f32 %v5550, %v5870
        %v5872 = vand.u32 %v5871, 4294901760
        %v5873 = vsub.f32 %v5871, %v5872
        %v5874 = vand.u32 %v5873, 4294901760
        %5875 = vmatpush1.msra.mxu0 %v5874
        %5876 = vmatprep.subr.mxu0 0.0
        %v5877 = vand.u32 %v5551, 4294901760
        %v5878 = vsub.f32 %v5551, %v5877
        %v5879 = vand.u32 %v5878, 4294901760
        %v5880 = vsub.f32 %v5878, %v5879
        %v5881 = vand.u32 %v5880, 4294901760
        %5882 = vmatpush1.msra.mxu0 %v5881
        %5883 = vmatprep.subr.mxu0 0.0
        %v5884 = vand.u32 %v5552, 4294901760
        %v5885 = vsub.f32 %v5552, %v5884
        %v5886 = vand.u32 %v5885, 4294901760
        %v5887 = vsub.f32 %v5885, %v5886
        %v5888 = vand.u32 %v5887, 4294901760
        %5889 = vmatpush1.msra.mxu0 %v5888
        %5890 = vmatprep.subr.mxu0 0.0
        %5891 = vmatpush1.msra.mxu0 0.0
        %5892 = vmatprep.subr.mxu0 0.0
        %5893 = vmatpush1.msra.mxu0 0.0
        %5894 = vmatprep.subr.mxu0 0.0
        %5895 = vmatpush1.msra.mxu0 0.0
        %5896 = vmatprep.subr.mxu0 0.0
        %5897 = vmatpush1.msra.mxu0 0.0
        %5898 = vmatprep.subr.mxu0 0.0
        %5899 = vmatpush1.msra.mxu0 0.0
        %5900 = vmatprep.subr.mxu0 0.0
        %5901 = vmatpush1.msra.mxu0 0.0
        %5902 = vmatprep.subr.mxu0 0.0
        %5903 = vmatpush1.msra.mxu0 0.0
        %5904 = vmatprep.subr.mxu0 0.0
        %5905 = vmatpush1.msra.mxu0 0.0
        %5906 = vmatprep.subr.mxu0 0.0
        %5907 = vmatpush1.msra.mxu0 0.0
        %5908 = vmatprep.subr.mxu0 0.0
        %5909 = vmatpush1.msra.mxu0 0.0
        %5910 = vmatprep.subr.mxu0 0.0
        %5911 = vmatpush1.msra.mxu0 0.0
        %5912 = vmatprep.subr.mxu0 0.0
        %5913 = vmatpush1.msra.mxu0 0.0
        %5914 = vmatprep.subr.mxu0 0.0
        %5915 = vmatpush1.msra.mxu0 0.0
        %5916 = vmatprep.subr.mxu0 0.0
        %5917 = vmatpush1.msra.mxu0 0.0
        %5918 = vmatprep.subr.mxu0 0.0
        %5919 = vmatpush1.msra.mxu0 0.0
        %5920 = vmatprep.subr.mxu0 0.0
        %5921 = vmatpush1.msra.mxu0 0.0
        %5922 = vmatprep.mubr.f32.mxu0 0.0
        %5923 = vmatmul.mubr.f32.gmra.mrb[0].mxu0 %v5521
        %v5924 = vpop.f32.mrb[0].mxu0
        %v5925 = vadd.f32 %v5640, %v5924
        %v5926 = vpop.f32.mrb[0].mxu0
        %5927 = vmatprep.mubr.f32.mxu0 0.0
        %5928 = vmatmul.mubr.f32.gmra.mrb[0].mxu0 %v5522
        %v5929 = vpop.f32.mrb[0].mxu0
        %v5930 = vadd.f32 %v5649, %v5929
        %v5931 = vpop.f32.mrb[0].mxu0
        %5932 = vmatprep.mubr.f32.mxu0 0.0
        %5933 = vmatmul.mubr.f32.gmra.mrb[0].mxu0 %v5523
        %v5934 = vpop.f32.mrb[0].mxu0
        %v5935 = vadd.f32 %v5658, %v5934
        %v5936 = vpop.f32.mrb[0].mxu0
        %5937 = vmatprep.mubr.f32.mxu0 0.0
        %5938 = vmatmul.mubr.f32.gmra.mrb[0].mxu0 %v5524
        %v5939 = vpop.f32.mrb[0].mxu0
        %v5940 = vadd.f32 %v5667, %v5939
        %v5941 = vpop.f32.mrb[0].mxu0
        %5942 = vmatprep.mubr.f32.mxu0 0.0
        %5943 = vmatmul.mubr.f32.gmra.mrb[0].mxu0 %v5525
        %v5944 = vpop.f32.mrb[0].mxu0
        %v5945 = vadd.f32 %v5676, %v5944
        %v5946 = vpop.f32.mrb[0].mxu0
        %5947 = vmatprep.mubr.f32.mxu0 0.0
        %5948 = vmatmul.mubr.f32.gmra.mrb[0].mxu0 %v5526
        %v5949 = vpop.f32.mrb[0].mxu0
        %v5950 = vadd.f32 %v5685, %v5949
        %v5951 = vpop.f32.mrb[0].mxu0
        %5952 = vmatprep.mubr.f32.mxu0 0.0
        %5953 = vmatmul.mubr.f32.gmra.mrb[0].mxu0 %v5527
        %v5954 = vpop.f32.mrb[0].mxu0
        %v5955 = vadd.f32 %v5694, %v5954
        %v5956 = vpop.f32.mrb[0].mxu0
        %5957 = vmatprep.mubr.f32.mxu0 0.0
        %5958 = vmatmul.mubr.f32.gmra.mrb[0].mxu0 %v5528
        %v5959 = vpop.f32.mrb[0].mxu0
        %v5960 = vadd.f32 %v5703, %v5959
        %v5961 = vpop.f32.mrb[0].mxu0
        %5962 = vmatprep.mubr.f32.mxu0 0.0
        %5963 = vmatmul.mubr.f32.gmra.mrb[0].mxu0 %v5529
        %v5964 = vpop.f32.mrb[0].mxu0
        %v5965 = vadd.f32 %v5712, %v5964
        %v5966 = vpop.f32.mrb[0].mxu0
        %5967 = vmatprep.mubr.f32.mxu0 0.0
        %5968 = vmatmul.mubr.f32.gmra.mrb[0].mxu0 %v5530
        %v5969 = vpop.f32.mrb[0].mxu0
        %v5970 = vadd.f32 %v5721, %v5969
        %v5971 = vpop.f32.mrb[0].mxu0
        %5972 = vmatprep.mubr.f32.mxu0 0.0
        %5973 = vmatmul.mubr.f32.gmra.mrb[0].mxu0 %v5531
        %v5974 = vpop.f32.mrb[0].mxu0
        %v5975 = vadd.f32 %v5730, %v5974
        %v5976 = vpop.f32.mrb[0].mxu0
        %5977 = vmatprep.mubr.f32.mxu0 0.0
        %5978 = vmatmul.mubr.f32.gmra.mrb[0].mxu0 %v5532
        %v5979 = vpop.f32.mrb[0].mxu0
        %v5980 = vadd.f32 %v5739, %v5979
        %v5981 = vpop.f32.mrb[0].mxu0
        %5982 = vmatprep.mubr.f32.mxu0 0.0
        %5983 = vmatmul.mubr.f32.gmra.mrb[0].mxu0 %v5533
        %v5984 = vpop.f32.mrb[0].mxu0
        %v5985 = vadd.f32 %v5748, %v5984
        %v5986 = vpop.f32.mrb[0].mxu0
        %5987 = vmatprep.mubr.f32.mxu0 0.0
        %5988 = vmatmul.mubr.f32.gmra.mrb[0].mxu0 %v5534
        %v5989 = vpop.f32.mrb[0].mxu0
        %v5990 = vadd.f32 %v5757, %v5989
        %v5991 = vpop.f32.mrb[0].mxu0
        %5992 = vmatprep.mubr.f32.mxu0 0.0
        %5993 = vmatmul.mubr.f32.gmra.mrb[0].mxu0 %v5535
        %v5994 = vpop.f32.mrb[0].mxu0
        %v5995 = vadd.f32 %v5766, %v5994
        %v5996 = vpop.f32.mrb[0].mxu0
        %5997 = vmatprep.mubr.f32.mxu0 0.0
        %5998 = vmatmul.mubr.f32.gmra.mrb[0].mxu0 %v5536
        %v5999 = vpop.f32.mrb[0].mxu0
        %v6000 = vadd.f32 %v5775, %v5999
        %v6001 = vpop.f32.mrb[0].mxu0
        %6002 = vdwg.mxu0
        %6003 = vmatprep.subr.mxu0 0.0
        %v6004 = vand.u32 %v5537, 4294901760
        %v6005 = vsub.f32 %v5537, %v6004
        %6006 = vmatpush1.msra.mxu0 %v6005
        %6007 = vmatprep.subr.mxu0 0.0
        %v6008 = vand.u32 %v5538, 4294901760
        %v6009 = vsub.f32 %v5538, %v6008
        %6010 = vmatpush1.msra.mxu0 %v6009
        %6011 = vmatprep.subr.mxu0 0.0
        %v6012 = vand.u32 %v5539, 4294901760
        %v6013 = vsub.f32 %v5539, %v6012
        %6014 = vmatpush1.msra.mxu0 %v6013
        %6015 = vmatprep.subr.mxu0 0.0
        %v6016 = vand.u32 %v5540, 4294901760
        %v6017 = vsub.f32 %v5540, %v6016
        %6018 = vmatpush1.msra.mxu0 %v6017
        %6019 = vmatprep.subr.mxu0 0.0
        %v6020 = vand.u32 %v5541, 4294901760
        %v6021 = vsub.f32 %v5541, %v6020
        %6022 = vmatpush1.msra.mxu0 %v6021
        %6023 = vmatprep.subr.mxu0 0.0
        %v6024 = vand.u32 %v5542, 4294901760
        %v6025 = vsub.f32 %v5542, %v6024
        %6026 = vmatpush1.msra.mxu0 %v6025
        %6027 = vmatprep.subr.mxu0 0.0
        %v6028 = vand.u32 %v5543, 4294901760
        %v6029 = vsub.f32 %v5543, %v6028
        %6030 = vmatpush1.msra.mxu0 %v6029
        %6031 = vmatprep.subr.mxu0 0.0
        %v6032 = vand.u32 %v5544, 4294901760
        %v6033 = vsub.f32 %v5544, %v6032
        %6034 = vmatpush1.msra.mxu0 %v6033
        %6035 = vmatprep.subr.mxu0 0.0
        %v6036 = vand.u32 %v5545, 4294901760
        %v6037 = vsub.f32 %v5545, %v6036
        %6038 = vmatpush1.msra.mxu0 %v6037
        %6039 = vmatprep.subr.mxu0 0.0
        %v6040 = vand.u32 %v5546, 4294901760
        %v6041 = vsub.f32 %v5546, %v6040
        %6042 = vmatpush1.msra.mxu0 %v6041
        %6043 = vmatprep.subr.mxu0 0.0
        %v6044 = vand.u32 %v5547, 4294901760
        %v6045 = vsub.f32 %v5547, %v6044
        %6046 = vmatpush1.msra.mxu0 %v6045
        %6047 = vmatprep.subr.mxu0 0.0
        %v6048 = vand.u32 %v5548, 4294901760
        %v6049 = vsub.f32 %v5548, %v6048
        %6050 = vmatpush1.msra.mxu0 %v6049
        %6051 = vmatprep.subr.mxu0 0.0
        %v6052 = vand.u32 %v5549, 4294901760
        %v6053 = vsub.f32 %v5549, %v6052
        %6054 = vmatpush1.msra.mxu0 %v6053
        %6055 = vmatprep.subr.mxu0 0.0
        %v6056 = vand.u32 %v5550, 4294901760
        %v6057 = vsub.f32 %v5550, %v6056
        %6058 = vmatpush1.msra.mxu0 %v6057
        %6059 = vmatprep.subr.mxu0 0.0
        %v6060 = vand.u32 %v5551, 4294901760
        %v6061 = vsub.f32 %v5551, %v6060
        %6062 = vmatpush1.msra.mxu0 %v6061
        %6063 = vmatprep.subr.mxu0 0.0
        %v6064 = vand.u32 %v5552, 4294901760
        %v6065 = vsub.f32 %v5552, %v6064
        %6066 = vmatpush1.msra.mxu0 %v6065
        %6067 = vmatprep.subr.mxu0 0.0
        %6068 = vmatpush1.msra.mxu0 0.0
        %6069 = vmatprep.subr.mxu0 0.0
        %6070 = vmatpush1.msra.mxu0 0.0
        %6071 = vmatprep.subr.mxu0 0.0
        %6072 = vmatpush1.msra.mxu0 0.0
        %6073 = vmatprep.subr.mxu0 0.0
        %6074 = vmatpush1.msra.mxu0 0.0
        %6075 = vmatprep.subr.mxu0 0.0
        %6076 = vmatpush1.msra.mxu0 0.0
        %6077 = vmatprep.subr.mxu0 0.0
        %6078 = vmatpush1.msra.mxu0 0.0
        %6079 = vmatprep.subr.mxu0 0.0
        %6080 = vmatpush1.msra.mxu0 0.0
        %6081 = vmatprep.subr.mxu0 0.0
        %6082 = vmatpush1.msra.mxu0 0.0
        %6083 = vmatprep.subr.mxu0 0.0
        %6084 = vmatpush1.msra.mxu0 0.0
        %6085 = vmatprep.subr.mxu0 0.0
        %6086 = vmatpush1.msra.mxu0 0.0
        %6087 = vmatprep.subr.mxu0 0.0
        %6088 = vmatpush1.msra.mxu0 0.0
        %6089 = vmatprep.subr.mxu0 0.0
        %6090 = vmatpush1.msra.mxu0 0.0
        %6091 = vmatprep.subr.mxu0 0.0
        %6092 = vmatpush1.msra.mxu0 0.0
        %6093 = vmatprep.subr.mxu0 0.0
        %6094 = vmatpush1.msra.mxu0 0.0
        %6095 = vmatprep.subr.mxu0 0.0
        %6096 = vmatpush1.msra.mxu0 0.0
        %6097 = vmatprep.subr.mxu0 0.0
        %6098 = vmatpush1.msra.mxu0 0.0
        %6099 = vmatprep.mubr.f32.mxu0 0.0
        %v6100 = vsub.f32 %v5521, %v5521
        %6101 = vmatmul.mubr.f32.gmra.mrb[0].mxu0 %v6100
        %v6102 = vpop.f32.mrb[0].mxu0
        %v6103 = vadd.f32 %v5925, %v6102
        %v6104 = vpop.f32.mrb[0].mxu0
        %6105 = vmatprep.mubr.f32.mxu0 0.0
        %v6106 = vsub.f32 %v5522, %v5522
        %6107 = vmatmul.mubr.f32.gmra.mrb[0].mxu0 %v6106
        %v6108 = vpop.f32.mrb[0].mxu0
        %v6109 = vadd.f32 %v5930, %v6108
        %v6110 = vpop.f32.mrb[0].mxu0
        %6111 = vmatprep.mubr.f32.mxu0 0.0
        %v6112 = vsub.f32 %v5523, %v5523
        %6113 = vmatmul.mubr.f32.gmra.mrb[0].mxu0 %v6112
        %v6114 = vpop.f32.mrb[0].mxu0
        %v6115 = vadd.f32 %v5935, %v6114
        %v6116 = vpop.f32.mrb[0].mxu0
        %6117 = vmatprep.mubr.f32.mxu0 0.0
        %v6118 = vsub.f32 %v5524, %v5524
        %6119 = vmatmul.mubr.f32.gmra.mrb[0].mxu0 %v6118
        %v6120 = vpop.f32.mrb[0].mxu0
        %v6121 = vadd.f32 %v5940, %v6120
        %v6122 = vpop.f32.mrb[0].mxu0
        %6123 = vmatprep.mubr.f32.mxu0 0.0
        %v6124 = vsub.f32 %v5525, %v5525
        %6125 = vmatmul.mubr.f32.gmra.mrb[0].mxu0 %v6124
        %v6126 = vpop.f32.mrb[0].mxu0
        %v6127 = vadd.f32 %v5945, %v6126
        %v6128 = vpop.f32.mrb[0].mxu0
        %6129 = vmatprep.mubr.f32.mxu0 0.0
        %v6130 = vsub.f32 %v5526, %v5526
        %6131 = vmatmul.mubr.f32.gmra.mrb[0].mxu0 %v6130
        %v6132 = vpop.f32.mrb[0].mxu0
        %v6133 = vadd.f32 %v5950, %v6132
        %v6134 = vpop.f32.mrb[0].mxu0
        %6135 = vmatprep.mubr.f32.mxu0 0.0
        %v6136 = vsub.f32 %v5527, %v5527
        %6137 = vmatmul.mubr.f32.gmra.mrb[0].mxu0 %v6136
        %v6138 = vpop.f32.mrb[0].mxu0
        %v6139 = vadd.f32 %v5955, %v6138
        %v6140 = vpop.f32.mrb[0].mxu0
        %6141 = vmatprep.mubr.f32.mxu0 0.0
        %v6142 = vsub.f32 %v5528, %v5528
        %6143 = vmatmul.mubr.f32.gmra.mrb[0].mxu0 %v6142
        %v6144 = vpop.f32.mrb[0].mxu0
        %v6145 = vadd.f32 %v5960, %v6144
        %v6146 = vpop.f32.mrb[0].mxu0
        %6147 = vmatprep.mubr.f32.mxu0 0.0
        %v6148 = vsub.f32 %v5529, %v5529
        %6149 = vmatmul.mubr.f32.gmra.mrb[0].mxu0 %v6148
        %v6150 = vpop.f32.mrb[0].mxu0
        %v6151 = vadd.f32 %v5965, %v6150
        %v6152 = vpop.f32.mrb[0].mxu0
        %6153 = vmatprep.mubr.f32.mxu0 0.0
        %v6154 = vsub.f32 %v5530, %v5530
        %6155 = vmatmul.mubr.f32.gmra.mrb[0].mxu0 %v6154
        %v6156 = vpop.f32.mrb[0].mxu0
        %v6157 = vadd.f32 %v5970, %v6156
        %v6158 = vpop.f32.mrb[0].mxu0
        %6159 = vmatprep.mubr.f32.mxu0 0.0
        %v6160 = vsub.f32 %v5531, %v5531
        %6161 = vmatmul.mubr.f32.gmra.mrb[0].mxu0 %v6160
        %v6162 = vpop.f32.mrb[0].mxu0
        %v6163 = vadd.f32 %v5975, %v6162
        %v6164 = vpop.f32.mrb[0].mxu0
        %6165 = vmatprep.mubr.f32.mxu0 0.0
        %v6166 = vsub.f32 %v5532, %v5532
        %6167 = vmatmul.mubr.f32.gmra.mrb[0].mxu0 %v6166
        %v6168 = vpop.f32.mrb[0].mxu0
        %v6169 = vadd.f32 %v5980, %v6168
        %v6170 = vpop.f32.mrb[0].mxu0
        %6171 = vmatprep.mubr.f32.mxu0 0.0
        %v6172 = vsub.f32 %v5533, %v5533
        %6173 = vmatmul.mubr.f32.gmra.mrb[0].mxu0 %v6172
        %v6174 = vpop.f32.mrb[0].mxu0
        %v6175 = vadd.f32 %v5985, %v6174
        %v6176 = vpop.f32.mrb[0].mxu0
        %6177 = vmatprep.mubr.f32.mxu0 0.0
        %v6178 = vsub.f32 %v5534, %v5534
        %6179 = vmatmul.mubr.f32.gmra.mrb[0].mxu0 %v6178
        %v6180 = vpop.f32.mrb[0].mxu0
        %v6181 = vadd.f32 %v5990, %v6180
        %v6182 = vpop.f32.mrb[0].mxu0
        %6183 = vmatprep.mubr.f32.mxu0 0.0
        %v6184 = vsub.f32 %v5535, %v5535
        %6185 = vmatmul.mubr.f32.gmra.mrb[0].mxu0 %v6184
        %v6186 = vpop.f32.mrb[0].mxu0
        %v6187 = vadd.f32 %v5995, %v6186
        %v6188 = vpop.f32.mrb[0].mxu0
        %6189 = vmatprep.mubr.f32.mxu0 0.0
        %v6190 = vsub.f32 %v5536, %v5536
        %6191 = vmatmul.mubr.f32.gmra.mrb[0].mxu0 %v6190
        %v6192 = vpop.f32.mrb[0].mxu0
        %v6193 = vadd.f32 %v6000, %v6192
        %v6194 = vpop.f32.mrb[0].mxu0
        %6195 = vdwg.mxu0
        %6196 = vmatprep.subr.mxu0 0.0
        %v6197 = vand.u32 %v5537, 4294901760
        %6198 = vmatpush1.msra.mxu0 %v6197
        %6199 = vmatprep.subr.mxu0 0.0
        %v6200 = vand.u32 %v5538, 4294901760
        %6201 = vmatpush1.msra.mxu0 %v6200
        %6202 = vmatprep.subr.mxu0 0.0
        %v6203 = vand.u32 %v5539, 4294901760
        %6204 = vmatpush1.msra.mxu0 %v6203
        %6205 = vmatprep.subr.mxu0 0.0
        %v6206 = vand.u32 %v5540, 4294901760
        %6207 = vmatpush1.msra.mxu0 %v6206
        %6208 = vmatprep.subr.mxu0 0.0
        %v6209 = vand.u32 %v5541, 4294901760
        %6210 = vmatpush1.msra.mxu0 %v6209
        %6211 = vmatprep.subr.mxu0 0.0
        %v6212 = vand.u32 %v5542, 4294901760
        %6213 = vmatpush1.msra.mxu0 %v6212
        %6214 = vmatprep.subr.mxu0 0.0
        %v6215 = vand.u32 %v5543, 4294901760
        %6216 = vmatpush1.msra.mxu0 %v6215
        %6217 = vmatprep.subr.mxu0 0.0
        %v6218 = vand.u32 %v5544, 4294901760
        %6219 = vmatpush1.msra.mxu0 %v6218
        %6220 = vmatprep.subr.mxu0 0.0
        %v6221 = vand.u32 %v5545, 4294901760
        %6222 = vmatpush1.msra.mxu0 %v6221
        %6223 = vmatprep.subr.mxu0 0.0
        %v6224 = vand.u32 %v5546, 4294901760
        %6225 = vmatpush1.msra.mxu0 %v6224
        %6226 = vmatprep.subr.mxu0 0.0
        %v6227 = vand.u32 %v5547, 4294901760
        %6228 = vmatpush1.msra.mxu0 %v6227
        %6229 = vmatprep.subr.mxu0 0.0
        %v6230 = vand.u32 %v5548, 4294901760
        %6231 = vmatpush1.msra.mxu0 %v6230
        %6232 = vmatprep.subr.mxu0 0.0
        %v6233 = vand.u32 %v5549, 4294901760
        %6234 = vmatpush1.msra.mxu0 %v6233
        %6235 = vmatprep.subr.mxu0 0.0
        %v6236 = vand.u32 %v5550, 4294901760
        %6237 = vmatpush1.msra.mxu0 %v6236
        %6238 = vmatprep.subr.mxu0 0.0
        %v6239 = vand.u32 %v5551, 4294901760
        %6240 = vmatpush1.msra.mxu0 %v6239
        %6241 = vmatprep.subr.mxu0 0.0
        %v6242 = vand.u32 %v5552, 4294901760
        %6243 = vmatpush1.msra.mxu0 %v6242
        %6244 = vmatprep.subr.mxu0 0.0
        %6245 = vmatpush1.msra.mxu0 0.0
        %6246 = vmatprep.subr.mxu0 0.0
        %6247 = vmatpush1.msra.mxu0 0.0
        %6248 = vmatprep.subr.mxu0 0.0
        %6249 = vmatpush1.msra.mxu0 0.0
        %6250 = vmatprep.subr.mxu0 0.0
        %6251 = vmatpush1.msra.mxu0 0.0
        %6252 = vmatprep.subr.mxu0 0.0
        %6253 = vmatpush1.msra.mxu0 0.0
        %6254 = vmatprep.subr.mxu0 0.0
        %6255 = vmatpush1.msra.mxu0 0.0
        %6256 = vmatprep.subr.mxu0 0.0
        %6257 = vmatpush1.msra.mxu0 0.0
        %6258 = vmatprep.subr.mxu0 0.0
        %6259 = vmatpush1.msra.mxu0 0.0
        %6260 = vmatprep.subr.mxu0 0.0
        %6261 = vmatpush1.msra.mxu0 0.0
        %6262 = vmatprep.subr.mxu0 0.0
        %6263 = vmatpush1.msra.mxu0 0.0
        %6264 = vmatprep.subr.mxu0 0.0
        %6265 = vmatpush1.msra.mxu0 0.0
        %6266 = vmatprep.subr.mxu0 0.0
        %6267 = vmatpush1.msra.mxu0 0.0
        %6268 = vmatprep.subr.mxu0 0.0
        %6269 = vmatpush1.msra.mxu0 0.0
        %6270 = vmatprep.subr.mxu0 0.0
        %6271 = vmatpush1.msra.mxu0 0.0
        %6272 = vmatprep.subr.mxu0 0.0
        %6273 = vmatpush1.msra.mxu0 0.0
        %6274 = vmatprep.subr.mxu0 0.0
        %6275 = vmatpush1.msra.mxu0 0.0
        %6276 = vmatprep.mubr.f32.mxu0 0.0
        %v6277 = vsub.f32 %v5521, %v5521
        %v6278 = vand.u32 %v6277, 4294901760
        %6279 = vmatmul.mubr.f32.gmra.mrb[0].mxu0 %v6278
        %v6280 = vpop.f32.mrb[0].mxu0
        %v6281 = vadd.f32 %v6103, %v6280
        %v6282 = vpop.f32.mrb[0].mxu0
        %6283 = vmatprep.mubr.f32.mxu0 0.0
        %v6284 = vsub.f32 %v5522, %v5522
        %v6285 = vand.u32 %v6284, 4294901760
        %6286 = vmatmul.mubr.f32.gmra.mrb[0].mxu0 %v6285
        %v6287 = vpop.f32.mrb[0].mxu0
        %v6288 = vadd.f32 %v6109, %v6287
        %v6289 = vpop.f32.mrb[0].mxu0
        %6290 = vmatprep.mubr.f32.mxu0 0.0
        %v6291 = vsub.f32 %v5523, %v5523
        %v6292 = vand.u32 %v6291, 4294901760
        %6293 = vmatmul.mubr.f32.gmra.mrb[0].mxu0 %v6292
        %v6294 = vpop.f32.mrb[0].mxu0
        %v6295 = vadd.f32 %v6115, %v6294
        %v6296 = vpop.f32.mrb[0].mxu0
        %6297 = vmatprep.mubr.f32.mxu0 0.0
        %v6298 = vsub.f32 %v5524, %v5524
        %v6299 = vand.u32 %v6298, 4294901760
        %6300 = vmatmul.mubr.f32.gmra.mrb[0].mxu0 %v6299
        %v6301 = vpop.f32.mrb[0].mxu0
        %v6302 = vadd.f32 %v6121, %v6301
        %v6303 = vpop.f32.mrb[0].mxu0
        %6304 = vmatprep.mubr.f32.mxu0 0.0
        %v6305 = vsub.f32 %v5525, %v5525
        %v6306 = vand.u32 %v6305, 4294901760
        %6307 = vmatmul.mubr.f32.gmra.mrb[0].mxu0 %v6306
        %v6308 = vpop.f32.mrb[0].mxu0
        %v6309 = vadd.f32 %v6127, %v6308
        %v6310 = vpop.f32.mrb[0].mxu0
        %6311 = vmatprep.mubr.f32.mxu0 0.0
        %v6312 = vsub.f32 %v5526, %v5526
        %v6313 = vand.u32 %v6312, 4294901760
        %6314 = vmatmul.mubr.f32.gmra.mrb[0].mxu0 %v6313
        %v6315 = vpop.f32.mrb[0].mxu0
        %v6316 = vadd.f32 %v6133, %v6315
        %v6317 = vpop.f32.mrb[0].mxu0
        %6318 = vmatprep.mubr.f32.mxu0 0.0
        %v6319 = vsub.f32 %v5527, %v5527
        %v6320 = vand.u32 %v6319, 4294901760
        %6321 = vmatmul.mubr.f32.gmra.mrb[0].mxu0 %v6320
        %v6322 = vpop.f32.mrb[0].mxu0
        %v6323 = vadd.f32 %v6139, %v6322
        %v6324 = vpop.f32.mrb[0].mxu0
        %6325 = vmatprep.mubr.f32.mxu0 0.0
        %v6326 = vsub.f32 %v5528, %v5528
        %v6327 = vand.u32 %v6326, 4294901760
        %6328 = vmatmul.mubr.f32.gmra.mrb[0].mxu0 %v6327
        %v6329 = vpop.f32.mrb[0].mxu0
        %v6330 = vadd.f32 %v6145, %v6329
        %v6331 = vpop.f32.mrb[0].mxu0
        %6332 = vmatprep.mubr.f32.mxu0 0.0
        %v6333 = vsub.f32 %v5529, %v5529
        %v6334 = vand.u32 %v6333, 4294901760
        %6335 = vmatmul.mubr.f32.gmra.mrb[0].mxu0 %v6334
        %v6336 = vpop.f32.mrb[0].mxu0
        %v6337 = vadd.f32 %v6151, %v6336
        %v6338 = vpop.f32.mrb[0].mxu0
        %6339 = vmatprep.mubr.f32.mxu0 0.0
        %v6340 = vsub.f32 %v5530, %v5530
        %v6341 = vand.u32 %v6340, 4294901760
        %6342 = vmatmul.mubr.f32.gmra.mrb[0].mxu0 %v6341
        %v6343 = vpop.f32.mrb[0].mxu0
        %v6344 = vadd.f32 %v6157, %v6343
        %v6345 = vpop.f32.mrb[0].mxu0
        %6346 = vmatprep.mubr.f32.mxu0 0.0
        %v6347 = vsub.f32 %v5531, %v5531
        %v6348 = vand.u32 %v6347, 4294901760
        %6349 = vmatmul.mubr.f32.gmra.mrb[0].mxu0 %v6348
        %v6350 = vpop.f32.mrb[0].mxu0
        %v6351 = vadd.f32 %v6163, %v6350
        %v6352 = vpop.f32.mrb[0].mxu0
        %6353 = vmatprep.mubr.f32.mxu0 0.0
        %v6354 = vsub.f32 %v5532, %v5532
        %v6355 = vand.u32 %v6354, 4294901760
        %6356 = vmatmul.mubr.f32.gmra.mrb[0].mxu0 %v6355
        %v6357 = vpop.f32.mrb[0].mxu0
        %v6358 = vadd.f32 %v6169, %v6357
        %v6359 = vpop.f32.mrb[0].mxu0
        %6360 = vmatprep.mubr.f32.mxu0 0.0
        %v6361 = vsub.f32 %v5533, %v5533
        %v6362 = vand.u32 %v6361, 4294901760
        %6363 = vmatmul.mubr.f32.gmra.mrb[0].mxu0 %v6362
        %v6364 = vpop.f32.mrb[0].mxu0
        %v6365 = vadd.f32 %v6175, %v6364
        %v6366 = vpop.f32.mrb[0].mxu0
        %6367 = vmatprep.mubr.f32.mxu0 0.0
        %v6368 = vsub.f32 %v5534, %v5534
        %v6369 = vand.u32 %v6368, 4294901760
        %6370 = vmatmul.mubr.f32.gmra.mrb[0].mxu0 %v6369
        %v6371 = vpop.f32.mrb[0].mxu0
        %v6372 = vadd.f32 %v6181, %v6371
        %v6373 = vpop.f32.mrb[0].mxu0
        %6374 = vmatprep.mubr.f32.mxu0 0.0
        %v6375 = vsub.f32 %v5535, %v5535
        %v6376 = vand.u32 %v6375, 4294901760
        %6377 = vmatmul.mubr.f32.gmra.mrb[0].mxu0 %v6376
        %v6378 = vpop.f32.mrb[0].mxu0
        %v6379 = vadd.f32 %v6187, %v6378
        %v6380 = vpop.f32.mrb[0].mxu0
        %6381 = vmatprep.mubr.f32.mxu0 0.0
        %v6382 = vsub.f32 %v5536, %v5536
        %v6383 = vand.u32 %v6382, 4294901760
        %6384 = vmatmul.mubr.f32.gmra.mrb[0].mxu0 %v6383
        %v6385 = vpop.f32.mrb[0].mxu0
        %v6386 = vadd.f32 %v6193, %v6385
        %v6387 = vpop.f32.mrb[0].mxu0
        %6388 = vdwg.mxu0
        %6389 = vmatprep.subr.mxu0 0.0
        %v6390 = vand.u32 %v5537, 4294901760
        %v6391 = vsub.f32 %v5537, %v6390
        %v6392 = vand.u32 %v6391, 4294901760
        %6393 = vmatpush1.msra.mxu0 %v6392
        %6394 = vmatprep.subr.mxu0 0.0
        %v6395 = vand.u32 %v5538, 4294901760
        %v6396 = vsub.f32 %v5538, %v6395
        %v6397 = vand.u32 %v6396, 4294901760
        %6398 = vmatpush1.msra.mxu0 %v6397
        %6399 = vmatprep.subr.mxu0 0.0
        %v6400 = vand.u32 %v5539, 4294901760
        %v6401 = vsub.f32 %v5539, %v6400
        %v6402 = vand.u32 %v6401, 4294901760
        %6403 = vmatpush1.msra.mxu0 %v6402
        %6404 = vmatprep.subr.mxu0 0.0
        %v6405 = vand.u32 %v5540, 4294901760
        %v6406 = vsub.f32 %v5540, %v6405
        %v6407 = vand.u32 %v6406, 4294901760
        %6408 = vmatpush1.msra.mxu0 %v6407
        %6409 = vmatprep.subr.mxu0 0.0
        %v6410 = vand.u32 %v5541, 4294901760
        %v6411 = vsub.f32 %v5541, %v6410
        %v6412 = vand.u32 %v6411, 4294901760
        %6413 = vmatpush1.msra.mxu0 %v6412
        %6414 = vmatprep.subr.mxu0 0.0
        %v6415 = vand.u32 %v5542, 4294901760
        %v6416 = vsub.f32 %v5542, %v6415
        %v6417 = vand.u32 %v6416, 4294901760
        %6418 = vmatpush1.msra.mxu0 %v6417
        %6419 = vmatprep.subr.mxu0 0.0
        %v6420 = vand.u32 %v5543, 4294901760
        %v6421 = vsub.f32 %v5543, %v6420
        %v6422 = vand.u32 %v6421, 4294901760
        %6423 = vmatpush1.msra.mxu0 %v6422
        %6424 = vmatprep.subr.mxu0 0.0
        %v6425 = vand.u32 %v5544, 4294901760
        %v6426 = vsub.f32 %v5544, %v6425
        %v6427 = vand.u32 %v6426, 4294901760
        %6428 = vmatpush1.msra.mxu0 %v6427
        %6429 = vmatprep.subr.mxu0 0.0
        %v6430 = vand.u32 %v5545, 4294901760
        %v6431 = vsub.f32 %v5545, %v6430
        %v6432 = vand.u32 %v6431, 4294901760
        %6433 = vmatpush1.msra.mxu0 %v6432
        %6434 = vmatprep.subr.mxu0 0.0
        %v6435 = vand.u32 %v5546, 4294901760
        %v6436 = vsub.f32 %v5546, %v6435
        %v6437 = vand.u32 %v6436, 4294901760
        %6438 = vmatpush1.msra.mxu0 %v6437
        %6439 = vmatprep.subr.mxu0 0.0
        %v6440 = vand.u32 %v5547, 4294901760
        %v6441 = vsub.f32 %v5547, %v6440
        %v6442 = vand.u32 %v6441, 4294901760
        %6443 = vmatpush1.msra.mxu0 %v6442
        %6444 = vmatprep.subr.mxu0 0.0
        %v6445 = vand.u32 %v5548, 4294901760
        %v6446 = vsub.f32 %v5548, %v6445
        %v6447 = vand.u32 %v6446, 4294901760
        %6448 = vmatpush1.msra.mxu0 %v6447
        %6449 = vmatprep.subr.mxu0 0.0
        %v6450 = vand.u32 %v5549, 4294901760
        %v6451 = vsub.f32 %v5549, %v6450
        %v6452 = vand.u32 %v6451, 4294901760
        %6453 = vmatpush1.msra.mxu0 %v6452
        %6454 = vmatprep.subr.mxu0 0.0
        %v6455 = vand.u32 %v5550, 4294901760
        %v6456 = vsub.f32 %v5550, %v6455
        %v6457 = vand.u32 %v6456, 4294901760
        %6458 = vmatpush1.msra.mxu0 %v6457
        %6459 = vmatprep.subr.mxu0 0.0
        %v6460 = vand.u32 %v5551, 4294901760
        %v6461 = vsub.f32 %v5551, %v6460
        %v6462 = vand.u32 %v6461, 4294901760
        %6463 = vmatpush1.msra.mxu0 %v6462
        %6464 = vmatprep.subr.mxu0 0.0
        %v6465 = vand.u32 %v5552, 4294901760
        %v6466 = vsub.f32 %v5552, %v6465
        %v6467 = vand.u32 %v6466, 4294901760
        %6468 = vmatpush1.msra.mxu0 %v6467
        %6469 = vmatprep.subr.mxu0 0.0
        %6470 = vmatpush1.msra.mxu0 0.0
        %6471 = vmatprep.subr.mxu0 0.0
        %6472 = vmatpush1.msra.mxu0 0.0
        %6473 = vmatprep.subr.mxu0 0.0
        %6474 = vmatpush1.msra.mxu0 0.0
        %6475 = vmatprep.subr.mxu0 0.0
        %6476 = vmatpush1.msra.mxu0 0.0
        %6477 = vmatprep.subr.mxu0 0.0
        %6478 = vmatpush1.msra.mxu0 0.0
        %6479 = vmatprep.subr.mxu0 0.0
        %6480 = vmatpush1.msra.mxu0 0.0
        %6481 = vmatprep.subr.mxu0 0.0
        %6482 = vmatpush1.msra.mxu0 0.0
        %6483 = vmatprep.subr.mxu0 0.0
        %6484 = vmatpush1.msra.mxu0 0.0
        %6485 = vmatprep.subr.mxu0 0.0
        %6486 = vmatpush1.msra.mxu0 0.0
        %6487 = vmatprep.subr.mxu0 0.0
        %6488 = vmatpush1.msra.mxu0 0.0
        %6489 = vmatprep.subr.mxu0 0.0
        %6490 = vmatpush1.msra.mxu0 0.0
        %6491 = vmatprep.subr.mxu0 0.0
        %6492 = vmatpush1.msra.mxu0 0.0
        %6493 = vmatprep.subr.mxu0 0.0
        %6494 = vmatpush1.msra.mxu0 0.0
        %6495 = vmatprep.subr.mxu0 0.0
        %6496 = vmatpush1.msra.mxu0 0.0
        %6497 = vmatprep.subr.mxu0 0.0
        %6498 = vmatpush1.msra.mxu0 0.0
        %6499 = vmatprep.subr.mxu0 0.0
        %6500 = vmatpush1.msra.mxu0 0.0
        %6501 = vmatprep.mubr.f32.mxu0 0.0
        %6502 = vmatmul.mubr.f32.gmra.mrb[0].mxu0 %v5521
        %v6503 = vpop.f32.mrb[0].mxu0
        %v6504 = vadd.f32 %v6281, %v6503
        %v6505 = vpop.f32.mrb[0].mxu0
        %6506 = vmatprep.mubr.f32.mxu0 0.0
        %6507 = vmatmul.mubr.f32.gmra.mrb[0].mxu0 %v5522
        %v6508 = vpop.f32.mrb[0].mxu0
        %v6509 = vadd.f32 %v6288, %v6508
        %v6510 = vpop.f32.mrb[0].mxu0
        %6511 = vmatprep.mubr.f32.mxu0 0.0
        %6512 = vmatmul.mubr.f32.gmra.mrb[0].mxu0 %v5523
        %v6513 = vpop.f32.mrb[0].mxu0
        %v6514 = vadd.f32 %v6295, %v6513
        %v6515 = vpop.f32.mrb[0].mxu0
        %6516 = vmatprep.mubr.f32.mxu0 0.0
        %6517 = vmatmul.mubr.f32.gmra.mrb[0].mxu0 %v5524
        %v6518 = vpop.f32.mrb[0].mxu0
        %v6519 = vadd.f32 %v6302, %v6518
        %v6520 = vpop.f32.mrb[0].mxu0
        %6521 = vmatprep.mubr.f32.mxu0 0.0
        %6522 = vmatmul.mubr.f32.gmra.mrb[0].mxu0 %v5525
        %v6523 = vpop.f32.mrb[0].mxu0
        %v6524 = vadd.f32 %v6309, %v6523
        %v6525 = vpop.f32.mrb[0].mxu0
        %6526 = vmatprep.mubr.f32.mxu0 0.0
        %6527 = vmatmul.mubr.f32.gmra.mrb[0].mxu0 %v5526
        %v6528 = vpop.f32.mrb[0].mxu0
        %v6529 = vadd.f32 %v6316, %v6528
        %v6530 = vpop.f32.mrb[0].mxu0
        %6531 = vmatprep.mubr.f32.mxu0 0.0
        %6532 = vmatmul.mubr.f32.gmra.mrb[0].mxu0 %v5527
        %v6533 = vpop.f32.mrb[0].mxu0
        %v6534 = vadd.f32 %v6323, %v6533
        %v6535 = vpop.f32.mrb[0].mxu0
        %6536 = vmatprep.mubr.f32.mxu0 0.0
        %6537 = vmatmul.mubr.f32.gmra.mrb[0].mxu0 %v5528
        %v6538 = vpop.f32.mrb[0].mxu0
        %v6539 = vadd.f32 %v6330, %v6538
        %v6540 = vpop.f32.mrb[0].mxu0
        %6541 = vmatprep.mubr.f32.mxu0 0.0
        %6542 = vmatmul.mubr.f32.gmra.mrb[0].mxu0 %v5529
        %v6543 = vpop.f32.mrb[0].mxu0
        %v6544 = vadd.f32 %v6337, %v6543
        %v6545 = vpop.f32.mrb[0].mxu0
        %6546 = vmatprep.mubr.f32.mxu0 0.0
        %6547 = vmatmul.mubr.f32.gmra.mrb[0].mxu0 %v5530
        %v6548 = vpop.f32.mrb[0].mxu0
        %v6549 = vadd.f32 %v6344, %v6548
        %v6550 = vpop.f32.mrb[0].mxu0
        %6551 = vmatprep.mubr.f32.mxu0 0.0
        %6552 = vmatmul.mubr.f32.gmra.mrb[0].mxu0 %v5531
        %v6553 = vpop.f32.mrb[0].mxu0
        %v6554 = vadd.f32 %v6351, %v6553
        %v6555 = vpop.f32.mrb[0].mxu0
        %6556 = vmatprep.mubr.f32.mxu0 0.0
        %6557 = vmatmul.mubr.f32.gmra.mrb[0].mxu0 %v5532
        %v6558 = vpop.f32.mrb[0].mxu0
        %v6559 = vadd.f32 %v6358, %v6558
        %v6560 = vpop.f32.mrb[0].mxu0
        %6561 = vmatprep.mubr.f32.mxu0 0.0
        %6562 = vmatmul.mubr.f32.gmra.mrb[0].mxu0 %v5533
        %v6563 = vpop.f32.mrb[0].mxu0
        %v6564 = vadd.f32 %v6365, %v6563
        %v6565 = vpop.f32.mrb[0].mxu0
        %6566 = vmatprep.mubr.f32.mxu0 0.0
        %6567 = vmatmul.mubr.f32.gmra.mrb[0].mxu0 %v5534
        %v6568 = vpop.f32.mrb[0].mxu0
        %v6569 = vadd.f32 %v6372, %v6568
        %v6570 = vpop.f32.mrb[0].mxu0
        %6571 = vmatprep.mubr.f32.mxu0 0.0
        %6572 = vmatmul.mubr.f32.gmra.mrb[0].mxu0 %v5535
        %v6573 = vpop.f32.mrb[0].mxu0
        %v6574 = vadd.f32 %v6379, %v6573
        %v6575 = vpop.f32.mrb[0].mxu0
        %6576 = vmatprep.mubr.f32.mxu0 0.0
        %6577 = vmatmul.mubr.f32.gmra.mrb[0].mxu0 %v5536
        %v6578 = vpop.f32.mrb[0].mxu0
        %v6579 = vadd.f32 %v6386, %v6578
        %v6580 = vpop.f32.mrb[0].mxu0
        %6581 = vdwg.mxu0
        %6582 = vmatprep.subr.mxu0 0.0
        %v6583 = vand.u32 %v5537, 4294901760
        %6584 = vmatpush1.msra.mxu0 %v6583
        %6585 = vmatprep.subr.mxu0 0.0
        %v6586 = vand.u32 %v5538, 4294901760
        %6587 = vmatpush1.msra.mxu0 %v6586
        %6588 = vmatprep.subr.mxu0 0.0
        %v6589 = vand.u32 %v5539, 4294901760
        %6590 = vmatpush1.msra.mxu0 %v6589
        %6591 = vmatprep.subr.mxu0 0.0
        %v6592 = vand.u32 %v5540, 4294901760
        %6593 = vmatpush1.msra.mxu0 %v6592
        %6594 = vmatprep.subr.mxu0 0.0
        %v6595 = vand.u32 %v5541, 4294901760
        %6596 = vmatpush1.msra.mxu0 %v6595
        %6597 = vmatprep.subr.mxu0 0.0
        %v6598 = vand.u32 %v5542, 4294901760
        %6599 = vmatpush1.msra.mxu0 %v6598
        %6600 = vmatprep.subr.mxu0 0.0
        %v6601 = vand.u32 %v5543, 4294901760
        %6602 = vmatpush1.msra.mxu0 %v6601
        %6603 = vmatprep.subr.mxu0 0.0
        %v6604 = vand.u32 %v5544, 4294901760
        %6605 = vmatpush1.msra.mxu0 %v6604
        %6606 = vmatprep.subr.mxu0 0.0
        %v6607 = vand.u32 %v5545, 4294901760
        %6608 = vmatpush1.msra.mxu0 %v6607
        %6609 = vmatprep.subr.mxu0 0.0
        %v6610 = vand.u32 %v5546, 4294901760
        %6611 = vmatpush1.msra.mxu0 %v6610
        %6612 = vmatprep.subr.mxu0 0.0
        %v6613 = vand.u32 %v5547, 4294901760
        %6614 = vmatpush1.msra.mxu0 %v6613
        %6615 = vmatprep.subr.mxu0 0.0
        %v6616 = vand.u32 %v5548, 4294901760
        %6617 = vmatpush1.msra.mxu0 %v6616
        %6618 = vmatprep.subr.mxu0 0.0
        %v6619 = vand.u32 %v5549, 4294901760
        %6620 = vmatpush1.msra.mxu0 %v6619
        %6621 = vmatprep.subr.mxu0 0.0
        %v6622 = vand.u32 %v5550, 4294901760
        %6623 = vmatpush1.msra.mxu0 %v6622
        %6624 = vmatprep.subr.mxu0 0.0
        %v6625 = vand.u32 %v5551, 4294901760
        %6626 = vmatpush1.msra.mxu0 %v6625
        %6627 = vmatprep.subr.mxu0 0.0
        %v6628 = vand.u32 %v5552, 4294901760
        %6629 = vmatpush1.msra.mxu0 %v6628
        %6630 = vmatprep.subr.mxu0 0.0
        %6631 = vmatpush1.msra.mxu0 0.0
        %6632 = vmatprep.subr.mxu0 0.0
        %6633 = vmatpush1.msra.mxu0 0.0
        %6634 = vmatprep.subr.mxu0 0.0
        %6635 = vmatpush1.msra.mxu0 0.0
        %6636 = vmatprep.subr.mxu0 0.0
        %6637 = vmatpush1.msra.mxu0 0.0
        %6638 = vmatprep.subr.mxu0 0.0
        %6639 = vmatpush1.msra.mxu0 0.0
        %6640 = vmatprep.subr.mxu0 0.0
        %6641 = vmatpush1.msra.mxu0 0.0
        %6642 = vmatprep.subr.mxu0 0.0
        %6643 = vmatpush1.msra.mxu0 0.0
        %6644 = vmatprep.subr.mxu0 0.0
        %6645 = vmatpush1.msra.mxu0 0.0
        %6646 = vmatprep.subr.mxu0 0.0
        %6647 = vmatpush1.msra.mxu0 0.0
        %6648 = vmatprep.subr.mxu0 0.0
        %6649 = vmatpush1.msra.mxu0 0.0
        %6650 = vmatprep.subr.mxu0 0.0
        %6651 = vmatpush1.msra.mxu0 0.0
        %6652 = vmatprep.subr.mxu0 0.0
        %6653 = vmatpush1.msra.mxu0 0.0
        %6654 = vmatprep.subr.mxu0 0.0
        %6655 = vmatpush1.msra.mxu0 0.0
        %6656 = vmatprep.subr.mxu0 0.0
        %6657 = vmatpush1.msra.mxu0 0.0
        %6658 = vmatprep.subr.mxu0 0.0
        %6659 = vmatpush1.msra.mxu0 0.0
        %6660 = vmatprep.subr.mxu0 0.0
        %6661 = vmatpush1.msra.mxu0 0.0
        %6662 = vmatprep.mubr.f32.mxu0 0.0
        %6663 = vmatmul.mubr.f32.gmra.mrb[0].mxu0 %v5521
        %v6664 = vpop.f32.mrb[0].mxu0
        %v6665 = vadd.f32 %v6504, %v6664
        %v6666 = vpop.f32.mrb[0].mxu0
        %6667 = vmatprep.mubr.f32.mxu0 0.0
        %6668 = vmatmul.mubr.f32.gmra.mrb[0].mxu0 %v5522
        %v6669 = vpop.f32.mrb[0].mxu0
        %v6670 = vadd.f32 %v6509, %v6669
        %v6671 = vpop.f32.mrb[0].mxu0
        %6672 = vmatprep.mubr.f32.mxu0 0.0
        %6673 = vmatmul.mubr.f32.gmra.mrb[0].mxu0 %v5523
        %v6674 = vpop.f32.mrb[0].mxu0
        %v6675 = vadd.f32 %v6514, %v6674
        %v6676 = vpop.f32.mrb[0].mxu0
        %6677 = vmatprep.mubr.f32.mxu0 0.0
        %6678 = vmatmul.mubr.f32.gmra.mrb[0].mxu0 %v5524
        %v6679 = vpop.f32.mrb[0].mxu0
        %v6680 = vadd.f32 %v6519, %v6679
        %v6681 = vpop.f32.mrb[0].mxu0
        %6682 = vmatprep.mubr.f32.mxu0 0.0
        %6683 = vmatmul.mubr.f32.gmra.mrb[0].mxu0 %v5525
        %v6684 = vpop.f32.mrb[0].mxu0
        %v6685 = vadd.f32 %v6524, %v6684
        %v6686 = vpop.f32.mrb[0].mxu0
        %6687 = vmatprep.mubr.f32.mxu0 0.0
        %6688 = vmatmul.mubr.f32.gmra.mrb[0].mxu0 %v5526
        %v6689 = vpop.f32.mrb[0].mxu0
        %v6690 = vadd.f32 %v6529, %v6689
        %v6691 = vpop.f32.mrb[0].mxu0
        %6692 = vmatprep.mubr.f32.mxu0 0.0
        %6693 = vmatmul.mubr.f32.gmra.mrb[0].mxu0 %v5527
        %v6694 = vpop.f32.mrb[0].mxu0
        %v6695 = vadd.f32 %v6534, %v6694
        %v6696 = vpop.f32.mrb[0].mxu0
        %6697 = vmatprep.mubr.f32.mxu0 0.0
        %6698 = vmatmul.mubr.f32.gmra.mrb[0].mxu0 %v5528
        %v6699 = vpop.f32.mrb[0].mxu0
        %v6700 = vadd.f32 %v6539, %v6699
        %v6701 = vpop.f32.mrb[0].mxu0
        %6702 = vmatprep.mubr.f32.mxu0 0.0
        %6703 = vmatmul.mubr.f32.gmra.mrb[0].mxu0 %v5529
        %v6704 = vpop.f32.mrb[0].mxu0
        %v6705 = vadd.f32 %v6544, %v6704
        %v6706 = vpop.f32.mrb[0].mxu0
        %6707 = vmatprep.mubr.f32.mxu0 0.0
        %6708 = vmatmul.mubr.f32.gmra.mrb[0].mxu0 %v5530
        %v6709 = vpop.f32.mrb[0].mxu0
        %v6710 = vadd.f32 %v6549, %v6709
        %v6711 = vpop.f32.mrb[0].mxu0
        %6712 = vmatprep.mubr.f32.mxu0 0.0
        %6713 = vmatmul.mubr.f32.gmra.mrb[0].mxu0 %v5531
        %v6714 = vpop.f32.mrb[0].mxu0
        %v6715 = vadd.f32 %v6554, %v6714
        %v6716 = vpop.f32.mrb[0].mxu0
        %6717 = vmatprep.mubr.f32.mxu0 0.0
        %6718 = vmatmul.mubr.f32.gmra.mrb[0].mxu0 %v5532
        %v6719 = vpop.f32.mrb[0].mxu0
        %v6720 = vadd.f32 %v6559, %v6719
        %v6721 = vpop.f32.mrb[0].mxu0
        %6722 = vmatprep.mubr.f32.mxu0 0.0
        %6723 = vmatmul.mubr.f32.gmra.mrb[0].mxu0 %v5533
        %v6724 = vpop.f32.mrb[0].mxu0
        %v6725 = vadd.f32 %v6564, %v6724
        %v6726 = vpop.f32.mrb[0].mxu0
        %6727 = vmatprep.mubr.f32.mxu0 0.0
        %6728 = vmatmul.mubr.f32.gmra.mrb[0].mxu0 %v5534
        %v6729 = vpop.f32.mrb[0].mxu0
        %v6730 = vadd.f32 %v6569, %v6729
        %v6731 = vpop.f32.mrb[0].mxu0
        %6732 = vmatprep.mubr.f32.mxu0 0.0
        %6733 = vmatmul.mubr.f32.gmra.mrb[0].mxu0 %v5535
        %v6734 = vpop.f32.mrb[0].mxu0
        %v6735 = vadd.f32 %v6574, %v6734
        %v6736 = vpop.f32.mrb[0].mxu0
        %6737 = vmatprep.mubr.f32.mxu0 0.0
        %6738 = vmatmul.mubr.f32.gmra.mrb[0].mxu0 %v5536
        %v6739 = vpop.f32.mrb[0].mxu0
        %v6740 = vadd.f32 %v6579, %v6739
        %v6741 = vpop.f32.mrb[0].mxu0
        %6742 = vdwg.mxu0
        %6743 = vmatprep.subr.mxu0 0.0
        %v6744 = vand.u32 %v5423, 4294901760
        %6745 = vmatpush1.msra.mxu0 %v6744
        %6746 = vmatprep.subr.mxu0 0.0
        %v6747 = vand.u32 %v5424, 4294901760
        %6748 = vmatpush1.msra.mxu0 %v6747
        %6749 = vmatprep.subr.mxu0 0.0
        %v6750 = vand.u32 %v5425, 4294901760
        %6751 = vmatpush1.msra.mxu0 %v6750
        %6752 = vmatprep.subr.mxu0 0.0
        %v6753 = vand.u32 %v5426, 4294901760
        %6754 = vmatpush1.msra.mxu0 %v6753
        %6755 = vmatprep.subr.mxu0 0.0
        %v6756 = vand.u32 %v5427, 4294901760
        %6757 = vmatpush1.msra.mxu0 %v6756
        %6758 = vmatprep.subr.mxu0 0.0
        %v6759 = vand.u32 %v5428, 4294901760
        %6760 = vmatpush1.msra.mxu0 %v6759
        %6761 = vmatprep.subr.mxu0 0.0
        %v6762 = vand.u32 %v5429, 4294901760
        %6763 = vmatpush1.msra.mxu0 %v6762
        %6764 = vmatprep.subr.mxu0 0.0
        %v6765 = vand.u32 %v5430, 4294901760
        %6766 = vmatpush1.msra.mxu0 %v6765
        %6767 = vmatprep.subr.mxu0 0.0
        %v6768 = vand.u32 %v5431, 4294901760
        %6769 = vmatpush1.msra.mxu0 %v6768
        %6770 = vmatprep.subr.mxu0 0.0
        %v6771 = vand.u32 %v5432, 4294901760
        %6772 = vmatpush1.msra.mxu0 %v6771
        %6773 = vmatprep.subr.mxu0 0.0
        %v6774 = vand.u32 %v5433, 4294901760
        %6775 = vmatpush1.msra.mxu0 %v6774
        %6776 = vmatprep.subr.mxu0 0.0
        %v6777 = vand.u32 %v5434, 4294901760
        %6778 = vmatpush1.msra.mxu0 %v6777
        %6779 = vmatprep.subr.mxu0 0.0
        %v6780 = vand.u32 %v5435, 4294901760
        %6781 = vmatpush1.msra.mxu0 %v6780
        %6782 = vmatprep.subr.mxu0 0.0
        %v6783 = vand.u32 %v5436, 4294901760
        %6784 = vmatpush1.msra.mxu0 %v6783
        %6785 = vmatprep.subr.mxu0 0.0
        %v6786 = vand.u32 %v5437, 4294901760
        %6787 = vmatpush1.msra.mxu0 %v6786
        %6788 = vmatprep.subr.mxu0 0.0
        %v6789 = vand.u32 %v5438, 4294901760
        %6790 = vmatpush1.msra.mxu0 %v6789
        %6791 = vmatprep.subr.mxu0 0.0
        %6792 = vmatpush1.msra.mxu0 0.0
        %6793 = vmatprep.subr.mxu0 0.0
        %6794 = vmatpush1.msra.mxu0 0.0
        %6795 = vmatprep.subr.mxu0 0.0
        %6796 = vmatpush1.msra.mxu0 0.0
        %6797 = vmatprep.subr.mxu0 0.0
        %6798 = vmatpush1.msra.mxu0 0.0
        %6799 = vmatprep.subr.mxu0 0.0
        %6800 = vmatpush1.msra.mxu0 0.0
        %6801 = vmatprep.subr.mxu0 0.0
        %6802 = vmatpush1.msra.mxu0 0.0
        %6803 = vmatprep.subr.mxu0 0.0
        %6804 = vmatpush1.msra.mxu0 0.0
        %6805 = vmatprep.subr.mxu0 0.0
        %6806 = vmatpush1.msra.mxu0 0.0
        %6807 = vmatprep.subr.mxu0 0.0
        %6808 = vmatpush1.msra.mxu0 0.0
        %6809 = vmatprep.subr.mxu0 0.0
        %6810 = vmatpush1.msra.mxu0 0.0
        %6811 = vmatprep.subr.mxu0 0.0
        %6812 = vmatpush1.msra.mxu0 0.0
        %6813 = vmatprep.subr.mxu0 0.0
        %6814 = vmatpush1.msra.mxu0 0.0
        %6815 = vmatprep.subr.mxu0 0.0
        %6816 = vmatpush1.msra.mxu0 0.0
        %6817 = vmatprep.subr.mxu0 0.0
        %6818 = vmatpush1.msra.mxu0 0.0
        %6819 = vmatprep.subr.mxu0 0.0
        %6820 = vmatpush1.msra.mxu0 0.0
        %6821 = vmatprep.subr.mxu0 0.0
        %6822 = vmatpush1.msra.mxu0 0.0
        %6823 = vmatprep.mubr.f32.mxu0 0.0
        %v6824 = vand.u32 %v5407, 4294901760
        %v6825 = vsub.f32 %v5407, %v6824
        %v6826 = vand.u32 %v6825, 4294901760
        %v6827 = vsub.f32 %v6825, %v6826
        %v6828 = vand.u32 %v6827, 4294901760
        %6829 = vmatmul.mubr.f32.gmra.mrb[0].mxu0 %v6828
        %v6830 = vpop.f32.mrb[0].mxu0
        %v6831 = vadd.f32 %v6665, %v6830
        %v6832 = vpop.f32.mrb[0].mxu0
        %6833 = vmatprep.mubr.f32.mxu0 0.0
        %v6834 = vand.u32 %v5408, 4294901760
        %v6835 = vsub.f32 %v5408, %v6834
        %v6836 = vand.u32 %v6835, 4294901760
        %v6837 = vsub.f32 %v6835, %v6836
        %v6838 = vand.u32 %v6837, 4294901760
        %6839 = vmatmul.mubr.f32.gmra.mrb[0].mxu0 %v6838
        %v6840 = vpop.f32.mrb[0].mxu0
        %v6841 = vadd.f32 %v6670, %v6840
        %v6842 = vpop.f32.mrb[0].mxu0
        %6843 = vmatprep.mubr.f32.mxu0 0.0
        %v6844 = vand.u32 %v5409, 4294901760
        %v6845 = vsub.f32 %v5409, %v6844
        %v6846 = vand.u32 %v6845, 4294901760
        %v6847 = vsub.f32 %v6845, %v6846
        %v6848 = vand.u32 %v6847, 4294901760
        %6849 = vmatmul.mubr.f32.gmra.mrb[0].mxu0 %v6848
        %v6850 = vpop.f32.mrb[0].mxu0
        %v6851 = vadd.f32 %v6675, %v6850
        %v6852 = vpop.f32.mrb[0].mxu0
        %6853 = vmatprep.mubr.f32.mxu0 0.0
        %v6854 = vand.u32 %v5410, 4294901760
        %v6855 = vsub.f32 %v5410, %v6854
        %v6856 = vand.u32 %v6855, 4294901760
        %v6857 = vsub.f32 %v6855, %v6856
        %v6858 = vand.u32 %v6857, 4294901760
        %6859 = vmatmul.mubr.f32.gmra.mrb[0].mxu0 %v6858
        %v6860 = vpop.f32.mrb[0].mxu0
        %v6861 = vadd.f32 %v6680, %v6860
        %v6862 = vpop.f32.mrb[0].mxu0
        %6863 = vmatprep.mubr.f32.mxu0 0.0
        %v6864 = vand.u32 %v5411, 4294901760
        %v6865 = vsub.f32 %v5411, %v6864
        %v6866 = vand.u32 %v6865, 4294901760
        %v6867 = vsub.f32 %v6865, %v6866
        %v6868 = vand.u32 %v6867, 4294901760
        %6869 = vmatmul.mubr.f32.gmra.mrb[0].mxu0 %v6868
        %v6870 = vpop.f32.mrb[0].mxu0
        %v6871 = vadd.f32 %v6685, %v6870
        %v6872 = vpop.f32.mrb[0].mxu0
        %6873 = vmatprep.mubr.f32.mxu0 0.0
        %v6874 = vand.u32 %v5412, 4294901760
        %v6875 = vsub.f32 %v5412, %v6874
        %v6876 = vand.u32 %v6875, 4294901760
        %v6877 = vsub.f32 %v6875, %v6876
        %v6878 = vand.u32 %v6877, 4294901760
        %6879 = vmatmul.mubr.f32.gmra.mrb[0].mxu0 %v6878
        %v6880 = vpop.f32.mrb[0].mxu0
        %v6881 = vadd.f32 %v6690, %v6880
        %v6882 = vpop.f32.mrb[0].mxu0
        %6883 = vmatprep.mubr.f32.mxu0 0.0
        %v6884 = vand.u32 %v5413, 4294901760
        %v6885 = vsub.f32 %v5413, %v6884
        %v6886 = vand.u32 %v6885, 4294901760
        %v6887 = vsub.f32 %v6885, %v6886
        %v6888 = vand.u32 %v6887, 4294901760
        %6889 = vmatmul.mubr.f32.gmra.mrb[0].mxu0 %v6888
        %v6890 = vpop.f32.mrb[0].mxu0
        %v6891 = vadd.f32 %v6695, %v6890
        %v6892 = vpop.f32.mrb[0].mxu0
        %6893 = vmatprep.mubr.f32.mxu0 0.0
        %v6894 = vand.u32 %v5414, 4294901760
        %v6895 = vsub.f32 %v5414, %v6894
        %v6896 = vand.u32 %v6895, 4294901760
        %v6897 = vsub.f32 %v6895, %v6896
        %v6898 = vand.u32 %v6897, 4294901760
        %6899 = vmatmul.mubr.f32.gmra.mrb[0].mxu0 %v6898
        %v6900 = vpop.f32.mrb[0].mxu0
        %v6901 = vadd.f32 %v6700, %v6900
        %v6902 = vpop.f32.mrb[0].mxu0
        %6903 = vmatprep.mubr.f32.mxu0 0.0
        %v6904 = vand.u32 %v5415, 4294901760
        %v6905 = vsub.f32 %v5415, %v6904
        %v6906 = vand.u32 %v6905, 4294901760
        %v6907 = vsub.f32 %v6905, %v6906
        %v6908 = vand.u32 %v6907, 4294901760
        %6909 = vmatmul.mubr.f32.gmra.mrb[0].mxu0 %v6908
        %v6910 = vpop.f32.mrb[0].mxu0
        %v6911 = vadd.f32 %v6705, %v6910
        %v6912 = vpop.f32.mrb[0].mxu0
        %6913 = vmatprep.mubr.f32.mxu0 0.0
        %v6914 = vand.u32 %v5416, 4294901760
        %v6915 = vsub.f32 %v5416, %v6914
        %v6916 = vand.u32 %v6915, 4294901760
        %v6917 = vsub.f32 %v6915, %v6916
        %v6918 = vand.u32 %v6917, 4294901760
        %6919 = vmatmul.mubr.f32.gmra.mrb[0].mxu0 %v6918
        %v6920 = vpop.f32.mrb[0].mxu0
        %v6921 = vadd.f32 %v6710, %v6920
        %v6922 = vpop.f32.mrb[0].mxu0
        %6923 = vmatprep.mubr.f32.mxu0 0.0
        %v6924 = vand.u32 %v5417, 4294901760
        %v6925 = vsub.f32 %v5417, %v6924
        %v6926 = vand.u32 %v6925, 4294901760
        %v6927 = vsub.f32 %v6925, %v6926
        %v6928 = vand.u32 %v6927, 4294901760
        %6929 = vmatmul.mubr.f32.gmra.mrb[0].mxu0 %v6928
        %v6930 = vpop.f32.mrb[0].mxu0
        %v6931 = vadd.f32 %v6715, %v6930
        %v6932 = vpop.f32.mrb[0].mxu0
        %6933 = vmatprep.mubr.f32.mxu0 0.0
        %v6934 = vand.u32 %v5418, 4294901760
        %v6935 = vsub.f32 %v5418, %v6934
        %v6936 = vand.u32 %v6935, 4294901760
        %v6937 = vsub.f32 %v6935, %v6936
        %v6938 = vand.u32 %v6937, 4294901760
        %6939 = vmatmul.mubr.f32.gmra.mrb[0].mxu0 %v6938
        %v6940 = vpop.f32.mrb[0].mxu0
        %v6941 = vadd.f32 %v6720, %v6940
        %v6942 = vpop.f32.mrb[0].mxu0
        %6943 = vmatprep.mubr.f32.mxu0 0.0
        %v6944 = vand.u32 %v5419, 4294901760
        %v6945 = vsub.f32 %v5419, %v6944
        %v6946 = vand.u32 %v6945, 4294901760
        %v6947 = vsub.f32 %v6945, %v6946
        %v6948 = vand.u32 %v6947, 4294901760
        %6949 = vmatmul.mubr.f32.gmra.mrb[0].mxu0 %v6948
        %v6950 = vpop.f32.mrb[0].mxu0
        %v6951 = vadd.f32 %v6725, %v6950
        %v6952 = vpop.f32.mrb[0].mxu0
        %6953 = vmatprep.mubr.f32.mxu0 0.0
        %v6954 = vand.u32 %v5420, 4294901760
        %v6955 = vsub.f32 %v5420, %v6954
        %v6956 = vand.u32 %v6955, 4294901760
        %v6957 = vsub.f32 %v6955, %v6956
        %v6958 = vand.u32 %v6957, 4294901760
        %6959 = vmatmul.mubr.f32.gmra.mrb[0].mxu0 %v6958
        %v6960 = vpop.f32.mrb[0].mxu0
        %v6961 = vadd.f32 %v6730, %v6960
        %v6962 = vpop.f32.mrb[0].mxu0
        %6963 = vmatprep.mubr.f32.mxu0 0.0
        %v6964 = vand.u32 %v5421, 4294901760
        %v6965 = vsub.f32 %v5421, %v6964
        %v6966 = vand.u32 %v6965, 4294901760
        %v6967 = vsub.f32 %v6965, %v6966
        %v6968 = vand.u32 %v6967, 4294901760
        %6969 = vmatmul.mubr.f32.gmra.mrb[0].mxu0 %v6968
        %v6970 = vpop.f32.mrb[0].mxu0
        %v6971 = vadd.f32 %v6735, %v6970
        %v6972 = vpop.f32.mrb[0].mxu0
        %6973 = vmatprep.mubr.f32.mxu0 0.0
        %v6974 = vand.u32 %v5422, 4294901760
        %v6975 = vsub.f32 %v5422, %v6974
        %v6976 = vand.u32 %v6975, 4294901760
        %v6977 = vsub.f32 %v6975, %v6976
        %v6978 = vand.u32 %v6977, 4294901760
        %6979 = vmatmul.mubr.f32.gmra.mrb[0].mxu0 %v6978
        %v6980 = vpop.f32.mrb[0].mxu0
        %v6981 = vadd.f32 %v6740, %v6980
        %v6982 = vpop.f32.mrb[0].mxu0
        %6983 = vdwg.mxu0
        %6984 = vmatprep.subr.mxu0 0.0
        %v6985 = vand.u32 %v5423, 4294901760
        %v6986 = vsub.f32 %v5423, %v6985
        %v6987 = vand.u32 %v6986, 4294901760
        %v6988 = vsub.f32 %v6986, %v6987
        %v6989 = vand.u32 %v6988, 4294901760
        %6990 = vmatpush1.msra.mxu0 %v6989
        %6991 = vmatprep.subr.mxu0 0.0
        %v6992 = vand.u32 %v5424, 4294901760
        %v6993 = vsub.f32 %v5424, %v6992
        %v6994 = vand.u32 %v6993, 4294901760
        %v6995 = vsub.f32 %v6993, %v6994
        %v6996 = vand.u32 %v6995, 4294901760
        %6997 = vmatpush1.msra.mxu0 %v6996
        %6998 = vmatprep.subr.mxu0 0.0
        %v6999 = vand.u32 %v5425, 4294901760
        %v7000 = vsub.f32 %v5425, %v6999
        %v7001 = vand.u32 %v7000, 4294901760
        %v7002 = vsub.f32 %v7000, %v7001
        %v7003 = vand.u32 %v7002, 4294901760
        %7004 = vmatpush1.msra.mxu0 %v7003
        %7005 = vmatprep.subr.mxu0 0.0
        %v7006 = vand.u32 %v5426, 4294901760
        %v7007 = vsub.f32 %v5426, %v7006
        %v7008 = vand.u32 %v7007, 4294901760
        %v7009 = vsub.f32 %v7007, %v7008
        %v7010 = vand.u32 %v7009, 4294901760
        %7011 = vmatpush1.msra.mxu0 %v7010
        %7012 = vmatprep.subr.mxu0 0.0
        %v7013 = vand.u32 %v5427, 4294901760
        %v7014 = vsub.f32 %v5427, %v7013
        %v7015 = vand.u32 %v7014, 4294901760
        %v7016 = vsub.f32 %v7014, %v7015
        %v7017 = vand.u32 %v7016, 4294901760
        %7018 = vmatpush1.msra.mxu0 %v7017
        %7019 = vmatprep.subr.mxu0 0.0
        %v7020 = vand.u32 %v5428, 4294901760
        %v7021 = vsub.f32 %v5428, %v7020
        %v7022 = vand.u32 %v7021, 4294901760
        %v7023 = vsub.f32 %v7021, %v7022
        %v7024 = vand.u32 %v7023, 4294901760
        %7025 = vmatpush1.msra.mxu0 %v7024
        %7026 = vmatprep.subr.mxu0 0.0
        %v7027 = vand.u32 %v5429, 4294901760
        %v7028 = vsub.f32 %v5429, %v7027
        %v7029 = vand.u32 %v7028, 4294901760
        %v7030 = vsub.f32 %v7028, %v7029
        %v7031 = vand.u32 %v7030, 4294901760
        %7032 = vmatpush1.msra.mxu0 %v7031
        %7033 = vmatprep.subr.mxu0 0.0
        %v7034 = vand.u32 %v5430, 4294901760
        %v7035 = vsub.f32 %v5430, %v7034
        %v7036 = vand.u32 %v7035, 4294901760
        %v7037 = vsub.f32 %v7035, %v7036
        %v7038 = vand.u32 %v7037, 4294901760
        %7039 = vmatpush1.msra.mxu0 %v7038
        %7040 = vmatprep.subr.mxu0 0.0
        %v7041 = vand.u32 %v5431, 4294901760
        %v7042 = vsub.f32 %v5431, %v7041
        %v7043 = vand.u32 %v7042, 4294901760
        %v7044 = vsub.f32 %v7042, %v7043
        %v7045 = vand.u32 %v7044, 4294901760
        %7046 = vmatpush1.msra.mxu0 %v7045
        %7047 = vmatprep.subr.mxu0 0.0
        %v7048 = vand.u32 %v5432, 4294901760
        %v7049 = vsub.f32 %v5432, %v7048
        %v7050 = vand.u32 %v7049, 4294901760
        %v7051 = vsub.f32 %v7049, %v7050
        %v7052 = vand.u32 %v7051, 4294901760
        %7053 = vmatpush1.msra.mxu0 %v7052
        %7054 = vmatprep.subr.mxu0 0.0
        %v7055 = vand.u32 %v5433, 4294901760
        %v7056 = vsub.f32 %v5433, %v7055
        %v7057 = vand.u32 %v7056, 4294901760
        %v7058 = vsub.f32 %v7056, %v7057
        %v7059 = vand.u32 %v7058, 4294901760
        %7060 = vmatpush1.msra.mxu0 %v7059
        %7061 = vmatprep.subr.mxu0 0.0
        %v7062 = vand.u32 %v5434, 4294901760
        %v7063 = vsub.f32 %v5434, %v7062
        %v7064 = vand.u32 %v7063, 4294901760
        %v7065 = vsub.f32 %v7063, %v7064
        %v7066 = vand.u32 %v7065, 4294901760
        %7067 = vmatpush1.msra.mxu0 %v7066
        %7068 = vmatprep.subr.mxu0 0.0
        %v7069 = vand.u32 %v5435, 4294901760
        %v7070 = vsub.f32 %v5435, %v7069
        %v7071 = vand.u32 %v7070, 4294901760
        %v7072 = vsub.f32 %v7070, %v7071
        %v7073 = vand.u32 %v7072, 4294901760
        %7074 = vmatpush1.msra.mxu0 %v7073
        %7075 = vmatprep.subr.mxu0 0.0
        %v7076 = vand.u32 %v5436, 4294901760
        %v7077 = vsub.f32 %v5436, %v7076
        %v7078 = vand.u32 %v7077, 4294901760
        %v7079 = vsub.f32 %v7077, %v7078
        %v7080 = vand.u32 %v7079, 4294901760
        %7081 = vmatpush1.msra.mxu0 %v7080
        %7082 = vmatprep.subr.mxu0 0.0
        %v7083 = vand.u32 %v5437, 4294901760
        %v7084 = vsub.f32 %v5437, %v7083
        %v7085 = vand.u32 %v7084, 4294901760
        %v7086 = vsub.f32 %v7084, %v7085
        %v7087 = vand.u32 %v7086, 4294901760
        %7088 = vmatpush1.msra.mxu0 %v7087
        %7089 = vmatprep.subr.mxu0 0.0
        %v7090 = vand.u32 %v5438, 4294901760
        %v7091 = vsub.f32 %v5438, %v7090
        %v7092 = vand.u32 %v7091, 4294901760
        %v7093 = vsub.f32 %v7091, %v7092
        %v7094 = vand.u32 %v7093, 4294901760
        %7095 = vmatpush1.msra.mxu0 %v7094
        %7096 = vmatprep.subr.mxu0 0.0
        %7097 = vmatpush1.msra.mxu0 0.0
        %7098 = vmatprep.subr.mxu0 0.0
        %7099 = vmatpush1.msra.mxu0 0.0
        %7100 = vmatprep.subr.mxu0 0.0
        %7101 = vmatpush1.msra.mxu0 0.0
        %7102 = vmatprep.subr.mxu0 0.0
        %7103 = vmatpush1.msra.mxu0 0.0
        %7104 = vmatprep.subr.mxu0 0.0
        %7105 = vmatpush1.msra.mxu0 0.0
        %7106 = vmatprep.subr.mxu0 0.0
        %7107 = vmatpush1.msra.mxu0 0.0
        %7108 = vmatprep.subr.mxu0 0.0
        %7109 = vmatpush1.msra.mxu0 0.0
        %7110 = vmatprep.subr.mxu0 0.0
        %7111 = vmatpush1.msra.mxu0 0.0
        %7112 = vmatprep.subr.mxu0 0.0
        %7113 = vmatpush1.msra.mxu0 0.0
        %7114 = vmatprep.subr.mxu0 0.0
        %7115 = vmatpush1.msra.mxu0 0.0
        %7116 = vmatprep.subr.mxu0 0.0
        %7117 = vmatpush1.msra.mxu0 0.0
        %7118 = vmatprep.subr.mxu0 0.0
        %7119 = vmatpush1.msra.mxu0 0.0
        %7120 = vmatprep.subr.mxu0 0.0
        %7121 = vmatpush1.msra.mxu0 0.0
        %7122 = vmatprep.subr.mxu0 0.0
        %7123 = vmatpush1.msra.mxu0 0.0
        %7124 = vmatprep.subr.mxu0 0.0
        %7125 = vmatpush1.msra.mxu0 0.0
        %7126 = vmatprep.subr.mxu0 0.0
        %7127 = vmatpush1.msra.mxu0 0.0
        %7128 = vmatprep.mubr.f32.mxu0 0.0
        %v7129 = vand.u32 %v5407, 4294901760
        %7130 = vmatmul.mubr.f32.gmra.mrb[0].mxu0 %v7129
        %v7131 = vpop.f32.mrb[0].mxu0
        %v7132 = vadd.f32 %v6831, %v7131
        %v7133 = vpop.f32.mrb[0].mxu0
        %7134 = vmatprep.mubr.f32.mxu0 0.0
        %v7135 = vand.u32 %v5408, 4294901760
        %7136 = vmatmul.mubr.f32.gmra.mrb[0].mxu0 %v7135
        %v7137 = vpop.f32.mrb[0].mxu0
        %v7138 = vadd.f32 %v6841, %v7137
        %v7139 = vpop.f32.mrb[0].mxu0
        %7140 = vmatprep.mubr.f32.mxu0 0.0
        %v7141 = vand.u32 %v5409, 4294901760
        %7142 = vmatmul.mubr.f32.gmra.mrb[0].mxu0 %v7141
        %v7143 = vpop.f32.mrb[0].mxu0
        %v7144 = vadd.f32 %v6851, %v7143
        %v7145 = vpop.f32.mrb[0].mxu0
        %7146 = vmatprep.mubr.f32.mxu0 0.0
        %v7147 = vand.u32 %v5410, 4294901760
        %7148 = vmatmul.mubr.f32.gmra.mrb[0].mxu0 %v7147
        %v7149 = vpop.f32.mrb[0].mxu0
        %v7150 = vadd.f32 %v6861, %v7149
        %v7151 = vpop.f32.mrb[0].mxu0
        %7152 = vmatprep.mubr.f32.mxu0 0.0
        %v7153 = vand.u32 %v5411, 4294901760
        %7154 = vmatmul.mubr.f32.gmra.mrb[0].mxu0 %v7153
        %v7155 = vpop.f32.mrb[0].mxu0
        %v7156 = vadd.f32 %v6871, %v7155
        %v7157 = vpop.f32.mrb[0].mxu0
        %7158 = vmatprep.mubr.f32.mxu0 0.0
        %v7159 = vand.u32 %v5412, 4294901760
        %7160 = vmatmul.mubr.f32.gmra.mrb[0].mxu0 %v7159
        %v7161 = vpop.f32.mrb[0].mxu0
        %v7162 = vadd.f32 %v6881, %v7161
        %v7163 = vpop.f32.mrb[0].mxu0
        %7164 = vmatprep.mubr.f32.mxu0 0.0
        %v7165 = vand.u32 %v5413, 4294901760
        %7166 = vmatmul.mubr.f32.gmra.mrb[0].mxu0 %v7165
        %v7167 = vpop.f32.mrb[0].mxu0
        %v7168 = vadd.f32 %v6891, %v7167
        %v7169 = vpop.f32.mrb[0].mxu0
        %7170 = vmatprep.mubr.f32.mxu0 0.0
        %v7171 = vand.u32 %v5414, 4294901760
        %7172 = vmatmul.mubr.f32.gmra.mrb[0].mxu0 %v7171
        %v7173 = vpop.f32.mrb[0].mxu0
        %v7174 = vadd.f32 %v6901, %v7173
        %v7175 = vpop.f32.mrb[0].mxu0
        %7176 = vmatprep.mubr.f32.mxu0 0.0
        %v7177 = vand.u32 %v5415, 4294901760
        %7178 = vmatmul.mubr.f32.gmra.mrb[0].mxu0 %v7177
        %v7179 = vpop.f32.mrb[0].mxu0
        %v7180 = vadd.f32 %v6911, %v7179
        %v7181 = vpop.f32.mrb[0].mxu0
        %7182 = vmatprep.mubr.f32.mxu0 0.0
        %v7183 = vand.u32 %v5416, 4294901760
        %7184 = vmatmul.mubr.f32.gmra.mrb[0].mxu0 %v7183
        %v7185 = vpop.f32.mrb[0].mxu0
        %v7186 = vadd.f32 %v6921, %v7185
        %v7187 = vpop.f32.mrb[0].mxu0
        %7188 = vmatprep.mubr.f32.mxu0 0.0
        %v7189 = vand.u32 %v5417, 4294901760
        %7190 = vmatmul.mubr.f32.gmra.mrb[0].mxu0 %v7189
        %v7191 = vpop.f32.mrb[0].mxu0
        %v7192 = vadd.f32 %v6931, %v7191
        %v7193 = vpop.f32.mrb[0].mxu0
        %7194 = vmatprep.mubr.f32.mxu0 0.0
        %v7195 = vand.u32 %v5418, 4294901760
        %7196 = vmatmul.mubr.f32.gmra.mrb[0].mxu0 %v7195
        %v7197 = vpop.f32.mrb[0].mxu0
        %v7198 = vadd.f32 %v6941, %v7197
        %v7199 = vpop.f32.mrb[0].mxu0
        %7200 = vmatprep.mubr.f32.mxu0 0.0
        %v7201 = vand.u32 %v5419, 4294901760
        %7202 = vmatmul.mubr.f32.gmra.mrb[0].mxu0 %v7201
        %v7203 = vpop.f32.mrb[0].mxu0
        %v7204 = vadd.f32 %v6951, %v7203
        %v7205 = vpop.f32.mrb[0].mxu0
        %7206 = vmatprep.mubr.f32.mxu0 0.0
        %v7207 = vand.u32 %v5420, 4294901760
        %7208 = vmatmul.mubr.f32.gmra.mrb[0].mxu0 %v7207
        %v7209 = vpop.f32.mrb[0].mxu0
        %v7210 = vadd.f32 %v6961, %v7209
        %v7211 = vpop.f32.mrb[0].mxu0
        %7212 = vmatprep.mubr.f32.mxu0 0.0
        %v7213 = vand.u32 %v5421, 4294901760
        %7214 = vmatmul.mubr.f32.gmra.mrb[0].mxu0 %v7213
        %v7215 = vpop.f32.mrb[0].mxu0
        %v7216 = vadd.f32 %v6971, %v7215
        %v7217 = vpop.f32.mrb[0].mxu0
        %7218 = vmatprep.mubr.f32.mxu0 0.0
        %v7219 = vand.u32 %v5422, 4294901760
        %7220 = vmatmul.mubr.f32.gmra.mrb[0].mxu0 %v7219
        %v7221 = vpop.f32.mrb[0].mxu0
        %v7222 = vadd.f32 %v6981, %v7221
        %v7223 = vpop.f32.mrb[0].mxu0
        %7224 = vdwg.mxu0
        %7225 = vmatprep.subr.mxu0 0.0
        %v7226 = vand.u32 %v5423, 4294901760
        %v7227 = vsub.f32 %v5423, %v7226
        %7228 = vmatpush1.msra.mxu0 %v7227
        %7229 = vmatprep.subr.mxu0 0.0
        %v7230 = vand.u32 %v5424, 4294901760
        %v7231 = vsub.f32 %v5424, %v7230
        %7232 = vmatpush1.msra.mxu0 %v7231
        %7233 = vmatprep.subr.mxu0 0.0
        %v7234 = vand.u32 %v5425, 4294901760
        %v7235 = vsub.f32 %v5425, %v7234
        %7236 = vmatpush1.msra.mxu0 %v7235
        %7237 = vmatprep.subr.mxu0 0.0
        %v7238 = vand.u32 %v5426, 4294901760
        %v7239 = vsub.f32 %v5426, %v7238
        %7240 = vmatpush1.msra.mxu0 %v7239
        %7241 = vmatprep.subr.mxu0 0.0
        %v7242 = vand.u32 %v5427, 4294901760
        %v7243 = vsub.f32 %v5427, %v7242
        %7244 = vmatpush1.msra.mxu0 %v7243
        %7245 = vmatprep.subr.mxu0 0.0
        %v7246 = vand.u32 %v5428, 4294901760
        %v7247 = vsub.f32 %v5428, %v7246
        %7248 = vmatpush1.msra.mxu0 %v7247
        %7249 = vmatprep.subr.mxu0 0.0
        %v7250 = vand.u32 %v5429, 4294901760
        %v7251 = vsub.f32 %v5429, %v7250
        %7252 = vmatpush1.msra.mxu0 %v7251
        %7253 = vmatprep.subr.mxu0 0.0
        %v7254 = vand.u32 %v5430, 4294901760
        %v7255 = vsub.f32 %v5430, %v7254
        %7256 = vmatpush1.msra.mxu0 %v7255
        %7257 = vmatprep.subr.mxu0 0.0
        %v7258 = vand.u32 %v5431, 4294901760
        %v7259 = vsub.f32 %v5431, %v7258
        %7260 = vmatpush1.msra.mxu0 %v7259
        %7261 = vmatprep.subr.mxu0 0.0
        %v7262 = vand.u32 %v5432, 4294901760
        %v7263 = vsub.f32 %v5432, %v7262
        %7264 = vmatpush1.msra.mxu0 %v7263
        %7265 = vmatprep.subr.mxu0 0.0
        %v7266 = vand.u32 %v5433, 4294901760
        %v7267 = vsub.f32 %v5433, %v7266
        %7268 = vmatpush1.msra.mxu0 %v7267
        %7269 = vmatprep.subr.mxu0 0.0
        %v7270 = vand.u32 %v5434, 4294901760
        %v7271 = vsub.f32 %v5434, %v7270
        %7272 = vmatpush1.msra.mxu0 %v7271
        %7273 = vmatprep.subr.mxu0 0.0
        %v7274 = vand.u32 %v5435, 4294901760
        %v7275 = vsub.f32 %v5435, %v7274
        %7276 = vmatpush1.msra.mxu0 %v7275
        %7277 = vmatprep.subr.mxu0 0.0
        %v7278 = vand.u32 %v5436, 4294901760
        %v7279 = vsub.f32 %v5436, %v7278
        %7280 = vmatpush1.msra.mxu0 %v7279
        %7281 = vmatprep.subr.mxu0 0.0
        %v7282 = vand.u32 %v5437, 4294901760
        %v7283 = vsub.f32 %v5437, %v7282
        %7284 = vmatpush1.msra.mxu0 %v7283
        %7285 = vmatprep.subr.mxu0 0.0
        %v7286 = vand.u32 %v5438, 4294901760
        %v7287 = vsub.f32 %v5438, %v7286
        %7288 = vmatpush1.msra.mxu0 %v7287
        %7289 = vmatprep.subr.mxu0 0.0
        %7290 = vmatpush1.msra.mxu0 0.0
        %7291 = vmatprep.subr.mxu0 0.0
        %7292 = vmatpush1.msra.mxu0 0.0
        %7293 = vmatprep.subr.mxu0 0.0
        %7294 = vmatpush1.msra.mxu0 0.0
        %7295 = vmatprep.subr.mxu0 0.0
        %7296 = vmatpush1.msra.mxu0 0.0
        %7297 = vmatprep.subr.mxu0 0.0
        %7298 = vmatpush1.msra.mxu0 0.0
        %7299 = vmatprep.subr.mxu0 0.0
        %7300 = vmatpush1.msra.mxu0 0.0
        %7301 = vmatprep.subr.mxu0 0.0
        %7302 = vmatpush1.msra.mxu0 0.0
        %7303 = vmatprep.subr.mxu0 0.0
        %7304 = vmatpush1.msra.mxu0 0.0
        %7305 = vmatprep.subr.mxu0 0.0
        %7306 = vmatpush1.msra.mxu0 0.0
        %7307 = vmatprep.subr.mxu0 0.0
        %7308 = vmatpush1.msra.mxu0 0.0
        %7309 = vmatprep.subr.mxu0 0.0
        %7310 = vmatpush1.msra.mxu0 0.0
        %7311 = vmatprep.subr.mxu0 0.0
        %7312 = vmatpush1.msra.mxu0 0.0
        %7313 = vmatprep.subr.mxu0 0.0
        %7314 = vmatpush1.msra.mxu0 0.0
        %7315 = vmatprep.subr.mxu0 0.0
        %7316 = vmatpush1.msra.mxu0 0.0
        %7317 = vmatprep.subr.mxu0 0.0
        %7318 = vmatpush1.msra.mxu0 0.0
        %7319 = vmatprep.subr.mxu0 0.0
        %7320 = vmatpush1.msra.mxu0 0.0
        %7321 = vmatprep.mubr.f32.mxu0 0.0
        %v7322 = vand.u32 %v5407, 4294901760
        %v7323 = vsub.f32 %v5407, %v7322
        %7324 = vmatmul.mubr.f32.gmra.mrb[0].mxu0 %v7323
        %v7325 = vpop.f32.mrb[0].mxu0
        %v7326 = vadd.f32 %v7132, %v7325
        %v7327 = vpop.f32.mrb[0].mxu0
        %7328 = vmatprep.mubr.f32.mxu0 0.0
        %v7329 = vand.u32 %v5408, 4294901760
        %v7330 = vsub.f32 %v5408, %v7329
        %7331 = vmatmul.mubr.f32.gmra.mrb[0].mxu0 %v7330
        %v7332 = vpop.f32.mrb[0].mxu0
        %v7333 = vadd.f32 %v7138, %v7332
        %v7334 = vpop.f32.mrb[0].mxu0
        %7335 = vmatprep.mubr.f32.mxu0 0.0
        %v7336 = vand.u32 %v5409, 4294901760
        %v7337 = vsub.f32 %v5409, %v7336
        %7338 = vmatmul.mubr.f32.gmra.mrb[0].mxu0 %v7337
        %v7339 = vpop.f32.mrb[0].mxu0
        %v7340 = vadd.f32 %v7144, %v7339
        %v7341 = vpop.f32.mrb[0].mxu0
        %7342 = vmatprep.mubr.f32.mxu0 0.0
        %v7343 = vand.u32 %v5410, 4294901760
        %v7344 = vsub.f32 %v5410, %v7343
        %7345 = vmatmul.mubr.f32.gmra.mrb[0].mxu0 %v7344
        %v7346 = vpop.f32.mrb[0].mxu0
        %v7347 = vadd.f32 %v7150, %v7346
        %v7348 = vpop.f32.mrb[0].mxu0
        %7349 = vmatprep.mubr.f32.mxu0 0.0
        %v7350 = vand.u32 %v5411, 4294901760
        %v7351 = vsub.f32 %v5411, %v7350
        %7352 = vmatmul.mubr.f32.gmra.mrb[0].mxu0 %v7351
        %v7353 = vpop.f32.mrb[0].mxu0
        %v7354 = vadd.f32 %v7156, %v7353
        %v7355 = vpop.f32.mrb[0].mxu0
        %7356 = vmatprep.mubr.f32.mxu0 0.0
        %v7357 = vand.u32 %v5412, 4294901760
        %v7358 = vsub.f32 %v5412, %v7357
        %7359 = vmatmul.mubr.f32.gmra.mrb[0].mxu0 %v7358
        %v7360 = vpop.f32.mrb[0].mxu0
        %v7361 = vadd.f32 %v7162, %v7360
        %v7362 = vpop.f32.mrb[0].mxu0
        %7363 = vmatprep.mubr.f32.mxu0 0.0
        %v7364 = vand.u32 %v5413, 4294901760
        %v7365 = vsub.f32 %v5413, %v7364
        %7366 = vmatmul.mubr.f32.gmra.mrb[0].mxu0 %v7365
        %v7367 = vpop.f32.mrb[0].mxu0
        %v7368 = vadd.f32 %v7168, %v7367
        %v7369 = vpop.f32.mrb[0].mxu0
        %7370 = vmatprep.mubr.f32.mxu0 0.0
        %v7371 = vand.u32 %v5414, 4294901760
        %v7372 = vsub.f32 %v5414, %v7371
        %7373 = vmatmul.mubr.f32.gmra.mrb[0].mxu0 %v7372
        %v7374 = vpop.f32.mrb[0].mxu0
        %v7375 = vadd.f32 %v7174, %v7374
        %v7376 = vpop.f32.mrb[0].mxu0
        %7377 = vmatprep.mubr.f32.mxu0 0.0
        %v7378 = vand.u32 %v5415, 4294901760
        %v7379 = vsub.f32 %v5415, %v7378
        %7380 = vmatmul.mubr.f32.gmra.mrb[0].mxu0 %v7379
        %v7381 = vpop.f32.mrb[0].mxu0
        %v7382 = vadd.f32 %v7180, %v7381
        %v7383 = vpop.f32.mrb[0].mxu0
        %7384 = vmatprep.mubr.f32.mxu0 0.0
        %v7385 = vand.u32 %v5416, 4294901760
        %v7386 = vsub.f32 %v5416, %v7385
        %7387 = vmatmul.mubr.f32.gmra.mrb[0].mxu0 %v7386
        %v7388 = vpop.f32.mrb[0].mxu0
        %v7389 = vadd.f32 %v7186, %v7388
        %v7390 = vpop.f32.mrb[0].mxu0
        %7391 = vmatprep.mubr.f32.mxu0 0.0
        %v7392 = vand.u32 %v5417, 4294901760
        %v7393 = vsub.f32 %v5417, %v7392
        %7394 = vmatmul.mubr.f32.gmra.mrb[0].mxu0 %v7393
        %v7395 = vpop.f32.mrb[0].mxu0
        %v7396 = vadd.f32 %v7192, %v7395
        %v7397 = vpop.f32.mrb[0].mxu0
        %7398 = vmatprep.mubr.f32.mxu0 0.0
        %v7399 = vand.u32 %v5418, 4294901760
        %v7400 = vsub.f32 %v5418, %v7399
        %7401 = vmatmul.mubr.f32.gmra.mrb[0].mxu0 %v7400
        %v7402 = vpop.f32.mrb[0].mxu0
        %v7403 = vadd.f32 %v7198, %v7402
        %v7404 = vpop.f32.mrb[0].mxu0
        %7405 = vmatprep.mubr.f32.mxu0 0.0
        %v7406 = vand.u32 %v5419, 4294901760
        %v7407 = vsub.f32 %v5419, %v7406
        %7408 = vmatmul.mubr.f32.gmra.mrb[0].mxu0 %v7407
        %v7409 = vpop.f32.mrb[0].mxu0
        %v7410 = vadd.f32 %v7204, %v7409
        %v7411 = vpop.f32.mrb[0].mxu0
        %7412 = vmatprep.mubr.f32.mxu0 0.0
        %v7413 = vand.u32 %v5420, 4294901760
        %v7414 = vsub.f32 %v5420, %v7413
        %7415 = vmatmul.mubr.f32.gmra.mrb[0].mxu0 %v7414
        %v7416 = vpop.f32.mrb[0].mxu0
        %v7417 = vadd.f32 %v7210, %v7416
        %v7418 = vpop.f32.mrb[0].mxu0
        %7419 = vmatprep.mubr.f32.mxu0 0.0
        %v7420 = vand.u32 %v5421, 4294901760
        %v7421 = vsub.f32 %v5421, %v7420
        %7422 = vmatmul.mubr.f32.gmra.mrb[0].mxu0 %v7421
        %v7423 = vpop.f32.mrb[0].mxu0
        %v7424 = vadd.f32 %v7216, %v7423
        %v7425 = vpop.f32.mrb[0].mxu0
        %7426 = vmatprep.mubr.f32.mxu0 0.0
        %v7427 = vand.u32 %v5422, 4294901760
        %v7428 = vsub.f32 %v5422, %v7427
        %7429 = vmatmul.mubr.f32.gmra.mrb[0].mxu0 %v7428
        %v7430 = vpop.f32.mrb[0].mxu0
        %v7431 = vadd.f32 %v7222, %v7430
        %v7432 = vpop.f32.mrb[0].mxu0
        %7433 = vdwg.mxu0
        %7434 = vmatprep.subr.mxu0 0.0
        %v7435 = vand.u32 %v5423, 4294901760
        %7436 = vmatpush1.msra.mxu0 %v7435
        %7437 = vmatprep.subr.mxu0 0.0
        %v7438 = vand.u32 %v5424, 4294901760
        %7439 = vmatpush1.msra.mxu0 %v7438
        %7440 = vmatprep.subr.mxu0 0.0
        %v7441 = vand.u32 %v5425, 4294901760
        %7442 = vmatpush1.msra.mxu0 %v7441
        %7443 = vmatprep.subr.mxu0 0.0
        %v7444 = vand.u32 %v5426, 4294901760
        %7445 = vmatpush1.msra.mxu0 %v7444
        %7446 = vmatprep.subr.mxu0 0.0
        %v7447 = vand.u32 %v5427, 4294901760
        %7448 = vmatpush1.msra.mxu0 %v7447
        %7449 = vmatprep.subr.mxu0 0.0
        %v7450 = vand.u32 %v5428, 4294901760
        %7451 = vmatpush1.msra.mxu0 %v7450
        %7452 = vmatprep.subr.mxu0 0.0
        %v7453 = vand.u32 %v5429, 4294901760
        %7454 = vmatpush1.msra.mxu0 %v7453
        %7455 = vmatprep.subr.mxu0 0.0
        %v7456 = vand.u32 %v5430, 4294901760
        %7457 = vmatpush1.msra.mxu0 %v7456
        %7458 = vmatprep.subr.mxu0 0.0
        %v7459 = vand.u32 %v5431, 4294901760
        %7460 = vmatpush1.msra.mxu0 %v7459
        %7461 = vmatprep.subr.mxu0 0.0
        %v7462 = vand.u32 %v5432, 4294901760
        %7463 = vmatpush1.msra.mxu0 %v7462
        %7464 = vmatprep.subr.mxu0 0.0
        %v7465 = vand.u32 %v5433, 4294901760
        %7466 = vmatpush1.msra.mxu0 %v7465
        %7467 = vmatprep.subr.mxu0 0.0
        %v7468 = vand.u32 %v5434, 4294901760
        %7469 = vmatpush1.msra.mxu0 %v7468
        %7470 = vmatprep.subr.mxu0 0.0
        %v7471 = vand.u32 %v5435, 4294901760
        %7472 = vmatpush1.msra.mxu0 %v7471
        %7473 = vmatprep.subr.mxu0 0.0
        %v7474 = vand.u32 %v5436, 4294901760
        %7475 = vmatpush1.msra.mxu0 %v7474
        %7476 = vmatprep.subr.mxu0 0.0
        %v7477 = vand.u32 %v5437, 4294901760
        %7478 = vmatpush1.msra.mxu0 %v7477
        %7479 = vmatprep.subr.mxu0 0.0
        %v7480 = vand.u32 %v5438, 4294901760
        %7481 = vmatpush1.msra.mxu0 %v7480
        %7482 = vmatprep.subr.mxu0 0.0
        %7483 = vmatpush1.msra.mxu0 0.0
        %7484 = vmatprep.subr.mxu0 0.0
        %7485 = vmatpush1.msra.mxu0 0.0
        %7486 = vmatprep.subr.mxu0 0.0
        %7487 = vmatpush1.msra.mxu0 0.0
        %7488 = vmatprep.subr.mxu0 0.0
        %7489 = vmatpush1.msra.mxu0 0.0
        %7490 = vmatprep.subr.mxu0 0.0
        %7491 = vmatpush1.msra.mxu0 0.0
        %7492 = vmatprep.subr.mxu0 0.0
        %7493 = vmatpush1.msra.mxu0 0.0
        %7494 = vmatprep.subr.mxu0 0.0
        %7495 = vmatpush1.msra.mxu0 0.0
        %7496 = vmatprep.subr.mxu0 0.0
        %7497 = vmatpush1.msra.mxu0 0.0
        %7498 = vmatprep.subr.mxu0 0.0
        %7499 = vmatpush1.msra.mxu0 0.0
        %7500 = vmatprep.subr.mxu0 0.0
        %7501 = vmatpush1.msra.mxu0 0.0
        %7502 = vmatprep.subr.mxu0 0.0
        %7503 = vmatpush1.msra.mxu0 0.0
        %7504 = vmatprep.subr.mxu0 0.0
        %7505 = vmatpush1.msra.mxu0 0.0
        %7506 = vmatprep.subr.mxu0 0.0
        %7507 = vmatpush1.msra.mxu0 0.0
        %7508 = vmatprep.subr.mxu0 0.0
        %7509 = vmatpush1.msra.mxu0 0.0
        %7510 = vmatprep.subr.mxu0 0.0
        %7511 = vmatpush1.msra.mxu0 0.0
        %7512 = vmatprep.subr.mxu0 0.0
        %7513 = vmatpush1.msra.mxu0 0.0
        %7514 = vmatprep.mubr.f32.mxu0 0.0
        %v7515 = vand.u32 %v5407, 4294901760
        %v7516 = vsub.f32 %v5407, %v7515
        %v7517 = vand.u32 %v7516, 4294901760
        %7518 = vmatmul.mubr.f32.gmra.mrb[0].mxu0 %v7517
        %v7519 = vpop.f32.mrb[0].mxu0
        %v7520 = vadd.f32 %v7326, %v7519
        %v7521 = vpop.f32.mrb[0].mxu0
        %7522 = vmatprep.mubr.f32.mxu0 0.0
        %v7523 = vand.u32 %v5408, 4294901760
        %v7524 = vsub.f32 %v5408, %v7523
        %v7525 = vand.u32 %v7524, 4294901760
        %7526 = vmatmul.mubr.f32.gmra.mrb[0].mxu0 %v7525
        %v7527 = vpop.f32.mrb[0].mxu0
        %v7528 = vadd.f32 %v7333, %v7527
        %v7529 = vpop.f32.mrb[0].mxu0
        %7530 = vmatprep.mubr.f32.mxu0 0.0
        %v7531 = vand.u32 %v5409, 4294901760
        %v7532 = vsub.f32 %v5409, %v7531
        %v7533 = vand.u32 %v7532, 4294901760
        %7534 = vmatmul.mubr.f32.gmra.mrb[0].mxu0 %v7533
        %v7535 = vpop.f32.mrb[0].mxu0
        %v7536 = vadd.f32 %v7340, %v7535
        %v7537 = vpop.f32.mrb[0].mxu0
        %7538 = vmatprep.mubr.f32.mxu0 0.0
        %v7539 = vand.u32 %v5410, 4294901760
        %v7540 = vsub.f32 %v5410, %v7539
        %v7541 = vand.u32 %v7540, 4294901760
        %7542 = vmatmul.mubr.f32.gmra.mrb[0].mxu0 %v7541
        %v7543 = vpop.f32.mrb[0].mxu0
        %v7544 = vadd.f32 %v7347, %v7543
        %v7545 = vpop.f32.mrb[0].mxu0
        %7546 = vmatprep.mubr.f32.mxu0 0.0
        %v7547 = vand.u32 %v5411, 4294901760
        %v7548 = vsub.f32 %v5411, %v7547
        %v7549 = vand.u32 %v7548, 4294901760
        %7550 = vmatmul.mubr.f32.gmra.mrb[0].mxu0 %v7549
        %v7551 = vpop.f32.mrb[0].mxu0
        %v7552 = vadd.f32 %v7354, %v7551
        %v7553 = vpop.f32.mrb[0].mxu0
        %7554 = vmatprep.mubr.f32.mxu0 0.0
        %v7555 = vand.u32 %v5412, 4294901760
        %v7556 = vsub.f32 %v5412, %v7555
        %v7557 = vand.u32 %v7556, 4294901760
        %7558 = vmatmul.mubr.f32.gmra.mrb[0].mxu0 %v7557
        %v7559 = vpop.f32.mrb[0].mxu0
        %v7560 = vadd.f32 %v7361, %v7559
        %v7561 = vpop.f32.mrb[0].mxu0
        %7562 = vmatprep.mubr.f32.mxu0 0.0
        %v7563 = vand.u32 %v5413, 4294901760
        %v7564 = vsub.f32 %v5413, %v7563
        %v7565 = vand.u32 %v7564, 4294901760
        %7566 = vmatmul.mubr.f32.gmra.mrb[0].mxu0 %v7565
        %v7567 = vpop.f32.mrb[0].mxu0
        %v7568 = vadd.f32 %v7368, %v7567
        %v7569 = vpop.f32.mrb[0].mxu0
        %7570 = vmatprep.mubr.f32.mxu0 0.0
        %v7571 = vand.u32 %v5414, 4294901760
        %v7572 = vsub.f32 %v5414, %v7571
        %v7573 = vand.u32 %v7572, 4294901760
        %7574 = vmatmul.mubr.f32.gmra.mrb[0].mxu0 %v7573
        %v7575 = vpop.f32.mrb[0].mxu0
        %v7576 = vadd.f32 %v7375, %v7575
        %v7577 = vpop.f32.mrb[0].mxu0
        %7578 = vmatprep.mubr.f32.mxu0 0.0
        %v7579 = vand.u32 %v5415, 4294901760
        %v7580 = vsub.f32 %v5415, %v7579
        %v7581 = vand.u32 %v7580, 4294901760
        %7582 = vmatmul.mubr.f32.gmra.mrb[0].mxu0 %v7581
        %v7583 = vpop.f32.mrb[0].mxu0
        %v7584 = vadd.f32 %v7382, %v7583
        %v7585 = vpop.f32.mrb[0].mxu0
        %7586 = vmatprep.mubr.f32.mxu0 0.0
        %v7587 = vand.u32 %v5416, 4294901760
        %v7588 = vsub.f32 %v5416, %v7587
        %v7589 = vand.u32 %v7588, 4294901760
        %7590 = vmatmul.mubr.f32.gmra.mrb[0].mxu0 %v7589
        %v7591 = vpop.f32.mrb[0].mxu0
        %v7592 = vadd.f32 %v7389, %v7591
        %v7593 = vpop.f32.mrb[0].mxu0
        %7594 = vmatprep.mubr.f32.mxu0 0.0
        %v7595 = vand.u32 %v5417, 4294901760
        %v7596 = vsub.f32 %v5417, %v7595
        %v7597 = vand.u32 %v7596, 4294901760
        %7598 = vmatmul.mubr.f32.gmra.mrb[0].mxu0 %v7597
        %v7599 = vpop.f32.mrb[0].mxu0
        %v7600 = vadd.f32 %v7396, %v7599
        %v7601 = vpop.f32.mrb[0].mxu0
        %7602 = vmatprep.mubr.f32.mxu0 0.0
        %v7603 = vand.u32 %v5418, 4294901760
        %v7604 = vsub.f32 %v5418, %v7603
        %v7605 = vand.u32 %v7604, 4294901760
        %7606 = vmatmul.mubr.f32.gmra.mrb[0].mxu0 %v7605
        %v7607 = vpop.f32.mrb[0].mxu0
        %v7608 = vadd.f32 %v7403, %v7607
        %v7609 = vpop.f32.mrb[0].mxu0
        %7610 = vmatprep.mubr.f32.mxu0 0.0
        %v7611 = vand.u32 %v5419, 4294901760
        %v7612 = vsub.f32 %v5419, %v7611
        %v7613 = vand.u32 %v7612, 4294901760
        %7614 = vmatmul.mubr.f32.gmra.mrb[0].mxu0 %v7613
        %v7615 = vpop.f32.mrb[0].mxu0
        %v7616 = vadd.f32 %v7410, %v7615
        %v7617 = vpop.f32.mrb[0].mxu0
        %7618 = vmatprep.mubr.f32.mxu0 0.0
        %v7619 = vand.u32 %v5420, 4294901760
        %v7620 = vsub.f32 %v5420, %v7619
        %v7621 = vand.u32 %v7620, 4294901760
        %7622 = vmatmul.mubr.f32.gmra.mrb[0].mxu0 %v7621
        %v7623 = vpop.f32.mrb[0].mxu0
        %v7624 = vadd.f32 %v7417, %v7623
        %v7625 = vpop.f32.mrb[0].mxu0
        %7626 = vmatprep.mubr.f32.mxu0 0.0
        %v7627 = vand.u32 %v5421, 4294901760
        %v7628 = vsub.f32 %v5421, %v7627
        %v7629 = vand.u32 %v7628, 4294901760
        %7630 = vmatmul.mubr.f32.gmra.mrb[0].mxu0 %v7629
        %v7631 = vpop.f32.mrb[0].mxu0
        %v7632 = vadd.f32 %v7424, %v7631
        %v7633 = vpop.f32.mrb[0].mxu0
        %7634 = vmatprep.mubr.f32.mxu0 0.0
        %v7635 = vand.u32 %v5422, 4294901760
        %v7636 = vsub.f32 %v5422, %v7635
        %v7637 = vand.u32 %v7636, 4294901760
        %7638 = vmatmul.mubr.f32.gmra.mrb[0].mxu0 %v7637
        %v7639 = vpop.f32.mrb[0].mxu0
        %v7640 = vadd.f32 %v7431, %v7639
        %v7641 = vpop.f32.mrb[0].mxu0
        %7642 = vdwg.mxu0
        %7643 = vmatprep.subr.mxu0 0.0
        %v7644 = vand.u32 %v5423, 4294901760
        %v7645 = vsub.f32 %v5423, %v7644
        %v7646 = vand.u32 %v7645, 4294901760
        %7647 = vmatpush1.msra.mxu0 %v7646
        %7648 = vmatprep.subr.mxu0 0.0
        %v7649 = vand.u32 %v5424, 4294901760
        %v7650 = vsub.f32 %v5424, %v7649
        %v7651 = vand.u32 %v7650, 4294901760
        %7652 = vmatpush1.msra.mxu0 %v7651
        %7653 = vmatprep.subr.mxu0 0.0
        %v7654 = vand.u32 %v5425, 4294901760
        %v7655 = vsub.f32 %v5425, %v7654
        %v7656 = vand.u32 %v7655, 4294901760
        %7657 = vmatpush1.msra.mxu0 %v7656
        %7658 = vmatprep.subr.mxu0 0.0
        %v7659 = vand.u32 %v5426, 4294901760
        %v7660 = vsub.f32 %v5426, %v7659
        %v7661 = vand.u32 %v7660, 4294901760
        %7662 = vmatpush1.msra.mxu0 %v7661
        %7663 = vmatprep.subr.mxu0 0.0
        %v7664 = vand.u32 %v5427, 4294901760
        %v7665 = vsub.f32 %v5427, %v7664
        %v7666 = vand.u32 %v7665, 4294901760
        %7667 = vmatpush1.msra.mxu0 %v7666
        %7668 = vmatprep.subr.mxu0 0.0
        %v7669 = vand.u32 %v5428, 4294901760
        %v7670 = vsub.f32 %v5428, %v7669
        %v7671 = vand.u32 %v7670, 4294901760
        %7672 = vmatpush1.msra.mxu0 %v7671
        %7673 = vmatprep.subr.mxu0 0.0
        %v7674 = vand.u32 %v5429, 4294901760
        %v7675 = vsub.f32 %v5429, %v7674
        %v7676 = vand.u32 %v7675, 4294901760
        %7677 = vmatpush1.msra.mxu0 %v7676
        %7678 = vmatprep.subr.mxu0 0.0
        %v7679 = vand.u32 %v5430, 4294901760
        %v7680 = vsub.f32 %v5430, %v7679
        %v7681 = vand.u32 %v7680, 4294901760
        %7682 = vmatpush1.msra.mxu0 %v7681
        %7683 = vmatprep.subr.mxu0 0.0
        %v7684 = vand.u32 %v5431, 4294901760
        %v7685 = vsub.f32 %v5431, %v7684
        %v7686 = vand.u32 %v7685, 4294901760
        %7687 = vmatpush1.msra.mxu0 %v7686
        %7688 = vmatprep.subr.mxu0 0.0
        %v7689 = vand.u32 %v5432, 4294901760
        %v7690 = vsub.f32 %v5432, %v7689
        %v7691 = vand.u32 %v7690, 4294901760
        %7692 = vmatpush1.msra.mxu0 %v7691
        %7693 = vmatprep.subr.mxu0 0.0
        %v7694 = vand.u32 %v5433, 4294901760
        %v7695 = vsub.f32 %v5433, %v7694
        %v7696 = vand.u32 %v7695, 4294901760
        %7697 = vmatpush1.msra.mxu0 %v7696
        %7698 = vmatprep.subr.mxu0 0.0
        %v7699 = vand.u32 %v5434, 4294901760
        %v7700 = vsub.f32 %v5434, %v7699
        %v7701 = vand.u32 %v7700, 4294901760
        %7702 = vmatpush1.msra.mxu0 %v7701
        %7703 = vmatprep.subr.mxu0 0.0
        %v7704 = vand.u32 %v5435, 4294901760
        %v7705 = vsub.f32 %v5435, %v7704
        %v7706 = vand.u32 %v7705, 4294901760
        %7707 = vmatpush1.msra.mxu0 %v7706
        %7708 = vmatprep.subr.mxu0 0.0
        %v7709 = vand.u32 %v5436, 4294901760
        %v7710 = vsub.f32 %v5436, %v7709
        %v7711 = vand.u32 %v7710, 4294901760
        %7712 = vmatpush1.msra.mxu0 %v7711
        %7713 = vmatprep.subr.mxu0 0.0
        %v7714 = vand.u32 %v5437, 4294901760
        %v7715 = vsub.f32 %v5437, %v7714
        %v7716 = vand.u32 %v7715, 4294901760
        %7717 = vmatpush1.msra.mxu0 %v7716
        %7718 = vmatprep.subr.mxu0 0.0
        %v7719 = vand.u32 %v5438, 4294901760
        %v7720 = vsub.f32 %v5438, %v7719
        %v7721 = vand.u32 %v7720, 4294901760
        %7722 = vmatpush1.msra.mxu0 %v7721
        %7723 = vmatprep.subr.mxu0 0.0
        %7724 = vmatpush1.msra.mxu0 0.0
        %7725 = vmatprep.subr.mxu0 0.0
        %7726 = vmatpush1.msra.mxu0 0.0
        %7727 = vmatprep.subr.mxu0 0.0
        %7728 = vmatpush1.msra.mxu0 0.0
        %7729 = vmatprep.subr.mxu0 0.0
        %7730 = vmatpush1.msra.mxu0 0.0
        %7731 = vmatprep.subr.mxu0 0.0
        %7732 = vmatpush1.msra.mxu0 0.0
        %7733 = vmatprep.subr.mxu0 0.0
        %7734 = vmatpush1.msra.mxu0 0.0
        %7735 = vmatprep.subr.mxu0 0.0
        %7736 = vmatpush1.msra.mxu0 0.0
        %7737 = vmatprep.subr.mxu0 0.0
        %7738 = vmatpush1.msra.mxu0 0.0
        %7739 = vmatprep.subr.mxu0 0.0
        %7740 = vmatpush1.msra.mxu0 0.0
        %7741 = vmatprep.subr.mxu0 0.0
        %7742 = vmatpush1.msra.mxu0 0.0
        %7743 = vmatprep.subr.mxu0 0.0
        %7744 = vmatpush1.msra.mxu0 0.0
        %7745 = vmatprep.subr.mxu0 0.0
        %7746 = vmatpush1.msra.mxu0 0.0
        %7747 = vmatprep.subr.mxu0 0.0
        %7748 = vmatpush1.msra.mxu0 0.0
        %7749 = vmatprep.subr.mxu0 0.0
        %7750 = vmatpush1.msra.mxu0 0.0
        %7751 = vmatprep.subr.mxu0 0.0
        %7752 = vmatpush1.msra.mxu0 0.0
        %7753 = vmatprep.subr.mxu0 0.0
        %7754 = vmatpush1.msra.mxu0 0.0
        %7755 = vmatprep.mubr.f32.mxu0 0.0
        %v7756 = vand.u32 %v5407, 4294901760
        %7757 = vmatmul.mubr.f32.gmra.mrb[0].mxu0 %v7756
        %v7758 = vpop.f32.mrb[0].mxu0
        %v7759 = vadd.f32 %v7520, %v7758
        %v7760 = vpop.f32.mrb[0].mxu0
        %7761 = vmatprep.mubr.f32.mxu0 0.0
        %v7762 = vand.u32 %v5408, 4294901760
        %7763 = vmatmul.mubr.f32.gmra.mrb[0].mxu0 %v7762
        %v7764 = vpop.f32.mrb[0].mxu0
        %v7765 = vadd.f32 %v7528, %v7764
        %v7766 = vpop.f32.mrb[0].mxu0
        %7767 = vmatprep.mubr.f32.mxu0 0.0
        %v7768 = vand.u32 %v5409, 4294901760
        %7769 = vmatmul.mubr.f32.gmra.mrb[0].mxu0 %v7768
        %v7770 = vpop.f32.mrb[0].mxu0
        %v7771 = vadd.f32 %v7536, %v7770
        %v7772 = vpop.f32.mrb[0].mxu0
        %7773 = vmatprep.mubr.f32.mxu0 0.0
        %v7774 = vand.u32 %v5410, 4294901760
        %7775 = vmatmul.mubr.f32.gmra.mrb[0].mxu0 %v7774
        %v7776 = vpop.f32.mrb[0].mxu0
        %v7777 = vadd.f32 %v7544, %v7776
        %v7778 = vpop.f32.mrb[0].mxu0
        %7779 = vmatprep.mubr.f32.mxu0 0.0
        %v7780 = vand.u32 %v5411, 4294901760
        %7781 = vmatmul.mubr.f32.gmra.mrb[0].mxu0 %v7780
        %v7782 = vpop.f32.mrb[0].mxu0
        %v7783 = vadd.f32 %v7552, %v7782
        %v7784 = vpop.f32.mrb[0].mxu0
        %7785 = vmatprep.mubr.f32.mxu0 0.0
        %v7786 = vand.u32 %v5412, 4294901760
        %7787 = vmatmul.mubr.f32.gmra.mrb[0].mxu0 %v7786
        %v7788 = vpop.f32.mrb[0].mxu0
        %v7789 = vadd.f32 %v7560, %v7788
        %v7790 = vpop.f32.mrb[0].mxu0
        %7791 = vmatprep.mubr.f32.mxu0 0.0
        %v7792 = vand.u32 %v5413, 4294901760
        %7793 = vmatmul.mubr.f32.gmra.mrb[0].mxu0 %v7792
        %v7794 = vpop.f32.mrb[0].mxu0
        %v7795 = vadd.f32 %v7568, %v7794
        %v7796 = vpop.f32.mrb[0].mxu0
        %7797 = vmatprep.mubr.f32.mxu0 0.0
        %v7798 = vand.u32 %v5414, 4294901760
        %7799 = vmatmul.mubr.f32.gmra.mrb[0].mxu0 %v7798
        %v7800 = vpop.f32.mrb[0].mxu0
        %v7801 = vadd.f32 %v7576, %v7800
        %v7802 = vpop.f32.mrb[0].mxu0
        %7803 = vmatprep.mubr.f32.mxu0 0.0
        %v7804 = vand.u32 %v5415, 4294901760
        %7805 = vmatmul.mubr.f32.gmra.mrb[0].mxu0 %v7804
        %v7806 = vpop.f32.mrb[0].mxu0
        %v7807 = vadd.f32 %v7584, %v7806
        %v7808 = vpop.f32.mrb[0].mxu0
        %7809 = vmatprep.mubr.f32.mxu0 0.0
        %v7810 = vand.u32 %v5416, 4294901760
        %7811 = vmatmul.mubr.f32.gmra.mrb[0].mxu0 %v7810
        %v7812 = vpop.f32.mrb[0].mxu0
        %v7813 = vadd.f32 %v7592, %v7812
        %v7814 = vpop.f32.mrb[0].mxu0
        %7815 = vmatprep.mubr.f32.mxu0 0.0
        %v7816 = vand.u32 %v5417, 4294901760
        %7817 = vmatmul.mubr.f32.gmra.mrb[0].mxu0 %v7816
        %v7818 = vpop.f32.mrb[0].mxu0
        %v7819 = vadd.f32 %v7600, %v7818
        %v7820 = vpop.f32.mrb[0].mxu0
        %7821 = vmatprep.mubr.f32.mxu0 0.0
        %v7822 = vand.u32 %v5418, 4294901760
        %7823 = vmatmul.mubr.f32.gmra.mrb[0].mxu0 %v7822
        %v7824 = vpop.f32.mrb[0].mxu0
        %v7825 = vadd.f32 %v7608, %v7824
        %v7826 = vpop.f32.mrb[0].mxu0
        %7827 = vmatprep.mubr.f32.mxu0 0.0
        %v7828 = vand.u32 %v5419, 4294901760
        %7829 = vmatmul.mubr.f32.gmra.mrb[0].mxu0 %v7828
        %v7830 = vpop.f32.mrb[0].mxu0
        %v7831 = vadd.f32 %v7616, %v7830
        %v7832 = vpop.f32.mrb[0].mxu0
        %7833 = vmatprep.mubr.f32.mxu0 0.0
        %v7834 = vand.u32 %v5420, 4294901760
        %7835 = vmatmul.mubr.f32.gmra.mrb[0].mxu0 %v7834
        %v7836 = vpop.f32.mrb[0].mxu0
        %v7837 = vadd.f32 %v7624, %v7836
        %v7838 = vpop.f32.mrb[0].mxu0
        %7839 = vmatprep.mubr.f32.mxu0 0.0
        %v7840 = vand.u32 %v5421, 4294901760
        %7841 = vmatmul.mubr.f32.gmra.mrb[0].mxu0 %v7840
        %v7842 = vpop.f32.mrb[0].mxu0
        %v7843 = vadd.f32 %v7632, %v7842
        %v7844 = vpop.f32.mrb[0].mxu0
        %7845 = vmatprep.mubr.f32.mxu0 0.0
        %v7846 = vand.u32 %v5422, 4294901760
        %7847 = vmatmul.mubr.f32.gmra.mrb[0].mxu0 %v7846
        %v7848 = vpop.f32.mrb[0].mxu0
        %v7849 = vadd.f32 %v7640, %v7848
        %v7850 = vpop.f32.mrb[0].mxu0
        %7851 = vdwg.mxu0
        %7852 = vmatprep.subr.mxu0 0.0
        %v7853 = vand.u32 %v5423, 4294901760
        %7854 = vmatpush1.msra.mxu0 %v7853
        %7855 = vmatprep.subr.mxu0 0.0
        %v7856 = vand.u32 %v5424, 4294901760
        %7857 = vmatpush1.msra.mxu0 %v7856
        %7858 = vmatprep.subr.mxu0 0.0
        %v7859 = vand.u32 %v5425, 4294901760
        %7860 = vmatpush1.msra.mxu0 %v7859
        %7861 = vmatprep.subr.mxu0 0.0
        %v7862 = vand.u32 %v5426, 4294901760
        %7863 = vmatpush1.msra.mxu0 %v7862
        %7864 = vmatprep.subr.mxu0 0.0
        %v7865 = vand.u32 %v5427, 4294901760
        %7866 = vmatpush1.msra.mxu0 %v7865
        %7867 = vmatprep.subr.mxu0 0.0
        %v7868 = vand.u32 %v5428, 4294901760
        %7869 = vmatpush1.msra.mxu0 %v7868
        %7870 = vmatprep.subr.mxu0 0.0
        %v7871 = vand.u32 %v5429, 4294901760
        %7872 = vmatpush1.msra.mxu0 %v7871
        %7873 = vmatprep.subr.mxu0 0.0
        %v7874 = vand.u32 %v5430, 4294901760
        %7875 = vmatpush1.msra.mxu0 %v7874
        %7876 = vmatprep.subr.mxu0 0.0
        %v7877 = vand.u32 %v5431, 4294901760
        %7878 = vmatpush1.msra.mxu0 %v7877
        %7879 = vmatprep.subr.mxu0 0.0
        %v7880 = vand.u32 %v5432, 4294901760
        %7881 = vmatpush1.msra.mxu0 %v7880
        %7882 = vmatprep.subr.mxu0 0.0
        %v7883 = vand.u32 %v5433, 4294901760
        %7884 = vmatpush1.msra.mxu0 %v7883
        %7885 = vmatprep.subr.mxu0 0.0
        %v7886 = vand.u32 %v5434, 4294901760
        %7887 = vmatpush1.msra.mxu0 %v7886
        %7888 = vmatprep.subr.mxu0 0.0
        %v7889 = vand.u32 %v5435, 4294901760
        %7890 = vmatpush1.msra.mxu0 %v7889
        %7891 = vmatprep.subr.mxu0 0.0
        %v7892 = vand.u32 %v5436, 4294901760
        %7893 = vmatpush1.msra.mxu0 %v7892
        %7894 = vmatprep.subr.mxu0 0.0
        %v7895 = vand.u32 %v5437, 4294901760
        %7896 = vmatpush1.msra.mxu0 %v7895
        %7897 = vmatprep.subr.mxu0 0.0
        %v7898 = vand.u32 %v5438, 4294901760
        %7899 = vmatpush1.msra.mxu0 %v7898
        %7900 = vmatprep.subr.mxu0 0.0
        %7901 = vmatpush1.msra.mxu0 0.0
        %7902 = vmatprep.subr.mxu0 0.0
        %7903 = vmatpush1.msra.mxu0 0.0
        %7904 = vmatprep.subr.mxu0 0.0
        %7905 = vmatpush1.msra.mxu0 0.0
        %7906 = vmatprep.subr.mxu0 0.0
        %7907 = vmatpush1.msra.mxu0 0.0
        %7908 = vmatprep.subr.mxu0 0.0
        %7909 = vmatpush1.msra.mxu0 0.0
        %7910 = vmatprep.subr.mxu0 0.0
        %7911 = vmatpush1.msra.mxu0 0.0
        %7912 = vmatprep.subr.mxu0 0.0
        %7913 = vmatpush1.msra.mxu0 0.0
        %7914 = vmatprep.subr.mxu0 0.0
        %7915 = vmatpush1.msra.mxu0 0.0
        %7916 = vmatprep.subr.mxu0 0.0
        %7917 = vmatpush1.msra.mxu0 0.0
        %7918 = vmatprep.subr.mxu0 0.0
        %7919 = vmatpush1.msra.mxu0 0.0
        %7920 = vmatprep.subr.mxu0 0.0
        %7921 = vmatpush1.msra.mxu0 0.0
        %7922 = vmatprep.subr.mxu0 0.0
        %7923 = vmatpush1.msra.mxu0 0.0
        %7924 = vmatprep.subr.mxu0 0.0
        %7925 = vmatpush1.msra.mxu0 0.0
        %7926 = vmatprep.subr.mxu0 0.0
        %7927 = vmatpush1.msra.mxu0 0.0
        %7928 = vmatprep.subr.mxu0 0.0
        %7929 = vmatpush1.msra.mxu0 0.0
        %7930 = vmatprep.subr.mxu0 0.0
        %7931 = vmatpush1.msra.mxu0 0.0
        %7932 = vmatprep.mubr.f32.mxu0 0.0
        %v7933 = vand.u32 %v5407, 4294901760
        %7934 = vmatmul.mubr.f32.gmra.mrb[0].mxu0 %v7933
        %v7935 = vpop.f32.mrb[0].mxu0
        %v7936 = vadd.f32 %v7759, %v7935
        %v7937 = vpop.f32.mrb[0].mxu0
        %7938 = vmatprep.mubr.f32.mxu0 0.0
        %v7939 = vand.u32 %v5408, 4294901760
        %7940 = vmatmul.mubr.f32.gmra.mrb[0].mxu0 %v7939
        %v7941 = vpop.f32.mrb[0].mxu0
        %v7942 = vadd.f32 %v7765, %v7941
        %v7943 = vpop.f32.mrb[0].mxu0
        %7944 = vmatprep.mubr.f32.mxu0 0.0
        %v7945 = vand.u32 %v5409, 4294901760
        %7946 = vmatmul.mubr.f32.gmra.mrb[0].mxu0 %v7945
        %v7947 = vpop.f32.mrb[0].mxu0
        %v7948 = vadd.f32 %v7771, %v7947
        %v7949 = vpop.f32.mrb[0].mxu0
        %7950 = vmatprep.mubr.f32.mxu0 0.0
        %v7951 = vand.u32 %v5410, 4294901760
        %7952 = vmatmul.mubr.f32.gmra.mrb[0].mxu0 %v7951
        %v7953 = vpop.f32.mrb[0].mxu0
        %v7954 = vadd.f32 %v7777, %v7953
        %v7955 = vpop.f32.mrb[0].mxu0
        %7956 = vmatprep.mubr.f32.mxu0 0.0
        %v7957 = vand.u32 %v5411, 4294901760
        %7958 = vmatmul.mubr.f32.gmra.mrb[0].mxu0 %v7957
        %v7959 = vpop.f32.mrb[0].mxu0
        %v7960 = vadd.f32 %v7783, %v7959
        %v7961 = vpop.f32.mrb[0].mxu0
        %7962 = vmatprep.mubr.f32.mxu0 0.0
        %v7963 = vand.u32 %v5412, 4294901760
        %7964 = vmatmul.mubr.f32.gmra.mrb[0].mxu0 %v7963
        %v7965 = vpop.f32.mrb[0].mxu0
        %v7966 = vadd.f32 %v7789, %v7965
        %v7967 = vpop.f32.mrb[0].mxu0
        %7968 = vmatprep.mubr.f32.mxu0 0.0
        %v7969 = vand.u32 %v5413, 4294901760
        %7970 = vmatmul.mubr.f32.gmra.mrb[0].mxu0 %v7969
        %v7971 = vpop.f32.mrb[0].mxu0
        %v7972 = vadd.f32 %v7795, %v7971
        %v7973 = vpop.f32.mrb[0].mxu0
        %7974 = vmatprep.mubr.f32.mxu0 0.0
        %v7975 = vand.u32 %v5414, 4294901760
        %7976 = vmatmul.mubr.f32.gmra.mrb[0].mxu0 %v7975
        %v7977 = vpop.f32.mrb[0].mxu0
        %v7978 = vadd.f32 %v7801, %v7977
        %v7979 = vpop.f32.mrb[0].mxu0
        %7980 = vmatprep.mubr.f32.mxu0 0.0
        %v7981 = vand.u32 %v5415, 4294901760
        %7982 = vmatmul.mubr.f32.gmra.mrb[0].mxu0 %v7981
        %v7983 = vpop.f32.mrb[0].mxu0
        %v7984 = vadd.f32 %v7807, %v7983
        %v7985 = vpop.f32.mrb[0].mxu0
        %7986 = vmatprep.mubr.f32.mxu0 0.0
        %v7987 = vand.u32 %v5416, 4294901760
        %7988 = vmatmul.mubr.f32.gmra.mrb[0].mxu0 %v7987
        %v7989 = vpop.f32.mrb[0].mxu0
        %v7990 = vadd.f32 %v7813, %v7989
        %v7991 = vpop.f32.mrb[0].mxu0
        %7992 = vmatprep.mubr.f32.mxu0 0.0
        %v7993 = vand.u32 %v5417, 4294901760
        %7994 = vmatmul.mubr.f32.gmra.mrb[0].mxu0 %v7993
        %v7995 = vpop.f32.mrb[0].mxu0
        %v7996 = vadd.f32 %v7819, %v7995
        %v7997 = vpop.f32.mrb[0].mxu0
        %7998 = vmatprep.mubr.f32.mxu0 0.0
        %v7999 = vand.u32 %v5418, 4294901760
        %8000 = vmatmul.mubr.f32.gmra.mrb[0].mxu0 %v7999
        %v8001 = vpop.f32.mrb[0].mxu0
        %v8002 = vadd.f32 %v7825, %v8001
        %v8003 = vpop.f32.mrb[0].mxu0
        %8004 = vmatprep.mubr.f32.mxu0 0.0
        %v8005 = vand.u32 %v5419, 4294901760
        %8006 = vmatmul.mubr.f32.gmra.mrb[0].mxu0 %v8005
        %v8007 = vpop.f32.mrb[0].mxu0
        %v8008 = vadd.f32 %v7831, %v8007
        %v8009 = vpop.f32.mrb[0].mxu0
        %8010 = vmatprep.mubr.f32.mxu0 0.0
        %v8011 = vand.u32 %v5420, 4294901760
        %8012 = vmatmul.mubr.f32.gmra.mrb[0].mxu0 %v8011
        %v8013 = vpop.f32.mrb[0].mxu0
        %v8014 = vadd.f32 %v7837, %v8013
        %v8015 = vpop.f32.mrb[0].mxu0
        %8016 = vmatprep.mubr.f32.mxu0 0.0
        %v8017 = vand.u32 %v5421, 4294901760
        %8018 = vmatmul.mubr.f32.gmra.mrb[0].mxu0 %v8017
        %v8019 = vpop.f32.mrb[0].mxu0
        %v8020 = vadd.f32 %v7843, %v8019
        %v8021 = vpop.f32.mrb[0].mxu0
        %8022 = vmatprep.mubr.f32.mxu0 0.0
        %v8023 = vand.u32 %v5422, 4294901760
        %8024 = vmatmul.mubr.f32.gmra.mrb[0].mxu0 %v8023
        %v8025 = vpop.f32.mrb[0].mxu0
        %v8026 = vadd.f32 %v7849, %v8025
        %v8027 = vpop.f32.mrb[0].mxu0
        %8028 = vdwg.mxu0
        %v8029 = vxor.u32 %v7936, 2147483648
        %v8030 = vxor.u32 %v7942, 2147483648
        %v8031 = vxor.u32 %v7948, 2147483648
        %v8032 = vxor.u32 %v7954, 2147483648
        %v8033 = vxor.u32 %v7960, 2147483648
        %v8034 = vxor.u32 %v7966, 2147483648
        %v8035 = vxor.u32 %v7972, 2147483648
        %v8036 = vxor.u32 %v7978, 2147483648
        %v8037 = vxor.u32 %v7984, 2147483648
        %v8038 = vxor.u32 %v7990, 2147483648
        %v8039 = vxor.u32 %v7996, 2147483648
        %v8040 = vxor.u32 %v8002, 2147483648
        %v8041 = vxor.u32 %v8008, 2147483648
        %v8042 = vxor.u32 %v8014, 2147483648
        %v8043 = vxor.u32 %v8020, 2147483648
        %v8044 = vxor.u32 %v8026, 2147483648
        %v8045 = vmul.f32 %v8029, 1.442695
        %v8046 = vpow.pop %v8045
        %v8047 = vmul.f32 %v8030, 1.442695
        %v8048 = vpow.pop %v8047
        %v8049 = vmul.f32 %v8031, 1.442695
        %v8050 = vpow.pop %v8049
        %v8051 = vmul.f32 %v8032, 1.442695
        %v8052 = vpow.pop %v8051
        %v8053 = vmul.f32 %v8033, 1.442695
        %v8054 = vpow.pop %v8053
        %v8055 = vmul.f32 %v8034, 1.442695
        %v8056 = vpow.pop %v8055
        %v8057 = vmul.f32 %v8035, 1.442695
        %v8058 = vpow.pop %v8057
        %v8059 = vmul.f32 %v8036, 1.442695
        %v8060 = vpow.pop %v8059
        %v8061 = vmul.f32 %v8037, 1.442695
        %v8062 = vpow.pop %v8061
        %v8063 = vmul.f32 %v8038, 1.442695
        %v8064 = vpow.pop %v8063
        %v8065 = vmul.f32 %v8039, 1.442695
        %v8066 = vpow.pop %v8065
        %v8067 = vmul.f32 %v8040, 1.442695
        %v8068 = vpow.pop %v8067
        %v8069 = vmul.f32 %v8041, 1.442695
        %v8070 = vpow.pop %v8069
        %v8071 = vmul.f32 %v8042, 1.442695
        %v8072 = vpow.pop %v8071
        %v8073 = vmul.f32 %v8043, 1.442695
        %v8074 = vpow.pop %v8073
        %v8075 = vmul.f32 %v8044, 1.442695
        %v8076 = vpow.pop %v8075
        %v8077 = vadd.f32 %v8046, 1.0
        %v8078 = vadd.f32 %v8048, 1.0
        %v8079 = vadd.f32 %v8050, 1.0
        %v8080 = vadd.f32 %v8052, 1.0
        %v8081 = vadd.f32 %v8054, 1.0
        %v8082 = vadd.f32 %v8056, 1.0
        %v8083 = vadd.f32 %v8058, 1.0
        %v8084 = vadd.f32 %v8060, 1.0
        %v8085 = vadd.f32 %v8062, 1.0
        %v8086 = vadd.f32 %v8064, 1.0
        %v8087 = vadd.f32 %v8066, 1.0
        %v8088 = vadd.f32 %v8068, 1.0
        %v8089 = vadd.f32 %v8070, 1.0
        %v8090 = vadd.f32 %v8072, 1.0
        %v8091 = vadd.f32 %v8074, 1.0
        %v8092 = vadd.f32 %v8076, 1.0
        %v8093 = vrcp.pop %v8077
        %v8094 = vmul.f32 1.0, %v8093
        %v8095 = vrcp.pop %v8078
        %v8096 = vmul.f32 1.0, %v8095
        %v8097 = vrcp.pop %v8079
        %v8098 = vmul.f32 1.0, %v8097
        %v8099 = vrcp.pop %v8080
        %v8100 = vmul.f32 1.0, %v8099
        %v8101 = vrcp.pop %v8081
        %v8102 = vmul.f32 1.0, %v8101
        %v8103 = vrcp.pop %v8082
        %v8104 = vmul.f32 1.0, %v8103
        %v8105 = vrcp.pop %v8083
        %v8106 = vmul.f32 1.0, %v8105
        %v8107 = vrcp.pop %v8084
        %v8108 = vmul.f32 1.0, %v8107
        %v8109 = vrcp.pop %v8085
        %v8110 = vmul.f32 1.0, %v8109
        %v8111 = vrcp.pop %v8086
        %v8112 = vmul.f32 1.0, %v8111
        %v8113 = vrcp.pop %v8087
        %v8114 = vmul.f32 1.0, %v8113
        %v8115 = vrcp.pop %v8088
        %v8116 = vmul.f32 1.0, %v8115
        %v8117 = vrcp.pop %v8089
        %v8118 = vmul.f32 1.0, %v8117
        %v8119 = vrcp.pop %v8090
        %v8120 = vmul.f32 1.0, %v8119
        %v8121 = vrcp.pop %v8091
        %v8122 = vmul.f32 1.0, %v8121
        %v8123 = vrcp.pop %v8092
        %v8124 = vmul.f32 1.0, %v8123
        %v8125 = vmul.f32 %v5314, %v8094
        %v8126 = vmul.f32 %v5320, %v8096
        %v8127 = vmul.f32 %v5326, %v8098
        %v8128 = vmul.f32 %v5332, %v8100
        %v8129 = vmul.f32 %v5338, %v8102
        %v8130 = vmul.f32 %v5344, %v8104
        %v8131 = vmul.f32 %v5350, %v8106
        %v8132 = vmul.f32 %v5356, %v8108
        %v8133 = vmul.f32 %v5362, %v8110
        %v8134 = vmul.f32 %v5368, %v8112
        %v8135 = vmul.f32 %v5374, %v8114
        %v8136 = vmul.f32 %v5380, %v8116
        %v8137 = vmul.f32 %v5386, %v8118
        %v8138 = vmul.f32 %v5392, %v8120
        %v8139 = vmul.f32 %v5398, %v8122
        %v8140 = vmul.f32 %v5404, %v8124
        %8141 = vst [vmem:[%s429] sm:$0xff] %v8125
        %8142 = vst [vmem:[%s429 + $0x8] sm:$0xff] %v8126
        %8143 = vst [vmem:[%s429 + $0x10] sm:$0xff] %v8127
        %8144 = vst [vmem:[%s429 + $0x18] sm:$0xff] %v8128
        %8145 = vst [vmem:[%s429 + $0x20] sm:$0xff] %v8129
        %8146 = vst [vmem:[%s429 + $0x28] sm:$0xff] %v8130
        %8147 = vst [vmem:[%s429 + $0x30] sm:$0xff] %v8131
        %8148 = vst [vmem:[%s429 + $0x38] sm:$0xff] %v8132
        %8149 = vst [vmem:[%s429 + $0x40] sm:$0xff] %v8133
        %8150 = vst [vmem:[%s429 + $0x48] sm:$0xff] %v8134
        %8151 = vst [vmem:[%s429 + $0x50] sm:$0xff] %v8135
        %8152 = vst [vmem:[%s429 + $0x58] sm:$0xff] %v8136
        %8153 = vst [vmem:[%s429 + $0x60] sm:$0xff] %v8137
        %8154 = vst [vmem:[%s429 + $0x68] sm:$0xff] %v8138
        %8155 = vst [vmem:[%s429 + $0x70] sm:$0xff] %v8139
        %8156 = vst [vmem:[%s429 + $0x78] sm:$0xff] %v8140
        %s8157 = sand.u32 %s259, 1
        %s8158 = scalar_lea.sflag [#allocation4], %s8157
        %s8159 = sand.u32 %s259, 1
        %s8160 = smul.addr %s8159, 128
        %s8161 = scalar_lea.vmem [#allocation8], %s8160
        // Predicated region
        $region73: #{tpu_custom_call.1} parent=59 // pred_check
          %p8162 = pneg %p269
        $region74: #{tpu_custom_call.1} parent=59 // pred_check_branch
          %8164 = sbr.rel (%p8162) target = $region76
        $region75: #{tpu_custom_call.1} parent=59 // pred_region
          %s8165 = smul.u32 16, %s26
          %s8167 = ssub.s32 2048, 2048
          %8168 = vsyncadd %s8158, %s8167
          %s8169 = smul.addr %s8165, 128
          %s8170 = scalar_lea.hbm %s10, %s8169
          %s8171 = sshll.u32 %s8161, 4
          %s8172 = int_to_ptr.vmem [resolvable:$true] %s8171
          %8177 = dma.vmem_to_hbm [thread:$0]  %s8172, 2048, %s8170, %s8158, 128, 128, 8
        $region76: #{tpu_custom_call.1} parent=59 // pred_fallthru
          _
      $region60: #{tpu_custom_call.1} parent=5 // pred_fallthru
        _
      %p8178 = scmp.le.s32.totalorder 2, %s21
      // Predicated region
      $region77: #{tpu_custom_call.1} parent=5 // pred_check
        %p8179 = pneg %p8178
      $region78: #{tpu_custom_call.1} parent=5 // pred_check_branch
        %8181 = sbr.rel (%p8179) target = $region80
      $region79: #{tpu_custom_call.1} parent=5 // pred_region
        %s8182 = ssub.s32 %s21, 2
        // Predicated region
        $region81: #{tpu_custom_call.1} parent=79 // pred_check
          %p8183 = pneg %p275
        $region82: #{tpu_custom_call.1} parent=79 // pred_check_branch
          %8185 = sbr.rel (%p8183) target = $region84
        $region83: #{tpu_custom_call.1} parent=79 // pred_region
          %s8186 = sand.u32 %s260, 1
          %s8187 = scalar_lea.sflag [#allocation4], %s8186
          %s8188 = sand.u32 %s260, 1
          %s8189 = smul.addr %s8188, 128
          %s8190 = scalar_lea.vmem [#allocation8], %s8189
          %8191 = dma.done %s8187, 2048
        $region84: #{tpu_custom_call.1} parent=79 // pred_fallthru
          _
      $region80: #{tpu_custom_call.1} parent=5 // pred_fallthru
        _
    $region6: #{tpu_custom_call.1} parent=1 // loop_footer
      %s25 = sadd.s32 1, %s21
    $region7: #{tpu_custom_call.1} parent=1 // loop_footer_branch
      %20 = sbr.rel target = $region3
    $region8: #{tpu_custom_call.1} parent=1 // loop_exit
      _
    %8192 = vsyncpa [#allocation3], 1
    %s8193 = scalar_lea.sflag [#allocation3], 1
    %8194 = vsyncpa %s8193, 1
    %8195 = vsyncpa [#allocation6], 1
    %8196 = vsyncpa [#allocation4], 1
    %s8197 = scalar_lea.sflag [#allocation4], 1
    %8198 = vsyncpa %s8197, 1

</llo_original>
